<compile_context>
chip_gen: v5e
topology: v5e:2x2
jax: 0.10.0
libtpu: 0.0.40
codegen_flags: <defaults>
</compile_context>

<pallas_src>
import math

import jax
import jax.numpy as jnp
from jax import lax
from jax.experimental import pallas as pl
from jax.experimental.pallas import tpu as pltpu

_VMEM_LIMIT_BYTES = 32 * 1024 * 1024   # explicit scoped-VMEM budget, safe on v5e/v6e/v7x


# ================= Pallas kernel: fused conv (+ bias + BN stats) =================

def _merge_minor_lanes(a, rows, groups, width):
    """(rows*groups, width) -> (rows, groups*width), row-major.

    Implemented with split-of-leading-dim reshape + static slices + lane-axis concat
    (robust Mosaic ops) instead of a generic minor-dim reshape."""
    a3 = a.reshape(rows, groups, width)
    return jnp.concatenate([a3[:, g, :] for g in range(groups)], axis=-1)


def _make_conv_stats_kernel(k, Ho, Wo, C, O):
    def kernel(x_ref, w_ref, b_ref, y_ref, s_ref):
        # Tap-packed im2col: ONE (Ho*Wo, k*k*C) bf16 tile, ONE MXU dot.
        cols = []
        for di in range(k):
            for dj in range(k):
                a = x_ref[0, di:di + Ho, dj:dj + Wo, :]          # (Ho, Wo, C) bf16
                cols.append(a.reshape(Ho * Wo, C))
        patches = jnp.concatenate(cols, axis=1)                   # (Ho*Wo, k*k*C)
        acc = jnp.dot(patches, w_ref[...],
                      preferred_element_type=jnp.float32)         # (Ho*Wo, O) f32
        acc = acc + b_ref[...]                                     # fused conv bias

        # Lane-dense store: (Ho, Wo*O) with Wo*O a multiple of 128 -> unmasked vst.
        y_ref[0] = _merge_minor_lanes(acc, Ho, Wo, O).astype(y_ref.dtype)

        # Fused BatchNorm statistics (per-channel sum / sum-of-squares) accumulated
        # across the batch grid axis into a resident (2, O) output block.
        stats = jnp.concatenate(
            [jnp.sum(acc, axis=0, keepdims=True),
             jnp.sum(acc * acc, axis=0, keepdims=True)], axis=0)   # (2, O)

        @pl.when(pl.program_id(0) == 0)
        def _():
            s_ref[...] = jnp.zeros_like(s_ref)

        s_ref[...] += stats

    return kernel


def conv_with_stats(x_pad, w2d, bias, k, O):
    """x_pad: (B, Hp, Wp, C) float (pre-padded spatially, padding mode chosen by caller).
       w2d:   (k*k*C, O) bf16, rows ordered tap-major ((di*k+dj)*C + c).
       bias:  (1, O) f32.
       Returns: y2 (B, Ho, Wo*O) bf16 (row-major flatten of the NHWC output) and
                stats (2, O) f32 = [sum, sum_of_squares] over (B, Ho, Wo)."""
    B, Hp, Wp, C = x_pad.shape
    KC, O2 = w2d.shape
    assert KC == k * k * C and O2 == O
    Ho, Wo = Hp - k + 1, Wp - k + 1
    kernel = _make_conv_stats_kernel(k, Ho, Wo, C, O)
    y2, stats = pl.pallas_call(
        kernel,
        out_shape=(jax.ShapeDtypeStruct((B, Ho, Wo * O), jnp.bfloat16),
                   jax.ShapeDtypeStruct((2, O), jnp.float32)),
        grid=(B,),
        in_specs=[pl.BlockSpec((1, Hp, Wp, C), lambda b: (b, 0, 0, 0)),
                  pl.BlockSpec((KC, O), lambda b: (0, 0)),
                  pl.BlockSpec((1, O), lambda b: (0, 0))],
        out_specs=(pl.BlockSpec((1, Ho, Wo * O), lambda b: (b, 0, 0)),
                   pl.BlockSpec((2, O), lambda b: (0, 0))),
        compiler_params=pltpu.CompilerParams(
            # batch axis is a reduction axis for the resident stats block
            dimension_semantics=("arbitrary",),
            vmem_limit_bytes=_VMEM_LIMIT_BYTES),
    )(x_pad.astype(jnp.bfloat16), w2d, bias.astype(jnp.float32))
    return y2, stats


# ================= Pallas kernel: lane-dense affine (BN) + PReLU =================

def _affine_prelu_kernel(x_ref, s_ref, b_ref, a_ref, o_ref):
    t = x_ref[...].astype(jnp.float32) * s_ref[...] + b_ref[...]
    o_ref[...] = jnp.where(t >= 0.0, t, t * a_ref[...]).astype(o_ref.dtype)


def affine_prelu_2d(x2d, scale, shift, alpha, out_dtype=jnp.bfloat16):
    """Per-lane affine + PReLU on a (M, L) view (L multiple of 128 -> Pallas path)."""
    M, L = x2d.shape
    if not ((L % 128 == 0) and (M <= 1024 or M % 8 == 0)):
        t = x2d.astype(jnp.float32) * scale + shift               # tiny-tensor fallback
        return jnp.where(t >= 0.0, t, t * alpha).astype(out_dtype)
    tm = M if M <= 1024 else 1024
    return pl.pallas_call(
        _affine_prelu_kernel,
        out_shape=jax.ShapeDtypeStruct((M, L), out_dtype),
        grid=(pl.cdiv(M, tm),),
        in_specs=[pl.BlockSpec((tm, L), lambda i: (i, 0)),
                  pl.BlockSpec((1, L), lambda i: (0, 0)),
                  pl.BlockSpec((1, L), lambda i: (0, 0)),
                  pl.BlockSpec((1, L), lambda i: (0, 0))],
        out_specs=pl.BlockSpec((tm, L), lambda i: (i, 0)),
        compiler_params=pltpu.CompilerParams(
            dimension_semantics=("parallel",),                     # megacore on v7x
            vmem_limit_bytes=_VMEM_LIMIT_BYTES),
    )(x2d, scale.reshape(1, L).astype(jnp.float32),
      shift.reshape(1, L).astype(jnp.float32),
      alpha.reshape(1, L).astype(jnp.float32))


def bn_scale_shift_from_stats(stats, count, gamma, beta, phase_reps=1, eps=1e-5):
    """Training-mode BatchNorm scale/shift from fused (sum, sum-of-squares) stats."""
    s, ss = stats[0], stats[1]
    if phase_reps > 1:                      # fold sub-pixel phases (channel = phase*C + c)
        C = s.shape[0] // phase_reps
        s = s.reshape(phase_reps, C).sum(axis=0)
        ss = ss.reshape(phase_reps, C).sum(axis=0)
        count = count * phase_reps
    mean = s / count
    var = jnp.maximum(ss / count - mean * mean, 0.0)   # biased variance (PyTorch train mode)
    scale = gamma * lax.rsqrt(var + eps)
    shift = beta - mean * scale
    return scale, shift


# ===================== bicubic x2 upsample + Smooth (NHWC, XLA) ===================

_BICUBIC_EVEN = (-0.03515625, 0.26171875, 0.87890625, -0.10546875)
_BICUBIC_ODD = (-0.10546875, 0.87890625, 0.26171875, -0.03515625)


def _upx2_along(x, axis):
    n = x.shape[axis]
    pad = [(0, 0)] * x.ndim
    pad[axis] = (2, 2)
    xp = jnp.pad(x, pad, mode='edge')
    sl = lambda s: lax.slice_in_dim(xp, s, s + n, axis=axis)
    even = sum(w * sl(t) for t, w in enumerate(_BICUBIC_EVEN))
    odd = sum(w * sl(t + 1) for t, w in enumerate(_BICUBIC_ODD))
    out = jnp.stack([even, odd], axis=axis + 1)
    shape = list(x.shape)
    shape[axis] = 2 * n
    return out.reshape(shape)


def bicubic_x2_nhwc(x):
    """PyTorch bicubic (A=-0.75, align_corners=False) x2 upsample."""
    return _upx2_along(_upx2_along(x, 1), 2)


def _blur3_along(x, axis):
    n = x.shape[axis]
    pad = [(0, 0)] * x.ndim
    pad[axis] = (1, 1)
    xp = jnp.pad(x, pad, mode='edge')
    sl = lambda s: lax.slice_in_dim(xp, s, s + n, axis=axis)
    return 0.25 * sl(0) + 0.5 * sl(1) + 0.25 * sl(2)


def smooth_nhwc(x):
    """Smooth: depthwise [[1,2,1],[2,4,2],[1,2,1]]/16 blur as separable shifted adds."""
    return _blur3_along(_blur3_along(x, 1), 2)


# ============================= attention (plain XLA) ==============================

def adaptive_avg_pool_nhwc(x, out):
    B, H, W, C = x.shape
    rows = [(math.floor(i * H / out), math.ceil((i + 1) * H / out)) for i in range(out)]
    cols = [(math.floor(j * W / out), math.ceil((j + 1) * W / out)) for j in range(out)]
    res = []
    for (r0, r1) in rows:
        row = [x[:, r0:r1, c0:c1, :].mean(axis=(1, 2)) for (c0, c1) in cols]
        res.append(jnp.stack(row, axis=1))
    return jnp.stack(res, axis=1)                          # (B, out, out, C)


def _bn_prelu_ref(x, gamma, beta, alpha, axes, eps=1e-5):
    mean = x.mean(axis=axes, keepdims=True)
    var = x.var(axis=axes, keepdims=True)
    y = (x - mean) * lax.rsqrt(var + eps) * gamma + beta
    if alpha is None:
        return y
    return jnp.where(y >= 0, y, y * alpha)


def sk_attention_conv(p, fea_u):
    """fea_u: (B, H, W, C) = sum over branches.  Returns attention (B, M, C).
       Tiny 5x5 / C-wide stack -> plain XLA (Pallas per-call overhead dominates)."""
    z = adaptive_avg_pool_nhwc(fea_u.astype(jnp.float32), 5)
    for lyr in p['conv_main']:
        zp = jnp.pad(z, ((0, 0), (1, 1), (1, 1), (0, 0)), mode='edge')
        z = lax.conv_general_dilated(
            zp, lyr['w'], (1, 1), 'VALID',
            dimension_numbers=('NHWC', 'HWIO', 'NHWC')) + lyr['b']
        z = _bn_prelu_ref(z, lyr['gamma'], lyr['beta'], lyr['alpha'], axes=(0, 1, 2))
    fea_z = jnp.mean(z, axis=(1, 2))                       # gap_fc -> (B, C)
    for lyr in p['fc_main']:
        fea_z = fea_z @ lyr['w'] + lyr['b']
        fea_z = _bn_prelu_ref(fea_z, lyr['gamma'], lyr['beta'], lyr['alpha'], axes=(0,))
    vecs = []
    for sub in p['fc_sub']:
        v = fea_z @ sub['w1'] + sub['b1']
        v = _bn_prelu_ref(v, sub['g1'], sub['be1'], sub['a1'], axes=(0,))
        v = v @ sub['w2'] + sub['b2']
        v = _bn_prelu_ref(v, sub['g2'], sub['be2'], None, axes=(0,))   # BN only
        vecs.append(v)
    return jax.nn.softmax(jnp.stack(vecs, axis=1), axis=1)  # (B, M, C)


# ================================ module forwards =================================

def sk_conv(p, x):
    """SKConv with all m branches fused into one tap-packed conv call."""
    B, H, W, C = x.shape
    k, m, O = p['k'], p['m'], p['cout']
    MO = m * O
    pad = (k - 1) // 2
    xp = jnp.pad(x, ((0, 0), (pad, pad), (pad, pad), (0, 0)), mode='edge')
    y2, stats = conv_with_stats(xp, p['w'], p['b'], k, MO)          # (B,H,W*MO), (2,MO)
    scale, shift = bn_scale_shift_from_stats(stats, B * H * W, p['gamma'], p['beta'])
    f2d = affine_prelu_2d(y2.reshape(B * H, W * MO),
                          jnp.tile(scale, W), jnp.tile(shift, W),
                          jnp.tile(p['alpha'], W))
    y = f2d.reshape(B, H, W, MO).astype(jnp.float32)
    # No (B,m,H,W,O) transpose: reduce over the interleaved branch axis directly.
    fea_u = y.reshape(B, H, W, m, O).sum(axis=3)
    att = sk_attention_conv(p['attn'], fea_u)                        # (B, m, O)
    out = jnp.zeros((B, H, W, O), jnp.float32)
    for i in range(m):
        out = out + y[..., i * O:(i + 1) * O] * att[:, i, None, None, :]
    return out


def sk_convT(p, x):
    """SKConvT: sub-pixel ConvTranspose branch + smoothed bicubic branch + attention."""
    B, H, W, C = x.shape
    # ConvTranspose2d(k=4, s=2, p=1) == 4-phase 3x3 conv on the zero-padded input.
    xp = jnp.pad(x, ((0, 0), (1, 1), (1, 1), (0, 0)))
    y2, stats = conv_with_stats(xp, p['w'], p['b'], 3, 4 * C)        # (B,H,W*4C), (2,4C)
    scale, shift = bn_scale_shift_from_stats(stats, B * H * W, p['gamma'], p['beta'],
                                             phase_reps=4)
    sc4 = jnp.tile(scale, 4)
    sh4 = jnp.tile(shift, 4)
    al4 = jnp.tile(p['alpha'], 4)
    f2d = affine_prelu_2d(y2.reshape(B * H, W * 4 * C),
                          jnp.tile(sc4, W), jnp.tile(sh4, W), jnp.tile(al4, W))
    # Interleave the 4 sub-pixel phases -> (B, 2H, 2W, C); done after BN+PReLU so the
    # small transpose fuses into the weighted-sum consumer.
    f1 = (f2d.reshape(B, H, W, 2, 2, C).astype(jnp.float32)
              .transpose(0, 1, 3, 2, 4, 5).reshape(B, 2 * H, 2 * W, C))
    f2 = smooth_nhwc(bicubic_x2_nhwc(x))
    fea_u = f1 + f2
    att = sk_attention_conv(p['attn'], fea_u)                        # (B, 2, C)
    return f1 * att[:, 0, None, None, :] + f2 * att[:, 1, None, None, :]


def generator_block_forward(params, x_nchw):
    x = jnp.transpose(x_nchw, (0, 2, 3, 1)).astype(jnp.float32)     # NCHW -> NHWC
    x = sk_convT(params['upsample'], x)
    x = sk_conv(params['convs_1'], x)
    x = sk_conv(params['convs_2'], x)
    return jnp.transpose(x, (0, 3, 1, 2))                           # back to NCHW


# ============================== parameter preparation =============================

class ParamGen:
    def __init__(self, key):
        self.key = key

    def normal(self, shape):
        self.key, sub = jax.random.split(self.key)
        return jax.random.normal(sub, shape, dtype=jnp.float32)


def _make_bn_prelu(c):
    return (jnp.ones((c,), jnp.float32), jnp.zeros((c,), jnp.float32),
            jnp.full((c,), 0.25, jnp.float32))


def make_attention_params(pg, c, m):
    conv_main, fc_main, fc_sub = [], [], []
    for _ in range(3):
        w = pg.normal((c, c, 3, 3)) * (1.0 / math.sqrt(c * 9))       # EqualizedConv2d
        g, b_, a = _make_bn_prelu(c)
        conv_main.append({'w': jnp.transpose(w, (2, 3, 1, 0)),       # HWIO
                          'b': pg.normal((c,)), 'gamma': g, 'beta': b_, 'alpha': a})
    for _ in range(2):
        w = pg.normal((c, c)) * (1.0 / math.sqrt(c))                 # EqualizedLinear
        g, b_, a = _make_bn_prelu(c)
        fc_main.append({'w': w.T, 'b': pg.normal((c,)), 'gamma': g, 'beta': b_, 'alpha': a})
    for _ in range(m):
        w1 = pg.normal((c, c)) * (1.0 / math.sqrt(c))
        w2 = pg.normal((c, c)) * (1.0 / math.sqrt(c))
        g1, be1, a1 = _make_bn_prelu(c)
        g2, be2, _ = _make_bn_prelu(c)
        fc_sub.append({'w1': w1.T, 'b1': pg.normal((c,)), 'g1': g1, 'be1': be1, 'a1': a1,
                       'w2': w2.T, 'b2': pg.normal((c,)), 'g2': g2, 'be2': be2})
    return {'conv_main': conv_main, 'fc_main': fc_main, 'fc_sub': fc_sub}


def make_sk_conv_params(pg, cin, cout, m):
    """All m branches (kernel sizes 3,5,...) concatenated into one kmax x kmax conv
       (exact under replication padding).  Weight pre-reshaped to the tap-packed
       (kmax*kmax*cin, m*cout) layout used by the Pallas kernel."""
    kmax = 3 + 2 * (m - 1)
    ws, bs, gs, bes, als = [], [], [], [], []
    for i in range(m):
        k = 3 + 2 * i
        w = pg.normal((cout, cin, k, k)) * (1.0 / math.sqrt(cin * k * k))
        off = (kmax - k) // 2
        w_full = jnp.zeros((cout, cin, kmax, kmax), jnp.float32)
        w_full = w_full.at[:, :, off:off + k, off:off + k].set(w)
        ws.append(w_full)
        bs.append(pg.normal((cout,)))
        g, be, a = _make_bn_prelu(cout)
        gs.append(g); bes.append(be); als.append(a)
    w_cat = jnp.concatenate(ws, axis=0)                              # (m*cout, cin, k, k)
    w2d = jnp.transpose(w_cat, (2, 3, 1, 0)).reshape(kmax * kmax * cin, m * cout)
    return {'k': kmax, 'm': m, 'cout': cout,
            'w': w2d.astype(jnp.bfloat16),
            'b': jnp.concatenate(bs).reshape(1, m * cout),
            'gamma': jnp.concatenate(gs), 'beta': jnp.concatenate(bes),
            'alpha': jnp.concatenate(als),
            'attn': make_attention_params(pg, cout, m)}


def _convT_to_subpixel(w, b):
    """ConvTranspose2d(k=4,s=2,p=1) -> tap-packed 3x3 conv weights (9*Cin, 4*Cout)."""
    cin, cout = w.shape[0], w.shape[1]
    tap_src = {0: (3, 1, None), 1: (None, 2, 0)}           # phase -> kernel tap per 3x3 slot
    phases = []
    for py in (0, 1):
        for px in (0, 1):
            k3 = jnp.zeros((3, 3, cin, cout), jnp.float32)
            for a in range(3):
                ky = tap_src[py][a]
                if ky is None:
                    continue
                for c_ in range(3):
                    kx = tap_src[px][c_]
                    if kx is None:
                        continue
                    k3 = k3.at[a, c_].set(w[:, :, ky, kx])
            phases.append(k3)
    w_cat = jnp.concatenate(phases, axis=-1)                # (3,3,cin,4*cout), tap-major rows
    return w_cat.reshape(9 * cin, 4 * cout), jnp.tile(b, 4)


def make_sk_convT_params(pg, c):
    w = pg.normal((c, c, 4, 4))                             # PyTorch convT layout (Cin,Cout,k,k)
    b = pg.normal((c,))
    w2d, b_cat = _convT_to_subpixel(w, b)
    g, be, a = _make_bn_prelu(c)
    return {'w': w2d.astype(jnp.bfloat16), 'b': b_cat.reshape(1, 4 * c),
            'gamma': g, 'beta': be, 'alpha': a,
            'attn': make_attention_params(pg, c, 2)}


def make_generator_block_params(pg, cin, cout, m, image_size):
    assert image_size > 4  # SKAttention_conv path only (SKAttention_fc not needed here)
    return {'upsample': make_sk_convT_params(pg, cin),
            'convs_1': make_sk_conv_params(pg, cin, cin, m),
            'convs_2': make_sk_conv_params(pg, cin, cout, m)}


# ===================================== main ========================================

if __name__ == "__main__":
    key = jax.random.PRNGKey(0)
    pkey, xkey = jax.random.split(key)

    batch, in_planes, out_planes, m, spatial = 2, 8, 8, 2, 8
    params = make_generator_block_params(ParamGen(pkey), in_planes, out_planes, m,
                                         image_size=2 * spatial)
    x = jax.random.normal(xkey, (batch, in_planes, spatial, spatial), dtype=jnp.float32)

    # Close over params so static config (k, m, cout) stays Python ints.
    fwd = jax.jit(lambda inp: generator_block_forward(params, inp))
    y = jax.block_until_ready(fwd(x))

    assert y.shape == (batch, out_planes, 2 * spatial, 2 * spatial), y.shape
    assert bool(jnp.all(jnp.isfinite(y)))
    print("KERNEL_OK")
</pallas_src>

<mosaic_0001>
module attributes {stable_mosaic.version = 11 : i64} {
  func.func @kernel(%arg0: i32, %arg1: memref<1x10x10x8xbf16, #tpu.memory_space<vmem>>, %arg2: memref<72x32xbf16, #tpu.memory_space<vmem>>, %arg3: memref<1x32xf32, #tpu.memory_space<vmem>>, %arg4: memref<1x8x256xbf16, #tpu.memory_space<vmem>>, %arg5: memref<2x32xf32, #tpu.memory_space<vmem>>) attributes {dimension_semantics = [#tpu.dimension_semantics<arbitrary>], iteration_bounds = array<i64: 2>, scalar_prefetch = 0 : i64, scratch_operands = 0 : i64, tpu.core_type = #tpu.core_type<tc>, window_params = [{transform_indices = @transform_0, window_bounds = array<i64: 1, 10, 10, 8>}, {pipeline_mode = #tpu.pipeline_mode<synchronous>, transform_indices = @transform_1, window_bounds = array<i64: 72, 32>}, {pipeline_mode = #tpu.pipeline_mode<synchronous>, transform_indices = @transform_2, window_bounds = array<i64: 1, 32>}, {transform_indices = @transform_3, window_bounds = array<i64: 1, 8, 256>}, {pipeline_mode = #tpu.pipeline_mode<synchronous>, transform_indices = @transform_4, window_bounds = array<i64: 2, 32>}]} {
    %c0 = arith.constant 0 : index
    %c0_0 = arith.constant 0 : index
    %c0_1 = arith.constant 0 : index
    %c0_2 = arith.constant 0 : index
    %0 = vector.load %arg1[%c0, %c0_0, %c0_1, %c0_2] : memref<1x10x10x8xbf16, #tpu.memory_space<vmem>>, vector<1x8x8x8xbf16>
    %1 = vector.shape_cast %0 : vector<1x8x8x8xbf16> to vector<8x8x8xbf16>
    %2 = vector.shape_cast %1 : vector<8x8x8xbf16> to vector<64x8xbf16>
    %c0_3 = arith.constant 0 : index
    %c0_4 = arith.constant 0 : index
    %c1 = arith.constant 1 : index
    %c0_5 = arith.constant 0 : index
    %3 = vector.load %arg1[%c0_3, %c0_4, %c1, %c0_5] : memref<1x10x10x8xbf16, #tpu.memory_space<vmem>>, vector<1x8x8x8xbf16>
    %4 = vector.shape_cast %3 : vector<1x8x8x8xbf16> to vector<8x8x8xbf16>
    %5 = vector.shape_cast %4 : vector<8x8x8xbf16> to vector<64x8xbf16>
    %c0_6 = arith.constant 0 : index
    %c0_7 = arith.constant 0 : index
    %c2 = arith.constant 2 : index
    %c0_8 = arith.constant 0 : index
    %6 = vector.load %arg1[%c0_6, %c0_7, %c2, %c0_8] : memref<1x10x10x8xbf16, #tpu.memory_space<vmem>>, vector<1x8x8x8xbf16>
    %7 = vector.shape_cast %6 : vector<1x8x8x8xbf16> to vector<8x8x8xbf16>
    %8 = vector.shape_cast %7 : vector<8x8x8xbf16> to vector<64x8xbf16>
    %c0_9 = arith.constant 0 : index
    %c1_10 = arith.constant 1 : index
    %c0_11 = arith.constant 0 : index
    %c0_12 = arith.constant 0 : index
    %9 = vector.load %arg1[%c0_9, %c1_10, %c0_11, %c0_12] : memref<1x10x10x8xbf16, #tpu.memory_space<vmem>>, vector<1x8x8x8xbf16>
    %10 = vector.shape_cast %9 : vector<1x8x8x8xbf16> to vector<8x8x8xbf16>
    %11 = vector.shape_cast %10 : vector<8x8x8xbf16> to vector<64x8xbf16>
    %c0_13 = arith.constant 0 : index
    %c1_14 = arith.constant 1 : index
    %c1_15 = arith.constant 1 : index
    %c0_16 = arith.constant 0 : index
    %12 = vector.load %arg1[%c0_13, %c1_14, %c1_15, %c0_16] : memref<1x10x10x8xbf16, #tpu.memory_space<vmem>>, vector<1x8x8x8xbf16>
    %13 = vector.shape_cast %12 : vector<1x8x8x8xbf16> to vector<8x8x8xbf16>
    %14 = vector.shape_cast %13 : vector<8x8x8xbf16> to vector<64x8xbf16>
    %c0_17 = arith.constant 0 : index
    %c1_18 = arith.constant 1 : index
    %c2_19 = arith.constant 2 : index
    %c0_20 = arith.constant 0 : index
    %15 = vector.load %arg1[%c0_17, %c1_18, %c2_19, %c0_20] : memref<1x10x10x8xbf16, #tpu.memory_space<vmem>>, vector<1x8x8x8xbf16>
    %16 = vector.shape_cast %15 : vector<1x8x8x8xbf16> to vector<8x8x8xbf16>
    %17 = vector.shape_cast %16 : vector<8x8x8xbf16> to vector<64x8xbf16>
    %c0_21 = arith.constant 0 : index
    %c2_22 = arith.constant 2 : index
    %c0_23 = arith.constant 0 : index
    %c0_24 = arith.constant 0 : index
    %18 = vector.load %arg1[%c0_21, %c2_22, %c0_23, %c0_24] : memref<1x10x10x8xbf16, #tpu.memory_space<vmem>>, vector<1x8x8x8xbf16>
    %19 = vector.shape_cast %18 : vector<1x8x8x8xbf16> to vector<8x8x8xbf16>
    %20 = vector.shape_cast %19 : vector<8x8x8xbf16> to vector<64x8xbf16>
    %c0_25 = arith.constant 0 : index
    %c2_26 = arith.constant 2 : index
    %c1_27 = arith.constant 1 : index
    %c0_28 = arith.constant 0 : index
    %21 = vector.load %arg1[%c0_25, %c2_26, %c1_27, %c0_28] : memref<1x10x10x8xbf16, #tpu.memory_space<vmem>>, vector<1x8x8x8xbf16>
    %22 = vector.shape_cast %21 : vector<1x8x8x8xbf16> to vector<8x8x8xbf16>
    %23 = vector.shape_cast %22 : vector<8x8x8xbf16> to vector<64x8xbf16>
    %c0_29 = arith.constant 0 : index
    %c2_30 = arith.constant 2 : index
    %c2_31 = arith.constant 2 : index
    %c0_32 = arith.constant 0 : index
    %24 = vector.load %arg1[%c0_29, %c2_30, %c2_31, %c0_32] : memref<1x10x10x8xbf16, #tpu.memory_space<vmem>>, vector<1x8x8x8xbf16>
    %25 = vector.shape_cast %24 : vector<1x8x8x8xbf16> to vector<8x8x8xbf16>
    %26 = vector.shape_cast %25 : vector<8x8x8xbf16> to vector<64x8xbf16>
    %27 = tpu.concatenate %2, %5, %8, %11, %14, %17, %20, %23, %26 in 1 : vector<64x8xbf16>, vector<64x8xbf16>, vector<64x8xbf16>, vector<64x8xbf16>, vector<64x8xbf16>, vector<64x8xbf16>, vector<64x8xbf16>, vector<64x8xbf16>, vector<64x8xbf16> -> vector<64x72xbf16>
    %c0_33 = arith.constant 0 : index
    %c0_34 = arith.constant 0 : index
    %28 = vector.load %arg2[%c0_33, %c0_34] : memref<72x32xbf16, #tpu.memory_space<vmem>>, vector<72x32xbf16>
    %cst = arith.constant dense<0.000000e+00> : vector<64x32xf32>
    %29 = tpu.matmul %27, %28, %cst {dimension_numbers = #tpu.dot_dimension_numbers<[1], [0], [0], [1], [0, 0, 1, 1], [], []>} : vector<64x72xbf16>, vector<72x32xbf16>, vector<64x32xf32> -> vector<64x32xf32>
    %c0_35 = arith.constant 0 : index
    %c0_36 = arith.constant 0 : index
    %30 = vector.load %arg3[%c0_35, %c0_36] : memref<1x32xf32, #tpu.memory_space<vmem>>, vector<1x32xf32>
    %31 = vector.broadcast %30 : vector<1x32xf32> to vector<64x32xf32>
    %32 = arith.addf %29, %31 : vector<64x32xf32>
    %33 = vector.shape_cast %32 : vector<64x32xf32> to vector<8x8x32xf32>
    %34 = vector.extract_strided_slice %33 {offsets = [0, 0, 0], sizes = [8, 1, 32], strides = [1, 1, 1]} : vector<8x8x32xf32> to vector<8x1x32xf32>
    %35 = vector.shape_cast %34 : vector<8x1x32xf32> to vector<8x32xf32>
    %36 = vector.extract_strided_slice %33 {offsets = [0, 1, 0], sizes = [8, 1, 32], strides = [1, 1, 1]} : vector<8x8x32xf32> to vector<8x1x32xf32>
    %37 = vector.shape_cast %36 : vector<8x1x32xf32> to vector<8x32xf32>
    %38 = vector.extract_strided_slice %33 {offsets = [0, 2, 0], sizes = [8, 1, 32], strides = [1, 1, 1]} : vector<8x8x32xf32> to vector<8x1x32xf32>
    %39 = vector.shape_cast %38 : vector<8x1x32xf32> to vector<8x32xf32>
    %40 = vector.extract_strided_slice %33 {offsets = [0, 3, 0], sizes = [8, 1, 32], strides = [1, 1, 1]} : vector<8x8x32xf32> to vector<8x1x32xf32>
    %41 = vector.shape_cast %40 : vector<8x1x32xf32> to vector<8x32xf32>
    %42 = vector.extract_strided_slice %33 {offsets = [0, 4, 0], sizes = [8, 1, 32], strides = [1, 1, 1]} : vector<8x8x32xf32> to vector<8x1x32xf32>
    %43 = vector.shape_cast %42 : vector<8x1x32xf32> to vector<8x32xf32>
    %44 = vector.extract_strided_slice %33 {offsets = [0, 5, 0], sizes = [8, 1, 32], strides = [1, 1, 1]} : vector<8x8x32xf32> to vector<8x1x32xf32>
    %45 = vector.shape_cast %44 : vector<8x1x32xf32> to vector<8x32xf32>
    %46 = vector.extract_strided_slice %33 {offsets = [0, 6, 0], sizes = [8, 1, 32], strides = [1, 1, 1]} : vector<8x8x32xf32> to vector<8x1x32xf32>
    %47 = vector.shape_cast %46 : vector<8x1x32xf32> to vector<8x32xf32>
    %48 = vector.extract_strided_slice %33 {offsets = [0, 7, 0], sizes = [8, 1, 32], strides = [1, 1, 1]} : vector<8x8x32xf32> to vector<8x1x32xf32>
    %49 = vector.shape_cast %48 : vector<8x1x32xf32> to vector<8x32xf32>
    %50 = tpu.concatenate %35, %37, %39, %41, %43, %45, %47, %49 in 1 : vector<8x32xf32>, vector<8x32xf32>, vector<8x32xf32>, vector<8x32xf32>, vector<8x32xf32>, vector<8x32xf32>, vector<8x32xf32>, vector<8x32xf32> -> vector<8x256xf32>
    %51 = arith.truncf %50 : vector<8x256xf32> to vector<8x256xbf16>
    %c0_37 = arith.constant 0 : index
    %c0_38 = arith.constant 0 : index
    %c0_39 = arith.constant 0 : index
    %52 = vector.load %arg4[%c0_37, %c0_38, %c0_39] : memref<1x8x256xbf16, #tpu.memory_space<vmem>>, vector<1x8x256xbf16>
    %53 = vector.shape_cast %52 : vector<1x8x256xbf16> to vector<8x256xbf16>
    %54 = vector.shape_cast %51 : vector<8x256xbf16> to vector<1x8x256xbf16>
    tpu.vector_store %arg4[%c0_37, %c0_38, %c0_39], %54 {strides = array<i32>} : memref<1x8x256xbf16, #tpu.memory_space<vmem>>, vector<1x8x256xbf16>,
    %cst_40 = arith.constant dense<0.000000e+00> : vector<32xf32>
    %55 = vector.multi_reduction <add>, %32, %cst_40 [0] : vector<64x32xf32> to vector<32xf32>
    %56 = vector.shape_cast %55 : vector<32xf32> to vector<1x32xf32>
    %57 = arith.mulf %32, %32 : vector<64x32xf32>
    %cst_41 = arith.constant dense<0.000000e+00> : vector<32xf32>
    %58 = vector.multi_reduction <add>, %57, %cst_41 [0] : vector<64x32xf32> to vector<32xf32>
    %59 = vector.shape_cast %58 : vector<32xf32> to vector<1x32xf32>
    %60 = tpu.concatenate %56, %59 in 0 : vector<1x32xf32>, vector<1x32xf32> -> vector<2x32xf32>
    %c0_i32 = arith.constant 0 : i32
    %61 = arith.cmpi eq, %arg0, %c0_i32 : i32
    %62 = arith.extui %61 : i1 to i32
    %c0_i32_42 = arith.constant 0 : i32
    %63 = arith.cmpi ne, %62, %c0_i32_42 : i32
    scf.if %63 {
      %cst_47 = arith.constant 0.000000e+00 : f32
      %67 = vector.broadcast %cst_47 : f32 to vector<2x32xf32>
      %c0_48 = arith.constant 0 : index
      %c0_49 = arith.constant 0 : index
      %68 = vector.load %arg5[%c0_48, %c0_49] : memref<2x32xf32, #tpu.memory_space<vmem>>, vector<2x32xf32>
      tpu.vector_store %arg5[%c0_48, %c0_49], %67 {strides = array<i32>} : memref<2x32xf32, #tpu.memory_space<vmem>>, vector<2x32xf32>,
    } else {
    }
    %c0_43 = arith.constant 0 : index
    %c0_44 = arith.constant 0 : index
    %64 = vector.load %arg5[%c0_43, %c0_44] : memref<2x32xf32, #tpu.memory_space<vmem>>, vector<2x32xf32>
    %65 = arith.addf %64, %60 : vector<2x32xf32>
    %c0_45 = arith.constant 0 : index
    %c0_46 = arith.constant 0 : index
    %66 = vector.load %arg5[%c0_45, %c0_46] : memref<2x32xf32, #tpu.memory_space<vmem>>, vector<2x32xf32>
    tpu.vector_store %arg5[%c0_45, %c0_46], %65 {strides = array<i32>} : memref<2x32xf32, #tpu.memory_space<vmem>>, vector<2x32xf32>,
    return
  }
  func.func @transform_0(%arg0: i32) -> (i32, i32, i32, i32) {
    %c0_i32 = arith.constant 0 : i32
    %c0_i32_0 = arith.constant 0 : i32
    %c0_i32_1 = arith.constant 0 : i32
    %c0_i32_2 = arith.constant 0 : i32
    return %arg0, %c0_i32, %c0_i32_0, %c0_i32_1 : i32, i32, i32, i32
  }
  func.func @transform_1(%arg0: i32) -> (i32, i32) {
    %c0_i32 = arith.constant 0 : i32
    %c0_i32_0 = arith.constant 0 : i32
    %c0_i32_1 = arith.constant 0 : i32
    return %c0_i32, %c0_i32_0 : i32, i32
  }
  func.func @transform_2(%arg0: i32) -> (i32, i32) {
    %c0_i32 = arith.constant 0 : i32
    %c0_i32_0 = arith.constant 0 : i32
    %c0_i32_1 = arith.constant 0 : i32
    return %c0_i32, %c0_i32_0 : i32, i32
  }
  func.func @transform_3(%arg0: i32) -> (i32, i32, i32) {
    %c0_i32 = arith.constant 0 : i32
    %c0_i32_0 = arith.constant 0 : i32
    %c0_i32_1 = arith.constant 0 : i32
    return %arg0, %c0_i32, %c0_i32_0 : i32, i32, i32
  }
  func.func @transform_4(%arg0: i32) -> (i32, i32) {
    %c0_i32 = arith.constant 0 : i32
    %c0_i32_0 = arith.constant 0 : i32
    %c0_i32_1 = arith.constant 0 : i32
    return %c0_i32, %c0_i32_0 : i32, i32
  }
}

module attributes {stable_mosaic.version = 11 : i64} {
  func.func @_affine_prelu_kernel(%arg0: i32, %arg1: memref<16x256xbf16, #tpu.memory_space<vmem>>, %arg2: memref<1x256xf32, #tpu.memory_space<vmem>>, %arg3: memref<1x256xf32, #tpu.memory_space<vmem>>, %arg4: memref<1x256xf32, #tpu.memory_space<vmem>>, %arg5: memref<16x256xbf16, #tpu.memory_space<vmem>>) attributes {dimension_semantics = [#tpu.dimension_semantics<parallel>], iteration_bounds = array<i64: 1>, scalar_prefetch = 0 : i64, scratch_operands = 0 : i64, tpu.core_type = #tpu.core_type<tc>, window_params = [{transform_indices = @transform_0, window_bounds = array<i64: 16, 256>}, {pipeline_mode = #tpu.pipeline_mode<synchronous>, transform_indices = @transform_1, window_bounds = array<i64: 1, 256>}, {pipeline_mode = #tpu.pipeline_mode<synchronous>, transform_indices = @transform_2, window_bounds = array<i64: 1, 256>}, {pipeline_mode = #tpu.pipeline_mode<synchronous>, transform_indices = @transform_3, window_bounds = array<i64: 1, 256>}, {transform_indices = @transform_4, window_bounds = array<i64: 16, 256>}]} {
    %c0 = arith.constant 0 : index
    %c0_0 = arith.constant 0 : index
    %0 = vector.load %arg1[%c0, %c0_0] : memref<16x256xbf16, #tpu.memory_space<vmem>>, vector<16x256xbf16>
    %1 = arith.extf %0 : vector<16x256xbf16> to vector<16x256xf32>
    %c0_1 = arith.constant 0 : index
    %c0_2 = arith.constant 0 : index
    %2 = vector.load %arg2[%c0_1, %c0_2] : memref<1x256xf32, #tpu.memory_space<vmem>>, vector<1x256xf32>
    %3 = vector.broadcast %2 : vector<1x256xf32> to vector<16x256xf32>
    %4 = arith.mulf %1, %3 : vector<16x256xf32>
    %c0_3 = arith.constant 0 : index
    %c0_4 = arith.constant 0 : index
    %5 = vector.load %arg3[%c0_3, %c0_4] : memref<1x256xf32, #tpu.memory_space<vmem>>, vector<1x256xf32>
    %6 = vector.broadcast %5 : vector<1x256xf32> to vector<16x256xf32>
    %7 = arith.addf %4, %6 : vector<16x256xf32>
    %cst = arith.constant 0.000000e+00 : f32
    %8 = vector.broadcast %cst : f32 to vector<16x256xf32>
    %9 = arith.cmpf oge, %7, %8 : vector<16x256xf32>
    %c0_5 = arith.constant 0 : index
    %c0_6 = arith.constant 0 : index
    %10 = vector.load %arg4[%c0_5, %c0_6] : memref<1x256xf32, #tpu.memory_space<vmem>>, vector<1x256xf32>
    %11 = vector.broadcast %10 : vector<1x256xf32> to vector<16x256xf32>
    %12 = arith.mulf %7, %11 : vector<16x256xf32>
    %13 = arith.select %9, %7, %12 : vector<16x256xi1>, vector<16x256xf32>
    %14 = arith.truncf %13 : vector<16x256xf32> to vector<16x256xbf16>
    %c0_7 = arith.constant 0 : index
    %c0_8 = arith.constant 0 : index
    %15 = vector.load %arg5[%c0_7, %c0_8] : memref<16x256xbf16, #tpu.memory_space<vmem>>, vector<16x256xbf16>
    tpu.vector_store %arg5[%c0_7, %c0_8], %14 {strides = array<i32>} : memref<16x256xbf16, #tpu.memory_space<vmem>>, vector<16x256xbf16>,
    return
  }
  func.func @transform_0(%arg0: i32) -> (i32, i32) {
    %c0_i32 = arith.constant 0 : i32
    %c0_i32_0 = arith.constant 0 : i32
    return %arg0, %c0_i32 : i32, i32
  }
  func.func @transform_1(%arg0: i32) -> (i32, i32) {
    %c0_i32 = arith.constant 0 : i32
    %c0_i32_0 = arith.constant 0 : i32
    %c0_i32_1 = arith.constant 0 : i32
    return %c0_i32, %c0_i32_0 : i32, i32
  }
  func.func @transform_2(%arg0: i32) -> (i32, i32) {
    %c0_i32 = arith.constant 0 : i32
    %c0_i32_0 = arith.constant 0 : i32
    %c0_i32_1 = arith.constant 0 : i32
    return %c0_i32, %c0_i32_0 : i32, i32
  }
  func.func @transform_3(%arg0: i32) -> (i32, i32) {
    %c0_i32 = arith.constant 0 : i32
    %c0_i32_0 = arith.constant 0 : i32
    %c0_i32_1 = arith.constant 0 : i32
    return %c0_i32, %c0_i32_0 : i32, i32
  }
  func.func @transform_4(%arg0: i32) -> (i32, i32) {
    %c0_i32 = arith.constant 0 : i32
    %c0_i32_0 = arith.constant 0 : i32
    return %arg0, %c0_i32 : i32, i32
  }
}

module attributes {stable_mosaic.version = 11 : i64} {
  func.func @_affine_prelu_kernel(%arg0: i32, %arg1: memref<32x256xbf16, #tpu.memory_space<vmem>>, %arg2: memref<1x256xf32, #tpu.memory_space<vmem>>, %arg3: memref<1x256xf32, #tpu.memory_space<vmem>>, %arg4: memref<1x256xf32, #tpu.memory_space<vmem>>, %arg5: memref<32x256xbf16, #tpu.memory_space<vmem>>) attributes {dimension_semantics = [#tpu.dimension_semantics<parallel>], iteration_bounds = array<i64: 1>, scalar_prefetch = 0 : i64, scratch_operands = 0 : i64, tpu.core_type = #tpu.core_type<tc>, window_params = [{transform_indices = @transform_0, window_bounds = array<i64: 32, 256>}, {pipeline_mode = #tpu.pipeline_mode<synchronous>, transform_indices = @transform_1, window_bounds = array<i64: 1, 256>}, {pipeline_mode = #tpu.pipeline_mode<synchronous>, transform_indices = @transform_2, window_bounds = array<i64: 1, 256>}, {pipeline_mode = #tpu.pipeline_mode<synchronous>, transform_indices = @transform_3, window_bounds = array<i64: 1, 256>}, {transform_indices = @transform_4, window_bounds = array<i64: 32, 256>}]} {
    %c0 = arith.constant 0 : index
    %c0_0 = arith.constant 0 : index
    %0 = vector.load %arg1[%c0, %c0_0] : memref<32x256xbf16, #tpu.memory_space<vmem>>, vector<32x256xbf16>
    %1 = arith.extf %0 : vector<32x256xbf16> to vector<32x256xf32>
    %c0_1 = arith.constant 0 : index
    %c0_2 = arith.constant 0 : index
    %2 = vector.load %arg2[%c0_1, %c0_2] : memref<1x256xf32, #tpu.memory_space<vmem>>, vector<1x256xf32>
    %3 = vector.broadcast %2 : vector<1x256xf32> to vector<32x256xf32>
    %4 = arith.mulf %1, %3 : vector<32x256xf32>
    %c0_3 = arith.constant 0 : index
    %c0_4 = arith.constant 0 : index
    %5 = vector.load %arg3[%c0_3, %c0_4] : memref<1x256xf32, #tpu.memory_space<vmem>>, vector<1x256xf32>
    %6 = vector.broadcast %5 : vector<1x256xf32> to vector<32x256xf32>
    %7 = arith.addf %4, %6 : vector<32x256xf32>
    %cst = arith.constant 0.000000e+00 : f32
    %8 = vector.broadcast %cst : f32 to vector<32x256xf32>
    %9 = arith.cmpf oge, %7, %8 : vector<32x256xf32>
    %c0_5 = arith.constant 0 : index
    %c0_6 = arith.constant 0 : index
    %10 = vector.load %arg4[%c0_5, %c0_6] : memref<1x256xf32, #tpu.memory_space<vmem>>, vector<1x256xf32>
    %11 = vector.broadcast %10 : vector<1x256xf32> to vector<32x256xf32>
    %12 = arith.mulf %7, %11 : vector<32x256xf32>
    %13 = arith.select %9, %7, %12 : vector<32x256xi1>, vector<32x256xf32>
    %14 = arith.truncf %13 : vector<32x256xf32> to vector<32x256xbf16>
    %c0_7 = arith.constant 0 : index
    %c0_8 = arith.constant 0 : index
    %15 = vector.load %arg5[%c0_7, %c0_8] : memref<32x256xbf16, #tpu.memory_space<vmem>>, vector<32x256xbf16>
    tpu.vector_store %arg5[%c0_7, %c0_8], %14 {strides = array<i32>} : memref<32x256xbf16, #tpu.memory_space<vmem>>, vector<32x256xbf16>,
    return
  }
  func.func @transform_0(%arg0: i32) -> (i32, i32) {
    %c0_i32 = arith.constant 0 : i32
    %c0_i32_0 = arith.constant 0 : i32
    return %arg0, %c0_i32 : i32, i32
  }
  func.func @transform_1(%arg0: i32) -> (i32, i32) {
    %c0_i32 = arith.constant 0 : i32
    %c0_i32_0 = arith.constant 0 : i32
    %c0_i32_1 = arith.constant 0 : i32
    return %c0_i32, %c0_i32_0 : i32, i32
  }
  func.func @transform_2(%arg0: i32) -> (i32, i32) {
    %c0_i32 = arith.constant 0 : i32
    %c0_i32_0 = arith.constant 0 : i32
    %c0_i32_1 = arith.constant 0 : i32
    return %c0_i32, %c0_i32_0 : i32, i32
  }
  func.func @transform_3(%arg0: i32) -> (i32, i32) {
    %c0_i32 = arith.constant 0 : i32
    %c0_i32_0 = arith.constant 0 : i32
    %c0_i32_1 = arith.constant 0 : i32
    return %c0_i32, %c0_i32_0 : i32, i32
  }
  func.func @transform_4(%arg0: i32) -> (i32, i32) {
    %c0_i32 = arith.constant 0 : i32
    %c0_i32_0 = arith.constant 0 : i32
    return %arg0, %c0_i32 : i32, i32
  }
}

module attributes {stable_mosaic.version = 11 : i64} {
  func.func @kernel(%arg0: i32, %arg1: memref<1x20x20x8xbf16, #tpu.memory_space<vmem>>, %arg2: memref<200x16xbf16, #tpu.memory_space<vmem>>, %arg3: memref<1x16xf32, #tpu.memory_space<vmem>>, %arg4: memref<1x16x256xbf16, #tpu.memory_space<vmem>>, %arg5: memref<2x16xf32, #tpu.memory_space<vmem>>) attributes {dimension_semantics = [#tpu.dimension_semantics<arbitrary>], iteration_bounds = array<i64: 2>, scalar_prefetch = 0 : i64, scratch_operands = 0 : i64, tpu.core_type = #tpu.core_type<tc>, window_params = [{transform_indices = @transform_0, window_bounds = array<i64: 1, 20, 20, 8>}, {pipeline_mode = #tpu.pipeline_mode<synchronous>, transform_indices = @transform_1, window_bounds = array<i64: 200, 16>}, {pipeline_mode = #tpu.pipeline_mode<synchronous>, transform_indices = @transform_2, window_bounds = array<i64: 1, 16>}, {transform_indices = @transform_3, window_bounds = array<i64: 1, 16, 256>}, {pipeline_mode = #tpu.pipeline_mode<synchronous>, transform_indices = @transform_4, window_bounds = array<i64: 2, 16>}]} {
    %c0 = arith.constant 0 : index
    %c0_0 = arith.constant 0 : index
    %c0_1 = arith.constant 0 : index
    %c0_2 = arith.constant 0 : index
    %0 = vector.load %arg1[%c0, %c0_0, %c0_1, %c0_2] : memref<1x20x20x8xbf16, #tpu.memory_space<vmem>>, vector<1x16x16x8xbf16>
    %1 = vector.shape_cast %0 : vector<1x16x16x8xbf16> to vector<16x16x8xbf16>
    %2 = vector.shape_cast %1 : vector<16x16x8xbf16> to vector<256x8xbf16>
    %c0_3 = arith.constant 0 : index
    %c0_4 = arith.constant 0 : index
    %c1 = arith.constant 1 : index
    %c0_5 = arith.constant 0 : index
    %3 = vector.load %arg1[%c0_3, %c0_4, %c1, %c0_5] : memref<1x20x20x8xbf16, #tpu.memory_space<vmem>>, vector<1x16x16x8xbf16>
    %4 = vector.shape_cast %3 : vector<1x16x16x8xbf16> to vector<16x16x8xbf16>
    %5 = vector.shape_cast %4 : vector<16x16x8xbf16> to vector<256x8xbf16>
    %c0_6 = arith.constant 0 : index
    %c0_7 = arith.constant 0 : index
    %c2 = arith.constant 2 : index
    %c0_8 = arith.constant 0 : index
    %6 = vector.load %arg1[%c0_6, %c0_7, %c2, %c0_8] : memref<1x20x20x8xbf16, #tpu.memory_space<vmem>>, vector<1x16x16x8xbf16>
    %7 = vector.shape_cast %6 : vector<1x16x16x8xbf16> to vector<16x16x8xbf16>
    %8 = vector.shape_cast %7 : vector<16x16x8xbf16> to vector<256x8xbf16>
    %c0_9 = arith.constant 0 : index
    %c0_10 = arith.constant 0 : index
    %c3 = arith.constant 3 : index
    %c0_11 = arith.constant 0 : index
    %9 = vector.load %arg1[%c0_9, %c0_10, %c3, %c0_11] : memref<1x20x20x8xbf16, #tpu.memory_space<vmem>>, vector<1x16x16x8xbf16>
    %10 = vector.shape_cast %9 : vector<1x16x16x8xbf16> to vector<16x16x8xbf16>
    %11 = vector.shape_cast %10 : vector<16x16x8xbf16> to vector<256x8xbf16>
    %c0_12 = arith.constant 0 : index
    %c0_13 = arith.constant 0 : index
    %c4 = arith.constant 4 : index
    %c0_14 = arith.constant 0 : index
    %12 = vector.load %arg1[%c0_12, %c0_13, %c4, %c0_14] : memref<1x20x20x8xbf16, #tpu.memory_space<vmem>>, vector<1x16x16x8xbf16>
    %13 = vector.shape_cast %12 : vector<1x16x16x8xbf16> to vector<16x16x8xbf16>
    %14 = vector.shape_cast %13 : vector<16x16x8xbf16> to vector<256x8xbf16>
    %c0_15 = arith.constant 0 : index
    %c1_16 = arith.constant 1 : index
    %c0_17 = arith.constant 0 : index
    %c0_18 = arith.constant 0 : index
    %15 = vector.load %arg1[%c0_15, %c1_16, %c0_17, %c0_18] : memref<1x20x20x8xbf16, #tpu.memory_space<vmem>>, vector<1x16x16x8xbf16>
    %16 = vector.shape_cast %15 : vector<1x16x16x8xbf16> to vector<16x16x8xbf16>
    %17 = vector.shape_cast %16 : vector<16x16x8xbf16> to vector<256x8xbf16>
    %c0_19 = arith.constant 0 : index
    %c1_20 = arith.constant 1 : index
    %c1_21 = arith.constant 1 : index
    %c0_22 = arith.constant 0 : index
    %18 = vector.load %arg1[%c0_19, %c1_20, %c1_21, %c0_22] : memref<1x20x20x8xbf16, #tpu.memory_space<vmem>>, vector<1x16x16x8xbf16>
    %19 = vector.shape_cast %18 : vector<1x16x16x8xbf16> to vector<16x16x8xbf16>
    %20 = vector.shape_cast %19 : vector<16x16x8xbf16> to vector<256x8xbf16>
    %c0_23 = arith.constant 0 : index
    %c1_24 = arith.constant 1 : index
    %c2_25 = arith.constant 2 : index
    %c0_26 = arith.constant 0 : index
    %21 = vector.load %arg1[%c0_23, %c1_24, %c2_25, %c0_26] : memref<1x20x20x8xbf16, #tpu.memory_space<vmem>>, vector<1x16x16x8xbf16>
    %22 = vector.shape_cast %21 : vector<1x16x16x8xbf16> to vector<16x16x8xbf16>
    %23 = vector.shape_cast %22 : vector<16x16x8xbf16> to vector<256x8xbf16>
    %c0_27 = arith.constant 0 : index
    %c1_28 = arith.constant 1 : index
    %c3_29 = arith.constant 3 : index
    %c0_30 = arith.constant 0 : index
    %24 = vector.load %arg1[%c0_27, %c1_28, %c3_29, %c0_30] : memref<1x20x20x8xbf16, #tpu.memory_space<vmem>>, vector<1x16x16x8xbf16>
    %25 = vector.shape_cast %24 : vector<1x16x16x8xbf16> to vector<16x16x8xbf16>
    %26 = vector.shape_cast %25 : vector<16x16x8xbf16> to vector<256x8xbf16>
    %c0_31 = arith.constant 0 : index
    %c1_32 = arith.constant 1 : index
    %c4_33 = arith.constant 4 : index
    %c0_34 = arith.constant 0 : index
    %27 = vector.load %arg1[%c0_31, %c1_32, %c4_33, %c0_34] : memref<1x20x20x8xbf16, #tpu.memory_space<vmem>>, vector<1x16x16x8xbf16>
    %28 = vector.shape_cast %27 : vector<1x16x16x8xbf16> to vector<16x16x8xbf16>
    %29 = vector.shape_cast %28 : vector<16x16x8xbf16> to vector<256x8xbf16>
    %c0_35 = arith.constant 0 : index
    %c2_36 = arith.constant 2 : index
    %c0_37 = arith.constant 0 : index
    %c0_38 = arith.constant 0 : index
    %30 = vector.load %arg1[%c0_35, %c2_36, %c0_37, %c0_38] : memref<1x20x20x8xbf16, #tpu.memory_space<vmem>>, vector<1x16x16x8xbf16>
    %31 = vector.shape_cast %30 : vector<1x16x16x8xbf16> to vector<16x16x8xbf16>
    %32 = vector.shape_cast %31 : vector<16x16x8xbf16> to vector<256x8xbf16>
    %c0_39 = arith.constant 0 : index
    %c2_40 = arith.constant 2 : index
    %c1_41 = arith.constant 1 : index
    %c0_42 = arith.constant 0 : index
    %33 = vector.load %arg1[%c0_39, %c2_40, %c1_41, %c0_42] : memref<1x20x20x8xbf16, #tpu.memory_space<vmem>>, vector<1x16x16x8xbf16>
    %34 = vector.shape_cast %33 : vector<1x16x16x8xbf16> to vector<16x16x8xbf16>
    %35 = vector.shape_cast %34 : vector<16x16x8xbf16> to vector<256x8xbf16>
    %c0_43 = arith.constant 0 : index
    %c2_44 = arith.constant 2 : index
    %c2_45 = arith.constant 2 : index
    %c0_46 = arith.constant 0 : index
    %36 = vector.load %arg1[%c0_43, %c2_44, %c2_45, %c0_46] : memref<1x20x20x8xbf16, #tpu.memory_space<vmem>>, vector<1x16x16x8xbf16>
    %37 = vector.shape_cast %36 : vector<1x16x16x8xbf16> to vector<16x16x8xbf16>
    %38 = vector.shape_cast %37 : vector<16x16x8xbf16> to vector<256x8xbf16>
    %c0_47 = arith.constant 0 : index
    %c2_48 = arith.constant 2 : index
    %c3_49 = arith.constant 3 : index
    %c0_50 = arith.constant 0 : index
    %39 = vector.load %arg1[%c0_47, %c2_48, %c3_49, %c0_50] : memref<1x20x20x8xbf16, #tpu.memory_space<vmem>>, vector<1x16x16x8xbf16>
    %40 = vector.shape_cast %39 : vector<1x16x16x8xbf16> to vector<16x16x8xbf16>
    %41 = vector.shape_cast %40 : vector<16x16x8xbf16> to vector<256x8xbf16>
    %c0_51 = arith.constant 0 : index
    %c2_52 = arith.constant 2 : index
    %c4_53 = arith.constant 4 : index
    %c0_54 = arith.constant 0 : index
    %42 = vector.load %arg1[%c0_51, %c2_52, %c4_53, %c0_54] : memref<1x20x20x8xbf16, #tpu.memory_space<vmem>>, vector<1x16x16x8xbf16>
    %43 = vector.shape_cast %42 : vector<1x16x16x8xbf16> to vector<16x16x8xbf16>
    %44 = vector.shape_cast %43 : vector<16x16x8xbf16> to vector<256x8xbf16>
    %c0_55 = arith.constant 0 : index
    %c3_56 = arith.constant 3 : index
    %c0_57 = arith.constant 0 : index
    %c0_58 = arith.constant 0 : index
    %45 = vector.load %arg1[%c0_55, %c3_56, %c0_57, %c0_58] : memref<1x20x20x8xbf16, #tpu.memory_space<vmem>>, vector<1x16x16x8xbf16>
    %46 = vector.shape_cast %45 : vector<1x16x16x8xbf16> to vector<16x16x8xbf16>
    %47 = vector.shape_cast %46 : vector<16x16x8xbf16> to vector<256x8xbf16>
    %c0_59 = arith.constant 0 : index
    %c3_60 = arith.constant 3 : index
    %c1_61 = arith.constant 1 : index
    %c0_62 = arith.constant 0 : index
    %48 = vector.load %arg1[%c0_59, %c3_60, %c1_61, %c0_62] : memref<1x20x20x8xbf16, #tpu.memory_space<vmem>>, vector<1x16x16x8xbf16>
    %49 = vector.shape_cast %48 : vector<1x16x16x8xbf16> to vector<16x16x8xbf16>
    %50 = vector.shape_cast %49 : vector<16x16x8xbf16> to vector<256x8xbf16>
    %c0_63 = arith.constant 0 : index
    %c3_64 = arith.constant 3 : index
    %c2_65 = arith.constant 2 : index
    %c0_66 = arith.constant 0 : index
    %51 = vector.load %arg1[%c0_63, %c3_64, %c2_65, %c0_66] : memref<1x20x20x8xbf16, #tpu.memory_space<vmem>>, vector<1x16x16x8xbf16>
    %52 = vector.shape_cast %51 : vector<1x16x16x8xbf16> to vector<16x16x8xbf16>
    %53 = vector.shape_cast %52 : vector<16x16x8xbf16> to vector<256x8xbf16>
    %c0_67 = arith.constant 0 : index
    %c3_68 = arith.constant 3 : index
    %c3_69 = arith.constant 3 : index
    %c0_70 = arith.constant 0 : index
    %54 = vector.load %arg1[%c0_67, %c3_68, %c3_69, %c0_70] : memref<1x20x20x8xbf16, #tpu.memory_space<vmem>>, vector<1x16x16x8xbf16>
    %55 = vector.shape_cast %54 : vector<1x16x16x8xbf16> to vector<16x16x8xbf16>
    %56 = vector.shape_cast %55 : vector<16x16x8xbf16> to vector<256x8xbf16>
    %c0_71 = arith.constant 0 : index
    %c3_72 = arith.constant 3 : index
    %c4_73 = arith.constant 4 : index
    %c0_74 = arith.constant 0 : index
    %57 = vector.load %arg1[%c0_71, %c3_72, %c4_73, %c0_74] : memref<1x20x20x8xbf16, #tpu.memory_space<vmem>>, vector<1x16x16x8xbf16>
    %58 = vector.shape_cast %57 : vector<1x16x16x8xbf16> to vector<16x16x8xbf16>
    %59 = vector.shape_cast %58 : vector<16x16x8xbf16> to vector<256x8xbf16>
    %c0_75 = arith.constant 0 : index
    %c4_76 = arith.constant 4 : index
    %c0_77 = arith.constant 0 : index
    %c0_78 = arith.constant 0 : index
    %60 = vector.load %arg1[%c0_75, %c4_76, %c0_77, %c0_78] : memref<1x20x20x8xbf16, #tpu.memory_space<vmem>>, vector<1x16x16x8xbf16>
    %61 = vector.shape_cast %60 : vector<1x16x16x8xbf16> to vector<16x16x8xbf16>
    %62 = vector.shape_cast %61 : vector<16x16x8xbf16> to vector<256x8xbf16>
    %c0_79 = arith.constant 0 : index
    %c4_80 = arith.constant 4 : index
    %c1_81 = arith.constant 1 : index
    %c0_82 = arith.constant 0 : index
    %63 = vector.load %arg1[%c0_79, %c4_80, %c1_81, %c0_82] : memref<1x20x20x8xbf16, #tpu.memory_space<vmem>>, vector<1x16x16x8xbf16>
    %64 = vector.shape_cast %63 : vector<1x16x16x8xbf16> to vector<16x16x8xbf16>
    %65 = vector.shape_cast %64 : vector<16x16x8xbf16> to vector<256x8xbf16>
    %c0_83 = arith.constant 0 : index
    %c4_84 = arith.constant 4 : index
    %c2_85 = arith.constant 2 : index
    %c0_86 = arith.constant 0 : index
    %66 = vector.load %arg1[%c0_83, %c4_84, %c2_85, %c0_86] : memref<1x20x20x8xbf16, #tpu.memory_space<vmem>>, vector<1x16x16x8xbf16>
    %67 = vector.shape_cast %66 : vector<1x16x16x8xbf16> to vector<16x16x8xbf16>
    %68 = vector.shape_cast %67 : vector<16x16x8xbf16> to vector<256x8xbf16>
    %c0_87 = arith.constant 0 : index
    %c4_88 = arith.constant 4 : index
    %c3_89 = arith.constant 3 : index
    %c0_90 = arith.constant 0 : index
    %69 = vector.load %arg1[%c0_87, %c4_88, %c3_89, %c0_90] : memref<1x20x20x8xbf16, #tpu.memory_space<vmem>>, vector<1x16x16x8xbf16>
    %70 = vector.shape_cast %69 : vector<1x16x16x8xbf16> to vector<16x16x8xbf16>
    %71 = vector.shape_cast %70 : vector<16x16x8xbf16> to vector<256x8xbf16>
    %c0_91 = arith.constant 0 : index
    %c4_92 = arith.constant 4 : index
    %c4_93 = arith.constant 4 : index
    %c0_94 = arith.constant 0 : index
    %72 = vector.load %arg1[%c0_91, %c4_92, %c4_93, %c0_94] : memref<1x20x20x8xbf16, #tpu.memory_space<vmem>>, vector<1x16x16x8xbf16>
    %73 = vector.shape_cast %72 : vector<1x16x16x8xbf16> to vector<16x16x8xbf16>
    %74 = vector.shape_cast %73 : vector<16x16x8xbf16> to vector<256x8xbf16>
    %75 = tpu.concatenate %2, %5, %8, %11, %14, %17, %20, %23, %26, %29, %32, %35, %38, %41, %44, %47 in 1 : vector<256x8xbf16>, vector<256x8xbf16>, vector<256x8xbf16>, vector<256x8xbf16>, vector<256x8xbf16>, vector<256x8xbf16>, vector<256x8xbf16>, vector<256x8xbf16>, vector<256x8xbf16>, vector<256x8xbf16>, vector<256x8xbf16>, vector<256x8xbf16>, vector<256x8xbf16>, vector<256x8xbf16>, vector<256x8xbf16>, vector<256x8xbf16> -> vector<256x128xbf16>
    %76 = tpu.concatenate %50, %53, %56, %59, %62, %65, %68, %71, %74 in 1 : vector<256x8xbf16>, vector<256x8xbf16>, vector<256x8xbf16>, vector<256x8xbf16>, vector<256x8xbf16>, vector<256x8xbf16>, vector<256x8xbf16>, vector<256x8xbf16>, vector<256x8xbf16> -> vector<256x72xbf16>
    %77 = tpu.concatenate %75, %76 in 1 : vector<256x128xbf16>, vector<256x72xbf16> -> vector<256x200xbf16>
    %c0_95 = arith.constant 0 : index
    %c0_96 = arith.constant 0 : index
    %78 = vector.load %arg2[%c0_95, %c0_96] : memref<200x16xbf16, #tpu.memory_space<vmem>>, vector<200x16xbf16>
    %cst = arith.constant dense<0.000000e+00> : vector<256x16xf32>
    %79 = tpu.matmul %77, %78, %cst {dimension_numbers = #tpu.dot_dimension_numbers<[1], [0], [0], [1], [0, 0, 1, 1], [], []>} : vector<256x200xbf16>, vector<200x16xbf16>, vector<256x16xf32> -> vector<256x16xf32>
    %c0_97 = arith.constant 0 : index
    %c0_98 = arith.constant 0 : index
    %80 = vector.load %arg3[%c0_97, %c0_98] : memref<1x16xf32, #tpu.memory_space<vmem>>, vector<1x16xf32>
    %81 = vector.broadcast %80 : vector<1x16xf32> to vector<256x16xf32>
    %82 = arith.addf %79, %81 : vector<256x16xf32>
    %83 = vector.shape_cast %82 : vector<256x16xf32> to vector<16x16x16xf32>
    %84 = vector.extract_strided_slice %83 {offsets = [0, 0, 0], sizes = [16, 1, 16], strides = [1, 1, 1]} : vector<16x16x16xf32> to vector<16x1x16xf32>
    %85 = vector.shape_cast %84 : vector<16x1x16xf32> to vector<16x16xf32>
    %86 = vector.extract_strided_slice %83 {offsets = [0, 1, 0], sizes = [16, 1, 16], strides = [1, 1, 1]} : vector<16x16x16xf32> to vector<16x1x16xf32>
    %87 = vector.shape_cast %86 : vector<16x1x16xf32> to vector<16x16xf32>
    %88 = vector.extract_strided_slice %83 {offsets = [0, 2, 0], sizes = [16, 1, 16], strides = [1, 1, 1]} : vector<16x16x16xf32> to vector<16x1x16xf32>
    %89 = vector.shape_cast %88 : vector<16x1x16xf32> to vector<16x16xf32>
    %90 = vector.extract_strided_slice %83 {offsets = [0, 3, 0], sizes = [16, 1, 16], strides = [1, 1, 1]} : vector<16x16x16xf32> to vector<16x1x16xf32>
    %91 = vector.shape_cast %90 : vector<16x1x16xf32> to vector<16x16xf32>
    %92 = vector.extract_strided_slice %83 {offsets = [0, 4, 0], sizes = [16, 1, 16], strides = [1, 1, 1]} : vector<16x16x16xf32> to vector<16x1x16xf32>
    %93 = vector.shape_cast %92 : vector<16x1x16xf32> to vector<16x16xf32>
    %94 = vector.extract_strided_slice %83 {offsets = [0, 5, 0], sizes = [16, 1, 16], strides = [1, 1, 1]} : vector<16x16x16xf32> to vector<16x1x16xf32>
    %95 = vector.shape_cast %94 : vector<16x1x16xf32> to vector<16x16xf32>
    %96 = vector.extract_strided_slice %83 {offsets = [0, 6, 0], sizes = [16, 1, 16], strides = [1, 1, 1]} : vector<16x16x16xf32> to vector<16x1x16xf32>
    %97 = vector.shape_cast %96 : vector<16x1x16xf32> to vector<16x16xf32>
    %98 = vector.extract_strided_slice %83 {offsets = [0, 7, 0], sizes = [16, 1, 16], strides = [1, 1, 1]} : vector<16x16x16xf32> to vector<16x1x16xf32>
    %99 = vector.shape_cast %98 : vector<16x1x16xf32> to vector<16x16xf32>
    %100 = vector.extract_strided_slice %83 {offsets = [0, 8, 0], sizes = [16, 1, 16], strides = [1, 1, 1]} : vector<16x16x16xf32> to vector<16x1x16xf32>
    %101 = vector.shape_cast %100 : vector<16x1x16xf32> to vector<16x16xf32>
    %102 = vector.extract_strided_slice %83 {offsets = [0, 9, 0], sizes = [16, 1, 16], strides = [1, 1, 1]} : vector<16x16x16xf32> to vector<16x1x16xf32>
    %103 = vector.shape_cast %102 : vector<16x1x16xf32> to vector<16x16xf32>
    %104 = vector.extract_strided_slice %83 {offsets = [0, 10, 0], sizes = [16, 1, 16], strides = [1, 1, 1]} : vector<16x16x16xf32> to vector<16x1x16xf32>
    %105 = vector.shape_cast %104 : vector<16x1x16xf32> to vector<16x16xf32>
    %106 = vector.extract_strided_slice %83 {offsets = [0, 11, 0], sizes = [16, 1, 16], strides = [1, 1, 1]} : vector<16x16x16xf32> to vector<16x1x16xf32>
    %107 = vector.shape_cast %106 : vector<16x1x16xf32> to vector<16x16xf32>
    %108 = vector.extract_strided_slice %83 {offsets = [0, 12, 0], sizes = [16, 1, 16], strides = [1, 1, 1]} : vector<16x16x16xf32> to vector<16x1x16xf32>
    %109 = vector.shape_cast %108 : vector<16x1x16xf32> to vector<16x16xf32>
    %110 = vector.extract_strided_slice %83 {offsets = [0, 13, 0], sizes = [16, 1, 16], strides = [1, 1, 1]} : vector<16x16x16xf32> to vector<16x1x16xf32>
    %111 = vector.shape_cast %110 : vector<16x1x16xf32> to vector<16x16xf32>
    %112 = vector.extract_strided_slice %83 {offsets = [0, 14, 0], sizes = [16, 1, 16], strides = [1, 1, 1]} : vector<16x16x16xf32> to vector<16x1x16xf32>
    %113 = vector.shape_cast %112 : vector<16x1x16xf32> to vector<16x16xf32>
    %114 = vector.extract_strided_slice %83 {offsets = [0, 15, 0], sizes = [16, 1, 16], strides = [1, 1, 1]} : vector<16x16x16xf32> to vector<16x1x16xf32>
    %115 = vector.shape_cast %114 : vector<16x1x16xf32> to vector<16x16xf32>
    %116 = tpu.concatenate %85, %87, %89, %91, %93, %95, %97, %99, %101, %103, %105, %107, %109, %111, %113, %115 in 1 : vector<16x16xf32>, vector<16x16xf32>, vector<16x16xf32>, vector<16x16xf32>, vector<16x16xf32>, vector<16x16xf32>, vector<16x16xf32>, vector<16x16xf32>, vector<16x16xf32>, vector<16x16xf32>, vector<16x16xf32>, vector<16x16xf32>, vector<16x16xf32>, vector<16x16xf32>, vector<16x16xf32>, vector<16x16xf32> -> vector<16x256xf32>
    %117 = arith.truncf %116 : vector<16x256xf32> to vector<16x256xbf16>
    %c0_99 = arith.constant 0 : index
    %c0_100 = arith.constant 0 : index
    %c0_101 = arith.constant 0 : index
    %118 = vector.load %arg4[%c0_99, %c0_100, %c0_101] : memref<1x16x256xbf16, #tpu.memory_space<vmem>>, vector<1x16x256xbf16>
    %119 = vector.shape_cast %118 : vector<1x16x256xbf16> to vector<16x256xbf16>
    %120 = vector.shape_cast %117 : vector<16x256xbf16> to vector<1x16x256xbf16>
    tpu.vector_store %arg4[%c0_99, %c0_100, %c0_101], %120 {strides = array<i32>} : memref<1x16x256xbf16, #tpu.memory_space<vmem>>, vector<1x16x256xbf16>,
    %cst_102 = arith.constant dense<0.000000e+00> : vector<16xf32>
    %121 = vector.multi_reduction <add>, %82, %cst_102 [0] : vector<256x16xf32> to vector<16xf32>
    %122 = vector.shape_cast %121 : vector<16xf32> to vector<1x16xf32>
    %123 = arith.mulf %82, %82 : vector<256x16xf32>
    %cst_103 = arith.constant dense<0.000000e+00> : vector<16xf32>
    %124 = vector.multi_reduction <add>, %123, %cst_103 [0] : vector<256x16xf32> to vector<16xf32>
    %125 = vector.shape_cast %124 : vector<16xf32> to vector<1x16xf32>
    %126 = tpu.concatenate %122, %125 in 0 : vector<1x16xf32>, vector<1x16xf32> -> vector<2x16xf32>
    %c0_i32 = arith.constant 0 : i32
    %127 = arith.cmpi eq, %arg0, %c0_i32 : i32
    %128 = arith.extui %127 : i1 to i32
    %c0_i32_104 = arith.constant 0 : i32
    %129 = arith.cmpi ne, %128, %c0_i32_104 : i32
    scf.if %129 {
      %cst_109 = arith.constant 0.000000e+00 : f32
      %133 = vector.broadcast %cst_109 : f32 to vector<2x16xf32>
      %c0_110 = arith.constant 0 : index
      %c0_111 = arith.constant 0 : index
      %134 = vector.load %arg5[%c0_110, %c0_111] : memref<2x16xf32, #tpu.memory_space<vmem>>, vector<2x16xf32>
      tpu.vector_store %arg5[%c0_110, %c0_111], %133 {strides = array<i32>} : memref<2x16xf32, #tpu.memory_space<vmem>>, vector<2x16xf32>,
    } else {
    }
    %c0_105 = arith.constant 0 : index
    %c0_106 = arith.constant 0 : index
    %130 = vector.load %arg5[%c0_105, %c0_106] : memref<2x16xf32, #tpu.memory_space<vmem>>, vector<2x16xf32>
    %131 = arith.addf %130, %126 : vector<2x16xf32>
    %c0_107 = arith.constant 0 : index
    %c0_108 = arith.constant 0 : index
    %132 = vector.load %arg5[%c0_107, %c0_108] : memref<2x16xf32, #tpu.memory_space<vmem>>, vector<2x16xf32>
    tpu.vector_store %arg5[%c0_107, %c0_108], %131 {strides = array<i32>} : memref<2x16xf32, #tpu.memory_space<vmem>>, vector<2x16xf32>,
    return
  }
  func.func @transform_0(%arg0: i32) -> (i32, i32, i32, i32) {
    %c0_i32 = arith.constant 0 : i32
    %c0_i32_0 = arith.constant 0 : i32
    %c0_i32_1 = arith.constant 0 : i32
    %c0_i32_2 = arith.constant 0 : i32
    return %arg0, %c0_i32, %c0_i32_0, %c0_i32_1 : i32, i32, i32, i32
  }
  func.func @transform_1(%arg0: i32) -> (i32, i32) {
    %c0_i32 = arith.constant 0 : i32
    %c0_i32_0 = arith.constant 0 : i32
    %c0_i32_1 = arith.constant 0 : i32
    return %c0_i32, %c0_i32_0 : i32, i32
  }
  func.func @transform_2(%arg0: i32) -> (i32, i32) {
    %c0_i32 = arith.constant 0 : i32
    %c0_i32_0 = arith.constant 0 : i32
    %c0_i32_1 = arith.constant 0 : i32
    return %c0_i32, %c0_i32_0 : i32, i32
  }
  func.func @transform_3(%arg0: i32) -> (i32, i32, i32) {
    %c0_i32 = arith.constant 0 : i32
    %c0_i32_0 = arith.constant 0 : i32
    %c0_i32_1 = arith.constant 0 : i32
    return %arg0, %c0_i32, %c0_i32_0 : i32, i32, i32
  }
  func.func @transform_4(%arg0: i32) -> (i32, i32) {
    %c0_i32 = arith.constant 0 : i32
    %c0_i32_0 = arith.constant 0 : i32
    %c0_i32_1 = arith.constant 0 : i32
    return %c0_i32, %c0_i32_0 : i32, i32
  }
}

</mosaic_0001>

<llo_original>
// kernel: squeeze.12
$region0: #{squeeze.12}
  %s0 = inlined_call_operand.vmem [shape: f32[32], index: 0, kind: input, shape index: {}]
  %s1 = inlined_call_operand.vmem [shape: f32[4,8], index: 1, kind: output, shape index: {}]
  $region1: #{squeeze.12} parent=0
    #allocation0 [shape = 'u8[4096]{0}', space=vmem, size = 0x1000, scoped, tag = 'scoped mem for output reshape']
    #allocation1 [shape = 'u8[4096]{0}', space=vmem, size = 0x1000, scoped, tag = 'scoped mem for input reshape']
    %s3 = ssub.s32 2, 1
    %v4 = vld [vmem:[%s0] sm:%s3]
    %5 = vst [vmem:[#allocation1] sm:%s3] %v4
    %v6 = vld [vmem:[#allocation1] sm:$0x1]
    %vm7 = vcmask 64512
    %8 = vst.msk [vmem:[#allocation0] sm:$0x1] %vm7, %v6
    %v9 = vld [vmem:[#allocation1] sm:$0x1]
    %10 = vrot.lane.b32.xlu0 %v9, 120
    %v11 = vpop.permute.xlu0 %10
    %vm12 = vcmask 64512
    %s13 = scalar_lea.vmem [#allocation0], 1
    %14 = vst.msk [vmem:[%s13] sm:$0x1] %vm12, %v11
    %v15 = vld [vmem:[#allocation1] sm:$0x1]
    %16 = vrot.lane.b32.xlu0 %v15, 112
    %v17 = vpop.permute.xlu0 %16
    %vm18 = vcmask 64512
    %s19 = scalar_lea.vmem [#allocation0], 2
    %20 = vst.msk [vmem:[%s19] sm:$0x1] %vm18, %v17
    %v21 = vld [vmem:[#allocation1] sm:$0x1]
    %22 = vrot.lane.b32.xlu0 %v21, 104
    %v23 = vpop.permute.xlu0 %22
    %vm24 = vcmask 64512
    %s25 = scalar_lea.vmem [#allocation0], 3
    %26 = vst.msk [vmem:[%s25] sm:$0x1] %vm24, %v23
    %s28 = ssub.s32 16, 1
    %v29 = vld [vmem:[#allocation0] sm:%s28]
    %s31 = ssub.s32 16, 1
    %32 = vst [vmem:[%s1] sm:%s31] %v29

// kernel: tile.41
$region0: #{tile.41}
  #allocation0 [shape = 's32[1]{0}', space=sflag, size = 0x4, scoped, tag = 'scoped memory for tile.41']
  %s0 = inlined_call_operand.vmem [shape: f32[8], index: 0, kind: input, shape index: {}]
  %s1 = inlined_call_operand.vmem [shape: f32[4,8], index: 1, kind: output, shape index: {}]
  // Predicated region
  $region2: #{tile.41} parent=0 // pred_check
    _
  $region3: #{tile.41} parent=0 // pred_check_branch
    %3 = sbr.rel (0) target = $region5
  $region4: #{tile.41} parent=0 // pred_region
    _
  $region5: #{tile.41} parent=0 // pred_fallthru
    _
  %v4 = vld [vmem:[%s0] ss:$0 sm:$0xff]
  %5 = vst [vmem:[%s1] sm:$0xf] %v4

// kernel: tile.48
$region0: #{tile.48}
  %s0 = inlined_call_operand.vmem [shape: f32[4,8], index: 0, kind: input, shape index: {}]
  %s1 = inlined_call_operand.vmem [shape: f32[32], index: 1, kind: output, shape index: {}]
  $region1: #{tile.48} parent=0
    #allocation0 [shape = 'u8[4096]{0}', space=vmem, size = 0x1000, scoped, tag = 'scoped mem for output reshape']
    #allocation1 [shape = 'u8[4096]{0}', space=vmem, size = 0x1000, scoped, tag = 'scoped mem for input reshape']
    %s3 = ssub.s32 16, 1
    %v4 = vld [vmem:[%s0] sm:%s3]
    %5 = vst [vmem:[#allocation1] sm:%s3] %v4
    %v6 = vld [vmem:[#allocation1] sm:$0x1]
    %vm7 = vcmask 64512
    %8 = vst.msk [vmem:[#allocation0] sm:$0x1] %vm7, %v6
    %s9 = scalar_lea.vmem [#allocation1], 3
    %v10 = vld [vmem:[%s9] sm:$0x1]
    %11 = vrot.lane.b32.xlu0 %v10, 24
    %v12 = vpop.permute.xlu0 %11
    %vm13 = vcmask 261312
    %14 = vst.msk [vmem:[#allocation0] sm:$0x1] %vm13, %v12
    %s15 = scalar_lea.vmem [#allocation1], 2
    %v16 = vld [vmem:[%s15] sm:$0x1]
    %17 = vrot.lane.b32.xlu0 %v16, 16
    %v18 = vpop.permute.xlu0 %17
    %vm19 = vcmask 195712
    %20 = vst.msk [vmem:[#allocation0] sm:$0x1] %vm19, %v18
    %s21 = scalar_lea.vmem [#allocation1], 1
    %v22 = vld [vmem:[%s21] sm:$0x1]
    %23 = vrot.lane.b32.xlu0 %v22, 8
    %v24 = vpop.permute.xlu0 %23
    %vm25 = vcmask 130112
    %26 = vst.msk [vmem:[#allocation0] sm:$0x1] %vm25, %v24
    %s28 = ssub.s32 2, 1
    %v29 = vld [vmem:[#allocation0] sm:%s28]
    %s31 = ssub.s32 2, 1
    %32 = vst [vmem:[%s1] sm:%s31] %v29

// kernel: tile.49
$region0: #{tile.49}
  #allocation0 [shape = 's32[1]{0}', space=sflag, size = 0x4, scoped, tag = 'scoped memory for tile.49']
  %s0 = inlined_call_operand.vmem [shape: f32[32], index: 0, kind: input, shape index: {}]
  %s1 = inlined_call_operand.vmem [shape: f32[8,32], index: 1, kind: output, shape index: {}]
  // Predicated region
  $region2: #{tile.49} parent=0 // pred_check
    _
  $region3: #{tile.49} parent=0 // pred_check_branch
    %3 = sbr.rel (0) target = $region5
  $region4: #{tile.49} parent=0 // pred_region
    _
  $region5: #{tile.49} parent=0 // pred_fallthru
    _
  %v4 = vld [vmem:[%s0] ss:$0 sm:$0xff]
  %5 = vst [vmem:[%s1] sm:$0xff] %v4

// kernel: tile.54
$region0: #{tile.54}
  %s0 = inlined_call_operand.vmem [shape: f32[8,32], index: 0, kind: input, shape index: {}]
  %s1 = inlined_call_operand.vmem [shape: f32[1,256], index: 1, kind: output, shape index: {}]
  $region1: #{tile.54} parent=0
    #allocation0 [shape = 'u8[8192]{0}', space=vmem, size = 0x2000, scoped, tag = 'scoped mem for output reshape']
    %s2 = smov 3
    %v3 = vld [vmem:[%s0] ss:$4 sm:%s2]
    %vm4 = vcmask 261120
    %5 = vst.msk [vmem:[#allocation0] ss:$8 sm:$0x3] %vm4, %v3
    %s6 = scalar_lea.vmem %s0, 3
    %s7 = smov 3
    %v8 = vld [vmem:[%s6] ss:$4 sm:%s7]
    %9 = vrot.lane.b32.xlu0 %v8, 96
    %v10 = vpop.permute.xlu0 %9
    %vm11 = vcmask 1048320
    %12 = vst.msk [vmem:[#allocation0] ss:$8 sm:$0x3] %vm11, %v10
    %s13 = scalar_lea.vmem %s0, 2
    %s14 = smov 3
    %v15 = vld [vmem:[%s13] ss:$4 sm:%s14]
    %16 = vrot.lane.b32.xlu0 %v15, 64
    %v17 = vpop.permute.xlu0 %16
    %vm18 = vcmask 785920
    %19 = vst.msk [vmem:[#allocation0] ss:$8 sm:$0x3] %vm18, %v17
    %s20 = scalar_lea.vmem %s0, 1
    %s21 = smov 3
    %v22 = vld [vmem:[%s20] ss:$4 sm:%s21]
    %23 = vrot.lane.b32.xlu0 %v22, 32
    %v24 = vpop.permute.xlu0 %23
    %vm25 = vcmask 523520
    %26 = vst.msk [vmem:[#allocation0] ss:$8 sm:$0x3] %vm25, %v24
    %s28 = ssub.s32 2, 1
    %v29 = vld [vmem:[#allocation0] sm:%s28]
    %s31 = ssub.s32 2, 1
    %32 = vst [vmem:[%s1] sm:%s31] %v29
    %s33 = scalar_lea.vmem [#allocation0], 8
    %v34 = vld [vmem:[%s33] sm:%s28]
    %s36 = ssub.s32 2, 1
    %s37 = scalar_lea.vmem %s1, 1
    %38 = vst [vmem:[%s37] sm:%s36] %v34

// kernel: _lambda_.7
$region0: #{_lambda_.7}
  #allocation0 [shape = 'u32[]', space=smem, size = 0x4, offset = 0x4, fixed_abs, tag = 'smem constant byte address 0x4 - core index']
  #allocation1 [shape = 'u32[72,128]{1,0:T(1,128)}', space=vmem, size = 0x9000, scoped, tag = 'internal scratch']
  %s0 = inlined_call_operand.vmem [shape: bf16[16,256], index: 0, kind: input, shape index: {}]
  %s1 = inlined_call_operand.vmem [shape: f32[1,256], index: 1, kind: input, shape index: {}]
  %s2 = inlined_call_operand.vmem [shape: f32[1,256], index: 2, kind: input, shape index: {}]
  %s3 = inlined_call_operand.vmem [shape: f32[1,256], index: 3, kind: input, shape index: {}]
  %s4 = inlined_call_operand.vmem [shape: bf16[16,256], index: 4, kind: output, shape index: {}]
  %s5 = sld [smem:[#allocation0]]
  $region26: #{_lambda_.7} parent=0
    _
  %s7 = ssub.s32 1, %s5
  %s8 = scalar_select 0, %s7, %s5
  // Predicated region
  $region2: #{_lambda_.7} parent=0 // pred_check
    _
  $region3: #{_lambda_.7} parent=0 // pred_check_branch
    %10 = sbr.rel (0) target = $region5
  $region4: #{_lambda_.7} parent=0 // pred_region
    _
  $region5: #{_lambda_.7} parent=0 // pred_fallthru
    _
  // Predicated region
  $region6: #{_lambda_.7} parent=0 // pred_check
    _
  $region7: #{_lambda_.7} parent=0 // pred_check_branch
    %12 = sbr.rel (0) target = $region9
  $region8: #{_lambda_.7} parent=0 // pred_region
    _
  $region9: #{_lambda_.7} parent=0 // pred_fallthru
    _
  // Predicated region
  $region10: #{_lambda_.7} parent=0 // pred_check
    _
  $region11: #{_lambda_.7} parent=0 // pred_check_branch
    %14 = sbr.rel (0) target = $region13
  $region12: #{_lambda_.7} parent=0 // pred_region
    _
  $region13: #{_lambda_.7} parent=0 // pred_fallthru
    _
  // Predicated region
  $region14: #{_lambda_.7} parent=0 // pred_check
    _
  $region15: #{_lambda_.7} parent=0 // pred_check_branch
    %16 = sbr.rel (0) target = $region17
  $region16: #{_lambda_.7} parent=0 // pred_region
    _
  $region17: #{_lambda_.7} parent=0 // pred_fallthru
    _
  %v17 = vld [vmem:[%s0] sm:$0xff]
  %v18 = vld [vmem:[%s0 + $0x8] sm:$0xff]
  %v19 = vunpack.c.l.bf16 %v17
  %v20 = vunpack.c.h.bf16 %v17
  %v21 = vunpack.c.l.bf16 %v18
  %v22 = vunpack.c.h.bf16 %v18
  %v23 = vld [vmem:[%s1] sm:$0x3]
  %v25 = vperm.slane %v23, 0
  %v26 = vperm.slane %v23, 1
  %v29 = vmul.f32 %v19, %v25
  %v30 = vmul.f32 %v20, %v26
  %v31 = vmul.f32 %v21, %v25
  %v32 = vmul.f32 %v22, %v26
  %v33 = vld [vmem:[%s2] sm:$0x3]
  %v35 = vperm.slane %v33, 0
  %v36 = vperm.slane %v33, 1
  %v39 = vadd.f32 %v29, %v35
  %v40 = vadd.f32 %v30, %v36
  %v41 = vadd.f32 %v31, %v35
  %v42 = vadd.f32 %v32, %v36
  %vm43 = vcmp.ge.f32.partialorder %v39, 0.0
  %vm44 = vcmp.ge.f32.partialorder %v40, 0.0
  %vm45 = vcmp.ge.f32.partialorder %v41, 0.0
  %vm46 = vcmp.ge.f32.partialorder %v42, 0.0
  %v47 = vld [vmem:[%s3] sm:$0x3]
  %v49 = vperm.slane %v47, 0
  %v50 = vperm.slane %v47, 1
  %v53 = vmul.f32 %v39, %v49
  %v54 = vmul.f32 %v40, %v50
  %v55 = vmul.f32 %v41, %v49
  %v56 = vmul.f32 %v42, %v50
  %v57 = vsel %vm43, %v39, %v53
  %v58 = vsel %vm44, %v40, %v54
  %v59 = vsel %vm45, %v41, %v55
  %v60 = vsel %vm46, %v42, %v56
  %v61 = vpack.c.bf16 %v58, %v57
  %v62 = vpack.c.bf16 %v60, %v59
  %63 = vst [vmem:[%s4] sm:$0xff] %v61
  %64 = vst [vmem:[%s4 + $0x8] sm:$0xff] %v62
  // Predicated region
  $region18: #{_lambda_.7} parent=0 // pred_check
    _
  $region19: #{_lambda_.7} parent=0 // pred_check_branch
    %66 = sbr.rel (0) target = $region21
  $region20: #{_lambda_.7} parent=0 // pred_region
    _
  $region21: #{_lambda_.7} parent=0 // pred_fallthru
    _
  // Predicated region
  $region22: #{_lambda_.7} parent=0 // pred_check
    _
  $region23: #{_lambda_.7} parent=0 // pred_check_branch
    %68 = sbr.rel (0) target = $region25
  $region24: #{_lambda_.7} parent=0 // pred_region
    _
  $region25: #{_lambda_.7} parent=0 // pred_fallthru
    _

// kernel: _lambda_.6
$region0: #{_lambda_.6}
  #allocation0 [shape = 'u32[]', space=smem, size = 0x4, offset = 0x4, fixed_abs, tag = 'smem constant byte address 0x4 - core index']
  #allocation1 [shape = 'u32[72,128]{1,0:T(1,128)}', space=vmem, size = 0x9000, scoped, tag = 'internal scratch']
  %s0 = inlined_call_operand.vmem [shape: bf16[2,10,10,8], index: 0, kind: input, shape index: {}]
  %s1 = inlined_call_operand.vmem [shape: bf16[72,32], index: 1, kind: input, shape index: {}]
  %s2 = inlined_call_operand.vmem [shape: f32[1,32], index: 2, kind: input, shape index: {}]
  %s3 = inlined_call_operand.vmem [shape: bf16[2,8,256], index: 3, kind: output, shape index: {0}]
  %s4 = inlined_call_operand.vmem [shape: f32[2,32], index: 4, kind: output, shape index: {1}]
  %5 = xla_tuple %s3, %s4
  %s6 = sld [smem:[#allocation0]]
  $region57: #{_lambda_.6} parent=0
    _
  %s8 = ssub.s32 1, %s6
  %s9 = scalar_select 0, %s8, %s6
  loop: start=0, step=1, limit=4
  $region2: #{_lambda_.6} parent=0 // loop_pre_header
    _
  $region3: #{_lambda_.6} parent=0 // loop_header
    %s11 = sphi 0, %s15
    %p12 = scmp.ge.s32.totalorder %s11, 4
    %s21 = sphi 0, %s23
    %s24 = sphi 0, %s21
    %s25 = sphi 0, %s24
    %s41 = sphi 0, %s25
    %s45 = sphi 0, %s45
    %s47 = sphi 0, %s45
    %s48 = sphi 0, %s47
    %s62 = sphi 0, %s48
    %s66 = sphi 0, %s66
    %s68 = sphi 0, %s66
    %s69 = sphi 0, %s68
    %s83 = sphi 0, %s69
    %s89 = sphi 0, %s91
    %s92 = sphi 0, %s89
    %s93 = sphi 0, %s92
    %s109 = sphi 0, %s93
    %s113 = sphi 0, %s113
    %s115 = sphi 0, %s113
    %s116 = sphi 0, %s115
    %s130 = sphi 0, %s116
  $region4: #{_lambda_.6} parent=0 // loop_header_branch
    %14 = sbr.rel (%p12) target = $region8
  $region5: #{_lambda_.6} parent=0 // loop_body
    %s16 = ssub.s32 %s11, 1
    %s17 = ssub.s32 %s11, 2
    %s18 = sadd.s32 %s11, 1
    %s19 = ssub.s32 %s11, %s18
    %p20 = scmp.eq.s32.totalorder %s19, 0
    %s22 = sadd.s32 %s21, 1
    %s23 = scalar_select %p20, %s21, %s22
    %p26 = pneg %p20
    %p27 = scmp.eq.s32.totalorder %s11, 1
    %p28 = por %p26, %p27
    %p29 = scmp.ne.s32.totalorder %s21, %s24
    %p30 = scmp.eq.s32.totalorder %s11, 0
    %p31 = por %p29, %p30
    %p32 = scmp.ne.s32.totalorder %s21, %s24
    %p33 = scmp.eq.s32.totalorder %s16, 1
    %p34 = por %p32, %p33
    %p35 = scmp.ne.s32.totalorder %s24, %s25
    %p36 = scmp.eq.s32.totalorder %s16, 0
    %p37 = por %p35, %p36
    %p38 = scmp.ne.s32.totalorder %s24, %s25
    %p39 = scmp.eq.s32.totalorder %s17, 1
    %p40 = por %p38, %p39
    %p42 = scmp.ne.s32.totalorder %s25, %s41
    %p43 = scmp.eq.s32.totalorder %s17, 0
    %p44 = por %p42, %p43
    %s46 = sadd.s32 %s45, 1
    %p49 = scmp.eq.s32.totalorder %s11, 1
    %p50 = scmp.ne.s32.totalorder %s45, %s47
    %p51 = scmp.eq.s32.totalorder %s11, 0
    %p52 = por %p50, %p51
    %p53 = scmp.ne.s32.totalorder %s45, %s47
    %p54 = scmp.eq.s32.totalorder %s16, 1
    %p55 = por %p53, %p54
    %p56 = scmp.ne.s32.totalorder %s47, %s48
    %p57 = scmp.eq.s32.totalorder %s16, 0
    %p58 = por %p56, %p57
    %p59 = scmp.ne.s32.totalorder %s47, %s48
    %p60 = scmp.eq.s32.totalorder %s17, 1
    %p61 = por %p59, %p60
    %p63 = scmp.ne.s32.totalorder %s48, %s62
    %p64 = scmp.eq.s32.totalorder %s17, 0
    %p65 = por %p63, %p64
    %s67 = sadd.s32 %s66, 1
    %p70 = scmp.eq.s32.totalorder %s11, 1
    %p71 = scmp.ne.s32.totalorder %s66, %s68
    %p72 = scmp.eq.s32.totalorder %s11, 0
    %p73 = por %p71, %p72
    %p74 = scmp.ne.s32.totalorder %s66, %s68
    %p75 = scmp.eq.s32.totalorder %s16, 1
    %p76 = por %p74, %p75
    %p77 = scmp.ne.s32.totalorder %s68, %s69
    %p78 = scmp.eq.s32.totalorder %s16, 0
    %p79 = por %p77, %p78
    %p80 = scmp.ne.s32.totalorder %s68, %s69
    %p81 = scmp.eq.s32.totalorder %s17, 1
    %p82 = por %p80, %p81
    %p84 = scmp.ne.s32.totalorder %s69, %s83
    %p85 = scmp.eq.s32.totalorder %s17, 0
    %p86 = por %p84, %p85
    %s87 = ssub.s32 %s11, %s18
    %p88 = scmp.eq.s32.totalorder %s87, 0
    %s90 = sadd.s32 %s89, 1
    %s91 = scalar_select %p88, %s89, %s90
    %p94 = pneg %p88
    %p95 = scmp.eq.s32.totalorder %s11, 1
    %p96 = por %p94, %p95
    %p97 = scmp.ne.s32.totalorder %s89, %s92
    %p98 = scmp.eq.s32.totalorder %s11, 0
    %p99 = por %p97, %p98
    %p100 = scmp.ne.s32.totalorder %s89, %s92
    %p101 = scmp.eq.s32.totalorder %s16, 1
    %p102 = por %p100, %p101
    %p103 = scmp.ne.s32.totalorder %s92, %s93
    %p104 = scmp.eq.s32.totalorder %s16, 0
    %p105 = por %p103, %p104
    %p106 = scmp.ne.s32.totalorder %s92, %s93
    %p107 = scmp.eq.s32.totalorder %s17, 1
    %p108 = por %p106, %p107
    %p110 = scmp.ne.s32.totalorder %s93, %s109
    %p111 = scmp.eq.s32.totalorder %s17, 0
    %p112 = por %p110, %p111
    %s114 = sadd.s32 %s113, 1
    %p117 = scmp.eq.s32.totalorder %s11, 1
    %p118 = scmp.ne.s32.totalorder %s113, %s115
    %p119 = scmp.eq.s32.totalorder %s11, 0
    %p120 = por %p118, %p119
    %p121 = scmp.ne.s32.totalorder %s113, %s115
    %p122 = scmp.eq.s32.totalorder %s16, 1
    %p123 = por %p121, %p122
    %p124 = scmp.ne.s32.totalorder %s115, %s116
    %p125 = scmp.eq.s32.totalorder %s16, 0
    %p126 = por %p124, %p125
    %p127 = scmp.ne.s32.totalorder %s115, %s116
    %p128 = scmp.eq.s32.totalorder %s17, 1
    %p129 = por %p127, %p128
    %p131 = scmp.ne.s32.totalorder %s116, %s130
    %p132 = scmp.eq.s32.totalorder %s17, 0
    %p133 = por %p131, %p132
    %p134 = scmp.le.s32.totalorder 1, %s11
    %p135 = scmp.lt.s32.totalorder %s11, 3
    %p136 = pnand %p134, %p135
    %p137 = pneg %p136
    // Predicated region
    $region9: #{_lambda_.6} parent=5 // pred_check
      _
    $region10: #{_lambda_.6} parent=5 // pred_check_branch
      %139 = sbr.rel (%p136) target = $region12
    $region11: #{_lambda_.6} parent=5 // pred_region
      %s140 = ssub.s32 %s11, 1
      // Predicated region
      $region13: #{_lambda_.6} parent=11 // pred_check
        %p141 = pneg %p58
      $region14: #{_lambda_.6} parent=11 // pred_check_branch
        %143 = sbr.rel (%p141) target = $region16
      $region15: #{_lambda_.6} parent=11 // pred_region
        _
      $region16: #{_lambda_.6} parent=11 // pred_fallthru
        _
      // Predicated region
      $region17: #{_lambda_.6} parent=11 // pred_check
        %p144 = pneg %p79
      $region18: #{_lambda_.6} parent=11 // pred_check_branch
        %146 = sbr.rel (%p144) target = $region20
      $region19: #{_lambda_.6} parent=11 // pred_region
        _
      $region20: #{_lambda_.6} parent=11 // pred_fallthru
        _
    $region12: #{_lambda_.6} parent=5 // pred_fallthru
      _
    %p147 = scmp.lt.s32.totalorder %s11, 2
    // Predicated region
    $region21: #{_lambda_.6} parent=5 // pred_check
      %p148 = pneg %p147
    $region22: #{_lambda_.6} parent=5 // pred_check_branch
      %150 = sbr.rel (%p148) target = $region24
    $region23: #{_lambda_.6} parent=5 // pred_region
      // Predicated region
      $region25: #{_lambda_.6} parent=23 // pred_check
        %p151 = pneg %p31
      $region26: #{_lambda_.6} parent=23 // pred_check_branch
        %153 = sbr.rel (%p151) target = $region28
      $region27: #{_lambda_.6} parent=23 // pred_region
        %p154 = scmp.lt.s32.totalorder %s11, 1
        %s155 = scalar_select %p154, %s11, 1
        %s156 = smul.addr %s155, 20
        %s157 = smul.addr %s156, 4
        %s158 = scalar_lea.vmem %s0, %s157
      $region28: #{_lambda_.6} parent=23 // pred_fallthru
        _
    $region24: #{_lambda_.6} parent=5 // pred_fallthru
      _
    %p159 = scmp.le.s32.totalorder 1, %s11
    %p160 = scmp.lt.s32.totalorder %s11, 3
    %p161 = pnand %p159, %p160
    %p162 = pneg %p161
    // Predicated region
    $region29: #{_lambda_.6} parent=5 // pred_check
      _
    $region30: #{_lambda_.6} parent=5 // pred_check_branch
      %164 = sbr.rel (%p161) target = $region32
    $region31: #{_lambda_.6} parent=5 // pred_region
      %s165 = ssub.s32 %s11, 1
      %p166 = scmp.lt.s32.totalorder %s16, 1
      %s167 = scalar_select %p166, %s16, 1
      %s168 = smul.addr %s167, 20
      %s169 = smul.addr %s168, 4
      %s170 = scalar_lea.vmem %s0, %s169
      %p171 = pneg %p37
      %p172 = pneg %p34
      %p173 = pneg %p58
      %p174 = pneg %p55
      %p175 = pneg %p79
      %p176 = pneg %p76
      %p177 = pneg %p105
      %p178 = pneg %p102
      %p179 = scmp.lt.s32.totalorder %s16, 1
      %s180 = scalar_select %p179, %s16, 1
      %s181 = smul.addr %s180, 2
      %s182 = smul.addr %s181, 4
      %s183 = scalar_lea.vmem %s3, %s182
      %p184 = pneg %p126
      %p185 = pneg %p123
      %p186 = scmp.lt.s32.totalorder %s16, 1
      %s187 = scalar_select %p186, %s16, 1
      %s188 = smul.addr %s187, 20
      %s189 = smul.addr %s188, 4
      %s190 = scalar_lea.vmem %s0, %s189
      %p191 = scmp.lt.s32.totalorder %s16, 1
      %s192 = scalar_select %p191, %s16, 1
      %s193 = smul.addr %s192, 2
      %s194 = smul.addr %s193, 4
      %s195 = scalar_lea.vmem %s3, %s194
      %v197 = vld [vmem:[%s190] sm:$0xf]
      %v198 = vld [vmem:[%s190 + $0x8] sm:$0xf]
      %v199 = vld [vmem:[%s190 + $0x10] sm:$0xf]
      %v200 = vld [vmem:[%s190 + $0x18] sm:$0xf]
      %v201 = vld [vmem:[%s190 + $0x20] sm:$0xf]
      %v202 = vld [vmem:[%s190 + $0x28] sm:$0xf]
      %v203 = vld [vmem:[%s190 + $0x30] sm:$0xf]
      %v204 = vld [vmem:[%s190 + $0x38] sm:$0xf]
      %v205 = vld [vmem:[%s190 + $0x4] sm:$0x1]
      %v206 = vld [vmem:[%s190 + $0xc] sm:$0x1]
      %v207 = vld [vmem:[%s190 + $0x14] sm:$0x1]
      %v208 = vld [vmem:[%s190 + $0x1c] sm:$0x1]
      %v209 = vld [vmem:[%s190 + $0x24] sm:$0x1]
      %v210 = vld [vmem:[%s190 + $0x2c] sm:$0x1]
      %v211 = vld [vmem:[%s190 + $0x34] sm:$0x1]
      %v212 = vld [vmem:[%s190 + $0x3c] sm:$0x1]
      %vm213 = vsmask.f32 3328
      %vm214 = vsmask.f32 7440
      %vm215 = vmor %vm213, %vm214
      %v217 = vshrl.u32 %v197, 16
      %v219 = vrot.slane %v217, 4
      %v220 = vshll.u32 %v197, 16
      %v222 = vrot.slane %v220, 5
      %v223 = vor.u32 %v219, %v222
      %v224 = vrot.slane %v223, 4
      %v226 = vshll.u32 %v205, 16
      %v228 = vrot.slane %v226, 5
      %v229 = vsel %vm215, %v224, %v228
      %v231 = vshrl.u32 %v198, 16
      %v233 = vrot.slane %v231, 4
      %v234 = vshll.u32 %v198, 16
      %v236 = vrot.slane %v234, 5
      %v237 = vor.u32 %v233, %v236
      %v238 = vrot.slane %v237, 4
      %v240 = vshll.u32 %v206, 16
      %v242 = vrot.slane %v240, 5
      %v243 = vsel %vm215, %v238, %v242
      %v245 = vshrl.u32 %v199, 16
      %v247 = vrot.slane %v245, 4
      %v248 = vshll.u32 %v199, 16
      %v250 = vrot.slane %v248, 5
      %v251 = vor.u32 %v247, %v250
      %v252 = vrot.slane %v251, 4
      %v254 = vshll.u32 %v207, 16
      %v256 = vrot.slane %v254, 5
      %v257 = vsel %vm215, %v252, %v256
      %v259 = vshrl.u32 %v200, 16
      %v261 = vrot.slane %v259, 4
      %v262 = vshll.u32 %v200, 16
      %v264 = vrot.slane %v262, 5
      %v265 = vor.u32 %v261, %v264
      %v266 = vrot.slane %v265, 4
      %v268 = vshll.u32 %v208, 16
      %v270 = vrot.slane %v268, 5
      %v271 = vsel %vm215, %v266, %v270
      %v273 = vshrl.u32 %v201, 16
      %v275 = vrot.slane %v273, 4
      %v276 = vshll.u32 %v201, 16
      %v278 = vrot.slane %v276, 5
      %v279 = vor.u32 %v275, %v278
      %v280 = vrot.slane %v279, 4
      %v282 = vshll.u32 %v209, 16
      %v284 = vrot.slane %v282, 5
      %v285 = vsel %vm215, %v280, %v284
      %v287 = vshrl.u32 %v202, 16
      %v289 = vrot.slane %v287, 4
      %v290 = vshll.u32 %v202, 16
      %v292 = vrot.slane %v290, 5
      %v293 = vor.u32 %v289, %v292
      %v294 = vrot.slane %v293, 4
      %v296 = vshll.u32 %v210, 16
      %v298 = vrot.slane %v296, 5
      %v299 = vsel %vm215, %v294, %v298
      %v301 = vshrl.u32 %v203, 16
      %v303 = vrot.slane %v301, 4
      %v304 = vshll.u32 %v203, 16
      %v306 = vrot.slane %v304, 5
      %v307 = vor.u32 %v303, %v306
      %v308 = vrot.slane %v307, 4
      %v310 = vshll.u32 %v211, 16
      %v312 = vrot.slane %v310, 5
      %v313 = vsel %vm215, %v308, %v312
      %v315 = vshrl.u32 %v204, 16
      %v317 = vrot.slane %v315, 4
      %v318 = vshll.u32 %v204, 16
      %v320 = vrot.slane %v318, 5
      %v321 = vor.u32 %v317, %v320
      %v322 = vrot.slane %v321, 4
      %v324 = vshll.u32 %v212, 16
      %v326 = vrot.slane %v324, 5
      %v327 = vsel %vm215, %v322, %v326
      %v328 = vld [vmem:[%s190] sm:$0xe]
      %v329 = vld [vmem:[%s190 + $0x8] sm:$0xe]
      %v330 = vld [vmem:[%s190 + $0x10] sm:$0xe]
      %v331 = vld [vmem:[%s190 + $0x18] sm:$0xe]
      %v332 = vld [vmem:[%s190 + $0x20] sm:$0xe]
      %v333 = vld [vmem:[%s190 + $0x28] sm:$0xe]
      %v334 = vld [vmem:[%s190 + $0x30] sm:$0xe]
      %v335 = vld [vmem:[%s190 + $0x38] sm:$0xe]
      %vm352 = vcmask 1042432
      %vm353 = vcmask 1046532
      %vm354 = vmor %vm352, %vm353
      %v355 = vrot.slane %v328, 5
      %v356 = vrot.slane %v355, 4
      %v357 = vrot.slane %v205, 5
      %v358 = vsel %vm354, %v356, %v357
      %v359 = vrot.slane %v329, 5
      %v360 = vrot.slane %v359, 4
      %v361 = vrot.slane %v206, 5
      %v362 = vsel %vm354, %v360, %v361
      %v363 = vrot.slane %v330, 5
      %v364 = vrot.slane %v363, 4
      %v365 = vrot.slane %v207, 5
      %v366 = vsel %vm354, %v364, %v365
      %v367 = vrot.slane %v331, 5
      %v368 = vrot.slane %v367, 4
      %v369 = vrot.slane %v208, 5
      %v370 = vsel %vm354, %v368, %v369
      %v371 = vrot.slane %v332, 5
      %v372 = vrot.slane %v371, 4
      %v373 = vrot.slane %v209, 5
      %v374 = vsel %vm354, %v372, %v373
      %v375 = vrot.slane %v333, 5
      %v376 = vrot.slane %v375, 4
      %v377 = vrot.slane %v210, 5
      %v378 = vsel %vm354, %v376, %v377
      %v379 = vrot.slane %v334, 5
      %v380 = vrot.slane %v379, 4
      %v381 = vrot.slane %v211, 5
      %v382 = vsel %vm354, %v380, %v381
      %v383 = vrot.slane %v335, 5
      %v384 = vrot.slane %v383, 4
      %v385 = vrot.slane %v212, 5
      %v386 = vsel %vm354, %v384, %v385
      %s387 = scalar_lea.vmem %s190, 8
      %v388 = vld [vmem:[%s387] sm:$0xf]
      %v389 = vld [vmem:[%s387 + $0x8] sm:$0xf]
      %v390 = vld [vmem:[%s387 + $0x10] sm:$0xf]
      %v391 = vld [vmem:[%s387 + $0x18] sm:$0xf]
      %v392 = vld [vmem:[%s387 + $0x20] sm:$0xf]
      %v393 = vld [vmem:[%s387 + $0x28] sm:$0xf]
      %v394 = vld [vmem:[%s387 + $0x30] sm:$0xf]
      %v395 = vld [vmem:[%s387 + $0x38] sm:$0xf]
      %v396 = vld [vmem:[%s387 + $0x4] sm:$0x1]
      %v397 = vld [vmem:[%s387 + $0xc] sm:$0x1]
      %v398 = vld [vmem:[%s387 + $0x14] sm:$0x1]
      %v399 = vld [vmem:[%s387 + $0x1c] sm:$0x1]
      %v400 = vld [vmem:[%s387 + $0x24] sm:$0x1]
      %v401 = vld [vmem:[%s387 + $0x2c] sm:$0x1]
      %v402 = vld [vmem:[%s387 + $0x34] sm:$0x1]
      %v403 = vld [vmem:[%s387 + $0x3c] sm:$0x1]
      %v405 = vshrl.u32 %v388, 16
      %v407 = vrot.slane %v405, 4
      %v408 = vshll.u32 %v388, 16
      %v410 = vrot.slane %v408, 5
      %v411 = vor.u32 %v407, %v410
      %v412 = vrot.slane %v411, 4
      %v414 = vshll.u32 %v396, 16
      %v416 = vrot.slane %v414, 5
      %v417 = vsel %vm215, %v412, %v416
      %v419 = vshrl.u32 %v389, 16
      %v421 = vrot.slane %v419, 4
      %v422 = vshll.u32 %v389, 16
      %v424 = vrot.slane %v422, 5
      %v425 = vor.u32 %v421, %v424
      %v426 = vrot.slane %v425, 4
      %v428 = vshll.u32 %v397, 16
      %v430 = vrot.slane %v428, 5
      %v431 = vsel %vm215, %v426, %v430
      %v433 = vshrl.u32 %v390, 16
      %v435 = vrot.slane %v433, 4
      %v436 = vshll.u32 %v390, 16
      %v438 = vrot.slane %v436, 5
      %v439 = vor.u32 %v435, %v438
      %v440 = vrot.slane %v439, 4
      %v442 = vshll.u32 %v398, 16
      %v444 = vrot.slane %v442, 5
      %v445 = vsel %vm215, %v440, %v444
      %v447 = vshrl.u32 %v391, 16
      %v449 = vrot.slane %v447, 4
      %v450 = vshll.u32 %v391, 16
      %v452 = vrot.slane %v450, 5
      %v453 = vor.u32 %v449, %v452
      %v454 = vrot.slane %v453, 4
      %v456 = vshll.u32 %v399, 16
      %v458 = vrot.slane %v456, 5
      %v459 = vsel %vm215, %v454, %v458
      %v461 = vshrl.u32 %v392, 16
      %v463 = vrot.slane %v461, 4
      %v464 = vshll.u32 %v392, 16
      %v466 = vrot.slane %v464, 5
      %v467 = vor.u32 %v463, %v466
      %v468 = vrot.slane %v467, 4
      %v470 = vshll.u32 %v400, 16
      %v472 = vrot.slane %v470, 5
      %v473 = vsel %vm215, %v468, %v472
      %v475 = vshrl.u32 %v393, 16
      %v477 = vrot.slane %v475, 4
      %v478 = vshll.u32 %v393, 16
      %v480 = vrot.slane %v478, 5
      %v481 = vor.u32 %v477, %v480
      %v482 = vrot.slane %v481, 4
      %v484 = vshll.u32 %v401, 16
      %v486 = vrot.slane %v484, 5
      %v487 = vsel %vm215, %v482, %v486
      %v489 = vshrl.u32 %v394, 16
      %v491 = vrot.slane %v489, 4
      %v492 = vshll.u32 %v394, 16
      %v494 = vrot.slane %v492, 5
      %v495 = vor.u32 %v491, %v494
      %v496 = vrot.slane %v495, 4
      %v498 = vshll.u32 %v402, 16
      %v500 = vrot.slane %v498, 5
      %v501 = vsel %vm215, %v496, %v500
      %v503 = vshrl.u32 %v395, 16
      %v505 = vrot.slane %v503, 4
      %v506 = vshll.u32 %v395, 16
      %v508 = vrot.slane %v506, 5
      %v509 = vor.u32 %v505, %v508
      %v510 = vrot.slane %v509, 4
      %v512 = vshll.u32 %v403, 16
      %v514 = vrot.slane %v512, 5
      %v515 = vsel %vm215, %v510, %v514
      %v516 = vld [vmem:[%s387] sm:$0xe]
      %v517 = vld [vmem:[%s387 + $0x8] sm:$0xe]
      %v518 = vld [vmem:[%s387 + $0x10] sm:$0xe]
      %v519 = vld [vmem:[%s387 + $0x18] sm:$0xe]
      %v520 = vld [vmem:[%s387 + $0x20] sm:$0xe]
      %v521 = vld [vmem:[%s387 + $0x28] sm:$0xe]
      %v522 = vld [vmem:[%s387 + $0x30] sm:$0xe]
      %v523 = vld [vmem:[%s387 + $0x38] sm:$0xe]
      %v540 = vrot.slane %v516, 5
      %v541 = vrot.slane %v540, 4
      %v542 = vrot.slane %v396, 5
      %v543 = vsel %vm354, %v541, %v542
      %v544 = vrot.slane %v517, 5
      %v545 = vrot.slane %v544, 4
      %v546 = vrot.slane %v397, 5
      %v547 = vsel %vm354, %v545, %v546
      %v548 = vrot.slane %v518, 5
      %v549 = vrot.slane %v548, 4
      %v550 = vrot.slane %v398, 5
      %v551 = vsel %vm354, %v549, %v550
      %v552 = vrot.slane %v519, 5
      %v553 = vrot.slane %v552, 4
      %v554 = vrot.slane %v399, 5
      %v555 = vsel %vm354, %v553, %v554
      %v556 = vrot.slane %v520, 5
      %v557 = vrot.slane %v556, 4
      %v558 = vrot.slane %v400, 5
      %v559 = vsel %vm354, %v557, %v558
      %v560 = vrot.slane %v521, 5
      %v561 = vrot.slane %v560, 4
      %v562 = vrot.slane %v401, 5
      %v563 = vsel %vm354, %v561, %v562
      %v564 = vrot.slane %v522, 5
      %v565 = vrot.slane %v564, 4
      %v566 = vrot.slane %v402, 5
      %v567 = vsel %vm354, %v565, %v566
      %v568 = vrot.slane %v523, 5
      %v569 = vrot.slane %v568, 4
      %v570 = vrot.slane %v403, 5
      %v571 = vsel %vm354, %v569, %v570
      %s572 = scalar_lea.vmem %s190, 16
      %v573 = vld [vmem:[%s572] sm:$0xf]
      %v574 = vld [vmem:[%s572 + $0x8] sm:$0xf]
      %v575 = vld [vmem:[%s572 + $0x10] sm:$0xf]
      %v576 = vld [vmem:[%s572 + $0x18] sm:$0xf]
      %v577 = vld [vmem:[%s572 + $0x20] sm:$0xf]
      %v578 = vld [vmem:[%s572 + $0x28] sm:$0xf]
      %v579 = vld [vmem:[%s572 + $0x30] sm:$0xf]
      %v580 = vld [vmem:[%s572 + $0x38] sm:$0xf]
      %v581 = vld [vmem:[%s572 + $0x4] sm:$0x1]
      %v582 = vld [vmem:[%s572 + $0xc] sm:$0x1]
      %v583 = vld [vmem:[%s572 + $0x14] sm:$0x1]
      %v584 = vld [vmem:[%s572 + $0x1c] sm:$0x1]
      %v585 = vld [vmem:[%s572 + $0x24] sm:$0x1]
      %v586 = vld [vmem:[%s572 + $0x2c] sm:$0x1]
      %v587 = vld [vmem:[%s572 + $0x34] sm:$0x1]
      %v588 = vld [vmem:[%s572 + $0x3c] sm:$0x1]
      %v590 = vshrl.u32 %v573, 16
      %v592 = vrot.slane %v590, 4
      %v593 = vshll.u32 %v573, 16
      %v595 = vrot.slane %v593, 5
      %v596 = vor.u32 %v592, %v595
      %v597 = vrot.slane %v596, 4
      %v599 = vshll.u32 %v581, 16
      %v601 = vrot.slane %v599, 5
      %v602 = vsel %vm215, %v597, %v601
      %v604 = vshrl.u32 %v574, 16
      %v606 = vrot.slane %v604, 4
      %v607 = vshll.u32 %v574, 16
      %v609 = vrot.slane %v607, 5
      %v610 = vor.u32 %v606, %v609
      %v611 = vrot.slane %v610, 4
      %v613 = vshll.u32 %v582, 16
      %v615 = vrot.slane %v613, 5
      %v616 = vsel %vm215, %v611, %v615
      %v618 = vshrl.u32 %v575, 16
      %v620 = vrot.slane %v618, 4
      %v621 = vshll.u32 %v575, 16
      %v623 = vrot.slane %v621, 5
      %v624 = vor.u32 %v620, %v623
      %v625 = vrot.slane %v624, 4
      %v627 = vshll.u32 %v583, 16
      %v629 = vrot.slane %v627, 5
      %v630 = vsel %vm215, %v625, %v629
      %v632 = vshrl.u32 %v576, 16
      %v634 = vrot.slane %v632, 4
      %v635 = vshll.u32 %v576, 16
      %v637 = vrot.slane %v635, 5
      %v638 = vor.u32 %v634, %v637
      %v639 = vrot.slane %v638, 4
      %v641 = vshll.u32 %v584, 16
      %v643 = vrot.slane %v641, 5
      %v644 = vsel %vm215, %v639, %v643
      %v646 = vshrl.u32 %v577, 16
      %v648 = vrot.slane %v646, 4
      %v649 = vshll.u32 %v577, 16
      %v651 = vrot.slane %v649, 5
      %v652 = vor.u32 %v648, %v651
      %v653 = vrot.slane %v652, 4
      %v655 = vshll.u32 %v585, 16
      %v657 = vrot.slane %v655, 5
      %v658 = vsel %vm215, %v653, %v657
      %v660 = vshrl.u32 %v578, 16
      %v662 = vrot.slane %v660, 4
      %v663 = vshll.u32 %v578, 16
      %v665 = vrot.slane %v663, 5
      %v666 = vor.u32 %v662, %v665
      %v667 = vrot.slane %v666, 4
      %v669 = vshll.u32 %v586, 16
      %v671 = vrot.slane %v669, 5
      %v672 = vsel %vm215, %v667, %v671
      %v674 = vshrl.u32 %v579, 16
      %v676 = vrot.slane %v674, 4
      %v677 = vshll.u32 %v579, 16
      %v679 = vrot.slane %v677, 5
      %v680 = vor.u32 %v676, %v679
      %v681 = vrot.slane %v680, 4
      %v683 = vshll.u32 %v587, 16
      %v685 = vrot.slane %v683, 5
      %v686 = vsel %vm215, %v681, %v685
      %v688 = vshrl.u32 %v580, 16
      %v690 = vrot.slane %v688, 4
      %v691 = vshll.u32 %v580, 16
      %v693 = vrot.slane %v691, 5
      %v694 = vor.u32 %v690, %v693
      %v695 = vrot.slane %v694, 4
      %v697 = vshll.u32 %v588, 16
      %v699 = vrot.slane %v697, 5
      %v700 = vsel %vm215, %v695, %v699
      %v701 = vld [vmem:[%s572] sm:$0xe]
      %v702 = vld [vmem:[%s572 + $0x8] sm:$0xe]
      %v703 = vld [vmem:[%s572 + $0x10] sm:$0xe]
      %v704 = vld [vmem:[%s572 + $0x18] sm:$0xe]
      %v705 = vld [vmem:[%s572 + $0x20] sm:$0xe]
      %v706 = vld [vmem:[%s572 + $0x28] sm:$0xe]
      %v707 = vld [vmem:[%s572 + $0x30] sm:$0xe]
      %v708 = vld [vmem:[%s572 + $0x38] sm:$0xe]
      %v725 = vrot.slane %v701, 5
      %v726 = vrot.slane %v725, 4
      %v727 = vrot.slane %v581, 5
      %v728 = vsel %vm354, %v726, %v727
      %v729 = vrot.slane %v702, 5
      %v730 = vrot.slane %v729, 4
      %v731 = vrot.slane %v582, 5
      %v732 = vsel %vm354, %v730, %v731
      %v733 = vrot.slane %v703, 5
      %v734 = vrot.slane %v733, 4
      %v735 = vrot.slane %v583, 5
      %v736 = vsel %vm354, %v734, %v735
      %v737 = vrot.slane %v704, 5
      %v738 = vrot.slane %v737, 4
      %v739 = vrot.slane %v584, 5
      %v740 = vsel %vm354, %v738, %v739
      %v741 = vrot.slane %v705, 5
      %v742 = vrot.slane %v741, 4
      %v743 = vrot.slane %v585, 5
      %v744 = vsel %vm354, %v742, %v743
      %v745 = vrot.slane %v706, 5
      %v746 = vrot.slane %v745, 4
      %v747 = vrot.slane %v586, 5
      %v748 = vsel %vm354, %v746, %v747
      %v749 = vrot.slane %v707, 5
      %v750 = vrot.slane %v749, 4
      %v751 = vrot.slane %v587, 5
      %v752 = vsel %vm354, %v750, %v751
      %v753 = vrot.slane %v708, 5
      %v754 = vrot.slane %v753, 4
      %v755 = vrot.slane %v588, 5
      %v756 = vsel %vm354, %v754, %v755
      %v765 = vunpack.c.l.b16 %v197
      %v766 = vunpack.c.l.b16 %v198
      %v767 = vunpack.c.l.b16 %v199
      %v768 = vunpack.c.l.b16 %v200
      %v769 = vunpack.c.l.b16 %v201
      %v770 = vunpack.c.l.b16 %v202
      %v771 = vunpack.c.l.b16 %v203
      %v772 = vunpack.c.l.b16 %v204
      %v773 = vpack.c.b16 %v766, %v765
      %v774 = vpack.c.b16 %v768, %v767
      %v775 = vpack.c.b16 %v770, %v769
      %v776 = vpack.c.b16 %v772, %v771
      %v777 = vunpack.c.l.b16 %v229
      %v778 = vunpack.c.l.b16 %v243
      %v779 = vunpack.c.l.b16 %v257
      %v780 = vunpack.c.l.b16 %v271
      %v781 = vunpack.c.l.b16 %v285
      %v782 = vunpack.c.l.b16 %v299
      %v783 = vunpack.c.l.b16 %v313
      %v784 = vunpack.c.l.b16 %v327
      %v785 = vpack.c.b16 %v778, %v777
      %v786 = vpack.c.b16 %v780, %v779
      %v787 = vpack.c.b16 %v782, %v781
      %v788 = vpack.c.b16 %v784, %v783
      %789 = vrot.lane.b32.xlu0 %v785, 8
      %v790 = vpop.permute.xlu0 %789
      %791 = vrot.lane.b32.xlu0 %v786, 8
      %v792 = vpop.permute.xlu0 %791
      %793 = vrot.lane.b32.xlu0 %v787, 8
      %v794 = vpop.permute.xlu0 %793
      %795 = vrot.lane.b32.xlu0 %v788, 8
      %v796 = vpop.permute.xlu0 %795
      %v797 = vunpack.c.l.b16 %v358
      %v798 = vunpack.c.l.b16 %v362
      %v799 = vunpack.c.l.b16 %v366
      %v800 = vunpack.c.l.b16 %v370
      %v801 = vunpack.c.l.b16 %v374
      %v802 = vunpack.c.l.b16 %v378
      %v803 = vunpack.c.l.b16 %v382
      %v804 = vunpack.c.l.b16 %v386
      %v805 = vpack.c.b16 %v798, %v797
      %v806 = vpack.c.b16 %v800, %v799
      %v807 = vpack.c.b16 %v802, %v801
      %v808 = vpack.c.b16 %v804, %v803
      %809 = vrot.lane.b32.xlu0 %v805, 16
      %v810 = vpop.permute.xlu0 %809
      %811 = vrot.lane.b32.xlu0 %v806, 16
      %v812 = vpop.permute.xlu0 %811
      %813 = vrot.lane.b32.xlu0 %v807, 16
      %v814 = vpop.permute.xlu0 %813
      %815 = vrot.lane.b32.xlu0 %v808, 16
      %v816 = vpop.permute.xlu0 %815
      %v825 = vunpack.c.l.b16 %v388
      %v826 = vunpack.c.l.b16 %v389
      %v827 = vunpack.c.l.b16 %v390
      %v828 = vunpack.c.l.b16 %v391
      %v829 = vunpack.c.l.b16 %v392
      %v830 = vunpack.c.l.b16 %v393
      %v831 = vunpack.c.l.b16 %v394
      %v832 = vunpack.c.l.b16 %v395
      %v833 = vpack.c.b16 %v826, %v825
      %v834 = vpack.c.b16 %v828, %v827
      %v835 = vpack.c.b16 %v830, %v829
      %v836 = vpack.c.b16 %v832, %v831
      %837 = vrot.lane.b32.xlu0 %v833, 24
      %v838 = vpop.permute.xlu0 %837
      %839 = vrot.lane.b32.xlu0 %v834, 24
      %v840 = vpop.permute.xlu0 %839
      %841 = vrot.lane.b32.xlu0 %v835, 24
      %v842 = vpop.permute.xlu0 %841
      %843 = vrot.lane.b32.xlu0 %v836, 24
      %v844 = vpop.permute.xlu0 %843
      %v845 = vunpack.c.l.b16 %v417
      %v846 = vunpack.c.l.b16 %v431
      %v847 = vunpack.c.l.b16 %v445
      %v848 = vunpack.c.l.b16 %v459
      %v849 = vunpack.c.l.b16 %v473
      %v850 = vunpack.c.l.b16 %v487
      %v851 = vunpack.c.l.b16 %v501
      %v852 = vunpack.c.l.b16 %v515
      %v853 = vpack.c.b16 %v846, %v845
      %v854 = vpack.c.b16 %v848, %v847
      %v855 = vpack.c.b16 %v850, %v849
      %v856 = vpack.c.b16 %v852, %v851
      %857 = vrot.lane.b32.xlu0 %v853, 32
      %v858 = vpop.permute.xlu0 %857
      %859 = vrot.lane.b32.xlu0 %v854, 32
      %v860 = vpop.permute.xlu0 %859
      %861 = vrot.lane.b32.xlu0 %v855, 32
      %v862 = vpop.permute.xlu0 %861
      %863 = vrot.lane.b32.xlu0 %v856, 32
      %v864 = vpop.permute.xlu0 %863
      %v865 = vunpack.c.l.b16 %v543
      %v866 = vunpack.c.l.b16 %v547
      %v867 = vunpack.c.l.b16 %v551
      %v868 = vunpack.c.l.b16 %v555
      %v869 = vunpack.c.l.b16 %v559
      %v870 = vunpack.c.l.b16 %v563
      %v871 = vunpack.c.l.b16 %v567
      %v872 = vunpack.c.l.b16 %v571
      %v873 = vpack.c.b16 %v866, %v865
      %v874 = vpack.c.b16 %v868, %v867
      %v875 = vpack.c.b16 %v870, %v869
      %v876 = vpack.c.b16 %v872, %v871
      %877 = vrot.lane.b32.xlu0 %v873, 40
      %v878 = vpop.permute.xlu0 %877
      %879 = vrot.lane.b32.xlu0 %v874, 40
      %v880 = vpop.permute.xlu0 %879
      %881 = vrot.lane.b32.xlu0 %v875, 40
      %v882 = vpop.permute.xlu0 %881
      %883 = vrot.lane.b32.xlu0 %v876, 40
      %v884 = vpop.permute.xlu0 %883
      %v893 = vunpack.c.l.b16 %v573
      %v894 = vunpack.c.l.b16 %v574
      %v895 = vunpack.c.l.b16 %v575
      %v896 = vunpack.c.l.b16 %v576
      %v897 = vunpack.c.l.b16 %v577
      %v898 = vunpack.c.l.b16 %v578
      %v899 = vunpack.c.l.b16 %v579
      %v900 = vunpack.c.l.b16 %v580
      %v901 = vpack.c.b16 %v894, %v893
      %v902 = vpack.c.b16 %v896, %v895
      %v903 = vpack.c.b16 %v898, %v897
      %v904 = vpack.c.b16 %v900, %v899
      %905 = vrot.lane.b32.xlu0 %v901, 48
      %v906 = vpop.permute.xlu0 %905
      %907 = vrot.lane.b32.xlu0 %v902, 48
      %v908 = vpop.permute.xlu0 %907
      %909 = vrot.lane.b32.xlu0 %v903, 48
      %v910 = vpop.permute.xlu0 %909
      %911 = vrot.lane.b32.xlu0 %v904, 48
      %v912 = vpop.permute.xlu0 %911
      %v913 = vunpack.c.l.b16 %v602
      %v914 = vunpack.c.l.b16 %v616
      %v915 = vunpack.c.l.b16 %v630
      %v916 = vunpack.c.l.b16 %v644
      %v917 = vunpack.c.l.b16 %v658
      %v918 = vunpack.c.l.b16 %v672
      %v919 = vunpack.c.l.b16 %v686
      %v920 = vunpack.c.l.b16 %v700
      %v921 = vpack.c.b16 %v914, %v913
      %v922 = vpack.c.b16 %v916, %v915
      %v923 = vpack.c.b16 %v918, %v917
      %v924 = vpack.c.b16 %v920, %v919
      %925 = vrot.lane.b32.xlu0 %v921, 56
      %v926 = vpop.permute.xlu0 %925
      %927 = vrot.lane.b32.xlu0 %v922, 56
      %v928 = vpop.permute.xlu0 %927
      %929 = vrot.lane.b32.xlu0 %v923, 56
      %v930 = vpop.permute.xlu0 %929
      %931 = vrot.lane.b32.xlu0 %v924, 56
      %v932 = vpop.permute.xlu0 %931
      %v933 = vunpack.c.l.b16 %v728
      %v934 = vunpack.c.l.b16 %v732
      %v935 = vunpack.c.l.b16 %v736
      %v936 = vunpack.c.l.b16 %v740
      %v937 = vunpack.c.l.b16 %v744
      %v938 = vunpack.c.l.b16 %v748
      %v939 = vunpack.c.l.b16 %v752
      %v940 = vunpack.c.l.b16 %v756
      %v941 = vpack.c.b16 %v934, %v933
      %v942 = vpack.c.b16 %v936, %v935
      %v943 = vpack.c.b16 %v938, %v937
      %v944 = vpack.c.b16 %v940, %v939
      %945 = vrot.lane.b32.xlu0 %v941, 64
      %v946 = vpop.permute.xlu0 %945
      %947 = vrot.lane.b32.xlu0 %v942, 64
      %v948 = vpop.permute.xlu0 %947
      %949 = vrot.lane.b32.xlu0 %v943, 64
      %v950 = vpop.permute.xlu0 %949
      %951 = vrot.lane.b32.xlu0 %v944, 64
      %v952 = vpop.permute.xlu0 %951
      %vm953 = vcmask 64512
      %v956 = vsel %vm953, %v773, %v790
      %v959 = vsel %vm953, %v774, %v792
      %v962 = vsel %vm953, %v775, %v794
      %v965 = vsel %vm953, %v776, %v796
      %vm966 = vcmask 130048
      %v968 = vsel %vm966, %v956, %v810
      %v970 = vsel %vm966, %v959, %v812
      %v972 = vsel %vm966, %v962, %v814
      %v974 = vsel %vm966, %v965, %v816
      %vm975 = vcmask 195584
      %v977 = vsel %vm975, %v968, %v838
      %v979 = vsel %vm975, %v970, %v840
      %v981 = vsel %vm975, %v972, %v842
      %v983 = vsel %vm975, %v974, %v844
      %vm984 = vcmask 261120
      %v986 = vsel %vm984, %v977, %v858
      %v988 = vsel %vm984, %v979, %v860
      %v990 = vsel %vm984, %v981, %v862
      %v992 = vsel %vm984, %v983, %v864
      %vm993 = vcmask 326656
      %v995 = vsel %vm993, %v986, %v878
      %v997 = vsel %vm993, %v988, %v880
      %v999 = vsel %vm993, %v990, %v882
      %v1001 = vsel %vm993, %v992, %v884
      %vm1002 = vcmask 392192
      %v1004 = vsel %vm1002, %v995, %v906
      %v1006 = vsel %vm1002, %v997, %v908
      %v1008 = vsel %vm1002, %v999, %v910
      %v1010 = vsel %vm1002, %v1001, %v912
      %vm1011 = vcmask 457728
      %v1013 = vsel %vm1011, %v1004, %v926
      %v1015 = vsel %vm1011, %v1006, %v928
      %v1017 = vsel %vm1011, %v1008, %v930
      %v1019 = vsel %vm1011, %v1010, %v932
      %vm1020 = vcmask 523264
      %v1022 = vsel %vm1020, %v1013, %v946
      %v1024 = vsel %vm1020, %v1015, %v948
      %v1026 = vsel %vm1020, %v1017, %v950
      %v1028 = vsel %vm1020, %v1019, %v952
      %v1029 = vld [vmem:[%s1] sm:$0xf]
      %v1030 = vld [vmem:[%s1 + $0x4] sm:$0xf]
      %v1031 = vld [vmem:[%s1 + $0x8] sm:$0xf]
      %v1032 = vld [vmem:[%s1 + $0xc] sm:$0xf]
      %v1033 = vld [vmem:[%s1 + $0x10] sm:$0xf]
      %v1034 = vld [vmem:[%s1 + $0x14] sm:$0xf]
      %v1035 = vld [vmem:[%s1 + $0x18] sm:$0xf]
      %v1036 = vld [vmem:[%s1 + $0x1c] sm:$0xf]
      %v1037 = vld [vmem:[%s1 + $0x20] sm:$0xf]
      %v1038 = vld [vmem:[%s2] sm:$0x1]
      %v1040 = vperm.slane %v1038, 0
      %v1051 = vunpack.c.l.b16 %v1029
      %v1052 = vunpack.c.l.b16 %v1030
      %v1053 = vunpack.c.l.b16 %v1031
      %v1054 = vunpack.c.l.b16 %v1032
      %v1055 = vunpack.c.l.b16 %v1033
      %v1056 = vunpack.c.l.b16 %v1034
      %v1057 = vunpack.c.l.b16 %v1035
      %v1058 = vunpack.c.l.b16 %v1036
      %v1059 = vunpack.c.l.b16 %v1037
      %v1060 = vpack.c.b16 %v1052, %v1051
      %v1061 = vpack.c.b16 %v1054, %v1053
      %v1062 = vpack.c.b16 %v1056, %v1055
      %v1063 = vpack.c.b16 %v1058, %v1057
      %v1064 = vpack.c.b16 %v1059, %v1059
      %vm1069 = vcmask 588800
      %v1070 = vsel %vm1069, %v1022, 0
      %v1072 = vsel %vm1069, %v1024, 0
      %v1074 = vsel %vm1069, %v1026, 0
      %v1076 = vsel %vm1069, %v1028, 0
      %vm1078 = vcmask 1043456
      %v1080 = vsel %vm1078, %v1064, 0
      %1082 = vmatpush.bf16.msra.mxu0 0
      %1083 = vmatpush.bf16.msra.mxu0 0
      %1084 = vmatpush.bf16.msra.mxu0 0
      %1085 = vmatpush.bf16.msra.mxu0 %v1080
      %1086 = vmatpush.bf16.msra.mxu0 %v1063
      %1087 = vmatpush.bf16.msra.mxu0 %v1062
      %1088 = vmatpush.bf16.msra.mxu0 %v1061
      %1089 = vmatpush.bf16.msra.mxu0 %v1060
      %1090 = vmatmul.bf16.gmra.mxu0 %v1070
      %v1091 = vpop.f32.mrf.mxu0
      %v1092 = vadd.f32 %v1040, %v1091
      %v1093 = vpop.f32.mrf.mxu0
      %v1094 = vadd.f32 %v1040, %v1093
      %1095 = vmatmul.bf16.gmra.mxu0 %v1072
      %v1096 = vpop.f32.mrf.mxu0
      %v1097 = vadd.f32 %v1040, %v1096
      %v1098 = vpop.f32.mrf.mxu0
      %v1099 = vadd.f32 %v1040, %v1098
      %1100 = vmatmul.bf16.gmra.mxu0 %v1074
      %v1101 = vpop.f32.mrf.mxu0
      %v1102 = vadd.f32 %v1040, %v1101
      %v1103 = vpop.f32.mrf.mxu0
      %v1104 = vadd.f32 %v1040, %v1103
      %1105 = vmatmul.bf16.gmra.mxu0 %v1076
      %v1106 = vpop.f32.mrf.mxu0
      %v1107 = vadd.f32 %v1040, %v1106
      %v1108 = vpop.f32.mrf.mxu0
      %v1109 = vadd.f32 %v1040, %v1108
      %1110 = vdwg.mxu0
      %v1119 = vrot.slane %v1094, 7
      %vm1120 = vcmask 1041409
      %v1121 = vsel %vm1120, %v1119, %v1092
      %v1122 = vrot.slane %v1097, 6
      %vm1123 = vcmask 1042434
      %v1124 = vsel %vm1123, %v1122, %v1121
      %v1125 = vrot.slane %v1099, 5
      %vm1126 = vcmask 1043459
      %v1127 = vsel %vm1126, %v1125, %v1124
      %v1128 = vrot.slane %v1102, 4
      %vm1129 = vcmask 1044484
      %v1130 = vsel %vm1129, %v1128, %v1127
      %v1131 = vrot.slane %v1104, 3
      %vm1132 = vcmask 1045509
      %v1133 = vsel %vm1132, %v1131, %v1130
      %v1134 = vrot.slane %v1107, 2
      %vm1135 = vcmask 1046534
      %v1136 = vsel %vm1135, %v1134, %v1133
      %v1137 = vrot.slane %v1109, 1
      %vm1138 = vcmask 1047559
      %v1139 = vsel %vm1138, %v1137, %v1136
      %v1141 = vrot.slane %v1092, 1
      %v1142 = vsel %vm1120, %v1094, %v1141
      %v1143 = vrot.slane %v1097, 7
      %v1144 = vsel %vm1123, %v1143, %v1142
      %v1145 = vrot.slane %v1099, 6
      %v1146 = vsel %vm1126, %v1145, %v1144
      %v1147 = vrot.slane %v1102, 5
      %v1148 = vsel %vm1129, %v1147, %v1146
      %v1149 = vrot.slane %v1104, 4
      %v1150 = vsel %vm1132, %v1149, %v1148
      %v1151 = vrot.slane %v1107, 3
      %v1152 = vsel %vm1135, %v1151, %v1150
      %v1153 = vrot.slane %v1109, 2
      %v1154 = vsel %vm1138, %v1153, %v1152
      %1155 = vrot.lane.b32.xlu0 %v1154, 32
      %v1156 = vpop.permute.xlu0 %1155
      %v1158 = vrot.slane %v1092, 2
      %v1159 = vrot.slane %v1094, 1
      %v1160 = vsel %vm1120, %v1159, %v1158
      %v1161 = vsel %vm1123, %v1097, %v1160
      %v1162 = vrot.slane %v1099, 7
      %v1163 = vsel %vm1126, %v1162, %v1161
      %v1164 = vrot.slane %v1102, 6
      %v1165 = vsel %vm1129, %v1164, %v1163
      %v1166 = vrot.slane %v1104, 5
      %v1167 = vsel %vm1132, %v1166, %v1165
      %v1168 = vrot.slane %v1107, 4
      %v1169 = vsel %vm1135, %v1168, %v1167
      %v1170 = vrot.slane %v1109, 3
      %v1171 = vsel %vm1138, %v1170, %v1169
      %1172 = vrot.lane.b32.xlu0 %v1171, 64
      %v1173 = vpop.permute.xlu0 %1172
      %v1175 = vrot.slane %v1092, 3
      %v1176 = vrot.slane %v1094, 2
      %v1177 = vsel %vm1120, %v1176, %v1175
      %v1178 = vrot.slane %v1097, 1
      %v1179 = vsel %vm1123, %v1178, %v1177
      %v1180 = vsel %vm1126, %v1099, %v1179
      %v1181 = vrot.slane %v1102, 7
      %v1182 = vsel %vm1129, %v1181, %v1180
      %v1183 = vrot.slane %v1104, 6
      %v1184 = vsel %vm1132, %v1183, %v1182
      %v1185 = vrot.slane %v1107, 5
      %v1186 = vsel %vm1135, %v1185, %v1184
      %v1187 = vrot.slane %v1109, 4
      %v1188 = vsel %vm1138, %v1187, %v1186
      %1189 = vrot.lane.b32.xlu0 %v1188, 96
      %v1190 = vpop.permute.xlu0 %1189
      %v1192 = vrot.slane %v1092, 4
      %v1193 = vrot.slane %v1094, 3
      %v1194 = vsel %vm1120, %v1193, %v1192
      %v1195 = vrot.slane %v1097, 2
      %v1196 = vsel %vm1123, %v1195, %v1194
      %v1197 = vrot.slane %v1099, 1
      %v1198 = vsel %vm1126, %v1197, %v1196
      %v1199 = vsel %vm1129, %v1102, %v1198
      %v1200 = vrot.slane %v1104, 7
      %v1201 = vsel %vm1132, %v1200, %v1199
      %v1202 = vrot.slane %v1107, 6
      %v1203 = vsel %vm1135, %v1202, %v1201
      %v1204 = vrot.slane %v1109, 5
      %v1205 = vsel %vm1138, %v1204, %v1203
      %v1207 = vrot.slane %v1092, 5
      %v1208 = vrot.slane %v1094, 4
      %v1209 = vsel %vm1120, %v1208, %v1207
      %v1210 = vrot.slane %v1097, 3
      %v1211 = vsel %vm1123, %v1210, %v1209
      %v1212 = vrot.slane %v1099, 2
      %v1213 = vsel %vm1126, %v1212, %v1211
      %v1214 = vrot.slane %v1102, 1
      %v1215 = vsel %vm1129, %v1214, %v1213
      %v1216 = vsel %vm1132, %v1104, %v1215
      %v1217 = vrot.slane %v1107, 7
      %v1218 = vsel %vm1135, %v1217, %v1216
      %v1219 = vrot.slane %v1109, 6
      %v1220 = vsel %vm1138, %v1219, %v1218
      %1221 = vrot.lane.b32.xlu0 %v1220, 32
      %v1222 = vpop.permute.xlu0 %1221
      %v1224 = vrot.slane %v1092, 6
      %v1225 = vrot.slane %v1094, 5
      %v1226 = vsel %vm1120, %v1225, %v1224
      %v1227 = vrot.slane %v1097, 4
      %v1228 = vsel %vm1123, %v1227, %v1226
      %v1229 = vrot.slane %v1099, 3
      %v1230 = vsel %vm1126, %v1229, %v1228
      %v1231 = vrot.slane %v1102, 2
      %v1232 = vsel %vm1129, %v1231, %v1230
      %v1233 = vrot.slane %v1104, 1
      %v1234 = vsel %vm1132, %v1233, %v1232
      %v1235 = vsel %vm1135, %v1107, %v1234
      %v1236 = vrot.slane %v1109, 7
      %v1237 = vsel %vm1138, %v1236, %v1235
      %1238 = vrot.lane.b32.xlu0 %v1237, 64
      %v1239 = vpop.permute.xlu0 %1238
      %v1241 = vrot.slane %v1092, 7
      %v1242 = vrot.slane %v1094, 6
      %v1243 = vsel %vm1120, %v1242, %v1241
      %v1244 = vrot.slane %v1097, 5
      %v1245 = vsel %vm1123, %v1244, %v1243
      %v1246 = vrot.slane %v1099, 4
      %v1247 = vsel %vm1126, %v1246, %v1245
      %v1248 = vrot.slane %v1102, 3
      %v1249 = vsel %vm1129, %v1248, %v1247
      %v1250 = vrot.slane %v1104, 2
      %v1251 = vsel %vm1132, %v1250, %v1249
      %v1252 = vrot.slane %v1107, 1
      %v1253 = vsel %vm1135, %v1252, %v1251
      %v1254 = vsel %vm1138, %v1109, %v1253
      %1255 = vrot.lane.b32.xlu0 %v1254, 96
      %v1256 = vpop.permute.xlu0 %1255
      %v1258 = vsel %vm984, %v1139, %v1156
      %v1259 = vsel %vm1020, %v1258, %v1173
      %vm1260 = vcmask 785408
      %v1261 = vsel %vm1260, %v1259, %v1190
      %v1262 = vsel %vm984, %v1205, %v1222
      %v1263 = vsel %vm1020, %v1262, %v1239
      %v1264 = vsel %vm1260, %v1263, %v1256
      %v1265 = vpack.c.bf16 %v1264, %v1261
      %1266 = vst [vmem:[%s195] sm:$0xff] %v1265
      %v1267 = vsel %vm984, %v1092, 0.0
      %v1268 = vsel %vm984, %v1094, 0.0
      %v1269 = vadd.f32 %v1267, %v1268
      %v1270 = vsel %vm984, %v1097, 0.0
      %v1271 = vadd.f32 %v1269, %v1270
      %v1272 = vsel %vm984, %v1099, 0.0
      %v1273 = vadd.f32 %v1271, %v1272
      %v1274 = vsel %vm984, %v1102, 0.0
      %v1275 = vadd.f32 %v1273, %v1274
      %v1276 = vsel %vm984, %v1104, 0.0
      %v1277 = vadd.f32 %v1275, %v1276
      %v1278 = vsel %vm984, %v1107, 0.0
      %v1279 = vadd.f32 %v1277, %v1278
      %v1280 = vsel %vm984, %v1109, 0.0
      %v1281 = vadd.f32 %v1279, %v1280
      %v1282 = vrot.slane %v1281, 4
      %v1283 = vadd.f32 %v1281, %v1282
      %v1284 = vrot.slane %v1283, 2
      %v1285 = vadd.f32 %v1283, %v1284
      %v1286 = vrot.slane %v1285, 1
      %v1287 = vadd.f32 %v1285, %v1286
      %v1288 = vmul.f32 %v1092, %v1092
      %v1289 = vmul.f32 %v1094, %v1094
      %v1290 = vmul.f32 %v1097, %v1097
      %v1291 = vmul.f32 %v1099, %v1099
      %v1292 = vmul.f32 %v1102, %v1102
      %v1293 = vmul.f32 %v1104, %v1104
      %v1294 = vmul.f32 %v1107, %v1107
      %v1295 = vmul.f32 %v1109, %v1109
      %v1296 = vsel %vm984, %v1288, 0.0
      %v1297 = vsel %vm984, %v1289, 0.0
      %v1298 = vadd.f32 %v1296, %v1297
      %v1299 = vsel %vm984, %v1290, 0.0
      %v1300 = vadd.f32 %v1298, %v1299
      %v1301 = vsel %vm984, %v1291, 0.0
      %v1302 = vadd.f32 %v1300, %v1301
      %v1303 = vsel %vm984, %v1292, 0.0
      %v1304 = vadd.f32 %v1302, %v1303
      %v1305 = vsel %vm984, %v1293, 0.0
      %v1306 = vadd.f32 %v1304, %v1305
      %v1307 = vsel %vm984, %v1294, 0.0
      %v1308 = vadd.f32 %v1306, %v1307
      %v1309 = vsel %vm984, %v1295, 0.0
      %v1310 = vadd.f32 %v1308, %v1309
      %v1311 = vrot.slane %v1310, 4
      %v1312 = vadd.f32 %v1310, %v1311
      %v1313 = vrot.slane %v1312, 2
      %v1314 = vadd.f32 %v1312, %v1313
      %v1315 = vrot.slane %v1314, 1
      %v1316 = vadd.f32 %v1314, %v1315
      %vm1317 = vcmask 1040384
      %v1318 = vsel %vm1317, %v1287, %v1316
      %p1319 = scmp.eq.s32.totalorder %s16, 0
      // Predicated region
      $region33: #{_lambda_.6} parent=31 // pred_check
        %p1320 = pneg %p1319
      $region34: #{_lambda_.6} parent=31 // pred_check_branch
        %1322 = sbr.rel (%p1320) target = $region36
      $region35: #{_lambda_.6} parent=31 // pred_region
        %vm1323 = vcmask 254976
        %1324 = vst.msk [vmem:[%s4] sm:$0x3] %vm1323, 0.0
      $region36: #{_lambda_.6} parent=31 // pred_fallthru
        _
      %v1325 = vld [vmem:[%s4] sm:$0x3]
      %v1326 = vadd.f32 %v1325, %v1318
      %vm1327 = vcmask 254976
      %1328 = vst.msk [vmem:[%s4] sm:$0x3] %vm1327, %v1326
      %p1329 = scmp.lt.s32.totalorder %s16, 1
      %s1330 = scalar_select %p1329, %s16, 1
      %s1331 = smul.addr %s1330, 2
      %s1332 = smul.addr %s1331, 4
      %s1333 = scalar_lea.vmem %s3, %s1332
      // Predicated region
      $region37: #{_lambda_.6} parent=31 // pred_check
        %p1334 = pneg %p102
      $region38: #{_lambda_.6} parent=31 // pred_check_branch
        %1336 = sbr.rel (%p1334) target = $region40
      $region39: #{_lambda_.6} parent=31 // pred_region
        _
      $region40: #{_lambda_.6} parent=31 // pred_fallthru
        _
      // Predicated region
      $region41: #{_lambda_.6} parent=31 // pred_check
        %p1337 = pneg %p123
      $region42: #{_lambda_.6} parent=31 // pred_check_branch
        %1339 = sbr.rel (%p1337) target = $region44
      $region43: #{_lambda_.6} parent=31 // pred_region
        _
      $region44: #{_lambda_.6} parent=31 // pred_fallthru
        _
      // Predicated region
      $region45: #{_lambda_.6} parent=31 // pred_check
        %p1340 = pneg %p123
      $region46: #{_lambda_.6} parent=31 // pred_check_branch
        %1342 = sbr.rel (%p1340) target = $region48
      $region47: #{_lambda_.6} parent=31 // pred_region
        _
      $region48: #{_lambda_.6} parent=31 // pred_fallthru
        _
    $region32: #{_lambda_.6} parent=5 // pred_fallthru
      _
    %p1343 = scmp.le.s32.totalorder 2, %s11
    // Predicated region
    $region49: #{_lambda_.6} parent=5 // pred_check
      %p1344 = pneg %p1343
    $region50: #{_lambda_.6} parent=5 // pred_check_branch
      %1346 = sbr.rel (%p1344) target = $region52
    $region51: #{_lambda_.6} parent=5 // pred_region
      %s1347 = ssub.s32 %s11, 2
      // Predicated region
      $region53: #{_lambda_.6} parent=51 // pred_check
        %p1348 = pneg %p108
      $region54: #{_lambda_.6} parent=51 // pred_check_branch
        %1350 = sbr.rel (%p1348) target = $region56
      $region55: #{_lambda_.6} parent=51 // pred_region
        %p1351 = scmp.lt.s32.totalorder %s17, 1
        %s1352 = scalar_select %p1351, %s17, 1
        %s1353 = smul.addr %s1352, 2
        %s1354 = smul.addr %s1353, 4
        %s1355 = scalar_lea.vmem %s3, %s1354
      $region56: #{_lambda_.6} parent=51 // pred_fallthru
        _
    $region52: #{_lambda_.6} parent=5 // pred_fallthru
      _
  $region6: #{_lambda_.6} parent=0 // loop_footer
    %s15 = sadd.s32 1, %s11
  $region7: #{_lambda_.6} parent=0 // loop_footer_branch
    %10 = sbr.rel target = $region3
  $region8: #{_lambda_.6} parent=0 // loop_exit
    _

// kernel: tile.59
$region0: #{tile.59}
  #allocation0 [shape = 's32[1]{0}', space=sflag, size = 0x4, scoped, tag = 'scoped memory for tile.59']
  %s0 = inlined_call_operand.vmem [shape: f32[16], index: 0, kind: input, shape index: {}]
  %s1 = inlined_call_operand.vmem [shape: f32[16,16], index: 1, kind: output, shape index: {}]
  // Predicated region
  $region2: #{tile.59} parent=0 // pred_check
    _
  $region3: #{tile.59} parent=0 // pred_check_branch
    %3 = sbr.rel (0) target = $region5
  $region4: #{tile.59} parent=0 // pred_region
    _
  $region5: #{tile.59} parent=0 // pred_fallthru
    _
  %v4 = vld [vmem:[%s0] ss:$0 sm:$0xff]
  %5 = vst [vmem:[%s1] sm:$0xff] %v4
  %s6 = scalar_lea.vmem %s1, 8
  %7 = vst [vmem:[%s6] sm:$0xff] %v4

// kernel: tile.64
$region0: #{tile.64}
  %s0 = inlined_call_operand.vmem [shape: f32[16,16], index: 0, kind: input, shape index: {}]
  %s1 = inlined_call_operand.vmem [shape: f32[1,256], index: 1, kind: output, shape index: {}]
  $region1: #{tile.64} parent=0
    #allocation0 [shape = 'u8[8192]{0}', space=vmem, size = 0x2000, scoped, tag = 'scoped mem for output reshape']
    %s2 = smov 3
    %v3 = vld [vmem:[%s0] ss:$8 sm:%s2]
    %vm4 = vcmask 130048
    %5 = vst.msk [vmem:[#allocation0] ss:$8 sm:$0x3] %vm4, %v3
    %s6 = scalar_lea.vmem %s0, 7
    %s7 = smov 3
    %v8 = vld [vmem:[%s6] ss:$8 sm:%s7]
    %9 = vrot.lane.b32.xlu0 %v8, 112
    %v10 = vpop.permute.xlu0 %9
    %vm11 = vcmask 1048448
    %12 = vst.msk [vmem:[#allocation0] ss:$8 sm:$0x3] %vm11, %v10
    %s13 = scalar_lea.vmem %s0, 6
    %s14 = smov 3
    %v15 = vld [vmem:[%s13] ss:$8 sm:%s14]
    %16 = vrot.lane.b32.xlu0 %v15, 96
    %v17 = vpop.permute.xlu0 %16
    %vm18 = vcmask 917248
    %19 = vst.msk [vmem:[#allocation0] ss:$8 sm:$0x3] %vm18, %v17
    %s20 = scalar_lea.vmem %s0, 5
    %s21 = smov 3
    %v22 = vld [vmem:[%s20] ss:$8 sm:%s21]
    %23 = vrot.lane.b32.xlu0 %v22, 80
    %v24 = vpop.permute.xlu0 %23
    %vm25 = vcmask 786048
    %26 = vst.msk [vmem:[#allocation0] ss:$8 sm:$0x3] %vm25, %v24
    %s27 = scalar_lea.vmem %s0, 4
    %s28 = smov 3
    %v29 = vld [vmem:[%s27] ss:$8 sm:%s28]
    %30 = vrot.lane.b32.xlu0 %v29, 64
    %v31 = vpop.permute.xlu0 %30
    %vm32 = vcmask 654848
    %33 = vst.msk [vmem:[#allocation0] ss:$8 sm:$0x3] %vm32, %v31
    %s34 = scalar_lea.vmem %s0, 3
    %s35 = smov 3
    %v36 = vld [vmem:[%s34] ss:$8 sm:%s35]
    %37 = vrot.lane.b32.xlu0 %v36, 48
    %v38 = vpop.permute.xlu0 %37
    %vm39 = vcmask 523648
    %40 = vst.msk [vmem:[#allocation0] ss:$8 sm:$0x3] %vm39, %v38
    %s41 = scalar_lea.vmem %s0, 2
    %s42 = smov 3
    %v43 = vld [vmem:[%s41] ss:$8 sm:%s42]
    %44 = vrot.lane.b32.xlu0 %v43, 32
    %v45 = vpop.permute.xlu0 %44
    %vm46 = vcmask 392448
    %47 = vst.msk [vmem:[#allocation0] ss:$8 sm:$0x3] %vm46, %v45
    %s48 = scalar_lea.vmem %s0, 1
    %s49 = smov 3
    %v50 = vld [vmem:[%s48] ss:$8 sm:%s49]
    %51 = vrot.lane.b32.xlu0 %v50, 16
    %v52 = vpop.permute.xlu0 %51
    %vm53 = vcmask 261248
    %54 = vst.msk [vmem:[#allocation0] ss:$8 sm:$0x3] %vm53, %v52
    %s56 = ssub.s32 2, 1
    %v57 = vld [vmem:[#allocation0] sm:%s56]
    %s59 = ssub.s32 2, 1
    %60 = vst [vmem:[%s1] sm:%s59] %v57
    %s61 = scalar_lea.vmem [#allocation0], 8
    %v62 = vld [vmem:[%s61] sm:%s56]
    %s64 = ssub.s32 2, 1
    %s65 = scalar_lea.vmem %s1, 1
    %66 = vst [vmem:[%s65] sm:%s64] %v62

// kernel: _lambda_.9
$region0: #{_lambda_.9}
  #allocation0 [shape = 'u32[]', space=smem, size = 0x4, offset = 0x4, fixed_abs, tag = 'smem constant byte address 0x4 - core index']
  #allocation1 [shape = 'u32[72,128]{1,0:T(1,128)}', space=vmem, size = 0x9000, scoped, tag = 'internal scratch']
  %s0 = inlined_call_operand.vmem [shape: bf16[32,256], index: 0, kind: input, shape index: {}]
  %s1 = inlined_call_operand.vmem [shape: f32[1,256], index: 1, kind: input, shape index: {}]
  %s2 = inlined_call_operand.vmem [shape: f32[1,256], index: 2, kind: input, shape index: {}]
  %s3 = inlined_call_operand.vmem [shape: f32[1,256], index: 3, kind: input, shape index: {}]
  %s4 = inlined_call_operand.vmem [shape: bf16[32,256], index: 4, kind: output, shape index: {}]
  %s5 = sld [smem:[#allocation0]]
  $region26: #{_lambda_.9} parent=0
    _
  %s7 = ssub.s32 1, %s5
  %s8 = scalar_select 0, %s7, %s5
  // Predicated region
  $region2: #{_lambda_.9} parent=0 // pred_check
    _
  $region3: #{_lambda_.9} parent=0 // pred_check_branch
    %10 = sbr.rel (0) target = $region5
  $region4: #{_lambda_.9} parent=0 // pred_region
    _
  $region5: #{_lambda_.9} parent=0 // pred_fallthru
    _
  // Predicated region
  $region6: #{_lambda_.9} parent=0 // pred_check
    _
  $region7: #{_lambda_.9} parent=0 // pred_check_branch
    %12 = sbr.rel (0) target = $region9
  $region8: #{_lambda_.9} parent=0 // pred_region
    _
  $region9: #{_lambda_.9} parent=0 // pred_fallthru
    _
  // Predicated region
  $region10: #{_lambda_.9} parent=0 // pred_check
    _
  $region11: #{_lambda_.9} parent=0 // pred_check_branch
    %14 = sbr.rel (0) target = $region13
  $region12: #{_lambda_.9} parent=0 // pred_region
    _
  $region13: #{_lambda_.9} parent=0 // pred_fallthru
    _
  // Predicated region
  $region14: #{_lambda_.9} parent=0 // pred_check
    _
  $region15: #{_lambda_.9} parent=0 // pred_check_branch
    %16 = sbr.rel (0) target = $region17
  $region16: #{_lambda_.9} parent=0 // pred_region
    _
  $region17: #{_lambda_.9} parent=0 // pred_fallthru
    _
  %v17 = vld [vmem:[%s0] sm:$0xff]
  %v18 = vld [vmem:[%s0 + $0x8] sm:$0xff]
  %v19 = vld [vmem:[%s0 + $0x10] sm:$0xff]
  %v20 = vld [vmem:[%s0 + $0x18] sm:$0xff]
  %v21 = vunpack.c.l.bf16 %v17
  %v22 = vunpack.c.h.bf16 %v17
  %v23 = vunpack.c.l.bf16 %v18
  %v24 = vunpack.c.h.bf16 %v18
  %v25 = vunpack.c.l.bf16 %v19
  %v26 = vunpack.c.h.bf16 %v19
  %v27 = vunpack.c.l.bf16 %v20
  %v28 = vunpack.c.h.bf16 %v20
  %v29 = vld [vmem:[%s1] sm:$0x3]
  %v31 = vperm.slane %v29, 0
  %v32 = vperm.slane %v29, 1
  %v35 = vmul.f32 %v21, %v31
  %v36 = vmul.f32 %v22, %v32
  %v37 = vmul.f32 %v23, %v31
  %v38 = vmul.f32 %v24, %v32
  %v39 = vmul.f32 %v25, %v31
  %v40 = vmul.f32 %v26, %v32
  %v41 = vmul.f32 %v27, %v31
  %v42 = vmul.f32 %v28, %v32
  %v43 = vld [vmem:[%s2] sm:$0x3]
  %v45 = vperm.slane %v43, 0
  %v46 = vperm.slane %v43, 1
  %v49 = vadd.f32 %v35, %v45
  %v50 = vadd.f32 %v36, %v46
  %v51 = vadd.f32 %v37, %v45
  %v52 = vadd.f32 %v38, %v46
  %v53 = vadd.f32 %v39, %v45
  %v54 = vadd.f32 %v40, %v46
  %v55 = vadd.f32 %v41, %v45
  %v56 = vadd.f32 %v42, %v46
  %vm57 = vcmp.ge.f32.partialorder %v49, 0.0
  %vm58 = vcmp.ge.f32.partialorder %v50, 0.0
  %vm59 = vcmp.ge.f32.partialorder %v51, 0.0
  %vm60 = vcmp.ge.f32.partialorder %v52, 0.0
  %vm61 = vcmp.ge.f32.partialorder %v53, 0.0
  %vm62 = vcmp.ge.f32.partialorder %v54, 0.0
  %vm63 = vcmp.ge.f32.partialorder %v55, 0.0
  %vm64 = vcmp.ge.f32.partialorder %v56, 0.0
  %v65 = vld [vmem:[%s3] sm:$0x3]
  %v67 = vperm.slane %v65, 0
  %v68 = vperm.slane %v65, 1
  %v71 = vmul.f32 %v49, %v67
  %v72 = vmul.f32 %v50, %v68
  %v73 = vmul.f32 %v51, %v67
  %v74 = vmul.f32 %v52, %v68
  %v75 = vmul.f32 %v53, %v67
  %v76 = vmul.f32 %v54, %v68
  %v77 = vmul.f32 %v55, %v67
  %v78 = vmul.f32 %v56, %v68
  %v79 = vsel %vm57, %v49, %v71
  %v80 = vsel %vm58, %v50, %v72
  %v81 = vsel %vm59, %v51, %v73
  %v82 = vsel %vm60, %v52, %v74
  %v83 = vsel %vm61, %v53, %v75
  %v84 = vsel %vm62, %v54, %v76
  %v85 = vsel %vm63, %v55, %v77
  %v86 = vsel %vm64, %v56, %v78
  %v87 = vpack.c.bf16 %v80, %v79
  %v88 = vpack.c.bf16 %v82, %v81
  %v89 = vpack.c.bf16 %v84, %v83
  %v90 = vpack.c.bf16 %v86, %v85
  %91 = vst [vmem:[%s4] sm:$0xff] %v87
  %92 = vst [vmem:[%s4 + $0x8] sm:$0xff] %v88
  %93 = vst [vmem:[%s4 + $0x10] sm:$0xff] %v89
  %94 = vst [vmem:[%s4 + $0x18] sm:$0xff] %v90
  // Predicated region
  $region18: #{_lambda_.9} parent=0 // pred_check
    _
  $region19: #{_lambda_.9} parent=0 // pred_check_branch
    %96 = sbr.rel (0) target = $region21
  $region20: #{_lambda_.9} parent=0 // pred_region
    _
  $region21: #{_lambda_.9} parent=0 // pred_fallthru
    _
  // Predicated region
  $region22: #{_lambda_.9} parent=0 // pred_check
    _
  $region23: #{_lambda_.9} parent=0 // pred_check_branch
    %98 = sbr.rel (0) target = $region25
  $region24: #{_lambda_.9} parent=0 // pred_region
    _
  $region25: #{_lambda_.9} parent=0 // pred_fallthru
    _

// kernel: _lambda_.8
$region0: #{_lambda_.8}
  #allocation0 [shape = 'u32[]', space=smem, size = 0x4, offset = 0x4, fixed_abs, tag = 'smem constant byte address 0x4 - core index']
  #allocation1 [shape = 'u32[72,128]{1,0:T(1,128)}', space=vmem, size = 0x9000, scoped, tag = 'internal scratch']
  %s0 = inlined_call_operand.vmem [shape: bf16[2,20,20,8], index: 0, kind: input, shape index: {}]
  %s1 = inlined_call_operand.vmem [shape: bf16[200,16], index: 1, kind: input, shape index: {}]
  %s2 = inlined_call_operand.vmem [shape: f32[1,16], index: 2, kind: input, shape index: {}]
  %s3 = inlined_call_operand.vmem [shape: bf16[2,16,256], index: 3, kind: output, shape index: {0}]
  %s4 = inlined_call_operand.vmem [shape: f32[2,16], index: 4, kind: output, shape index: {1}]
  %5 = xla_tuple %s3, %s4
  %s6 = sld [smem:[#allocation0]]
  $region57: #{_lambda_.8} parent=0
    _
  %s8 = ssub.s32 1, %s6
  %s9 = scalar_select 0, %s8, %s6
  loop: start=0, step=1, limit=4
  $region2: #{_lambda_.8} parent=0 // loop_pre_header
    _
  $region3: #{_lambda_.8} parent=0 // loop_header
    %s11 = sphi 0, %s15
    %p12 = scmp.ge.s32.totalorder %s11, 4
    %s21 = sphi 0, %s23
    %s24 = sphi 0, %s21
    %s25 = sphi 0, %s24
    %s41 = sphi 0, %s25
    %s45 = sphi 0, %s45
    %s47 = sphi 0, %s45
    %s48 = sphi 0, %s47
    %s62 = sphi 0, %s48
    %s66 = sphi 0, %s66
    %s68 = sphi 0, %s66
    %s69 = sphi 0, %s68
    %s83 = sphi 0, %s69
    %s89 = sphi 0, %s91
    %s92 = sphi 0, %s89
    %s93 = sphi 0, %s92
    %s109 = sphi 0, %s93
    %s113 = sphi 0, %s113
    %s115 = sphi 0, %s113
    %s116 = sphi 0, %s115
    %s130 = sphi 0, %s116
  $region4: #{_lambda_.8} parent=0 // loop_header_branch
    %14 = sbr.rel (%p12) target = $region8
  $region5: #{_lambda_.8} parent=0 // loop_body
    %s16 = ssub.s32 %s11, 1
    %s17 = ssub.s32 %s11, 2
    %s18 = sadd.s32 %s11, 1
    %s19 = ssub.s32 %s11, %s18
    %p20 = scmp.eq.s32.totalorder %s19, 0
    %s22 = sadd.s32 %s21, 1
    %s23 = scalar_select %p20, %s21, %s22
    %p26 = pneg %p20
    %p27 = scmp.eq.s32.totalorder %s11, 1
    %p28 = por %p26, %p27
    %p29 = scmp.ne.s32.totalorder %s21, %s24
    %p30 = scmp.eq.s32.totalorder %s11, 0
    %p31 = por %p29, %p30
    %p32 = scmp.ne.s32.totalorder %s21, %s24
    %p33 = scmp.eq.s32.totalorder %s16, 1
    %p34 = por %p32, %p33
    %p35 = scmp.ne.s32.totalorder %s24, %s25
    %p36 = scmp.eq.s32.totalorder %s16, 0
    %p37 = por %p35, %p36
    %p38 = scmp.ne.s32.totalorder %s24, %s25
    %p39 = scmp.eq.s32.totalorder %s17, 1
    %p40 = por %p38, %p39
    %p42 = scmp.ne.s32.totalorder %s25, %s41
    %p43 = scmp.eq.s32.totalorder %s17, 0
    %p44 = por %p42, %p43
    %s46 = sadd.s32 %s45, 1
    %p49 = scmp.eq.s32.totalorder %s11, 1
    %p50 = scmp.ne.s32.totalorder %s45, %s47
    %p51 = scmp.eq.s32.totalorder %s11, 0
    %p52 = por %p50, %p51
    %p53 = scmp.ne.s32.totalorder %s45, %s47
    %p54 = scmp.eq.s32.totalorder %s16, 1
    %p55 = por %p53, %p54
    %p56 = scmp.ne.s32.totalorder %s47, %s48
    %p57 = scmp.eq.s32.totalorder %s16, 0
    %p58 = por %p56, %p57
    %p59 = scmp.ne.s32.totalorder %s47, %s48
    %p60 = scmp.eq.s32.totalorder %s17, 1
    %p61 = por %p59, %p60
    %p63 = scmp.ne.s32.totalorder %s48, %s62
    %p64 = scmp.eq.s32.totalorder %s17, 0
    %p65 = por %p63, %p64
    %s67 = sadd.s32 %s66, 1
    %p70 = scmp.eq.s32.totalorder %s11, 1
    %p71 = scmp.ne.s32.totalorder %s66, %s68
    %p72 = scmp.eq.s32.totalorder %s11, 0
    %p73 = por %p71, %p72
    %p74 = scmp.ne.s32.totalorder %s66, %s68
    %p75 = scmp.eq.s32.totalorder %s16, 1
    %p76 = por %p74, %p75
    %p77 = scmp.ne.s32.totalorder %s68, %s69
    %p78 = scmp.eq.s32.totalorder %s16, 0
    %p79 = por %p77, %p78
    %p80 = scmp.ne.s32.totalorder %s68, %s69
    %p81 = scmp.eq.s32.totalorder %s17, 1
    %p82 = por %p80, %p81
    %p84 = scmp.ne.s32.totalorder %s69, %s83
    %p85 = scmp.eq.s32.totalorder %s17, 0
    %p86 = por %p84, %p85
    %s87 = ssub.s32 %s11, %s18
    %p88 = scmp.eq.s32.totalorder %s87, 0
    %s90 = sadd.s32 %s89, 1
    %s91 = scalar_select %p88, %s89, %s90
    %p94 = pneg %p88
    %p95 = scmp.eq.s32.totalorder %s11, 1
    %p96 = por %p94, %p95
    %p97 = scmp.ne.s32.totalorder %s89, %s92
    %p98 = scmp.eq.s32.totalorder %s11, 0
    %p99 = por %p97, %p98
    %p100 = scmp.ne.s32.totalorder %s89, %s92
    %p101 = scmp.eq.s32.totalorder %s16, 1
    %p102 = por %p100, %p101
    %p103 = scmp.ne.s32.totalorder %s92, %s93
    %p104 = scmp.eq.s32.totalorder %s16, 0
    %p105 = por %p103, %p104
    %p106 = scmp.ne.s32.totalorder %s92, %s93
    %p107 = scmp.eq.s32.totalorder %s17, 1
    %p108 = por %p106, %p107
    %p110 = scmp.ne.s32.totalorder %s93, %s109
    %p111 = scmp.eq.s32.totalorder %s17, 0
    %p112 = por %p110, %p111
    %s114 = sadd.s32 %s113, 1
    %p117 = scmp.eq.s32.totalorder %s11, 1
    %p118 = scmp.ne.s32.totalorder %s113, %s115
    %p119 = scmp.eq.s32.totalorder %s11, 0
    %p120 = por %p118, %p119
    %p121 = scmp.ne.s32.totalorder %s113, %s115
    %p122 = scmp.eq.s32.totalorder %s16, 1
    %p123 = por %p121, %p122
    %p124 = scmp.ne.s32.totalorder %s115, %s116
    %p125 = scmp.eq.s32.totalorder %s16, 0
    %p126 = por %p124, %p125
    %p127 = scmp.ne.s32.totalorder %s115, %s116
    %p128 = scmp.eq.s32.totalorder %s17, 1
    %p129 = por %p127, %p128
    %p131 = scmp.ne.s32.totalorder %s116, %s130
    %p132 = scmp.eq.s32.totalorder %s17, 0
    %p133 = por %p131, %p132
    %p134 = scmp.le.s32.totalorder 1, %s11
    %p135 = scmp.lt.s32.totalorder %s11, 3
    %p136 = pnand %p134, %p135
    %p137 = pneg %p136
    // Predicated region
    $region9: #{_lambda_.8} parent=5 // pred_check
      _
    $region10: #{_lambda_.8} parent=5 // pred_check_branch
      %139 = sbr.rel (%p136) target = $region12
    $region11: #{_lambda_.8} parent=5 // pred_region
      %s140 = ssub.s32 %s11, 1
      // Predicated region
      $region13: #{_lambda_.8} parent=11 // pred_check
        %p141 = pneg %p58
      $region14: #{_lambda_.8} parent=11 // pred_check_branch
        %143 = sbr.rel (%p141) target = $region16
      $region15: #{_lambda_.8} parent=11 // pred_region
        _
      $region16: #{_lambda_.8} parent=11 // pred_fallthru
        _
      // Predicated region
      $region17: #{_lambda_.8} parent=11 // pred_check
        %p144 = pneg %p79
      $region18: #{_lambda_.8} parent=11 // pred_check_branch
        %146 = sbr.rel (%p144) target = $region20
      $region19: #{_lambda_.8} parent=11 // pred_region
        _
      $region20: #{_lambda_.8} parent=11 // pred_fallthru
        _
    $region12: #{_lambda_.8} parent=5 // pred_fallthru
      _
    %p147 = scmp.lt.s32.totalorder %s11, 2
    // Predicated region
    $region21: #{_lambda_.8} parent=5 // pred_check
      %p148 = pneg %p147
    $region22: #{_lambda_.8} parent=5 // pred_check_branch
      %150 = sbr.rel (%p148) target = $region24
    $region23: #{_lambda_.8} parent=5 // pred_region
      // Predicated region
      $region25: #{_lambda_.8} parent=23 // pred_check
        %p151 = pneg %p31
      $region26: #{_lambda_.8} parent=23 // pred_check_branch
        %153 = sbr.rel (%p151) target = $region28
      $region27: #{_lambda_.8} parent=23 // pred_region
        %p154 = scmp.lt.s32.totalorder %s11, 1
        %s155 = scalar_select %p154, %s11, 1
        %s156 = smul.addr %s155, 60
        %s157 = smul.addr %s156, 4
        %s158 = scalar_lea.vmem %s0, %s157
      $region28: #{_lambda_.8} parent=23 // pred_fallthru
        _
    $region24: #{_lambda_.8} parent=5 // pred_fallthru
      _
    %p159 = scmp.le.s32.totalorder 1, %s11
    %p160 = scmp.lt.s32.totalorder %s11, 3
    %p161 = pnand %p159, %p160
    %p162 = pneg %p161
    // Predicated region
    $region29: #{_lambda_.8} parent=5 // pred_check
      _
    $region30: #{_lambda_.8} parent=5 // pred_check_branch
      %164 = sbr.rel (%p161) target = $region32
    $region31: #{_lambda_.8} parent=5 // pred_region
      %s165 = ssub.s32 %s11, 1
      %p166 = scmp.lt.s32.totalorder %s16, 1
      %s167 = scalar_select %p166, %s16, 1
      %s168 = smul.addr %s167, 60
      %s169 = smul.addr %s168, 4
      %s170 = scalar_lea.vmem %s0, %s169
      %p171 = pneg %p37
      %p172 = pneg %p34
      %p173 = pneg %p58
      %p174 = pneg %p55
      %p175 = pneg %p79
      %p176 = pneg %p76
      %p177 = pneg %p105
      %p178 = pneg %p102
      %p179 = scmp.lt.s32.totalorder %s16, 1
      %s180 = scalar_select %p179, %s16, 1
      %s181 = smul.addr %s180, 4
      %s182 = smul.addr %s181, 4
      %s183 = scalar_lea.vmem %s3, %s182
      %p184 = pneg %p126
      %p185 = pneg %p123
      %p186 = scmp.lt.s32.totalorder %s16, 1
      %s187 = scalar_select %p186, %s16, 1
      %s188 = smul.addr %s187, 60
      %s189 = smul.addr %s188, 4
      %s190 = scalar_lea.vmem %s0, %s189
      %p191 = scmp.lt.s32.totalorder %s16, 1
      %s192 = scalar_select %p191, %s16, 1
      %s193 = smul.addr %s192, 4
      %s194 = smul.addr %s193, 4
      %s195 = scalar_lea.vmem %s3, %s194
      %v197 = vld [vmem:[%s190] sm:$0xf]
      %v198 = vld [vmem:[%s190 + $0x4] sm:$0xf]
      %v199 = vld [vmem:[%s190 + $0xc] sm:$0xf]
      %v200 = vld [vmem:[%s190 + $0x10] sm:$0xf]
      %v201 = vld [vmem:[%s190 + $0x18] sm:$0xf]
      %v202 = vld [vmem:[%s190 + $0x1c] sm:$0xf]
      %v203 = vld [vmem:[%s190 + $0x24] sm:$0xf]
      %v204 = vld [vmem:[%s190 + $0x28] sm:$0xf]
      %v205 = vld [vmem:[%s190 + $0x30] sm:$0xf]
      %v206 = vld [vmem:[%s190 + $0x34] sm:$0xf]
      %v207 = vld [vmem:[%s190 + $0x3c] sm:$0xf]
      %v208 = vld [vmem:[%s190 + $0x40] sm:$0xf]
      %v209 = vld [vmem:[%s190 + $0x48] sm:$0xf]
      %v210 = vld [vmem:[%s190 + $0x4c] sm:$0xf]
      %v211 = vld [vmem:[%s190 + $0x54] sm:$0xf]
      %v212 = vld [vmem:[%s190 + $0x58] sm:$0xf]
      %v213 = vld [vmem:[%s190 + $0x60] sm:$0xf]
      %v214 = vld [vmem:[%s190 + $0x64] sm:$0xf]
      %v215 = vld [vmem:[%s190 + $0x6c] sm:$0xf]
      %v216 = vld [vmem:[%s190 + $0x70] sm:$0xf]
      %v217 = vld [vmem:[%s190 + $0x78] sm:$0xf]
      %v218 = vld [vmem:[%s190 + $0x7c] sm:$0xf]
      %v219 = vld [vmem:[%s190 + $0x84] sm:$0xf]
      %v220 = vld [vmem:[%s190 + $0x88] sm:$0xf]
      %v221 = vld [vmem:[%s190 + $0x90] sm:$0xf]
      %v222 = vld [vmem:[%s190 + $0x94] sm:$0xf]
      %v223 = vld [vmem:[%s190 + $0x9c] sm:$0xf]
      %v224 = vld [vmem:[%s190 + $0xa0] sm:$0xf]
      %v225 = vld [vmem:[%s190 + $0xa8] sm:$0xf]
      %v226 = vld [vmem:[%s190 + $0xac] sm:$0xf]
      %v227 = vld [vmem:[%s190 + $0xb4] sm:$0xf]
      %v228 = vld [vmem:[%s190 + $0xb8] sm:$0xf]
      %v229 = vld [vmem:[%s190 + $0x8] sm:$0x1]
      %v230 = vld [vmem:[%s190 + $0x14] sm:$0x1]
      %v231 = vld [vmem:[%s190 + $0x20] sm:$0x1]
      %v232 = vld [vmem:[%s190 + $0x2c] sm:$0x1]
      %v233 = vld [vmem:[%s190 + $0x38] sm:$0x1]
      %v234 = vld [vmem:[%s190 + $0x44] sm:$0x1]
      %v235 = vld [vmem:[%s190 + $0x50] sm:$0x1]
      %v236 = vld [vmem:[%s190 + $0x5c] sm:$0x1]
      %v237 = vld [vmem:[%s190 + $0x68] sm:$0x1]
      %v238 = vld [vmem:[%s190 + $0x74] sm:$0x1]
      %v239 = vld [vmem:[%s190 + $0x80] sm:$0x1]
      %v240 = vld [vmem:[%s190 + $0x8c] sm:$0x1]
      %v241 = vld [vmem:[%s190 + $0x98] sm:$0x1]
      %v242 = vld [vmem:[%s190 + $0xa4] sm:$0x1]
      %v243 = vld [vmem:[%s190 + $0xb0] sm:$0x1]
      %v244 = vld [vmem:[%s190 + $0xbc] sm:$0x1]
      %vm245 = vsmask.f32 3328
      %vm246 = vsmask.f32 7440
      %vm247 = vmor %vm245, %vm246
      %v249 = vshrl.u32 %v197, 16
      %v251 = vrot.slane %v249, 4
      %v252 = vshll.u32 %v197, 16
      %v254 = vrot.slane %v252, 5
      %v255 = vor.u32 %v251, %v254
      %v256 = vrot.slane %v255, 4
      %v258 = vshll.u32 %v198, 16
      %v260 = vrot.slane %v258, 5
      %v261 = vsel %vm247, %v256, %v260
      %v262 = vshrl.u32 %v198, 16
      %v264 = vrot.slane %v262, 4
      %v265 = vor.u32 %v264, %v260
      %v266 = vrot.slane %v265, 4
      %v268 = vshll.u32 %v229, 16
      %v270 = vrot.slane %v268, 5
      %v271 = vsel %vm247, %v266, %v270
      %v273 = vshrl.u32 %v199, 16
      %v275 = vrot.slane %v273, 4
      %v276 = vshll.u32 %v199, 16
      %v278 = vrot.slane %v276, 5
      %v279 = vor.u32 %v275, %v278
      %v280 = vrot.slane %v279, 4
      %v282 = vshll.u32 %v200, 16
      %v284 = vrot.slane %v282, 5
      %v285 = vsel %vm247, %v280, %v284
      %v286 = vshrl.u32 %v200, 16
      %v288 = vrot.slane %v286, 4
      %v289 = vor.u32 %v288, %v284
      %v290 = vrot.slane %v289, 4
      %v292 = vshll.u32 %v230, 16
      %v294 = vrot.slane %v292, 5
      %v295 = vsel %vm247, %v290, %v294
      %v297 = vshrl.u32 %v201, 16
      %v299 = vrot.slane %v297, 4
      %v300 = vshll.u32 %v201, 16
      %v302 = vrot.slane %v300, 5
      %v303 = vor.u32 %v299, %v302
      %v304 = vrot.slane %v303, 4
      %v306 = vshll.u32 %v202, 16
      %v308 = vrot.slane %v306, 5
      %v309 = vsel %vm247, %v304, %v308
      %v310 = vshrl.u32 %v202, 16
      %v312 = vrot.slane %v310, 4
      %v313 = vor.u32 %v312, %v308
      %v314 = vrot.slane %v313, 4
      %v316 = vshll.u32 %v231, 16
      %v318 = vrot.slane %v316, 5
      %v319 = vsel %vm247, %v314, %v318
      %v321 = vshrl.u32 %v203, 16
      %v323 = vrot.slane %v321, 4
      %v324 = vshll.u32 %v203, 16
      %v326 = vrot.slane %v324, 5
      %v327 = vor.u32 %v323, %v326
      %v328 = vrot.slane %v327, 4
      %v330 = vshll.u32 %v204, 16
      %v332 = vrot.slane %v330, 5
      %v333 = vsel %vm247, %v328, %v332
      %v334 = vshrl.u32 %v204, 16
      %v336 = vrot.slane %v334, 4
      %v337 = vor.u32 %v336, %v332
      %v338 = vrot.slane %v337, 4
      %v340 = vshll.u32 %v232, 16
      %v342 = vrot.slane %v340, 5
      %v343 = vsel %vm247, %v338, %v342
      %v345 = vshrl.u32 %v205, 16
      %v347 = vrot.slane %v345, 4
      %v348 = vshll.u32 %v205, 16
      %v350 = vrot.slane %v348, 5
      %v351 = vor.u32 %v347, %v350
      %v352 = vrot.slane %v351, 4
      %v354 = vshll.u32 %v206, 16
      %v356 = vrot.slane %v354, 5
      %v357 = vsel %vm247, %v352, %v356
      %v358 = vshrl.u32 %v206, 16
      %v360 = vrot.slane %v358, 4
      %v361 = vor.u32 %v360, %v356
      %v362 = vrot.slane %v361, 4
      %v364 = vshll.u32 %v233, 16
      %v366 = vrot.slane %v364, 5
      %v367 = vsel %vm247, %v362, %v366
      %v369 = vshrl.u32 %v207, 16
      %v371 = vrot.slane %v369, 4
      %v372 = vshll.u32 %v207, 16
      %v374 = vrot.slane %v372, 5
      %v375 = vor.u32 %v371, %v374
      %v376 = vrot.slane %v375, 4
      %v378 = vshll.u32 %v208, 16
      %v380 = vrot.slane %v378, 5
      %v381 = vsel %vm247, %v376, %v380
      %v382 = vshrl.u32 %v208, 16
      %v384 = vrot.slane %v382, 4
      %v385 = vor.u32 %v384, %v380
      %v386 = vrot.slane %v385, 4
      %v388 = vshll.u32 %v234, 16
      %v390 = vrot.slane %v388, 5
      %v391 = vsel %vm247, %v386, %v390
      %v393 = vshrl.u32 %v209, 16
      %v395 = vrot.slane %v393, 4
      %v396 = vshll.u32 %v209, 16
      %v398 = vrot.slane %v396, 5
      %v399 = vor.u32 %v395, %v398
      %v400 = vrot.slane %v399, 4
      %v402 = vshll.u32 %v210, 16
      %v404 = vrot.slane %v402, 5
      %v405 = vsel %vm247, %v400, %v404
      %v406 = vshrl.u32 %v210, 16
      %v408 = vrot.slane %v406, 4
      %v409 = vor.u32 %v408, %v404
      %v410 = vrot.slane %v409, 4
      %v412 = vshll.u32 %v235, 16
      %v414 = vrot.slane %v412, 5
      %v415 = vsel %vm247, %v410, %v414
      %v417 = vshrl.u32 %v211, 16
      %v419 = vrot.slane %v417, 4
      %v420 = vshll.u32 %v211, 16
      %v422 = vrot.slane %v420, 5
      %v423 = vor.u32 %v419, %v422
      %v424 = vrot.slane %v423, 4
      %v426 = vshll.u32 %v212, 16
      %v428 = vrot.slane %v426, 5
      %v429 = vsel %vm247, %v424, %v428
      %v430 = vshrl.u32 %v212, 16
      %v432 = vrot.slane %v430, 4
      %v433 = vor.u32 %v432, %v428
      %v434 = vrot.slane %v433, 4
      %v436 = vshll.u32 %v236, 16
      %v438 = vrot.slane %v436, 5
      %v439 = vsel %vm247, %v434, %v438
      %v441 = vshrl.u32 %v213, 16
      %v443 = vrot.slane %v441, 4
      %v444 = vshll.u32 %v213, 16
      %v446 = vrot.slane %v444, 5
      %v447 = vor.u32 %v443, %v446
      %v448 = vrot.slane %v447, 4
      %v450 = vshll.u32 %v214, 16
      %v452 = vrot.slane %v450, 5
      %v453 = vsel %vm247, %v448, %v452
      %v454 = vshrl.u32 %v214, 16
      %v456 = vrot.slane %v454, 4
      %v457 = vor.u32 %v456, %v452
      %v458 = vrot.slane %v457, 4
      %v460 = vshll.u32 %v237, 16
      %v462 = vrot.slane %v460, 5
      %v463 = vsel %vm247, %v458, %v462
      %v465 = vshrl.u32 %v215, 16
      %v467 = vrot.slane %v465, 4
      %v468 = vshll.u32 %v215, 16
      %v470 = vrot.slane %v468, 5
      %v471 = vor.u32 %v467, %v470
      %v472 = vrot.slane %v471, 4
      %v474 = vshll.u32 %v216, 16
      %v476 = vrot.slane %v474, 5
      %v477 = vsel %vm247, %v472, %v476
      %v478 = vshrl.u32 %v216, 16
      %v480 = vrot.slane %v478, 4
      %v481 = vor.u32 %v480, %v476
      %v482 = vrot.slane %v481, 4
      %v484 = vshll.u32 %v238, 16
      %v486 = vrot.slane %v484, 5
      %v487 = vsel %vm247, %v482, %v486
      %v489 = vshrl.u32 %v217, 16
      %v491 = vrot.slane %v489, 4
      %v492 = vshll.u32 %v217, 16
      %v494 = vrot.slane %v492, 5
      %v495 = vor.u32 %v491, %v494
      %v496 = vrot.slane %v495, 4
      %v498 = vshll.u32 %v218, 16
      %v500 = vrot.slane %v498, 5
      %v501 = vsel %vm247, %v496, %v500
      %v502 = vshrl.u32 %v218, 16
      %v504 = vrot.slane %v502, 4
      %v505 = vor.u32 %v504, %v500
      %v506 = vrot.slane %v505, 4
      %v508 = vshll.u32 %v239, 16
      %v510 = vrot.slane %v508, 5
      %v511 = vsel %vm247, %v506, %v510
      %v513 = vshrl.u32 %v219, 16
      %v515 = vrot.slane %v513, 4
      %v516 = vshll.u32 %v219, 16
      %v518 = vrot.slane %v516, 5
      %v519 = vor.u32 %v515, %v518
      %v520 = vrot.slane %v519, 4
      %v522 = vshll.u32 %v220, 16
      %v524 = vrot.slane %v522, 5
      %v525 = vsel %vm247, %v520, %v524
      %v526 = vshrl.u32 %v220, 16
      %v528 = vrot.slane %v526, 4
      %v529 = vor.u32 %v528, %v524
      %v530 = vrot.slane %v529, 4
      %v532 = vshll.u32 %v240, 16
      %v534 = vrot.slane %v532, 5
      %v535 = vsel %vm247, %v530, %v534
      %v537 = vshrl.u32 %v221, 16
      %v539 = vrot.slane %v537, 4
      %v540 = vshll.u32 %v221, 16
      %v542 = vrot.slane %v540, 5
      %v543 = vor.u32 %v539, %v542
      %v544 = vrot.slane %v543, 4
      %v546 = vshll.u32 %v222, 16
      %v548 = vrot.slane %v546, 5
      %v549 = vsel %vm247, %v544, %v548
      %v550 = vshrl.u32 %v222, 16
      %v552 = vrot.slane %v550, 4
      %v553 = vor.u32 %v552, %v548
      %v554 = vrot.slane %v553, 4
      %v556 = vshll.u32 %v241, 16
      %v558 = vrot.slane %v556, 5
      %v559 = vsel %vm247, %v554, %v558
      %v561 = vshrl.u32 %v223, 16
      %v563 = vrot.slane %v561, 4
      %v564 = vshll.u32 %v223, 16
      %v566 = vrot.slane %v564, 5
      %v567 = vor.u32 %v563, %v566
      %v568 = vrot.slane %v567, 4
      %v570 = vshll.u32 %v224, 16
      %v572 = vrot.slane %v570, 5
      %v573 = vsel %vm247, %v568, %v572
      %v574 = vshrl.u32 %v224, 16
      %v576 = vrot.slane %v574, 4
      %v577 = vor.u32 %v576, %v572
      %v578 = vrot.slane %v577, 4
      %v580 = vshll.u32 %v242, 16
      %v582 = vrot.slane %v580, 5
      %v583 = vsel %vm247, %v578, %v582
      %v585 = vshrl.u32 %v225, 16
      %v587 = vrot.slane %v585, 4
      %v588 = vshll.u32 %v225, 16
      %v590 = vrot.slane %v588, 5
      %v591 = vor.u32 %v587, %v590
      %v592 = vrot.slane %v591, 4
      %v594 = vshll.u32 %v226, 16
      %v596 = vrot.slane %v594, 5
      %v597 = vsel %vm247, %v592, %v596
      %v598 = vshrl.u32 %v226, 16
      %v600 = vrot.slane %v598, 4
      %v601 = vor.u32 %v600, %v596
      %v602 = vrot.slane %v601, 4
      %v604 = vshll.u32 %v243, 16
      %v606 = vrot.slane %v604, 5
      %v607 = vsel %vm247, %v602, %v606
      %v609 = vshrl.u32 %v227, 16
      %v611 = vrot.slane %v609, 4
      %v612 = vshll.u32 %v227, 16
      %v614 = vrot.slane %v612, 5
      %v615 = vor.u32 %v611, %v614
      %v616 = vrot.slane %v615, 4
      %v618 = vshll.u32 %v228, 16
      %v620 = vrot.slane %v618, 5
      %v621 = vsel %vm247, %v616, %v620
      %v622 = vshrl.u32 %v228, 16
      %v624 = vrot.slane %v622, 4
      %v625 = vor.u32 %v624, %v620
      %v626 = vrot.slane %v625, 4
      %v628 = vshll.u32 %v244, 16
      %v630 = vrot.slane %v628, 5
      %v631 = vsel %vm247, %v626, %v630
      %v632 = vld [vmem:[%s190] sm:$0xe]
      %v633 = vld [vmem:[%s190 + $0xc] sm:$0xe]
      %v634 = vld [vmem:[%s190 + $0x18] sm:$0xe]
      %v635 = vld [vmem:[%s190 + $0x24] sm:$0xe]
      %v636 = vld [vmem:[%s190 + $0x30] sm:$0xe]
      %v637 = vld [vmem:[%s190 + $0x3c] sm:$0xe]
      %v638 = vld [vmem:[%s190 + $0x48] sm:$0xe]
      %v639 = vld [vmem:[%s190 + $0x54] sm:$0xe]
      %v640 = vld [vmem:[%s190 + $0x60] sm:$0xe]
      %v641 = vld [vmem:[%s190 + $0x6c] sm:$0xe]
      %v642 = vld [vmem:[%s190 + $0x78] sm:$0xe]
      %v643 = vld [vmem:[%s190 + $0x84] sm:$0xe]
      %v644 = vld [vmem:[%s190 + $0x90] sm:$0xe]
      %v645 = vld [vmem:[%s190 + $0x9c] sm:$0xe]
      %v646 = vld [vmem:[%s190 + $0xa8] sm:$0xe]
      %v647 = vld [vmem:[%s190 + $0xb4] sm:$0xe]
      %vm696 = vcmask 1042432
      %vm697 = vcmask 1046532
      %vm698 = vmor %vm696, %vm697
      %v699 = vrot.slane %v632, 5
      %v700 = vrot.slane %v699, 4
      %v701 = vrot.slane %v198, 5
      %v702 = vsel %vm698, %v700, %v701
      %v703 = vrot.slane %v701, 4
      %v704 = vrot.slane %v229, 5
      %v705 = vsel %vm698, %v703, %v704
      %v706 = vrot.slane %v633, 5
      %v707 = vrot.slane %v706, 4
      %v708 = vrot.slane %v200, 5
      %v709 = vsel %vm698, %v707, %v708
      %v710 = vrot.slane %v708, 4
      %v711 = vrot.slane %v230, 5
      %v712 = vsel %vm698, %v710, %v711
      %v713 = vrot.slane %v634, 5
      %v714 = vrot.slane %v713, 4
      %v715 = vrot.slane %v202, 5
      %v716 = vsel %vm698, %v714, %v715
      %v717 = vrot.slane %v715, 4
      %v718 = vrot.slane %v231, 5
      %v719 = vsel %vm698, %v717, %v718
      %v720 = vrot.slane %v635, 5
      %v721 = vrot.slane %v720, 4
      %v722 = vrot.slane %v204, 5
      %v723 = vsel %vm698, %v721, %v722
      %v724 = vrot.slane %v722, 4
      %v725 = vrot.slane %v232, 5
      %v726 = vsel %vm698, %v724, %v725
      %v727 = vrot.slane %v636, 5
      %v728 = vrot.slane %v727, 4
      %v729 = vrot.slane %v206, 5
      %v730 = vsel %vm698, %v728, %v729
      %v731 = vrot.slane %v729, 4
      %v732 = vrot.slane %v233, 5
      %v733 = vsel %vm698, %v731, %v732
      %v734 = vrot.slane %v637, 5
      %v735 = vrot.slane %v734, 4
      %v736 = vrot.slane %v208, 5
      %v737 = vsel %vm698, %v735, %v736
      %v738 = vrot.slane %v736, 4
      %v739 = vrot.slane %v234, 5
      %v740 = vsel %vm698, %v738, %v739
      %v741 = vrot.slane %v638, 5
      %v742 = vrot.slane %v741, 4
      %v743 = vrot.slane %v210, 5
      %v744 = vsel %vm698, %v742, %v743
      %v745 = vrot.slane %v743, 4
      %v746 = vrot.slane %v235, 5
      %v747 = vsel %vm698, %v745, %v746
      %v748 = vrot.slane %v639, 5
      %v749 = vrot.slane %v748, 4
      %v750 = vrot.slane %v212, 5
      %v751 = vsel %vm698, %v749, %v750
      %v752 = vrot.slane %v750, 4
      %v753 = vrot.slane %v236, 5
      %v754 = vsel %vm698, %v752, %v753
      %v755 = vrot.slane %v640, 5
      %v756 = vrot.slane %v755, 4
      %v757 = vrot.slane %v214, 5
      %v758 = vsel %vm698, %v756, %v757
      %v759 = vrot.slane %v757, 4
      %v760 = vrot.slane %v237, 5
      %v761 = vsel %vm698, %v759, %v760
      %v762 = vrot.slane %v641, 5
      %v763 = vrot.slane %v762, 4
      %v764 = vrot.slane %v216, 5
      %v765 = vsel %vm698, %v763, %v764
      %v766 = vrot.slane %v764, 4
      %v767 = vrot.slane %v238, 5
      %v768 = vsel %vm698, %v766, %v767
      %v769 = vrot.slane %v642, 5
      %v770 = vrot.slane %v769, 4
      %v771 = vrot.slane %v218, 5
      %v772 = vsel %vm698, %v770, %v771
      %v773 = vrot.slane %v771, 4
      %v774 = vrot.slane %v239, 5
      %v775 = vsel %vm698, %v773, %v774
      %v776 = vrot.slane %v643, 5
      %v777 = vrot.slane %v776, 4
      %v778 = vrot.slane %v220, 5
      %v779 = vsel %vm698, %v777, %v778
      %v780 = vrot.slane %v778, 4
      %v781 = vrot.slane %v240, 5
      %v782 = vsel %vm698, %v780, %v781
      %v783 = vrot.slane %v644, 5
      %v784 = vrot.slane %v783, 4
      %v785 = vrot.slane %v222, 5
      %v786 = vsel %vm698, %v784, %v785
      %v787 = vrot.slane %v785, 4
      %v788 = vrot.slane %v241, 5
      %v789 = vsel %vm698, %v787, %v788
      %v790 = vrot.slane %v645, 5
      %v791 = vrot.slane %v790, 4
      %v792 = vrot.slane %v224, 5
      %v793 = vsel %vm698, %v791, %v792
      %v794 = vrot.slane %v792, 4
      %v795 = vrot.slane %v242, 5
      %v796 = vsel %vm698, %v794, %v795
      %v797 = vrot.slane %v646, 5
      %v798 = vrot.slane %v797, 4
      %v799 = vrot.slane %v226, 5
      %v800 = vsel %vm698, %v798, %v799
      %v801 = vrot.slane %v799, 4
      %v802 = vrot.slane %v243, 5
      %v803 = vsel %vm698, %v801, %v802
      %v804 = vrot.slane %v647, 5
      %v805 = vrot.slane %v804, 4
      %v806 = vrot.slane %v228, 5
      %v807 = vsel %vm698, %v805, %v806
      %v808 = vrot.slane %v806, 4
      %v809 = vrot.slane %v244, 5
      %v810 = vsel %vm698, %v808, %v809
      %v811 = vld [vmem:[%s190 + $0x8] sm:$0x3]
      %v812 = vld [vmem:[%s190 + $0x14] sm:$0x3]
      %v813 = vld [vmem:[%s190 + $0x20] sm:$0x3]
      %v814 = vld [vmem:[%s190 + $0x2c] sm:$0x3]
      %v815 = vld [vmem:[%s190 + $0x38] sm:$0x3]
      %v816 = vld [vmem:[%s190 + $0x44] sm:$0x3]
      %v817 = vld [vmem:[%s190 + $0x50] sm:$0x3]
      %v818 = vld [vmem:[%s190 + $0x5c] sm:$0x3]
      %v819 = vld [vmem:[%s190 + $0x68] sm:$0x3]
      %v820 = vld [vmem:[%s190 + $0x74] sm:$0x3]
      %v821 = vld [vmem:[%s190 + $0x80] sm:$0x3]
      %v822 = vld [vmem:[%s190 + $0x8c] sm:$0x3]
      %v823 = vld [vmem:[%s190 + $0x98] sm:$0x3]
      %v824 = vld [vmem:[%s190 + $0xa4] sm:$0x3]
      %v825 = vld [vmem:[%s190 + $0xb0] sm:$0x3]
      %v826 = vld [vmem:[%s190 + $0xbc] sm:$0x3]
      %vm827 = vsmask.f32 2304
      %vm828 = vsmask.f32 6416
      %vm829 = vmor %vm827, %vm828
      %v831 = vshrl.u32 %v632, 16
      %v833 = vrot.slane %v831, 5
      %v834 = vshll.u32 %v632, 16
      %v836 = vrot.slane %v834, 6
      %v837 = vor.u32 %v833, %v836
      %v838 = vrot.slane %v837, 4
      %v839 = vrot.slane %v262, 5
      %v840 = vrot.slane %v258, 6
      %v841 = vor.u32 %v839, %v840
      %v842 = vsel %vm829, %v838, %v841
      %v843 = vrot.slane %v841, 4
      %v845 = vshrl.u32 %v811, 16
      %v847 = vrot.slane %v845, 5
      %v848 = vshll.u32 %v811, 16
      %v850 = vrot.slane %v848, 6
      %v851 = vor.u32 %v847, %v850
      %v852 = vsel %vm829, %v843, %v851
      %v854 = vshrl.u32 %v633, 16
      %v856 = vrot.slane %v854, 5
      %v857 = vshll.u32 %v633, 16
      %v859 = vrot.slane %v857, 6
      %v860 = vor.u32 %v856, %v859
      %v861 = vrot.slane %v860, 4
      %v862 = vrot.slane %v286, 5
      %v863 = vrot.slane %v282, 6
      %v864 = vor.u32 %v862, %v863
      %v865 = vsel %vm829, %v861, %v864
      %v866 = vrot.slane %v864, 4
      %v868 = vshrl.u32 %v812, 16
      %v870 = vrot.slane %v868, 5
      %v871 = vshll.u32 %v812, 16
      %v873 = vrot.slane %v871, 6
      %v874 = vor.u32 %v870, %v873
      %v875 = vsel %vm829, %v866, %v874
      %v877 = vshrl.u32 %v634, 16
      %v879 = vrot.slane %v877, 5
      %v880 = vshll.u32 %v634, 16
      %v882 = vrot.slane %v880, 6
      %v883 = vor.u32 %v879, %v882
      %v884 = vrot.slane %v883, 4
      %v885 = vrot.slane %v310, 5
      %v886 = vrot.slane %v306, 6
      %v887 = vor.u32 %v885, %v886
      %v888 = vsel %vm829, %v884, %v887
      %v889 = vrot.slane %v887, 4
      %v891 = vshrl.u32 %v813, 16
      %v893 = vrot.slane %v891, 5
      %v894 = vshll.u32 %v813, 16
      %v896 = vrot.slane %v894, 6
      %v897 = vor.u32 %v893, %v896
      %v898 = vsel %vm829, %v889, %v897
      %v900 = vshrl.u32 %v635, 16
      %v902 = vrot.slane %v900, 5
      %v903 = vshll.u32 %v635, 16
      %v905 = vrot.slane %v903, 6
      %v906 = vor.u32 %v902, %v905
      %v907 = vrot.slane %v906, 4
      %v908 = vrot.slane %v334, 5
      %v909 = vrot.slane %v330, 6
      %v910 = vor.u32 %v908, %v909
      %v911 = vsel %vm829, %v907, %v910
      %v912 = vrot.slane %v910, 4
      %v914 = vshrl.u32 %v814, 16
      %v916 = vrot.slane %v914, 5
      %v917 = vshll.u32 %v814, 16
      %v919 = vrot.slane %v917, 6
      %v920 = vor.u32 %v916, %v919
      %v921 = vsel %vm829, %v912, %v920
      %v923 = vshrl.u32 %v636, 16
      %v925 = vrot.slane %v923, 5
      %v926 = vshll.u32 %v636, 16
      %v928 = vrot.slane %v926, 6
      %v929 = vor.u32 %v925, %v928
      %v930 = vrot.slane %v929, 4
      %v931 = vrot.slane %v358, 5
      %v932 = vrot.slane %v354, 6
      %v933 = vor.u32 %v931, %v932
      %v934 = vsel %vm829, %v930, %v933
      %v935 = vrot.slane %v933, 4
      %v937 = vshrl.u32 %v815, 16
      %v939 = vrot.slane %v937, 5
      %v940 = vshll.u32 %v815, 16
      %v942 = vrot.slane %v940, 6
      %v943 = vor.u32 %v939, %v942
      %v944 = vsel %vm829, %v935, %v943
      %v946 = vshrl.u32 %v637, 16
      %v948 = vrot.slane %v946, 5
      %v949 = vshll.u32 %v637, 16
      %v951 = vrot.slane %v949, 6
      %v952 = vor.u32 %v948, %v951
      %v953 = vrot.slane %v952, 4
      %v954 = vrot.slane %v382, 5
      %v955 = vrot.slane %v378, 6
      %v956 = vor.u32 %v954, %v955
      %v957 = vsel %vm829, %v953, %v956
      %v958 = vrot.slane %v956, 4
      %v960 = vshrl.u32 %v816, 16
      %v962 = vrot.slane %v960, 5
      %v963 = vshll.u32 %v816, 16
      %v965 = vrot.slane %v963, 6
      %v966 = vor.u32 %v962, %v965
      %v967 = vsel %vm829, %v958, %v966
      %v969 = vshrl.u32 %v638, 16
      %v971 = vrot.slane %v969, 5
      %v972 = vshll.u32 %v638, 16
      %v974 = vrot.slane %v972, 6
      %v975 = vor.u32 %v971, %v974
      %v976 = vrot.slane %v975, 4
      %v977 = vrot.slane %v406, 5
      %v978 = vrot.slane %v402, 6
      %v979 = vor.u32 %v977, %v978
      %v980 = vsel %vm829, %v976, %v979
      %v981 = vrot.slane %v979, 4
      %v983 = vshrl.u32 %v817, 16
      %v985 = vrot.slane %v983, 5
      %v986 = vshll.u32 %v817, 16
      %v988 = vrot.slane %v986, 6
      %v989 = vor.u32 %v985, %v988
      %v990 = vsel %vm829, %v981, %v989
      %v992 = vshrl.u32 %v639, 16
      %v994 = vrot.slane %v992, 5
      %v995 = vshll.u32 %v639, 16
      %v997 = vrot.slane %v995, 6
      %v998 = vor.u32 %v994, %v997
      %v999 = vrot.slane %v998, 4
      %v1000 = vrot.slane %v430, 5
      %v1001 = vrot.slane %v426, 6
      %v1002 = vor.u32 %v1000, %v1001
      %v1003 = vsel %vm829, %v999, %v1002
      %v1004 = vrot.slane %v1002, 4
      %v1006 = vshrl.u32 %v818, 16
      %v1008 = vrot.slane %v1006, 5
      %v1009 = vshll.u32 %v818, 16
      %v1011 = vrot.slane %v1009, 6
      %v1012 = vor.u32 %v1008, %v1011
      %v1013 = vsel %vm829, %v1004, %v1012
      %v1015 = vshrl.u32 %v640, 16
      %v1017 = vrot.slane %v1015, 5
      %v1018 = vshll.u32 %v640, 16
      %v1020 = vrot.slane %v1018, 6
      %v1021 = vor.u32 %v1017, %v1020
      %v1022 = vrot.slane %v1021, 4
      %v1023 = vrot.slane %v454, 5
      %v1024 = vrot.slane %v450, 6
      %v1025 = vor.u32 %v1023, %v1024
      %v1026 = vsel %vm829, %v1022, %v1025
      %v1027 = vrot.slane %v1025, 4
      %v1029 = vshrl.u32 %v819, 16
      %v1031 = vrot.slane %v1029, 5
      %v1032 = vshll.u32 %v819, 16
      %v1034 = vrot.slane %v1032, 6
      %v1035 = vor.u32 %v1031, %v1034
      %v1036 = vsel %vm829, %v1027, %v1035
      %v1038 = vshrl.u32 %v641, 16
      %v1040 = vrot.slane %v1038, 5
      %v1041 = vshll.u32 %v641, 16
      %v1043 = vrot.slane %v1041, 6
      %v1044 = vor.u32 %v1040, %v1043
      %v1045 = vrot.slane %v1044, 4
      %v1046 = vrot.slane %v478, 5
      %v1047 = vrot.slane %v474, 6
      %v1048 = vor.u32 %v1046, %v1047
      %v1049 = vsel %vm829, %v1045, %v1048
      %v1050 = vrot.slane %v1048, 4
      %v1052 = vshrl.u32 %v820, 16
      %v1054 = vrot.slane %v1052, 5
      %v1055 = vshll.u32 %v820, 16
      %v1057 = vrot.slane %v1055, 6
      %v1058 = vor.u32 %v1054, %v1057
      %v1059 = vsel %vm829, %v1050, %v1058
      %v1061 = vshrl.u32 %v642, 16
      %v1063 = vrot.slane %v1061, 5
      %v1064 = vshll.u32 %v642, 16
      %v1066 = vrot.slane %v1064, 6
      %v1067 = vor.u32 %v1063, %v1066
      %v1068 = vrot.slane %v1067, 4
      %v1069 = vrot.slane %v502, 5
      %v1070 = vrot.slane %v498, 6
      %v1071 = vor.u32 %v1069, %v1070
      %v1072 = vsel %vm829, %v1068, %v1071
      %v1073 = vrot.slane %v1071, 4
      %v1075 = vshrl.u32 %v821, 16
      %v1077 = vrot.slane %v1075, 5
      %v1078 = vshll.u32 %v821, 16
      %v1080 = vrot.slane %v1078, 6
      %v1081 = vor.u32 %v1077, %v1080
      %v1082 = vsel %vm829, %v1073, %v1081
      %v1084 = vshrl.u32 %v643, 16
      %v1086 = vrot.slane %v1084, 5
      %v1087 = vshll.u32 %v643, 16
      %v1089 = vrot.slane %v1087, 6
      %v1090 = vor.u32 %v1086, %v1089
      %v1091 = vrot.slane %v1090, 4
      %v1092 = vrot.slane %v526, 5
      %v1093 = vrot.slane %v522, 6
      %v1094 = vor.u32 %v1092, %v1093
      %v1095 = vsel %vm829, %v1091, %v1094
      %v1096 = vrot.slane %v1094, 4
      %v1098 = vshrl.u32 %v822, 16
      %v1100 = vrot.slane %v1098, 5
      %v1101 = vshll.u32 %v822, 16
      %v1103 = vrot.slane %v1101, 6
      %v1104 = vor.u32 %v1100, %v1103
      %v1105 = vsel %vm829, %v1096, %v1104
      %v1107 = vshrl.u32 %v644, 16
      %v1109 = vrot.slane %v1107, 5
      %v1110 = vshll.u32 %v644, 16
      %v1112 = vrot.slane %v1110, 6
      %v1113 = vor.u32 %v1109, %v1112
      %v1114 = vrot.slane %v1113, 4
      %v1115 = vrot.slane %v550, 5
      %v1116 = vrot.slane %v546, 6
      %v1117 = vor.u32 %v1115, %v1116
      %v1118 = vsel %vm829, %v1114, %v1117
      %v1119 = vrot.slane %v1117, 4
      %v1121 = vshrl.u32 %v823, 16
      %v1123 = vrot.slane %v1121, 5
      %v1124 = vshll.u32 %v823, 16
      %v1126 = vrot.slane %v1124, 6
      %v1127 = vor.u32 %v1123, %v1126
      %v1128 = vsel %vm829, %v1119, %v1127
      %v1130 = vshrl.u32 %v645, 16
      %v1132 = vrot.slane %v1130, 5
      %v1133 = vshll.u32 %v645, 16
      %v1135 = vrot.slane %v1133, 6
      %v1136 = vor.u32 %v1132, %v1135
      %v1137 = vrot.slane %v1136, 4
      %v1138 = vrot.slane %v574, 5
      %v1139 = vrot.slane %v570, 6
      %v1140 = vor.u32 %v1138, %v1139
      %v1141 = vsel %vm829, %v1137, %v1140
      %v1142 = vrot.slane %v1140, 4
      %v1144 = vshrl.u32 %v824, 16
      %v1146 = vrot.slane %v1144, 5
      %v1147 = vshll.u32 %v824, 16
      %v1149 = vrot.slane %v1147, 6
      %v1150 = vor.u32 %v1146, %v1149
      %v1151 = vsel %vm829, %v1142, %v1150
      %v1153 = vshrl.u32 %v646, 16
      %v1155 = vrot.slane %v1153, 5
      %v1156 = vshll.u32 %v646, 16
      %v1158 = vrot.slane %v1156, 6
      %v1159 = vor.u32 %v1155, %v1158
      %v1160 = vrot.slane %v1159, 4
      %v1161 = vrot.slane %v598, 5
      %v1162 = vrot.slane %v594, 6
      %v1163 = vor.u32 %v1161, %v1162
      %v1164 = vsel %vm829, %v1160, %v1163
      %v1165 = vrot.slane %v1163, 4
      %v1167 = vshrl.u32 %v825, 16
      %v1169 = vrot.slane %v1167, 5
      %v1170 = vshll.u32 %v825, 16
      %v1172 = vrot.slane %v1170, 6
      %v1173 = vor.u32 %v1169, %v1172
      %v1174 = vsel %vm829, %v1165, %v1173
      %v1176 = vshrl.u32 %v647, 16
      %v1178 = vrot.slane %v1176, 5
      %v1179 = vshll.u32 %v647, 16
      %v1181 = vrot.slane %v1179, 6
      %v1182 = vor.u32 %v1178, %v1181
      %v1183 = vrot.slane %v1182, 4
      %v1184 = vrot.slane %v622, 5
      %v1185 = vrot.slane %v618, 6
      %v1186 = vor.u32 %v1184, %v1185
      %v1187 = vsel %vm829, %v1183, %v1186
      %v1188 = vrot.slane %v1186, 4
      %v1190 = vshrl.u32 %v826, 16
      %v1192 = vrot.slane %v1190, 5
      %v1193 = vshll.u32 %v826, 16
      %v1195 = vrot.slane %v1193, 6
      %v1196 = vor.u32 %v1192, %v1195
      %v1197 = vsel %vm829, %v1188, %v1196
      %v1198 = vld [vmem:[%s190] sm:$0xc]
      %v1199 = vld [vmem:[%s190 + $0xc] sm:$0xc]
      %v1200 = vld [vmem:[%s190 + $0x18] sm:$0xc]
      %v1201 = vld [vmem:[%s190 + $0x24] sm:$0xc]
      %v1202 = vld [vmem:[%s190 + $0x30] sm:$0xc]
      %v1203 = vld [vmem:[%s190 + $0x3c] sm:$0xc]
      %v1204 = vld [vmem:[%s190 + $0x48] sm:$0xc]
      %v1205 = vld [vmem:[%s190 + $0x54] sm:$0xc]
      %v1206 = vld [vmem:[%s190 + $0x60] sm:$0xc]
      %v1207 = vld [vmem:[%s190 + $0x6c] sm:$0xc]
      %v1208 = vld [vmem:[%s190 + $0x78] sm:$0xc]
      %v1209 = vld [vmem:[%s190 + $0x84] sm:$0xc]
      %v1210 = vld [vmem:[%s190 + $0x90] sm:$0xc]
      %v1211 = vld [vmem:[%s190 + $0x9c] sm:$0xc]
      %v1212 = vld [vmem:[%s190 + $0xa8] sm:$0xc]
      %v1213 = vld [vmem:[%s190 + $0xb4] sm:$0xc]
      %vm1246 = vcmask 1041408
      %vm1247 = vcmask 1045508
      %vm1248 = vmor %vm1246, %vm1247
      %v1249 = vrot.slane %v1198, 6
      %v1250 = vrot.slane %v1249, 4
      %v1251 = vrot.slane %v198, 6
      %v1252 = vsel %vm1248, %v1250, %v1251
      %v1253 = vrot.slane %v1251, 4
      %v1254 = vrot.slane %v811, 6
      %v1255 = vsel %vm1248, %v1253, %v1254
      %v1256 = vrot.slane %v1199, 6
      %v1257 = vrot.slane %v1256, 4
      %v1258 = vrot.slane %v200, 6
      %v1259 = vsel %vm1248, %v1257, %v1258
      %v1260 = vrot.slane %v1258, 4
      %v1261 = vrot.slane %v812, 6
      %v1262 = vsel %vm1248, %v1260, %v1261
      %v1263 = vrot.slane %v1200, 6
      %v1264 = vrot.slane %v1263, 4
      %v1265 = vrot.slane %v202, 6
      %v1266 = vsel %vm1248, %v1264, %v1265
      %v1267 = vrot.slane %v1265, 4
      %v1268 = vrot.slane %v813, 6
      %v1269 = vsel %vm1248, %v1267, %v1268
      %v1270 = vrot.slane %v1201, 6
      %v1271 = vrot.slane %v1270, 4
      %v1272 = vrot.slane %v204, 6
      %v1273 = vsel %vm1248, %v1271, %v1272
      %v1274 = vrot.slane %v1272, 4
      %v1275 = vrot.slane %v814, 6
      %v1276 = vsel %vm1248, %v1274, %v1275
      %v1277 = vrot.slane %v1202, 6
      %v1278 = vrot.slane %v1277, 4
      %v1279 = vrot.slane %v206, 6
      %v1280 = vsel %vm1248, %v1278, %v1279
      %v1281 = vrot.slane %v1279, 4
      %v1282 = vrot.slane %v815, 6
      %v1283 = vsel %vm1248, %v1281, %v1282
      %v1284 = vrot.slane %v1203, 6
      %v1285 = vrot.slane %v1284, 4
      %v1286 = vrot.slane %v208, 6
      %v1287 = vsel %vm1248, %v1285, %v1286
      %v1288 = vrot.slane %v1286, 4
      %v1289 = vrot.slane %v816, 6
      %v1290 = vsel %vm1248, %v1288, %v1289
      %v1291 = vrot.slane %v1204, 6
      %v1292 = vrot.slane %v1291, 4
      %v1293 = vrot.slane %v210, 6
      %v1294 = vsel %vm1248, %v1292, %v1293
      %v1295 = vrot.slane %v1293, 4
      %v1296 = vrot.slane %v817, 6
      %v1297 = vsel %vm1248, %v1295, %v1296
      %v1298 = vrot.slane %v1205, 6
      %v1299 = vrot.slane %v1298, 4
      %v1300 = vrot.slane %v212, 6
      %v1301 = vsel %vm1248, %v1299, %v1300
      %v1302 = vrot.slane %v1300, 4
      %v1303 = vrot.slane %v818, 6
      %v1304 = vsel %vm1248, %v1302, %v1303
      %v1305 = vrot.slane %v1206, 6
      %v1306 = vrot.slane %v1305, 4
      %v1307 = vrot.slane %v214, 6
      %v1308 = vsel %vm1248, %v1306, %v1307
      %v1309 = vrot.slane %v1307, 4
      %v1310 = vrot.slane %v819, 6
      %v1311 = vsel %vm1248, %v1309, %v1310
      %v1312 = vrot.slane %v1207, 6
      %v1313 = vrot.slane %v1312, 4
      %v1314 = vrot.slane %v216, 6
      %v1315 = vsel %vm1248, %v1313, %v1314
      %v1316 = vrot.slane %v1314, 4
      %v1317 = vrot.slane %v820, 6
      %v1318 = vsel %vm1248, %v1316, %v1317
      %v1319 = vrot.slane %v1208, 6
      %v1320 = vrot.slane %v1319, 4
      %v1321 = vrot.slane %v218, 6
      %v1322 = vsel %vm1248, %v1320, %v1321
      %v1323 = vrot.slane %v1321, 4
      %v1324 = vrot.slane %v821, 6
      %v1325 = vsel %vm1248, %v1323, %v1324
      %v1326 = vrot.slane %v1209, 6
      %v1327 = vrot.slane %v1326, 4
      %v1328 = vrot.slane %v220, 6
      %v1329 = vsel %vm1248, %v1327, %v1328
      %v1330 = vrot.slane %v1328, 4
      %v1331 = vrot.slane %v822, 6
      %v1332 = vsel %vm1248, %v1330, %v1331
      %v1333 = vrot.slane %v1210, 6
      %v1334 = vrot.slane %v1333, 4
      %v1335 = vrot.slane %v222, 6
      %v1336 = vsel %vm1248, %v1334, %v1335
      %v1337 = vrot.slane %v1335, 4
      %v1338 = vrot.slane %v823, 6
      %v1339 = vsel %vm1248, %v1337, %v1338
      %v1340 = vrot.slane %v1211, 6
      %v1341 = vrot.slane %v1340, 4
      %v1342 = vrot.slane %v224, 6
      %v1343 = vsel %vm1248, %v1341, %v1342
      %v1344 = vrot.slane %v1342, 4
      %v1345 = vrot.slane %v824, 6
      %v1346 = vsel %vm1248, %v1344, %v1345
      %v1347 = vrot.slane %v1212, 6
      %v1348 = vrot.slane %v1347, 4
      %v1349 = vrot.slane %v226, 6
      %v1350 = vsel %vm1248, %v1348, %v1349
      %v1351 = vrot.slane %v1349, 4
      %v1352 = vrot.slane %v825, 6
      %v1353 = vsel %vm1248, %v1351, %v1352
      %v1354 = vrot.slane %v1213, 6
      %v1355 = vrot.slane %v1354, 4
      %v1356 = vrot.slane %v228, 6
      %v1357 = vsel %vm1248, %v1355, %v1356
      %v1358 = vrot.slane %v1356, 4
      %v1359 = vrot.slane %v826, 6
      %v1360 = vsel %vm1248, %v1358, %v1359
      %s1361 = scalar_lea.vmem %s190, 12
      %v1362 = vld [vmem:[%s1361] sm:$0xf]
      %v1363 = vld [vmem:[%s1361 + $0x4] sm:$0xf]
      %v1364 = vld [vmem:[%s1361 + $0xc] sm:$0xf]
      %v1365 = vld [vmem:[%s1361 + $0x10] sm:$0xf]
      %v1366 = vld [vmem:[%s1361 + $0x18] sm:$0xf]
      %v1367 = vld [vmem:[%s1361 + $0x1c] sm:$0xf]
      %v1368 = vld [vmem:[%s1361 + $0x24] sm:$0xf]
      %v1369 = vld [vmem:[%s1361 + $0x28] sm:$0xf]
      %v1370 = vld [vmem:[%s1361 + $0x30] sm:$0xf]
      %v1371 = vld [vmem:[%s1361 + $0x34] sm:$0xf]
      %v1372 = vld [vmem:[%s1361 + $0x3c] sm:$0xf]
      %v1373 = vld [vmem:[%s1361 + $0x40] sm:$0xf]
      %v1374 = vld [vmem:[%s1361 + $0x48] sm:$0xf]
      %v1375 = vld [vmem:[%s1361 + $0x4c] sm:$0xf]
      %v1376 = vld [vmem:[%s1361 + $0x54] sm:$0xf]
      %v1377 = vld [vmem:[%s1361 + $0x58] sm:$0xf]
      %v1378 = vld [vmem:[%s1361 + $0x60] sm:$0xf]
      %v1379 = vld [vmem:[%s1361 + $0x64] sm:$0xf]
      %v1380 = vld [vmem:[%s1361 + $0x6c] sm:$0xf]
      %v1381 = vld [vmem:[%s1361 + $0x70] sm:$0xf]
      %v1382 = vld [vmem:[%s1361 + $0x78] sm:$0xf]
      %v1383 = vld [vmem:[%s1361 + $0x7c] sm:$0xf]
      %v1384 = vld [vmem:[%s1361 + $0x84] sm:$0xf]
      %v1385 = vld [vmem:[%s1361 + $0x88] sm:$0xf]
      %v1386 = vld [vmem:[%s1361 + $0x90] sm:$0xf]
      %v1387 = vld [vmem:[%s1361 + $0x94] sm:$0xf]
      %v1388 = vld [vmem:[%s1361 + $0x9c] sm:$0xf]
      %v1389 = vld [vmem:[%s1361 + $0xa0] sm:$0xf]
      %v1390 = vld [vmem:[%s1361 + $0xa8] sm:$0xf]
      %v1391 = vld [vmem:[%s1361 + $0xac] sm:$0xf]
      %v1392 = vld [vmem:[%s1361 + $0xb4] sm:$0xf]
      %v1393 = vld [vmem:[%s1361 + $0xb8] sm:$0xf]
      %v1394 = vld [vmem:[%s1361 + $0x8] sm:$0x1]
      %v1395 = vld [vmem:[%s1361 + $0x14] sm:$0x1]
      %v1396 = vld [vmem:[%s1361 + $0x20] sm:$0x1]
      %v1397 = vld [vmem:[%s1361 + $0x2c] sm:$0x1]
      %v1398 = vld [vmem:[%s1361 + $0x38] sm:$0x1]
      %v1399 = vld [vmem:[%s1361 + $0x44] sm:$0x1]
      %v1400 = vld [vmem:[%s1361 + $0x50] sm:$0x1]
      %v1401 = vld [vmem:[%s1361 + $0x5c] sm:$0x1]
      %v1402 = vld [vmem:[%s1361 + $0x68] sm:$0x1]
      %v1403 = vld [vmem:[%s1361 + $0x74] sm:$0x1]
      %v1404 = vld [vmem:[%s1361 + $0x80] sm:$0x1]
      %v1405 = vld [vmem:[%s1361 + $0x8c] sm:$0x1]
      %v1406 = vld [vmem:[%s1361 + $0x98] sm:$0x1]
      %v1407 = vld [vmem:[%s1361 + $0xa4] sm:$0x1]
      %v1408 = vld [vmem:[%s1361 + $0xb0] sm:$0x1]
      %v1409 = vld [vmem:[%s1361 + $0xbc] sm:$0x1]
      %v1411 = vshrl.u32 %v1362, 16
      %v1413 = vrot.slane %v1411, 4
      %v1414 = vshll.u32 %v1362, 16
      %v1416 = vrot.slane %v1414, 5
      %v1417 = vor.u32 %v1413, %v1416
      %v1418 = vrot.slane %v1417, 4
      %v1420 = vshll.u32 %v1363, 16
      %v1422 = vrot.slane %v1420, 5
      %v1423 = vsel %vm247, %v1418, %v1422
      %v1424 = vshrl.u32 %v1363, 16
      %v1426 = vrot.slane %v1424, 4
      %v1427 = vor.u32 %v1426, %v1422
      %v1428 = vrot.slane %v1427, 4
      %v1430 = vshll.u32 %v1394, 16
      %v1432 = vrot.slane %v1430, 5
      %v1433 = vsel %vm247, %v1428, %v1432
      %v1435 = vshrl.u32 %v1364, 16
      %v1437 = vrot.slane %v1435, 4
      %v1438 = vshll.u32 %v1364, 16
      %v1440 = vrot.slane %v1438, 5
      %v1441 = vor.u32 %v1437, %v1440
      %v1442 = vrot.slane %v1441, 4
      %v1444 = vshll.u32 %v1365, 16
      %v1446 = vrot.slane %v1444, 5
      %v1447 = vsel %vm247, %v1442, %v1446
      %v1448 = vshrl.u32 %v1365, 16
      %v1450 = vrot.slane %v1448, 4
      %v1451 = vor.u32 %v1450, %v1446
      %v1452 = vrot.slane %v1451, 4
      %v1454 = vshll.u32 %v1395, 16
      %v1456 = vrot.slane %v1454, 5
      %v1457 = vsel %vm247, %v1452, %v1456
      %v1459 = vshrl.u32 %v1366, 16
      %v1461 = vrot.slane %v1459, 4
      %v1462 = vshll.u32 %v1366, 16
      %v1464 = vrot.slane %v1462, 5
      %v1465 = vor.u32 %v1461, %v1464
      %v1466 = vrot.slane %v1465, 4
      %v1468 = vshll.u32 %v1367, 16
      %v1470 = vrot.slane %v1468, 5
      %v1471 = vsel %vm247, %v1466, %v1470
      %v1472 = vshrl.u32 %v1367, 16
      %v1474 = vrot.slane %v1472, 4
      %v1475 = vor.u32 %v1474, %v1470
      %v1476 = vrot.slane %v1475, 4
      %v1478 = vshll.u32 %v1396, 16
      %v1480 = vrot.slane %v1478, 5
      %v1481 = vsel %vm247, %v1476, %v1480
      %v1483 = vshrl.u32 %v1368, 16
      %v1485 = vrot.slane %v1483, 4
      %v1486 = vshll.u32 %v1368, 16
      %v1488 = vrot.slane %v1486, 5
      %v1489 = vor.u32 %v1485, %v1488
      %v1490 = vrot.slane %v1489, 4
      %v1492 = vshll.u32 %v1369, 16
      %v1494 = vrot.slane %v1492, 5
      %v1495 = vsel %vm247, %v1490, %v1494
      %v1496 = vshrl.u32 %v1369, 16
      %v1498 = vrot.slane %v1496, 4
      %v1499 = vor.u32 %v1498, %v1494
      %v1500 = vrot.slane %v1499, 4
      %v1502 = vshll.u32 %v1397, 16
      %v1504 = vrot.slane %v1502, 5
      %v1505 = vsel %vm247, %v1500, %v1504
      %v1507 = vshrl.u32 %v1370, 16
      %v1509 = vrot.slane %v1507, 4
      %v1510 = vshll.u32 %v1370, 16
      %v1512 = vrot.slane %v1510, 5
      %v1513 = vor.u32 %v1509, %v1512
      %v1514 = vrot.slane %v1513, 4
      %v1516 = vshll.u32 %v1371, 16
      %v1518 = vrot.slane %v1516, 5
      %v1519 = vsel %vm247, %v1514, %v1518
      %v1520 = vshrl.u32 %v1371, 16
      %v1522 = vrot.slane %v1520, 4
      %v1523 = vor.u32 %v1522, %v1518
      %v1524 = vrot.slane %v1523, 4
      %v1526 = vshll.u32 %v1398, 16
      %v1528 = vrot.slane %v1526, 5
      %v1529 = vsel %vm247, %v1524, %v1528
      %v1531 = vshrl.u32 %v1372, 16
      %v1533 = vrot.slane %v1531, 4
      %v1534 = vshll.u32 %v1372, 16
      %v1536 = vrot.slane %v1534, 5
      %v1537 = vor.u32 %v1533, %v1536
      %v1538 = vrot.slane %v1537, 4
      %v1540 = vshll.u32 %v1373, 16
      %v1542 = vrot.slane %v1540, 5
      %v1543 = vsel %vm247, %v1538, %v1542
      %v1544 = vshrl.u32 %v1373, 16
      %v1546 = vrot.slane %v1544, 4
      %v1547 = vor.u32 %v1546, %v1542
      %v1548 = vrot.slane %v1547, 4
      %v1550 = vshll.u32 %v1399, 16
      %v1552 = vrot.slane %v1550, 5
      %v1553 = vsel %vm247, %v1548, %v1552
      %v1555 = vshrl.u32 %v1374, 16
      %v1557 = vrot.slane %v1555, 4
      %v1558 = vshll.u32 %v1374, 16
      %v1560 = vrot.slane %v1558, 5
      %v1561 = vor.u32 %v1557, %v1560
      %v1562 = vrot.slane %v1561, 4
      %v1564 = vshll.u32 %v1375, 16
      %v1566 = vrot.slane %v1564, 5
      %v1567 = vsel %vm247, %v1562, %v1566
      %v1568 = vshrl.u32 %v1375, 16
      %v1570 = vrot.slane %v1568, 4
      %v1571 = vor.u32 %v1570, %v1566
      %v1572 = vrot.slane %v1571, 4
      %v1574 = vshll.u32 %v1400, 16
      %v1576 = vrot.slane %v1574, 5
      %v1577 = vsel %vm247, %v1572, %v1576
      %v1579 = vshrl.u32 %v1376, 16
      %v1581 = vrot.slane %v1579, 4
      %v1582 = vshll.u32 %v1376, 16
      %v1584 = vrot.slane %v1582, 5
      %v1585 = vor.u32 %v1581, %v1584
      %v1586 = vrot.slane %v1585, 4
      %v1588 = vshll.u32 %v1377, 16
      %v1590 = vrot.slane %v1588, 5
      %v1591 = vsel %vm247, %v1586, %v1590
      %v1592 = vshrl.u32 %v1377, 16
      %v1594 = vrot.slane %v1592, 4
      %v1595 = vor.u32 %v1594, %v1590
      %v1596 = vrot.slane %v1595, 4
      %v1598 = vshll.u32 %v1401, 16
      %v1600 = vrot.slane %v1598, 5
      %v1601 = vsel %vm247, %v1596, %v1600
      %v1603 = vshrl.u32 %v1378, 16
      %v1605 = vrot.slane %v1603, 4
      %v1606 = vshll.u32 %v1378, 16
      %v1608 = vrot.slane %v1606, 5
      %v1609 = vor.u32 %v1605, %v1608
      %v1610 = vrot.slane %v1609, 4
      %v1612 = vshll.u32 %v1379, 16
      %v1614 = vrot.slane %v1612, 5
      %v1615 = vsel %vm247, %v1610, %v1614
      %v1616 = vshrl.u32 %v1379, 16
      %v1618 = vrot.slane %v1616, 4
      %v1619 = vor.u32 %v1618, %v1614
      %v1620 = vrot.slane %v1619, 4
      %v1622 = vshll.u32 %v1402, 16
      %v1624 = vrot.slane %v1622, 5
      %v1625 = vsel %vm247, %v1620, %v1624
      %v1627 = vshrl.u32 %v1380, 16
      %v1629 = vrot.slane %v1627, 4
      %v1630 = vshll.u32 %v1380, 16
      %v1632 = vrot.slane %v1630, 5
      %v1633 = vor.u32 %v1629, %v1632
      %v1634 = vrot.slane %v1633, 4
      %v1636 = vshll.u32 %v1381, 16
      %v1638 = vrot.slane %v1636, 5
      %v1639 = vsel %vm247, %v1634, %v1638
      %v1640 = vshrl.u32 %v1381, 16
      %v1642 = vrot.slane %v1640, 4
      %v1643 = vor.u32 %v1642, %v1638
      %v1644 = vrot.slane %v1643, 4
      %v1646 = vshll.u32 %v1403, 16
      %v1648 = vrot.slane %v1646, 5
      %v1649 = vsel %vm247, %v1644, %v1648
      %v1651 = vshrl.u32 %v1382, 16
      %v1653 = vrot.slane %v1651, 4
      %v1654 = vshll.u32 %v1382, 16
      %v1656 = vrot.slane %v1654, 5
      %v1657 = vor.u32 %v1653, %v1656
      %v1658 = vrot.slane %v1657, 4
      %v1660 = vshll.u32 %v1383, 16
      %v1662 = vrot.slane %v1660, 5
      %v1663 = vsel %vm247, %v1658, %v1662
      %v1664 = vshrl.u32 %v1383, 16
      %v1666 = vrot.slane %v1664, 4
      %v1667 = vor.u32 %v1666, %v1662
      %v1668 = vrot.slane %v1667, 4
      %v1670 = vshll.u32 %v1404, 16
      %v1672 = vrot.slane %v1670, 5
      %v1673 = vsel %vm247, %v1668, %v1672
      %v1675 = vshrl.u32 %v1384, 16
      %v1677 = vrot.slane %v1675, 4
      %v1678 = vshll.u32 %v1384, 16
      %v1680 = vrot.slane %v1678, 5
      %v1681 = vor.u32 %v1677, %v1680
      %v1682 = vrot.slane %v1681, 4
      %v1684 = vshll.u32 %v1385, 16
      %v1686 = vrot.slane %v1684, 5
      %v1687 = vsel %vm247, %v1682, %v1686
      %v1688 = vshrl.u32 %v1385, 16
      %v1690 = vrot.slane %v1688, 4
      %v1691 = vor.u32 %v1690, %v1686
      %v1692 = vrot.slane %v1691, 4
      %v1694 = vshll.u32 %v1405, 16
      %v1696 = vrot.slane %v1694, 5
      %v1697 = vsel %vm247, %v1692, %v1696
      %v1699 = vshrl.u32 %v1386, 16
      %v1701 = vrot.slane %v1699, 4
      %v1702 = vshll.u32 %v1386, 16
      %v1704 = vrot.slane %v1702, 5
      %v1705 = vor.u32 %v1701, %v1704
      %v1706 = vrot.slane %v1705, 4
      %v1708 = vshll.u32 %v1387, 16
      %v1710 = vrot.slane %v1708, 5
      %v1711 = vsel %vm247, %v1706, %v1710
      %v1712 = vshrl.u32 %v1387, 16
      %v1714 = vrot.slane %v1712, 4
      %v1715 = vor.u32 %v1714, %v1710
      %v1716 = vrot.slane %v1715, 4
      %v1718 = vshll.u32 %v1406, 16
      %v1720 = vrot.slane %v1718, 5
      %v1721 = vsel %vm247, %v1716, %v1720
      %v1723 = vshrl.u32 %v1388, 16
      %v1725 = vrot.slane %v1723, 4
      %v1726 = vshll.u32 %v1388, 16
      %v1728 = vrot.slane %v1726, 5
      %v1729 = vor.u32 %v1725, %v1728
      %v1730 = vrot.slane %v1729, 4
      %v1732 = vshll.u32 %v1389, 16
      %v1734 = vrot.slane %v1732, 5
      %v1735 = vsel %vm247, %v1730, %v1734
      %v1736 = vshrl.u32 %v1389, 16
      %v1738 = vrot.slane %v1736, 4
      %v1739 = vor.u32 %v1738, %v1734
      %v1740 = vrot.slane %v1739, 4
      %v1742 = vshll.u32 %v1407, 16
      %v1744 = vrot.slane %v1742, 5
      %v1745 = vsel %vm247, %v1740, %v1744
      %v1747 = vshrl.u32 %v1390, 16
      %v1749 = vrot.slane %v1747, 4
      %v1750 = vshll.u32 %v1390, 16
      %v1752 = vrot.slane %v1750, 5
      %v1753 = vor.u32 %v1749, %v1752
      %v1754 = vrot.slane %v1753, 4
      %v1756 = vshll.u32 %v1391, 16
      %v1758 = vrot.slane %v1756, 5
      %v1759 = vsel %vm247, %v1754, %v1758
      %v1760 = vshrl.u32 %v1391, 16
      %v1762 = vrot.slane %v1760, 4
      %v1763 = vor.u32 %v1762, %v1758
      %v1764 = vrot.slane %v1763, 4
      %v1766 = vshll.u32 %v1408, 16
      %v1768 = vrot.slane %v1766, 5
      %v1769 = vsel %vm247, %v1764, %v1768
      %v1771 = vshrl.u32 %v1392, 16
      %v1773 = vrot.slane %v1771, 4
      %v1774 = vshll.u32 %v1392, 16
      %v1776 = vrot.slane %v1774, 5
      %v1777 = vor.u32 %v1773, %v1776
      %v1778 = vrot.slane %v1777, 4
      %v1780 = vshll.u32 %v1393, 16
      %v1782 = vrot.slane %v1780, 5
      %v1783 = vsel %vm247, %v1778, %v1782
      %v1784 = vshrl.u32 %v1393, 16
      %v1786 = vrot.slane %v1784, 4
      %v1787 = vor.u32 %v1786, %v1782
      %v1788 = vrot.slane %v1787, 4
      %v1790 = vshll.u32 %v1409, 16
      %v1792 = vrot.slane %v1790, 5
      %v1793 = vsel %vm247, %v1788, %v1792
      %v1794 = vld [vmem:[%s1361] sm:$0xe]
      %v1795 = vld [vmem:[%s1361 + $0xc] sm:$0xe]
      %v1796 = vld [vmem:[%s1361 + $0x18] sm:$0xe]
      %v1797 = vld [vmem:[%s1361 + $0x24] sm:$0xe]
      %v1798 = vld [vmem:[%s1361 + $0x30] sm:$0xe]
      %v1799 = vld [vmem:[%s1361 + $0x3c] sm:$0xe]
      %v1800 = vld [vmem:[%s1361 + $0x48] sm:$0xe]
      %v1801 = vld [vmem:[%s1361 + $0x54] sm:$0xe]
      %v1802 = vld [vmem:[%s1361 + $0x60] sm:$0xe]
      %v1803 = vld [vmem:[%s1361 + $0x6c] sm:$0xe]
      %v1804 = vld [vmem:[%s1361 + $0x78] sm:$0xe]
      %v1805 = vld [vmem:[%s1361 + $0x84] sm:$0xe]
      %v1806 = vld [vmem:[%s1361 + $0x90] sm:$0xe]
      %v1807 = vld [vmem:[%s1361 + $0x9c] sm:$0xe]
      %v1808 = vld [vmem:[%s1361 + $0xa8] sm:$0xe]
      %v1809 = vld [vmem:[%s1361 + $0xb4] sm:$0xe]
      %v1858 = vrot.slane %v1794, 5
      %v1859 = vrot.slane %v1858, 4
      %v1860 = vrot.slane %v1363, 5
      %v1861 = vsel %vm698, %v1859, %v1860
      %v1862 = vrot.slane %v1860, 4
      %v1863 = vrot.slane %v1394, 5
      %v1864 = vsel %vm698, %v1862, %v1863
      %v1865 = vrot.slane %v1795, 5
      %v1866 = vrot.slane %v1865, 4
      %v1867 = vrot.slane %v1365, 5
      %v1868 = vsel %vm698, %v1866, %v1867
      %v1869 = vrot.slane %v1867, 4
      %v1870 = vrot.slane %v1395, 5
      %v1871 = vsel %vm698, %v1869, %v1870
      %v1872 = vrot.slane %v1796, 5
      %v1873 = vrot.slane %v1872, 4
      %v1874 = vrot.slane %v1367, 5
      %v1875 = vsel %vm698, %v1873, %v1874
      %v1876 = vrot.slane %v1874, 4
      %v1877 = vrot.slane %v1396, 5
      %v1878 = vsel %vm698, %v1876, %v1877
      %v1879 = vrot.slane %v1797, 5
      %v1880 = vrot.slane %v1879, 4
      %v1881 = vrot.slane %v1369, 5
      %v1882 = vsel %vm698, %v1880, %v1881
      %v1883 = vrot.slane %v1881, 4
      %v1884 = vrot.slane %v1397, 5
      %v1885 = vsel %vm698, %v1883, %v1884
      %v1886 = vrot.slane %v1798, 5
      %v1887 = vrot.slane %v1886, 4
      %v1888 = vrot.slane %v1371, 5
      %v1889 = vsel %vm698, %v1887, %v1888
      %v1890 = vrot.slane %v1888, 4
      %v1891 = vrot.slane %v1398, 5
      %v1892 = vsel %vm698, %v1890, %v1891
      %v1893 = vrot.slane %v1799, 5
      %v1894 = vrot.slane %v1893, 4
      %v1895 = vrot.slane %v1373, 5
      %v1896 = vsel %vm698, %v1894, %v1895
      %v1897 = vrot.slane %v1895, 4
      %v1898 = vrot.slane %v1399, 5
      %v1899 = vsel %vm698, %v1897, %v1898
      %v1900 = vrot.slane %v1800, 5
      %v1901 = vrot.slane %v1900, 4
      %v1902 = vrot.slane %v1375, 5
      %v1903 = vsel %vm698, %v1901, %v1902
      %v1904 = vrot.slane %v1902, 4
      %v1905 = vrot.slane %v1400, 5
      %v1906 = vsel %vm698, %v1904, %v1905
      %v1907 = vrot.slane %v1801, 5
      %v1908 = vrot.slane %v1907, 4
      %v1909 = vrot.slane %v1377, 5
      %v1910 = vsel %vm698, %v1908, %v1909
      %v1911 = vrot.slane %v1909, 4
      %v1912 = vrot.slane %v1401, 5
      %v1913 = vsel %vm698, %v1911, %v1912
      %v1914 = vrot.slane %v1802, 5
      %v1915 = vrot.slane %v1914, 4
      %v1916 = vrot.slane %v1379, 5
      %v1917 = vsel %vm698, %v1915, %v1916
      %v1918 = vrot.slane %v1916, 4
      %v1919 = vrot.slane %v1402, 5
      %v1920 = vsel %vm698, %v1918, %v1919
      %v1921 = vrot.slane %v1803, 5
      %v1922 = vrot.slane %v1921, 4
      %v1923 = vrot.slane %v1381, 5
      %v1924 = vsel %vm698, %v1922, %v1923
      %v1925 = vrot.slane %v1923, 4
      %v1926 = vrot.slane %v1403, 5
      %v1927 = vsel %vm698, %v1925, %v1926
      %v1928 = vrot.slane %v1804, 5
      %v1929 = vrot.slane %v1928, 4
      %v1930 = vrot.slane %v1383, 5
      %v1931 = vsel %vm698, %v1929, %v1930
      %v1932 = vrot.slane %v1930, 4
      %v1933 = vrot.slane %v1404, 5
      %v1934 = vsel %vm698, %v1932, %v1933
      %v1935 = vrot.slane %v1805, 5
      %v1936 = vrot.slane %v1935, 4
      %v1937 = vrot.slane %v1385, 5
      %v1938 = vsel %vm698, %v1936, %v1937
      %v1939 = vrot.slane %v1937, 4
      %v1940 = vrot.slane %v1405, 5
      %v1941 = vsel %vm698, %v1939, %v1940
      %v1942 = vrot.slane %v1806, 5
      %v1943 = vrot.slane %v1942, 4
      %v1944 = vrot.slane %v1387, 5
      %v1945 = vsel %vm698, %v1943, %v1944
      %v1946 = vrot.slane %v1944, 4
      %v1947 = vrot.slane %v1406, 5
      %v1948 = vsel %vm698, %v1946, %v1947
      %v1949 = vrot.slane %v1807, 5
      %v1950 = vrot.slane %v1949, 4
      %v1951 = vrot.slane %v1389, 5
      %v1952 = vsel %vm698, %v1950, %v1951
      %v1953 = vrot.slane %v1951, 4
      %v1954 = vrot.slane %v1407, 5
      %v1955 = vsel %vm698, %v1953, %v1954
      %v1956 = vrot.slane %v1808, 5
      %v1957 = vrot.slane %v1956, 4
      %v1958 = vrot.slane %v1391, 5
      %v1959 = vsel %vm698, %v1957, %v1958
      %v1960 = vrot.slane %v1958, 4
      %v1961 = vrot.slane %v1408, 5
      %v1962 = vsel %vm698, %v1960, %v1961
      %v1963 = vrot.slane %v1809, 5
      %v1964 = vrot.slane %v1963, 4
      %v1965 = vrot.slane %v1393, 5
      %v1966 = vsel %vm698, %v1964, %v1965
      %v1967 = vrot.slane %v1965, 4
      %v1968 = vrot.slane %v1409, 5
      %v1969 = vsel %vm698, %v1967, %v1968
      %v1970 = vld [vmem:[%s1361 + $0x8] sm:$0x3]
      %v1971 = vld [vmem:[%s1361 + $0x14] sm:$0x3]
      %v1972 = vld [vmem:[%s1361 + $0x20] sm:$0x3]
      %v1973 = vld [vmem:[%s1361 + $0x2c] sm:$0x3]
      %v1974 = vld [vmem:[%s1361 + $0x38] sm:$0x3]
      %v1975 = vld [vmem:[%s1361 + $0x44] sm:$0x3]
      %v1976 = vld [vmem:[%s1361 + $0x50] sm:$0x3]
      %v1977 = vld [vmem:[%s1361 + $0x5c] sm:$0x3]
      %v1978 = vld [vmem:[%s1361 + $0x68] sm:$0x3]
      %v1979 = vld [vmem:[%s1361 + $0x74] sm:$0x3]
      %v1980 = vld [vmem:[%s1361 + $0x80] sm:$0x3]
      %v1981 = vld [vmem:[%s1361 + $0x8c] sm:$0x3]
      %v1982 = vld [vmem:[%s1361 + $0x98] sm:$0x3]
      %v1983 = vld [vmem:[%s1361 + $0xa4] sm:$0x3]
      %v1984 = vld [vmem:[%s1361 + $0xb0] sm:$0x3]
      %v1985 = vld [vmem:[%s1361 + $0xbc] sm:$0x3]
      %v1987 = vshrl.u32 %v1794, 16
      %v1989 = vrot.slane %v1987, 5
      %v1990 = vshll.u32 %v1794, 16
      %v1992 = vrot.slane %v1990, 6
      %v1993 = vor.u32 %v1989, %v1992
      %v1994 = vrot.slane %v1993, 4
      %v1995 = vrot.slane %v1424, 5
      %v1996 = vrot.slane %v1420, 6
      %v1997 = vor.u32 %v1995, %v1996
      %v1998 = vsel %vm829, %v1994, %v1997
      %v1999 = vrot.slane %v1997, 4
      %v2001 = vshrl.u32 %v1970, 16
      %v2003 = vrot.slane %v2001, 5
      %v2004 = vshll.u32 %v1970, 16
      %v2006 = vrot.slane %v2004, 6
      %v2007 = vor.u32 %v2003, %v2006
      %v2008 = vsel %vm829, %v1999, %v2007
      %v2010 = vshrl.u32 %v1795, 16
      %v2012 = vrot.slane %v2010, 5
      %v2013 = vshll.u32 %v1795, 16
      %v2015 = vrot.slane %v2013, 6
      %v2016 = vor.u32 %v2012, %v2015
      %v2017 = vrot.slane %v2016, 4
      %v2018 = vrot.slane %v1448, 5
      %v2019 = vrot.slane %v1444, 6
      %v2020 = vor.u32 %v2018, %v2019
      %v2021 = vsel %vm829, %v2017, %v2020
      %v2022 = vrot.slane %v2020, 4
      %v2024 = vshrl.u32 %v1971, 16
      %v2026 = vrot.slane %v2024, 5
      %v2027 = vshll.u32 %v1971, 16
      %v2029 = vrot.slane %v2027, 6
      %v2030 = vor.u32 %v2026, %v2029
      %v2031 = vsel %vm829, %v2022, %v2030
      %v2033 = vshrl.u32 %v1796, 16
      %v2035 = vrot.slane %v2033, 5
      %v2036 = vshll.u32 %v1796, 16
      %v2038 = vrot.slane %v2036, 6
      %v2039 = vor.u32 %v2035, %v2038
      %v2040 = vrot.slane %v2039, 4
      %v2041 = vrot.slane %v1472, 5
      %v2042 = vrot.slane %v1468, 6
      %v2043 = vor.u32 %v2041, %v2042
      %v2044 = vsel %vm829, %v2040, %v2043
      %v2045 = vrot.slane %v2043, 4
      %v2047 = vshrl.u32 %v1972, 16
      %v2049 = vrot.slane %v2047, 5
      %v2050 = vshll.u32 %v1972, 16
      %v2052 = vrot.slane %v2050, 6
      %v2053 = vor.u32 %v2049, %v2052
      %v2054 = vsel %vm829, %v2045, %v2053
      %v2056 = vshrl.u32 %v1797, 16
      %v2058 = vrot.slane %v2056, 5
      %v2059 = vshll.u32 %v1797, 16
      %v2061 = vrot.slane %v2059, 6
      %v2062 = vor.u32 %v2058, %v2061
      %v2063 = vrot.slane %v2062, 4
      %v2064 = vrot.slane %v1496, 5
      %v2065 = vrot.slane %v1492, 6
      %v2066 = vor.u32 %v2064, %v2065
      %v2067 = vsel %vm829, %v2063, %v2066
      %v2068 = vrot.slane %v2066, 4
      %v2070 = vshrl.u32 %v1973, 16
      %v2072 = vrot.slane %v2070, 5
      %v2073 = vshll.u32 %v1973, 16
      %v2075 = vrot.slane %v2073, 6
      %v2076 = vor.u32 %v2072, %v2075
      %v2077 = vsel %vm829, %v2068, %v2076
      %v2079 = vshrl.u32 %v1798, 16
      %v2081 = vrot.slane %v2079, 5
      %v2082 = vshll.u32 %v1798, 16
      %v2084 = vrot.slane %v2082, 6
      %v2085 = vor.u32 %v2081, %v2084
      %v2086 = vrot.slane %v2085, 4
      %v2087 = vrot.slane %v1520, 5
      %v2088 = vrot.slane %v1516, 6
      %v2089 = vor.u32 %v2087, %v2088
      %v2090 = vsel %vm829, %v2086, %v2089
      %v2091 = vrot.slane %v2089, 4
      %v2093 = vshrl.u32 %v1974, 16
      %v2095 = vrot.slane %v2093, 5
      %v2096 = vshll.u32 %v1974, 16
      %v2098 = vrot.slane %v2096, 6
      %v2099 = vor.u32 %v2095, %v2098
      %v2100 = vsel %vm829, %v2091, %v2099
      %v2102 = vshrl.u32 %v1799, 16
      %v2104 = vrot.slane %v2102, 5
      %v2105 = vshll.u32 %v1799, 16
      %v2107 = vrot.slane %v2105, 6
      %v2108 = vor.u32 %v2104, %v2107
      %v2109 = vrot.slane %v2108, 4
      %v2110 = vrot.slane %v1544, 5
      %v2111 = vrot.slane %v1540, 6
      %v2112 = vor.u32 %v2110, %v2111
      %v2113 = vsel %vm829, %v2109, %v2112
      %v2114 = vrot.slane %v2112, 4
      %v2116 = vshrl.u32 %v1975, 16
      %v2118 = vrot.slane %v2116, 5
      %v2119 = vshll.u32 %v1975, 16
      %v2121 = vrot.slane %v2119, 6
      %v2122 = vor.u32 %v2118, %v2121
      %v2123 = vsel %vm829, %v2114, %v2122
      %v2125 = vshrl.u32 %v1800, 16
      %v2127 = vrot.slane %v2125, 5
      %v2128 = vshll.u32 %v1800, 16
      %v2130 = vrot.slane %v2128, 6
      %v2131 = vor.u32 %v2127, %v2130
      %v2132 = vrot.slane %v2131, 4
      %v2133 = vrot.slane %v1568, 5
      %v2134 = vrot.slane %v1564, 6
      %v2135 = vor.u32 %v2133, %v2134
      %v2136 = vsel %vm829, %v2132, %v2135
      %v2137 = vrot.slane %v2135, 4
      %v2139 = vshrl.u32 %v1976, 16
      %v2141 = vrot.slane %v2139, 5
      %v2142 = vshll.u32 %v1976, 16
      %v2144 = vrot.slane %v2142, 6
      %v2145 = vor.u32 %v2141, %v2144
      %v2146 = vsel %vm829, %v2137, %v2145
      %v2148 = vshrl.u32 %v1801, 16
      %v2150 = vrot.slane %v2148, 5
      %v2151 = vshll.u32 %v1801, 16
      %v2153 = vrot.slane %v2151, 6
      %v2154 = vor.u32 %v2150, %v2153
      %v2155 = vrot.slane %v2154, 4
      %v2156 = vrot.slane %v1592, 5
      %v2157 = vrot.slane %v1588, 6
      %v2158 = vor.u32 %v2156, %v2157
      %v2159 = vsel %vm829, %v2155, %v2158
      %v2160 = vrot.slane %v2158, 4
      %v2162 = vshrl.u32 %v1977, 16
      %v2164 = vrot.slane %v2162, 5
      %v2165 = vshll.u32 %v1977, 16
      %v2167 = vrot.slane %v2165, 6
      %v2168 = vor.u32 %v2164, %v2167
      %v2169 = vsel %vm829, %v2160, %v2168
      %v2171 = vshrl.u32 %v1802, 16
      %v2173 = vrot.slane %v2171, 5
      %v2174 = vshll.u32 %v1802, 16
      %v2176 = vrot.slane %v2174, 6
      %v2177 = vor.u32 %v2173, %v2176
      %v2178 = vrot.slane %v2177, 4
      %v2179 = vrot.slane %v1616, 5
      %v2180 = vrot.slane %v1612, 6
      %v2181 = vor.u32 %v2179, %v2180
      %v2182 = vsel %vm829, %v2178, %v2181
      %v2183 = vrot.slane %v2181, 4
      %v2185 = vshrl.u32 %v1978, 16
      %v2187 = vrot.slane %v2185, 5
      %v2188 = vshll.u32 %v1978, 16
      %v2190 = vrot.slane %v2188, 6
      %v2191 = vor.u32 %v2187, %v2190
      %v2192 = vsel %vm829, %v2183, %v2191
      %v2194 = vshrl.u32 %v1803, 16
      %v2196 = vrot.slane %v2194, 5
      %v2197 = vshll.u32 %v1803, 16
      %v2199 = vrot.slane %v2197, 6
      %v2200 = vor.u32 %v2196, %v2199
      %v2201 = vrot.slane %v2200, 4
      %v2202 = vrot.slane %v1640, 5
      %v2203 = vrot.slane %v1636, 6
      %v2204 = vor.u32 %v2202, %v2203
      %v2205 = vsel %vm829, %v2201, %v2204
      %v2206 = vrot.slane %v2204, 4
      %v2208 = vshrl.u32 %v1979, 16
      %v2210 = vrot.slane %v2208, 5
      %v2211 = vshll.u32 %v1979, 16
      %v2213 = vrot.slane %v2211, 6
      %v2214 = vor.u32 %v2210, %v2213
      %v2215 = vsel %vm829, %v2206, %v2214
      %v2217 = vshrl.u32 %v1804, 16
      %v2219 = vrot.slane %v2217, 5
      %v2220 = vshll.u32 %v1804, 16
      %v2222 = vrot.slane %v2220, 6
      %v2223 = vor.u32 %v2219, %v2222
      %v2224 = vrot.slane %v2223, 4
      %v2225 = vrot.slane %v1664, 5
      %v2226 = vrot.slane %v1660, 6
      %v2227 = vor.u32 %v2225, %v2226
      %v2228 = vsel %vm829, %v2224, %v2227
      %v2229 = vrot.slane %v2227, 4
      %v2231 = vshrl.u32 %v1980, 16
      %v2233 = vrot.slane %v2231, 5
      %v2234 = vshll.u32 %v1980, 16
      %v2236 = vrot.slane %v2234, 6
      %v2237 = vor.u32 %v2233, %v2236
      %v2238 = vsel %vm829, %v2229, %v2237
      %v2240 = vshrl.u32 %v1805, 16
      %v2242 = vrot.slane %v2240, 5
      %v2243 = vshll.u32 %v1805, 16
      %v2245 = vrot.slane %v2243, 6
      %v2246 = vor.u32 %v2242, %v2245
      %v2247 = vrot.slane %v2246, 4
      %v2248 = vrot.slane %v1688, 5
      %v2249 = vrot.slane %v1684, 6
      %v2250 = vor.u32 %v2248, %v2249
      %v2251 = vsel %vm829, %v2247, %v2250
      %v2252 = vrot.slane %v2250, 4
      %v2254 = vshrl.u32 %v1981, 16
      %v2256 = vrot.slane %v2254, 5
      %v2257 = vshll.u32 %v1981, 16
      %v2259 = vrot.slane %v2257, 6
      %v2260 = vor.u32 %v2256, %v2259
      %v2261 = vsel %vm829, %v2252, %v2260
      %v2263 = vshrl.u32 %v1806, 16
      %v2265 = vrot.slane %v2263, 5
      %v2266 = vshll.u32 %v1806, 16
      %v2268 = vrot.slane %v2266, 6
      %v2269 = vor.u32 %v2265, %v2268
      %v2270 = vrot.slane %v2269, 4
      %v2271 = vrot.slane %v1712, 5
      %v2272 = vrot.slane %v1708, 6
      %v2273 = vor.u32 %v2271, %v2272
      %v2274 = vsel %vm829, %v2270, %v2273
      %v2275 = vrot.slane %v2273, 4
      %v2277 = vshrl.u32 %v1982, 16
      %v2279 = vrot.slane %v2277, 5
      %v2280 = vshll.u32 %v1982, 16
      %v2282 = vrot.slane %v2280, 6
      %v2283 = vor.u32 %v2279, %v2282
      %v2284 = vsel %vm829, %v2275, %v2283
      %v2286 = vshrl.u32 %v1807, 16
      %v2288 = vrot.slane %v2286, 5
      %v2289 = vshll.u32 %v1807, 16
      %v2291 = vrot.slane %v2289, 6
      %v2292 = vor.u32 %v2288, %v2291
      %v2293 = vrot.slane %v2292, 4
      %v2294 = vrot.slane %v1736, 5
      %v2295 = vrot.slane %v1732, 6
      %v2296 = vor.u32 %v2294, %v2295
      %v2297 = vsel %vm829, %v2293, %v2296
      %v2298 = vrot.slane %v2296, 4
      %v2300 = vshrl.u32 %v1983, 16
      %v2302 = vrot.slane %v2300, 5
      %v2303 = vshll.u32 %v1983, 16
      %v2305 = vrot.slane %v2303, 6
      %v2306 = vor.u32 %v2302, %v2305
      %v2307 = vsel %vm829, %v2298, %v2306
      %v2309 = vshrl.u32 %v1808, 16
      %v2311 = vrot.slane %v2309, 5
      %v2312 = vshll.u32 %v1808, 16
      %v2314 = vrot.slane %v2312, 6
      %v2315 = vor.u32 %v2311, %v2314
      %v2316 = vrot.slane %v2315, 4
      %v2317 = vrot.slane %v1760, 5
      %v2318 = vrot.slane %v1756, 6
      %v2319 = vor.u32 %v2317, %v2318
      %v2320 = vsel %vm829, %v2316, %v2319
      %v2321 = vrot.slane %v2319, 4
      %v2323 = vshrl.u32 %v1984, 16
      %v2325 = vrot.slane %v2323, 5
      %v2326 = vshll.u32 %v1984, 16
      %v2328 = vrot.slane %v2326, 6
      %v2329 = vor.u32 %v2325, %v2328
      %v2330 = vsel %vm829, %v2321, %v2329
      %v2332 = vshrl.u32 %v1809, 16
      %v2334 = vrot.slane %v2332, 5
      %v2335 = vshll.u32 %v1809, 16
      %v2337 = vrot.slane %v2335, 6
      %v2338 = vor.u32 %v2334, %v2337
      %v2339 = vrot.slane %v2338, 4
      %v2340 = vrot.slane %v1784, 5
      %v2341 = vrot.slane %v1780, 6
      %v2342 = vor.u32 %v2340, %v2341
      %v2343 = vsel %vm829, %v2339, %v2342
      %v2344 = vrot.slane %v2342, 4
      %v2346 = vshrl.u32 %v1985, 16
      %v2348 = vrot.slane %v2346, 5
      %v2349 = vshll.u32 %v1985, 16
      %v2351 = vrot.slane %v2349, 6
      %v2352 = vor.u32 %v2348, %v2351
      %v2353 = vsel %vm829, %v2344, %v2352
      %v2354 = vld [vmem:[%s1361] sm:$0xc]
      %v2355 = vld [vmem:[%s1361 + $0xc] sm:$0xc]
      %v2356 = vld [vmem:[%s1361 + $0x18] sm:$0xc]
      %v2357 = vld [vmem:[%s1361 + $0x24] sm:$0xc]
      %v2358 = vld [vmem:[%s1361 + $0x30] sm:$0xc]
      %v2359 = vld [vmem:[%s1361 + $0x3c] sm:$0xc]
      %v2360 = vld [vmem:[%s1361 + $0x48] sm:$0xc]
      %v2361 = vld [vmem:[%s1361 + $0x54] sm:$0xc]
      %v2362 = vld [vmem:[%s1361 + $0x60] sm:$0xc]
      %v2363 = vld [vmem:[%s1361 + $0x6c] sm:$0xc]
      %v2364 = vld [vmem:[%s1361 + $0x78] sm:$0xc]
      %v2365 = vld [vmem:[%s1361 + $0x84] sm:$0xc]
      %v2366 = vld [vmem:[%s1361 + $0x90] sm:$0xc]
      %v2367 = vld [vmem:[%s1361 + $0x9c] sm:$0xc]
      %v2368 = vld [vmem:[%s1361 + $0xa8] sm:$0xc]
      %v2369 = vld [vmem:[%s1361 + $0xb4] sm:$0xc]
      %v2402 = vrot.slane %v2354, 6
      %v2403 = vrot.slane %v2402, 4
      %v2404 = vrot.slane %v1363, 6
      %v2405 = vsel %vm1248, %v2403, %v2404
      %v2406 = vrot.slane %v2404, 4
      %v2407 = vrot.slane %v1970, 6
      %v2408 = vsel %vm1248, %v2406, %v2407
      %v2409 = vrot.slane %v2355, 6
      %v2410 = vrot.slane %v2409, 4
      %v2411 = vrot.slane %v1365, 6
      %v2412 = vsel %vm1248, %v2410, %v2411
      %v2413 = vrot.slane %v2411, 4
      %v2414 = vrot.slane %v1971, 6
      %v2415 = vsel %vm1248, %v2413, %v2414
      %v2416 = vrot.slane %v2356, 6
      %v2417 = vrot.slane %v2416, 4
      %v2418 = vrot.slane %v1367, 6
      %v2419 = vsel %vm1248, %v2417, %v2418
      %v2420 = vrot.slane %v2418, 4
      %v2421 = vrot.slane %v1972, 6
      %v2422 = vsel %vm1248, %v2420, %v2421
      %v2423 = vrot.slane %v2357, 6
      %v2424 = vrot.slane %v2423, 4
      %v2425 = vrot.slane %v1369, 6
      %v2426 = vsel %vm1248, %v2424, %v2425
      %v2427 = vrot.slane %v2425, 4
      %v2428 = vrot.slane %v1973, 6
      %v2429 = vsel %vm1248, %v2427, %v2428
      %v2430 = vrot.slane %v2358, 6
      %v2431 = vrot.slane %v2430, 4
      %v2432 = vrot.slane %v1371, 6
      %v2433 = vsel %vm1248, %v2431, %v2432
      %v2434 = vrot.slane %v2432, 4
      %v2435 = vrot.slane %v1974, 6
      %v2436 = vsel %vm1248, %v2434, %v2435
      %v2437 = vrot.slane %v2359, 6
      %v2438 = vrot.slane %v2437, 4
      %v2439 = vrot.slane %v1373, 6
      %v2440 = vsel %vm1248, %v2438, %v2439
      %v2441 = vrot.slane %v2439, 4
      %v2442 = vrot.slane %v1975, 6
      %v2443 = vsel %vm1248, %v2441, %v2442
      %v2444 = vrot.slane %v2360, 6
      %v2445 = vrot.slane %v2444, 4
      %v2446 = vrot.slane %v1375, 6
      %v2447 = vsel %vm1248, %v2445, %v2446
      %v2448 = vrot.slane %v2446, 4
      %v2449 = vrot.slane %v1976, 6
      %v2450 = vsel %vm1248, %v2448, %v2449
      %v2451 = vrot.slane %v2361, 6
      %v2452 = vrot.slane %v2451, 4
      %v2453 = vrot.slane %v1377, 6
      %v2454 = vsel %vm1248, %v2452, %v2453
      %v2455 = vrot.slane %v2453, 4
      %v2456 = vrot.slane %v1977, 6
      %v2457 = vsel %vm1248, %v2455, %v2456
      %v2458 = vrot.slane %v2362, 6
      %v2459 = vrot.slane %v2458, 4
      %v2460 = vrot.slane %v1379, 6
      %v2461 = vsel %vm1248, %v2459, %v2460
      %v2462 = vrot.slane %v2460, 4
      %v2463 = vrot.slane %v1978, 6
      %v2464 = vsel %vm1248, %v2462, %v2463
      %v2465 = vrot.slane %v2363, 6
      %v2466 = vrot.slane %v2465, 4
      %v2467 = vrot.slane %v1381, 6
      %v2468 = vsel %vm1248, %v2466, %v2467
      %v2469 = vrot.slane %v2467, 4
      %v2470 = vrot.slane %v1979, 6
      %v2471 = vsel %vm1248, %v2469, %v2470
      %v2472 = vrot.slane %v2364, 6
      %v2473 = vrot.slane %v2472, 4
      %v2474 = vrot.slane %v1383, 6
      %v2475 = vsel %vm1248, %v2473, %v2474
      %v2476 = vrot.slane %v2474, 4
      %v2477 = vrot.slane %v1980, 6
      %v2478 = vsel %vm1248, %v2476, %v2477
      %v2479 = vrot.slane %v2365, 6
      %v2480 = vrot.slane %v2479, 4
      %v2481 = vrot.slane %v1385, 6
      %v2482 = vsel %vm1248, %v2480, %v2481
      %v2483 = vrot.slane %v2481, 4
      %v2484 = vrot.slane %v1981, 6
      %v2485 = vsel %vm1248, %v2483, %v2484
      %v2486 = vrot.slane %v2366, 6
      %v2487 = vrot.slane %v2486, 4
      %v2488 = vrot.slane %v1387, 6
      %v2489 = vsel %vm1248, %v2487, %v2488
      %v2490 = vrot.slane %v2488, 4
      %v2491 = vrot.slane %v1982, 6
      %v2492 = vsel %vm1248, %v2490, %v2491
      %v2493 = vrot.slane %v2367, 6
      %v2494 = vrot.slane %v2493, 4
      %v2495 = vrot.slane %v1389, 6
      %v2496 = vsel %vm1248, %v2494, %v2495
      %v2497 = vrot.slane %v2495, 4
      %v2498 = vrot.slane %v1983, 6
      %v2499 = vsel %vm1248, %v2497, %v2498
      %v2500 = vrot.slane %v2368, 6
      %v2501 = vrot.slane %v2500, 4
      %v2502 = vrot.slane %v1391, 6
      %v2503 = vsel %vm1248, %v2501, %v2502
      %v2504 = vrot.slane %v2502, 4
      %v2505 = vrot.slane %v1984, 6
      %v2506 = vsel %vm1248, %v2504, %v2505
      %v2507 = vrot.slane %v2369, 6
      %v2508 = vrot.slane %v2507, 4
      %v2509 = vrot.slane %v1393, 6
      %v2510 = vsel %vm1248, %v2508, %v2509
      %v2511 = vrot.slane %v2509, 4
      %v2512 = vrot.slane %v1985, 6
      %v2513 = vsel %vm1248, %v2511, %v2512
      %s2514 = scalar_lea.vmem %s190, 24
      %v2515 = vld [vmem:[%s2514] sm:$0xf]
      %v2516 = vld [vmem:[%s2514 + $0x4] sm:$0xf]
      %v2517 = vld [vmem:[%s2514 + $0xc] sm:$0xf]
      %v2518 = vld [vmem:[%s2514 + $0x10] sm:$0xf]
      %v2519 = vld [vmem:[%s2514 + $0x18] sm:$0xf]
      %v2520 = vld [vmem:[%s2514 + $0x1c] sm:$0xf]
      %v2521 = vld [vmem:[%s2514 + $0x24] sm:$0xf]
      %v2522 = vld [vmem:[%s2514 + $0x28] sm:$0xf]
      %v2523 = vld [vmem:[%s2514 + $0x30] sm:$0xf]
      %v2524 = vld [vmem:[%s2514 + $0x34] sm:$0xf]
      %v2525 = vld [vmem:[%s2514 + $0x3c] sm:$0xf]
      %v2526 = vld [vmem:[%s2514 + $0x40] sm:$0xf]
      %v2527 = vld [vmem:[%s2514 + $0x48] sm:$0xf]
      %v2528 = vld [vmem:[%s2514 + $0x4c] sm:$0xf]
      %v2529 = vld [vmem:[%s2514 + $0x54] sm:$0xf]
      %v2530 = vld [vmem:[%s2514 + $0x58] sm:$0xf]
      %v2531 = vld [vmem:[%s2514 + $0x60] sm:$0xf]
      %v2532 = vld [vmem:[%s2514 + $0x64] sm:$0xf]
      %v2533 = vld [vmem:[%s2514 + $0x6c] sm:$0xf]
      %v2534 = vld [vmem:[%s2514 + $0x70] sm:$0xf]
      %v2535 = vld [vmem:[%s2514 + $0x78] sm:$0xf]
      %v2536 = vld [vmem:[%s2514 + $0x7c] sm:$0xf]
      %v2537 = vld [vmem:[%s2514 + $0x84] sm:$0xf]
      %v2538 = vld [vmem:[%s2514 + $0x88] sm:$0xf]
      %v2539 = vld [vmem:[%s2514 + $0x90] sm:$0xf]
      %v2540 = vld [vmem:[%s2514 + $0x94] sm:$0xf]
      %v2541 = vld [vmem:[%s2514 + $0x9c] sm:$0xf]
      %v2542 = vld [vmem:[%s2514 + $0xa0] sm:$0xf]
      %v2543 = vld [vmem:[%s2514 + $0xa8] sm:$0xf]
      %v2544 = vld [vmem:[%s2514 + $0xac] sm:$0xf]
      %v2545 = vld [vmem:[%s2514 + $0xb4] sm:$0xf]
      %v2546 = vld [vmem:[%s2514 + $0xb8] sm:$0xf]
      %v2547 = vld [vmem:[%s2514 + $0x8] sm:$0x1]
      %v2548 = vld [vmem:[%s2514 + $0x14] sm:$0x1]
      %v2549 = vld [vmem:[%s2514 + $0x20] sm:$0x1]
      %v2550 = vld [vmem:[%s2514 + $0x2c] sm:$0x1]
      %v2551 = vld [vmem:[%s2514 + $0x38] sm:$0x1]
      %v2552 = vld [vmem:[%s2514 + $0x44] sm:$0x1]
      %v2553 = vld [vmem:[%s2514 + $0x50] sm:$0x1]
      %v2554 = vld [vmem:[%s2514 + $0x5c] sm:$0x1]
      %v2555 = vld [vmem:[%s2514 + $0x68] sm:$0x1]
      %v2556 = vld [vmem:[%s2514 + $0x74] sm:$0x1]
      %v2557 = vld [vmem:[%s2514 + $0x80] sm:$0x1]
      %v2558 = vld [vmem:[%s2514 + $0x8c] sm:$0x1]
      %v2559 = vld [vmem:[%s2514 + $0x98] sm:$0x1]
      %v2560 = vld [vmem:[%s2514 + $0xa4] sm:$0x1]
      %v2561 = vld [vmem:[%s2514 + $0xb0] sm:$0x1]
      %v2562 = vld [vmem:[%s2514 + $0xbc] sm:$0x1]
      %v2564 = vshrl.u32 %v2515, 16
      %v2566 = vrot.slane %v2564, 4
      %v2567 = vshll.u32 %v2515, 16
      %v2569 = vrot.slane %v2567, 5
      %v2570 = vor.u32 %v2566, %v2569
      %v2571 = vrot.slane %v2570, 4
      %v2573 = vshll.u32 %v2516, 16
      %v2575 = vrot.slane %v2573, 5
      %v2576 = vsel %vm247, %v2571, %v2575
      %v2577 = vshrl.u32 %v2516, 16
      %v2579 = vrot.slane %v2577, 4
      %v2580 = vor.u32 %v2579, %v2575
      %v2581 = vrot.slane %v2580, 4
      %v2583 = vshll.u32 %v2547, 16
      %v2585 = vrot.slane %v2583, 5
      %v2586 = vsel %vm247, %v2581, %v2585
      %v2588 = vshrl.u32 %v2517, 16
      %v2590 = vrot.slane %v2588, 4
      %v2591 = vshll.u32 %v2517, 16
      %v2593 = vrot.slane %v2591, 5
      %v2594 = vor.u32 %v2590, %v2593
      %v2595 = vrot.slane %v2594, 4
      %v2597 = vshll.u32 %v2518, 16
      %v2599 = vrot.slane %v2597, 5
      %v2600 = vsel %vm247, %v2595, %v2599
      %v2601 = vshrl.u32 %v2518, 16
      %v2603 = vrot.slane %v2601, 4
      %v2604 = vor.u32 %v2603, %v2599
      %v2605 = vrot.slane %v2604, 4
      %v2607 = vshll.u32 %v2548, 16
      %v2609 = vrot.slane %v2607, 5
      %v2610 = vsel %vm247, %v2605, %v2609
      %v2612 = vshrl.u32 %v2519, 16
      %v2614 = vrot.slane %v2612, 4
      %v2615 = vshll.u32 %v2519, 16
      %v2617 = vrot.slane %v2615, 5
      %v2618 = vor.u32 %v2614, %v2617
      %v2619 = vrot.slane %v2618, 4
      %v2621 = vshll.u32 %v2520, 16
      %v2623 = vrot.slane %v2621, 5
      %v2624 = vsel %vm247, %v2619, %v2623
      %v2625 = vshrl.u32 %v2520, 16
      %v2627 = vrot.slane %v2625, 4
      %v2628 = vor.u32 %v2627, %v2623
      %v2629 = vrot.slane %v2628, 4
      %v2631 = vshll.u32 %v2549, 16
      %v2633 = vrot.slane %v2631, 5
      %v2634 = vsel %vm247, %v2629, %v2633
      %v2636 = vshrl.u32 %v2521, 16
      %v2638 = vrot.slane %v2636, 4
      %v2639 = vshll.u32 %v2521, 16
      %v2641 = vrot.slane %v2639, 5
      %v2642 = vor.u32 %v2638, %v2641
      %v2643 = vrot.slane %v2642, 4
      %v2645 = vshll.u32 %v2522, 16
      %v2647 = vrot.slane %v2645, 5
      %v2648 = vsel %vm247, %v2643, %v2647
      %v2649 = vshrl.u32 %v2522, 16
      %v2651 = vrot.slane %v2649, 4
      %v2652 = vor.u32 %v2651, %v2647
      %v2653 = vrot.slane %v2652, 4
      %v2655 = vshll.u32 %v2550, 16
      %v2657 = vrot.slane %v2655, 5
      %v2658 = vsel %vm247, %v2653, %v2657
      %v2660 = vshrl.u32 %v2523, 16
      %v2662 = vrot.slane %v2660, 4
      %v2663 = vshll.u32 %v2523, 16
      %v2665 = vrot.slane %v2663, 5
      %v2666 = vor.u32 %v2662, %v2665
      %v2667 = vrot.slane %v2666, 4
      %v2669 = vshll.u32 %v2524, 16
      %v2671 = vrot.slane %v2669, 5
      %v2672 = vsel %vm247, %v2667, %v2671
      %v2673 = vshrl.u32 %v2524, 16
      %v2675 = vrot.slane %v2673, 4
      %v2676 = vor.u32 %v2675, %v2671
      %v2677 = vrot.slane %v2676, 4
      %v2679 = vshll.u32 %v2551, 16
      %v2681 = vrot.slane %v2679, 5
      %v2682 = vsel %vm247, %v2677, %v2681
      %v2684 = vshrl.u32 %v2525, 16
      %v2686 = vrot.slane %v2684, 4
      %v2687 = vshll.u32 %v2525, 16
      %v2689 = vrot.slane %v2687, 5
      %v2690 = vor.u32 %v2686, %v2689
      %v2691 = vrot.slane %v2690, 4
      %v2693 = vshll.u32 %v2526, 16
      %v2695 = vrot.slane %v2693, 5
      %v2696 = vsel %vm247, %v2691, %v2695
      %v2697 = vshrl.u32 %v2526, 16
      %v2699 = vrot.slane %v2697, 4
      %v2700 = vor.u32 %v2699, %v2695
      %v2701 = vrot.slane %v2700, 4
      %v2703 = vshll.u32 %v2552, 16
      %v2705 = vrot.slane %v2703, 5
      %v2706 = vsel %vm247, %v2701, %v2705
      %v2708 = vshrl.u32 %v2527, 16
      %v2710 = vrot.slane %v2708, 4
      %v2711 = vshll.u32 %v2527, 16
      %v2713 = vrot.slane %v2711, 5
      %v2714 = vor.u32 %v2710, %v2713
      %v2715 = vrot.slane %v2714, 4
      %v2717 = vshll.u32 %v2528, 16
      %v2719 = vrot.slane %v2717, 5
      %v2720 = vsel %vm247, %v2715, %v2719
      %v2721 = vshrl.u32 %v2528, 16
      %v2723 = vrot.slane %v2721, 4
      %v2724 = vor.u32 %v2723, %v2719
      %v2725 = vrot.slane %v2724, 4
      %v2727 = vshll.u32 %v2553, 16
      %v2729 = vrot.slane %v2727, 5
      %v2730 = vsel %vm247, %v2725, %v2729
      %v2732 = vshrl.u32 %v2529, 16
      %v2734 = vrot.slane %v2732, 4
      %v2735 = vshll.u32 %v2529, 16
      %v2737 = vrot.slane %v2735, 5
      %v2738 = vor.u32 %v2734, %v2737
      %v2739 = vrot.slane %v2738, 4
      %v2741 = vshll.u32 %v2530, 16
      %v2743 = vrot.slane %v2741, 5
      %v2744 = vsel %vm247, %v2739, %v2743
      %v2745 = vshrl.u32 %v2530, 16
      %v2747 = vrot.slane %v2745, 4
      %v2748 = vor.u32 %v2747, %v2743
      %v2749 = vrot.slane %v2748, 4
      %v2751 = vshll.u32 %v2554, 16
      %v2753 = vrot.slane %v2751, 5
      %v2754 = vsel %vm247, %v2749, %v2753
      %v2756 = vshrl.u32 %v2531, 16
      %v2758 = vrot.slane %v2756, 4
      %v2759 = vshll.u32 %v2531, 16
      %v2761 = vrot.slane %v2759, 5
      %v2762 = vor.u32 %v2758, %v2761
      %v2763 = vrot.slane %v2762, 4
      %v2765 = vshll.u32 %v2532, 16
      %v2767 = vrot.slane %v2765, 5
      %v2768 = vsel %vm247, %v2763, %v2767
      %v2769 = vshrl.u32 %v2532, 16
      %v2771 = vrot.slane %v2769, 4
      %v2772 = vor.u32 %v2771, %v2767
      %v2773 = vrot.slane %v2772, 4
      %v2775 = vshll.u32 %v2555, 16
      %v2777 = vrot.slane %v2775, 5
      %v2778 = vsel %vm247, %v2773, %v2777
      %v2780 = vshrl.u32 %v2533, 16
      %v2782 = vrot.slane %v2780, 4
      %v2783 = vshll.u32 %v2533, 16
      %v2785 = vrot.slane %v2783, 5
      %v2786 = vor.u32 %v2782, %v2785
      %v2787 = vrot.slane %v2786, 4
      %v2789 = vshll.u32 %v2534, 16
      %v2791 = vrot.slane %v2789, 5
      %v2792 = vsel %vm247, %v2787, %v2791
      %v2793 = vshrl.u32 %v2534, 16
      %v2795 = vrot.slane %v2793, 4
      %v2796 = vor.u32 %v2795, %v2791
      %v2797 = vrot.slane %v2796, 4
      %v2799 = vshll.u32 %v2556, 16
      %v2801 = vrot.slane %v2799, 5
      %v2802 = vsel %vm247, %v2797, %v2801
      %v2804 = vshrl.u32 %v2535, 16
      %v2806 = vrot.slane %v2804, 4
      %v2807 = vshll.u32 %v2535, 16
      %v2809 = vrot.slane %v2807, 5
      %v2810 = vor.u32 %v2806, %v2809
      %v2811 = vrot.slane %v2810, 4
      %v2813 = vshll.u32 %v2536, 16
      %v2815 = vrot.slane %v2813, 5
      %v2816 = vsel %vm247, %v2811, %v2815
      %v2817 = vshrl.u32 %v2536, 16
      %v2819 = vrot.slane %v2817, 4
      %v2820 = vor.u32 %v2819, %v2815
      %v2821 = vrot.slane %v2820, 4
      %v2823 = vshll.u32 %v2557, 16
      %v2825 = vrot.slane %v2823, 5
      %v2826 = vsel %vm247, %v2821, %v2825
      %v2828 = vshrl.u32 %v2537, 16
      %v2830 = vrot.slane %v2828, 4
      %v2831 = vshll.u32 %v2537, 16
      %v2833 = vrot.slane %v2831, 5
      %v2834 = vor.u32 %v2830, %v2833
      %v2835 = vrot.slane %v2834, 4
      %v2837 = vshll.u32 %v2538, 16
      %v2839 = vrot.slane %v2837, 5
      %v2840 = vsel %vm247, %v2835, %v2839
      %v2841 = vshrl.u32 %v2538, 16
      %v2843 = vrot.slane %v2841, 4
      %v2844 = vor.u32 %v2843, %v2839
      %v2845 = vrot.slane %v2844, 4
      %v2847 = vshll.u32 %v2558, 16
      %v2849 = vrot.slane %v2847, 5
      %v2850 = vsel %vm247, %v2845, %v2849
      %v2852 = vshrl.u32 %v2539, 16
      %v2854 = vrot.slane %v2852, 4
      %v2855 = vshll.u32 %v2539, 16
      %v2857 = vrot.slane %v2855, 5
      %v2858 = vor.u32 %v2854, %v2857
      %v2859 = vrot.slane %v2858, 4
      %v2861 = vshll.u32 %v2540, 16
      %v2863 = vrot.slane %v2861, 5
      %v2864 = vsel %vm247, %v2859, %v2863
      %v2865 = vshrl.u32 %v2540, 16
      %v2867 = vrot.slane %v2865, 4
      %v2868 = vor.u32 %v2867, %v2863
      %v2869 = vrot.slane %v2868, 4
      %v2871 = vshll.u32 %v2559, 16
      %v2873 = vrot.slane %v2871, 5
      %v2874 = vsel %vm247, %v2869, %v2873
      %v2876 = vshrl.u32 %v2541, 16
      %v2878 = vrot.slane %v2876, 4
      %v2879 = vshll.u32 %v2541, 16
      %v2881 = vrot.slane %v2879, 5
      %v2882 = vor.u32 %v2878, %v2881
      %v2883 = vrot.slane %v2882, 4
      %v2885 = vshll.u32 %v2542, 16
      %v2887 = vrot.slane %v2885, 5
      %v2888 = vsel %vm247, %v2883, %v2887
      %v2889 = vshrl.u32 %v2542, 16
      %v2891 = vrot.slane %v2889, 4
      %v2892 = vor.u32 %v2891, %v2887
      %v2893 = vrot.slane %v2892, 4
      %v2895 = vshll.u32 %v2560, 16
      %v2897 = vrot.slane %v2895, 5
      %v2898 = vsel %vm247, %v2893, %v2897
      %v2900 = vshrl.u32 %v2543, 16
      %v2902 = vrot.slane %v2900, 4
      %v2903 = vshll.u32 %v2543, 16
      %v2905 = vrot.slane %v2903, 5
      %v2906 = vor.u32 %v2902, %v2905
      %v2907 = vrot.slane %v2906, 4
      %v2909 = vshll.u32 %v2544, 16
      %v2911 = vrot.slane %v2909, 5
      %v2912 = vsel %vm247, %v2907, %v2911
      %v2913 = vshrl.u32 %v2544, 16
      %v2915 = vrot.slane %v2913, 4
      %v2916 = vor.u32 %v2915, %v2911
      %v2917 = vrot.slane %v2916, 4
      %v2919 = vshll.u32 %v2561, 16
      %v2921 = vrot.slane %v2919, 5
      %v2922 = vsel %vm247, %v2917, %v2921
      %v2924 = vshrl.u32 %v2545, 16
      %v2926 = vrot.slane %v2924, 4
      %v2927 = vshll.u32 %v2545, 16
      %v2929 = vrot.slane %v2927, 5
      %v2930 = vor.u32 %v2926, %v2929
      %v2931 = vrot.slane %v2930, 4
      %v2933 = vshll.u32 %v2546, 16
      %v2935 = vrot.slane %v2933, 5
      %v2936 = vsel %vm247, %v2931, %v2935
      %v2937 = vshrl.u32 %v2546, 16
      %v2939 = vrot.slane %v2937, 4
      %v2940 = vor.u32 %v2939, %v2935
      %v2941 = vrot.slane %v2940, 4
      %v2943 = vshll.u32 %v2562, 16
      %v2945 = vrot.slane %v2943, 5
      %v2946 = vsel %vm247, %v2941, %v2945
      %v2947 = vld [vmem:[%s2514] sm:$0xe]
      %v2948 = vld [vmem:[%s2514 + $0xc] sm:$0xe]
      %v2949 = vld [vmem:[%s2514 + $0x18] sm:$0xe]
      %v2950 = vld [vmem:[%s2514 + $0x24] sm:$0xe]
      %v2951 = vld [vmem:[%s2514 + $0x30] sm:$0xe]
      %v2952 = vld [vmem:[%s2514 + $0x3c] sm:$0xe]
      %v2953 = vld [vmem:[%s2514 + $0x48] sm:$0xe]
      %v2954 = vld [vmem:[%s2514 + $0x54] sm:$0xe]
      %v2955 = vld [vmem:[%s2514 + $0x60] sm:$0xe]
      %v2956 = vld [vmem:[%s2514 + $0x6c] sm:$0xe]
      %v2957 = vld [vmem:[%s2514 + $0x78] sm:$0xe]
      %v2958 = vld [vmem:[%s2514 + $0x84] sm:$0xe]
      %v2959 = vld [vmem:[%s2514 + $0x90] sm:$0xe]
      %v2960 = vld [vmem:[%s2514 + $0x9c] sm:$0xe]
      %v2961 = vld [vmem:[%s2514 + $0xa8] sm:$0xe]
      %v2962 = vld [vmem:[%s2514 + $0xb4] sm:$0xe]
      %v3011 = vrot.slane %v2947, 5
      %v3012 = vrot.slane %v3011, 4
      %v3013 = vrot.slane %v2516, 5
      %v3014 = vsel %vm698, %v3012, %v3013
      %v3015 = vrot.slane %v3013, 4
      %v3016 = vrot.slane %v2547, 5
      %v3017 = vsel %vm698, %v3015, %v3016
      %v3018 = vrot.slane %v2948, 5
      %v3019 = vrot.slane %v3018, 4
      %v3020 = vrot.slane %v2518, 5
      %v3021 = vsel %vm698, %v3019, %v3020
      %v3022 = vrot.slane %v3020, 4
      %v3023 = vrot.slane %v2548, 5
      %v3024 = vsel %vm698, %v3022, %v3023
      %v3025 = vrot.slane %v2949, 5
      %v3026 = vrot.slane %v3025, 4
      %v3027 = vrot.slane %v2520, 5
      %v3028 = vsel %vm698, %v3026, %v3027
      %v3029 = vrot.slane %v3027, 4
      %v3030 = vrot.slane %v2549, 5
      %v3031 = vsel %vm698, %v3029, %v3030
      %v3032 = vrot.slane %v2950, 5
      %v3033 = vrot.slane %v3032, 4
      %v3034 = vrot.slane %v2522, 5
      %v3035 = vsel %vm698, %v3033, %v3034
      %v3036 = vrot.slane %v3034, 4
      %v3037 = vrot.slane %v2550, 5
      %v3038 = vsel %vm698, %v3036, %v3037
      %v3039 = vrot.slane %v2951, 5
      %v3040 = vrot.slane %v3039, 4
      %v3041 = vrot.slane %v2524, 5
      %v3042 = vsel %vm698, %v3040, %v3041
      %v3043 = vrot.slane %v3041, 4
      %v3044 = vrot.slane %v2551, 5
      %v3045 = vsel %vm698, %v3043, %v3044
      %v3046 = vrot.slane %v2952, 5
      %v3047 = vrot.slane %v3046, 4
      %v3048 = vrot.slane %v2526, 5
      %v3049 = vsel %vm698, %v3047, %v3048
      %v3050 = vrot.slane %v3048, 4
      %v3051 = vrot.slane %v2552, 5
      %v3052 = vsel %vm698, %v3050, %v3051
      %v3053 = vrot.slane %v2953, 5
      %v3054 = vrot.slane %v3053, 4
      %v3055 = vrot.slane %v2528, 5
      %v3056 = vsel %vm698, %v3054, %v3055
      %v3057 = vrot.slane %v3055, 4
      %v3058 = vrot.slane %v2553, 5
      %v3059 = vsel %vm698, %v3057, %v3058
      %v3060 = vrot.slane %v2954, 5
      %v3061 = vrot.slane %v3060, 4
      %v3062 = vrot.slane %v2530, 5
      %v3063 = vsel %vm698, %v3061, %v3062
      %v3064 = vrot.slane %v3062, 4
      %v3065 = vrot.slane %v2554, 5
      %v3066 = vsel %vm698, %v3064, %v3065
      %v3067 = vrot.slane %v2955, 5
      %v3068 = vrot.slane %v3067, 4
      %v3069 = vrot.slane %v2532, 5
      %v3070 = vsel %vm698, %v3068, %v3069
      %v3071 = vrot.slane %v3069, 4
      %v3072 = vrot.slane %v2555, 5
      %v3073 = vsel %vm698, %v3071, %v3072
      %v3074 = vrot.slane %v2956, 5
      %v3075 = vrot.slane %v3074, 4
      %v3076 = vrot.slane %v2534, 5
      %v3077 = vsel %vm698, %v3075, %v3076
      %v3078 = vrot.slane %v3076, 4
      %v3079 = vrot.slane %v2556, 5
      %v3080 = vsel %vm698, %v3078, %v3079
      %v3081 = vrot.slane %v2957, 5
      %v3082 = vrot.slane %v3081, 4
      %v3083 = vrot.slane %v2536, 5
      %v3084 = vsel %vm698, %v3082, %v3083
      %v3085 = vrot.slane %v3083, 4
      %v3086 = vrot.slane %v2557, 5
      %v3087 = vsel %vm698, %v3085, %v3086
      %v3088 = vrot.slane %v2958, 5
      %v3089 = vrot.slane %v3088, 4
      %v3090 = vrot.slane %v2538, 5
      %v3091 = vsel %vm698, %v3089, %v3090
      %v3092 = vrot.slane %v3090, 4
      %v3093 = vrot.slane %v2558, 5
      %v3094 = vsel %vm698, %v3092, %v3093
      %v3095 = vrot.slane %v2959, 5
      %v3096 = vrot.slane %v3095, 4
      %v3097 = vrot.slane %v2540, 5
      %v3098 = vsel %vm698, %v3096, %v3097
      %v3099 = vrot.slane %v3097, 4
      %v3100 = vrot.slane %v2559, 5
      %v3101 = vsel %vm698, %v3099, %v3100
      %v3102 = vrot.slane %v2960, 5
      %v3103 = vrot.slane %v3102, 4
      %v3104 = vrot.slane %v2542, 5
      %v3105 = vsel %vm698, %v3103, %v3104
      %v3106 = vrot.slane %v3104, 4
      %v3107 = vrot.slane %v2560, 5
      %v3108 = vsel %vm698, %v3106, %v3107
      %v3109 = vrot.slane %v2961, 5
      %v3110 = vrot.slane %v3109, 4
      %v3111 = vrot.slane %v2544, 5
      %v3112 = vsel %vm698, %v3110, %v3111
      %v3113 = vrot.slane %v3111, 4
      %v3114 = vrot.slane %v2561, 5
      %v3115 = vsel %vm698, %v3113, %v3114
      %v3116 = vrot.slane %v2962, 5
      %v3117 = vrot.slane %v3116, 4
      %v3118 = vrot.slane %v2546, 5
      %v3119 = vsel %vm698, %v3117, %v3118
      %v3120 = vrot.slane %v3118, 4
      %v3121 = vrot.slane %v2562, 5
      %v3122 = vsel %vm698, %v3120, %v3121
      %v3123 = vld [vmem:[%s2514 + $0x8] sm:$0x3]
      %v3124 = vld [vmem:[%s2514 + $0x14] sm:$0x3]
      %v3125 = vld [vmem:[%s2514 + $0x20] sm:$0x3]
      %v3126 = vld [vmem:[%s2514 + $0x2c] sm:$0x3]
      %v3127 = vld [vmem:[%s2514 + $0x38] sm:$0x3]
      %v3128 = vld [vmem:[%s2514 + $0x44] sm:$0x3]
      %v3129 = vld [vmem:[%s2514 + $0x50] sm:$0x3]
      %v3130 = vld [vmem:[%s2514 + $0x5c] sm:$0x3]
      %v3131 = vld [vmem:[%s2514 + $0x68] sm:$0x3]
      %v3132 = vld [vmem:[%s2514 + $0x74] sm:$0x3]
      %v3133 = vld [vmem:[%s2514 + $0x80] sm:$0x3]
      %v3134 = vld [vmem:[%s2514 + $0x8c] sm:$0x3]
      %v3135 = vld [vmem:[%s2514 + $0x98] sm:$0x3]
      %v3136 = vld [vmem:[%s2514 + $0xa4] sm:$0x3]
      %v3137 = vld [vmem:[%s2514 + $0xb0] sm:$0x3]
      %v3138 = vld [vmem:[%s2514 + $0xbc] sm:$0x3]
      %v3140 = vshrl.u32 %v2947, 16
      %v3142 = vrot.slane %v3140, 5
      %v3143 = vshll.u32 %v2947, 16
      %v3145 = vrot.slane %v3143, 6
      %v3146 = vor.u32 %v3142, %v3145
      %v3147 = vrot.slane %v3146, 4
      %v3148 = vrot.slane %v2577, 5
      %v3149 = vrot.slane %v2573, 6
      %v3150 = vor.u32 %v3148, %v3149
      %v3151 = vsel %vm829, %v3147, %v3150
      %v3152 = vrot.slane %v3150, 4
      %v3154 = vshrl.u32 %v3123, 16
      %v3156 = vrot.slane %v3154, 5
      %v3157 = vshll.u32 %v3123, 16
      %v3159 = vrot.slane %v3157, 6
      %v3160 = vor.u32 %v3156, %v3159
      %v3161 = vsel %vm829, %v3152, %v3160
      %v3163 = vshrl.u32 %v2948, 16
      %v3165 = vrot.slane %v3163, 5
      %v3166 = vshll.u32 %v2948, 16
      %v3168 = vrot.slane %v3166, 6
      %v3169 = vor.u32 %v3165, %v3168
      %v3170 = vrot.slane %v3169, 4
      %v3171 = vrot.slane %v2601, 5
      %v3172 = vrot.slane %v2597, 6
      %v3173 = vor.u32 %v3171, %v3172
      %v3174 = vsel %vm829, %v3170, %v3173
      %v3175 = vrot.slane %v3173, 4
      %v3177 = vshrl.u32 %v3124, 16
      %v3179 = vrot.slane %v3177, 5
      %v3180 = vshll.u32 %v3124, 16
      %v3182 = vrot.slane %v3180, 6
      %v3183 = vor.u32 %v3179, %v3182
      %v3184 = vsel %vm829, %v3175, %v3183
      %v3186 = vshrl.u32 %v2949, 16
      %v3188 = vrot.slane %v3186, 5
      %v3189 = vshll.u32 %v2949, 16
      %v3191 = vrot.slane %v3189, 6
      %v3192 = vor.u32 %v3188, %v3191
      %v3193 = vrot.slane %v3192, 4
      %v3194 = vrot.slane %v2625, 5
      %v3195 = vrot.slane %v2621, 6
      %v3196 = vor.u32 %v3194, %v3195
      %v3197 = vsel %vm829, %v3193, %v3196
      %v3198 = vrot.slane %v3196, 4
      %v3200 = vshrl.u32 %v3125, 16
      %v3202 = vrot.slane %v3200, 5
      %v3203 = vshll.u32 %v3125, 16
      %v3205 = vrot.slane %v3203, 6
      %v3206 = vor.u32 %v3202, %v3205
      %v3207 = vsel %vm829, %v3198, %v3206
      %v3209 = vshrl.u32 %v2950, 16
      %v3211 = vrot.slane %v3209, 5
      %v3212 = vshll.u32 %v2950, 16
      %v3214 = vrot.slane %v3212, 6
      %v3215 = vor.u32 %v3211, %v3214
      %v3216 = vrot.slane %v3215, 4
      %v3217 = vrot.slane %v2649, 5
      %v3218 = vrot.slane %v2645, 6
      %v3219 = vor.u32 %v3217, %v3218
      %v3220 = vsel %vm829, %v3216, %v3219
      %v3221 = vrot.slane %v3219, 4
      %v3223 = vshrl.u32 %v3126, 16
      %v3225 = vrot.slane %v3223, 5
      %v3226 = vshll.u32 %v3126, 16
      %v3228 = vrot.slane %v3226, 6
      %v3229 = vor.u32 %v3225, %v3228
      %v3230 = vsel %vm829, %v3221, %v3229
      %v3232 = vshrl.u32 %v2951, 16
      %v3234 = vrot.slane %v3232, 5
      %v3235 = vshll.u32 %v2951, 16
      %v3237 = vrot.slane %v3235, 6
      %v3238 = vor.u32 %v3234, %v3237
      %v3239 = vrot.slane %v3238, 4
      %v3240 = vrot.slane %v2673, 5
      %v3241 = vrot.slane %v2669, 6
      %v3242 = vor.u32 %v3240, %v3241
      %v3243 = vsel %vm829, %v3239, %v3242
      %v3244 = vrot.slane %v3242, 4
      %v3246 = vshrl.u32 %v3127, 16
      %v3248 = vrot.slane %v3246, 5
      %v3249 = vshll.u32 %v3127, 16
      %v3251 = vrot.slane %v3249, 6
      %v3252 = vor.u32 %v3248, %v3251
      %v3253 = vsel %vm829, %v3244, %v3252
      %v3255 = vshrl.u32 %v2952, 16
      %v3257 = vrot.slane %v3255, 5
      %v3258 = vshll.u32 %v2952, 16
      %v3260 = vrot.slane %v3258, 6
      %v3261 = vor.u32 %v3257, %v3260
      %v3262 = vrot.slane %v3261, 4
      %v3263 = vrot.slane %v2697, 5
      %v3264 = vrot.slane %v2693, 6
      %v3265 = vor.u32 %v3263, %v3264
      %v3266 = vsel %vm829, %v3262, %v3265
      %v3267 = vrot.slane %v3265, 4
      %v3269 = vshrl.u32 %v3128, 16
      %v3271 = vrot.slane %v3269, 5
      %v3272 = vshll.u32 %v3128, 16
      %v3274 = vrot.slane %v3272, 6
      %v3275 = vor.u32 %v3271, %v3274
      %v3276 = vsel %vm829, %v3267, %v3275
      %v3278 = vshrl.u32 %v2953, 16
      %v3280 = vrot.slane %v3278, 5
      %v3281 = vshll.u32 %v2953, 16
      %v3283 = vrot.slane %v3281, 6
      %v3284 = vor.u32 %v3280, %v3283
      %v3285 = vrot.slane %v3284, 4
      %v3286 = vrot.slane %v2721, 5
      %v3287 = vrot.slane %v2717, 6
      %v3288 = vor.u32 %v3286, %v3287
      %v3289 = vsel %vm829, %v3285, %v3288
      %v3290 = vrot.slane %v3288, 4
      %v3292 = vshrl.u32 %v3129, 16
      %v3294 = vrot.slane %v3292, 5
      %v3295 = vshll.u32 %v3129, 16
      %v3297 = vrot.slane %v3295, 6
      %v3298 = vor.u32 %v3294, %v3297
      %v3299 = vsel %vm829, %v3290, %v3298
      %v3301 = vshrl.u32 %v2954, 16
      %v3303 = vrot.slane %v3301, 5
      %v3304 = vshll.u32 %v2954, 16
      %v3306 = vrot.slane %v3304, 6
      %v3307 = vor.u32 %v3303, %v3306
      %v3308 = vrot.slane %v3307, 4
      %v3309 = vrot.slane %v2745, 5
      %v3310 = vrot.slane %v2741, 6
      %v3311 = vor.u32 %v3309, %v3310
      %v3312 = vsel %vm829, %v3308, %v3311
      %v3313 = vrot.slane %v3311, 4
      %v3315 = vshrl.u32 %v3130, 16
      %v3317 = vrot.slane %v3315, 5
      %v3318 = vshll.u32 %v3130, 16
      %v3320 = vrot.slane %v3318, 6
      %v3321 = vor.u32 %v3317, %v3320
      %v3322 = vsel %vm829, %v3313, %v3321
      %v3324 = vshrl.u32 %v2955, 16
      %v3326 = vrot.slane %v3324, 5
      %v3327 = vshll.u32 %v2955, 16
      %v3329 = vrot.slane %v3327, 6
      %v3330 = vor.u32 %v3326, %v3329
      %v3331 = vrot.slane %v3330, 4
      %v3332 = vrot.slane %v2769, 5
      %v3333 = vrot.slane %v2765, 6
      %v3334 = vor.u32 %v3332, %v3333
      %v3335 = vsel %vm829, %v3331, %v3334
      %v3336 = vrot.slane %v3334, 4
      %v3338 = vshrl.u32 %v3131, 16
      %v3340 = vrot.slane %v3338, 5
      %v3341 = vshll.u32 %v3131, 16
      %v3343 = vrot.slane %v3341, 6
      %v3344 = vor.u32 %v3340, %v3343
      %v3345 = vsel %vm829, %v3336, %v3344
      %v3347 = vshrl.u32 %v2956, 16
      %v3349 = vrot.slane %v3347, 5
      %v3350 = vshll.u32 %v2956, 16
      %v3352 = vrot.slane %v3350, 6
      %v3353 = vor.u32 %v3349, %v3352
      %v3354 = vrot.slane %v3353, 4
      %v3355 = vrot.slane %v2793, 5
      %v3356 = vrot.slane %v2789, 6
      %v3357 = vor.u32 %v3355, %v3356
      %v3358 = vsel %vm829, %v3354, %v3357
      %v3359 = vrot.slane %v3357, 4
      %v3361 = vshrl.u32 %v3132, 16
      %v3363 = vrot.slane %v3361, 5
      %v3364 = vshll.u32 %v3132, 16
      %v3366 = vrot.slane %v3364, 6
      %v3367 = vor.u32 %v3363, %v3366
      %v3368 = vsel %vm829, %v3359, %v3367
      %v3370 = vshrl.u32 %v2957, 16
      %v3372 = vrot.slane %v3370, 5
      %v3373 = vshll.u32 %v2957, 16
      %v3375 = vrot.slane %v3373, 6
      %v3376 = vor.u32 %v3372, %v3375
      %v3377 = vrot.slane %v3376, 4
      %v3378 = vrot.slane %v2817, 5
      %v3379 = vrot.slane %v2813, 6
      %v3380 = vor.u32 %v3378, %v3379
      %v3381 = vsel %vm829, %v3377, %v3380
      %v3382 = vrot.slane %v3380, 4
      %v3384 = vshrl.u32 %v3133, 16
      %v3386 = vrot.slane %v3384, 5
      %v3387 = vshll.u32 %v3133, 16
      %v3389 = vrot.slane %v3387, 6
      %v3390 = vor.u32 %v3386, %v3389
      %v3391 = vsel %vm829, %v3382, %v3390
      %v3393 = vshrl.u32 %v2958, 16
      %v3395 = vrot.slane %v3393, 5
      %v3396 = vshll.u32 %v2958, 16
      %v3398 = vrot.slane %v3396, 6
      %v3399 = vor.u32 %v3395, %v3398
      %v3400 = vrot.slane %v3399, 4
      %v3401 = vrot.slane %v2841, 5
      %v3402 = vrot.slane %v2837, 6
      %v3403 = vor.u32 %v3401, %v3402
      %v3404 = vsel %vm829, %v3400, %v3403
      %v3405 = vrot.slane %v3403, 4
      %v3407 = vshrl.u32 %v3134, 16
      %v3409 = vrot.slane %v3407, 5
      %v3410 = vshll.u32 %v3134, 16
      %v3412 = vrot.slane %v3410, 6
      %v3413 = vor.u32 %v3409, %v3412
      %v3414 = vsel %vm829, %v3405, %v3413
      %v3416 = vshrl.u32 %v2959, 16
      %v3418 = vrot.slane %v3416, 5
      %v3419 = vshll.u32 %v2959, 16
      %v3421 = vrot.slane %v3419, 6
      %v3422 = vor.u32 %v3418, %v3421
      %v3423 = vrot.slane %v3422, 4
      %v3424 = vrot.slane %v2865, 5
      %v3425 = vrot.slane %v2861, 6
      %v3426 = vor.u32 %v3424, %v3425
      %v3427 = vsel %vm829, %v3423, %v3426
      %v3428 = vrot.slane %v3426, 4
      %v3430 = vshrl.u32 %v3135, 16
      %v3432 = vrot.slane %v3430, 5
      %v3433 = vshll.u32 %v3135, 16
      %v3435 = vrot.slane %v3433, 6
      %v3436 = vor.u32 %v3432, %v3435
      %v3437 = vsel %vm829, %v3428, %v3436
      %v3439 = vshrl.u32 %v2960, 16
      %v3441 = vrot.slane %v3439, 5
      %v3442 = vshll.u32 %v2960, 16
      %v3444 = vrot.slane %v3442, 6
      %v3445 = vor.u32 %v3441, %v3444
      %v3446 = vrot.slane %v3445, 4
      %v3447 = vrot.slane %v2889, 5
      %v3448 = vrot.slane %v2885, 6
      %v3449 = vor.u32 %v3447, %v3448
      %v3450 = vsel %vm829, %v3446, %v3449
      %v3451 = vrot.slane %v3449, 4
      %v3453 = vshrl.u32 %v3136, 16
      %v3455 = vrot.slane %v3453, 5
      %v3456 = vshll.u32 %v3136, 16
      %v3458 = vrot.slane %v3456, 6
      %v3459 = vor.u32 %v3455, %v3458
      %v3460 = vsel %vm829, %v3451, %v3459
      %v3462 = vshrl.u32 %v2961, 16
      %v3464 = vrot.slane %v3462, 5
      %v3465 = vshll.u32 %v2961, 16
      %v3467 = vrot.slane %v3465, 6
      %v3468 = vor.u32 %v3464, %v3467
      %v3469 = vrot.slane %v3468, 4
      %v3470 = vrot.slane %v2913, 5
      %v3471 = vrot.slane %v2909, 6
      %v3472 = vor.u32 %v3470, %v3471
      %v3473 = vsel %vm829, %v3469, %v3472
      %v3474 = vrot.slane %v3472, 4
      %v3476 = vshrl.u32 %v3137, 16
      %v3478 = vrot.slane %v3476, 5
      %v3479 = vshll.u32 %v3137, 16
      %v3481 = vrot.slane %v3479, 6
      %v3482 = vor.u32 %v3478, %v3481
      %v3483 = vsel %vm829, %v3474, %v3482
      %v3485 = vshrl.u32 %v2962, 16
      %v3487 = vrot.slane %v3485, 5
      %v3488 = vshll.u32 %v2962, 16
      %v3490 = vrot.slane %v3488, 6
      %v3491 = vor.u32 %v3487, %v3490
      %v3492 = vrot.slane %v3491, 4
      %v3493 = vrot.slane %v2937, 5
      %v3494 = vrot.slane %v2933, 6
      %v3495 = vor.u32 %v3493, %v3494
      %v3496 = vsel %vm829, %v3492, %v3495
      %v3497 = vrot.slane %v3495, 4
      %v3499 = vshrl.u32 %v3138, 16
      %v3501 = vrot.slane %v3499, 5
      %v3502 = vshll.u32 %v3138, 16
      %v3504 = vrot.slane %v3502, 6
      %v3505 = vor.u32 %v3501, %v3504
      %v3506 = vsel %vm829, %v3497, %v3505
      %v3507 = vld [vmem:[%s2514] sm:$0xc]
      %v3508 = vld [vmem:[%s2514 + $0xc] sm:$0xc]
      %v3509 = vld [vmem:[%s2514 + $0x18] sm:$0xc]
      %v3510 = vld [vmem:[%s2514 + $0x24] sm:$0xc]
      %v3511 = vld [vmem:[%s2514 + $0x30] sm:$0xc]
      %v3512 = vld [vmem:[%s2514 + $0x3c] sm:$0xc]
      %v3513 = vld [vmem:[%s2514 + $0x48] sm:$0xc]
      %v3514 = vld [vmem:[%s2514 + $0x54] sm:$0xc]
      %v3515 = vld [vmem:[%s2514 + $0x60] sm:$0xc]
      %v3516 = vld [vmem:[%s2514 + $0x6c] sm:$0xc]
      %v3517 = vld [vmem:[%s2514 + $0x78] sm:$0xc]
      %v3518 = vld [vmem:[%s2514 + $0x84] sm:$0xc]
      %v3519 = vld [vmem:[%s2514 + $0x90] sm:$0xc]
      %v3520 = vld [vmem:[%s2514 + $0x9c] sm:$0xc]
      %v3521 = vld [vmem:[%s2514 + $0xa8] sm:$0xc]
      %v3522 = vld [vmem:[%s2514 + $0xb4] sm:$0xc]
      %v3555 = vrot.slane %v3507, 6
      %v3556 = vrot.slane %v3555, 4
      %v3557 = vrot.slane %v2516, 6
      %v3558 = vsel %vm1248, %v3556, %v3557
      %v3559 = vrot.slane %v3557, 4
      %v3560 = vrot.slane %v3123, 6
      %v3561 = vsel %vm1248, %v3559, %v3560
      %v3562 = vrot.slane %v3508, 6
      %v3563 = vrot.slane %v3562, 4
      %v3564 = vrot.slane %v2518, 6
      %v3565 = vsel %vm1248, %v3563, %v3564
      %v3566 = vrot.slane %v3564, 4
      %v3567 = vrot.slane %v3124, 6
      %v3568 = vsel %vm1248, %v3566, %v3567
      %v3569 = vrot.slane %v3509, 6
      %v3570 = vrot.slane %v3569, 4
      %v3571 = vrot.slane %v2520, 6
      %v3572 = vsel %vm1248, %v3570, %v3571
      %v3573 = vrot.slane %v3571, 4
      %v3574 = vrot.slane %v3125, 6
      %v3575 = vsel %vm1248, %v3573, %v3574
      %v3576 = vrot.slane %v3510, 6
      %v3577 = vrot.slane %v3576, 4
      %v3578 = vrot.slane %v2522, 6
      %v3579 = vsel %vm1248, %v3577, %v3578
      %v3580 = vrot.slane %v3578, 4
      %v3581 = vrot.slane %v3126, 6
      %v3582 = vsel %vm1248, %v3580, %v3581
      %v3583 = vrot.slane %v3511, 6
      %v3584 = vrot.slane %v3583, 4
      %v3585 = vrot.slane %v2524, 6
      %v3586 = vsel %vm1248, %v3584, %v3585
      %v3587 = vrot.slane %v3585, 4
      %v3588 = vrot.slane %v3127, 6
      %v3589 = vsel %vm1248, %v3587, %v3588
      %v3590 = vrot.slane %v3512, 6
      %v3591 = vrot.slane %v3590, 4
      %v3592 = vrot.slane %v2526, 6
      %v3593 = vsel %vm1248, %v3591, %v3592
      %v3594 = vrot.slane %v3592, 4
      %v3595 = vrot.slane %v3128, 6
      %v3596 = vsel %vm1248, %v3594, %v3595
      %v3597 = vrot.slane %v3513, 6
      %v3598 = vrot.slane %v3597, 4
      %v3599 = vrot.slane %v2528, 6
      %v3600 = vsel %vm1248, %v3598, %v3599
      %v3601 = vrot.slane %v3599, 4
      %v3602 = vrot.slane %v3129, 6
      %v3603 = vsel %vm1248, %v3601, %v3602
      %v3604 = vrot.slane %v3514, 6
      %v3605 = vrot.slane %v3604, 4
      %v3606 = vrot.slane %v2530, 6
      %v3607 = vsel %vm1248, %v3605, %v3606
      %v3608 = vrot.slane %v3606, 4
      %v3609 = vrot.slane %v3130, 6
      %v3610 = vsel %vm1248, %v3608, %v3609
      %v3611 = vrot.slane %v3515, 6
      %v3612 = vrot.slane %v3611, 4
      %v3613 = vrot.slane %v2532, 6
      %v3614 = vsel %vm1248, %v3612, %v3613
      %v3615 = vrot.slane %v3613, 4
      %v3616 = vrot.slane %v3131, 6
      %v3617 = vsel %vm1248, %v3615, %v3616
      %v3618 = vrot.slane %v3516, 6
      %v3619 = vrot.slane %v3618, 4
      %v3620 = vrot.slane %v2534, 6
      %v3621 = vsel %vm1248, %v3619, %v3620
      %v3622 = vrot.slane %v3620, 4
      %v3623 = vrot.slane %v3132, 6
      %v3624 = vsel %vm1248, %v3622, %v3623
      %v3625 = vrot.slane %v3517, 6
      %v3626 = vrot.slane %v3625, 4
      %v3627 = vrot.slane %v2536, 6
      %v3628 = vsel %vm1248, %v3626, %v3627
      %v3629 = vrot.slane %v3627, 4
      %v3630 = vrot.slane %v3133, 6
      %v3631 = vsel %vm1248, %v3629, %v3630
      %v3632 = vrot.slane %v3518, 6
      %v3633 = vrot.slane %v3632, 4
      %v3634 = vrot.slane %v2538, 6
      %v3635 = vsel %vm1248, %v3633, %v3634
      %v3636 = vrot.slane %v3634, 4
      %v3637 = vrot.slane %v3134, 6
      %v3638 = vsel %vm1248, %v3636, %v3637
      %v3639 = vrot.slane %v3519, 6
      %v3640 = vrot.slane %v3639, 4
      %v3641 = vrot.slane %v2540, 6
      %v3642 = vsel %vm1248, %v3640, %v3641
      %v3643 = vrot.slane %v3641, 4
      %v3644 = vrot.slane %v3135, 6
      %v3645 = vsel %vm1248, %v3643, %v3644
      %v3646 = vrot.slane %v3520, 6
      %v3647 = vrot.slane %v3646, 4
      %v3648 = vrot.slane %v2542, 6
      %v3649 = vsel %vm1248, %v3647, %v3648
      %v3650 = vrot.slane %v3648, 4
      %v3651 = vrot.slane %v3136, 6
      %v3652 = vsel %vm1248, %v3650, %v3651
      %v3653 = vrot.slane %v3521, 6
      %v3654 = vrot.slane %v3653, 4
      %v3655 = vrot.slane %v2544, 6
      %v3656 = vsel %vm1248, %v3654, %v3655
      %v3657 = vrot.slane %v3655, 4
      %v3658 = vrot.slane %v3137, 6
      %v3659 = vsel %vm1248, %v3657, %v3658
      %v3660 = vrot.slane %v3522, 6
      %v3661 = vrot.slane %v3660, 4
      %v3662 = vrot.slane %v2546, 6
      %v3663 = vsel %vm1248, %v3661, %v3662
      %v3664 = vrot.slane %v3662, 4
      %v3665 = vrot.slane %v3138, 6
      %v3666 = vsel %vm1248, %v3664, %v3665
      %s3667 = scalar_lea.vmem %s190, 36
      %v3668 = vld [vmem:[%s3667] sm:$0xf]
      %v3669 = vld [vmem:[%s3667 + $0x4] sm:$0xf]
      %v3670 = vld [vmem:[%s3667 + $0xc] sm:$0xf]
      %v3671 = vld [vmem:[%s3667 + $0x10] sm:$0xf]
      %v3672 = vld [vmem:[%s3667 + $0x18] sm:$0xf]
      %v3673 = vld [vmem:[%s3667 + $0x1c] sm:$0xf]
      %v3674 = vld [vmem:[%s3667 + $0x24] sm:$0xf]
      %v3675 = vld [vmem:[%s3667 + $0x28] sm:$0xf]
      %v3676 = vld [vmem:[%s3667 + $0x30] sm:$0xf]
      %v3677 = vld [vmem:[%s3667 + $0x34] sm:$0xf]
      %v3678 = vld [vmem:[%s3667 + $0x3c] sm:$0xf]
      %v3679 = vld [vmem:[%s3667 + $0x40] sm:$0xf]
      %v3680 = vld [vmem:[%s3667 + $0x48] sm:$0xf]
      %v3681 = vld [vmem:[%s3667 + $0x4c] sm:$0xf]
      %v3682 = vld [vmem:[%s3667 + $0x54] sm:$0xf]
      %v3683 = vld [vmem:[%s3667 + $0x58] sm:$0xf]
      %v3684 = vld [vmem:[%s3667 + $0x60] sm:$0xf]
      %v3685 = vld [vmem:[%s3667 + $0x64] sm:$0xf]
      %v3686 = vld [vmem:[%s3667 + $0x6c] sm:$0xf]
      %v3687 = vld [vmem:[%s3667 + $0x70] sm:$0xf]
      %v3688 = vld [vmem:[%s3667 + $0x78] sm:$0xf]
      %v3689 = vld [vmem:[%s3667 + $0x7c] sm:$0xf]
      %v3690 = vld [vmem:[%s3667 + $0x84] sm:$0xf]
      %v3691 = vld [vmem:[%s3667 + $0x88] sm:$0xf]
      %v3692 = vld [vmem:[%s3667 + $0x90] sm:$0xf]
      %v3693 = vld [vmem:[%s3667 + $0x94] sm:$0xf]
      %v3694 = vld [vmem:[%s3667 + $0x9c] sm:$0xf]
      %v3695 = vld [vmem:[%s3667 + $0xa0] sm:$0xf]
      %v3696 = vld [vmem:[%s3667 + $0xa8] sm:$0xf]
      %v3697 = vld [vmem:[%s3667 + $0xac] sm:$0xf]
      %v3698 = vld [vmem:[%s3667 + $0xb4] sm:$0xf]
      %v3699 = vld [vmem:[%s3667 + $0xb8] sm:$0xf]
      %v3700 = vld [vmem:[%s3667 + $0x8] sm:$0x1]
      %v3701 = vld [vmem:[%s3667 + $0x14] sm:$0x1]
      %v3702 = vld [vmem:[%s3667 + $0x20] sm:$0x1]
      %v3703 = vld [vmem:[%s3667 + $0x2c] sm:$0x1]
      %v3704 = vld [vmem:[%s3667 + $0x38] sm:$0x1]
      %v3705 = vld [vmem:[%s3667 + $0x44] sm:$0x1]
      %v3706 = vld [vmem:[%s3667 + $0x50] sm:$0x1]
      %v3707 = vld [vmem:[%s3667 + $0x5c] sm:$0x1]
      %v3708 = vld [vmem:[%s3667 + $0x68] sm:$0x1]
      %v3709 = vld [vmem:[%s3667 + $0x74] sm:$0x1]
      %v3710 = vld [vmem:[%s3667 + $0x80] sm:$0x1]
      %v3711 = vld [vmem:[%s3667 + $0x8c] sm:$0x1]
      %v3712 = vld [vmem:[%s3667 + $0x98] sm:$0x1]
      %v3713 = vld [vmem:[%s3667 + $0xa4] sm:$0x1]
      %v3714 = vld [vmem:[%s3667 + $0xb0] sm:$0x1]
      %v3715 = vld [vmem:[%s3667 + $0xbc] sm:$0x1]
      %v3717 = vshrl.u32 %v3668, 16
      %v3719 = vrot.slane %v3717, 4
      %v3720 = vshll.u32 %v3668, 16
      %v3722 = vrot.slane %v3720, 5
      %v3723 = vor.u32 %v3719, %v3722
      %v3724 = vrot.slane %v3723, 4
      %v3726 = vshll.u32 %v3669, 16
      %v3728 = vrot.slane %v3726, 5
      %v3729 = vsel %vm247, %v3724, %v3728
      %v3730 = vshrl.u32 %v3669, 16
      %v3732 = vrot.slane %v3730, 4
      %v3733 = vor.u32 %v3732, %v3728
      %v3734 = vrot.slane %v3733, 4
      %v3736 = vshll.u32 %v3700, 16
      %v3738 = vrot.slane %v3736, 5
      %v3739 = vsel %vm247, %v3734, %v3738
      %v3741 = vshrl.u32 %v3670, 16
      %v3743 = vrot.slane %v3741, 4
      %v3744 = vshll.u32 %v3670, 16
      %v3746 = vrot.slane %v3744, 5
      %v3747 = vor.u32 %v3743, %v3746
      %v3748 = vrot.slane %v3747, 4
      %v3750 = vshll.u32 %v3671, 16
      %v3752 = vrot.slane %v3750, 5
      %v3753 = vsel %vm247, %v3748, %v3752
      %v3754 = vshrl.u32 %v3671, 16
      %v3756 = vrot.slane %v3754, 4
      %v3757 = vor.u32 %v3756, %v3752
      %v3758 = vrot.slane %v3757, 4
      %v3760 = vshll.u32 %v3701, 16
      %v3762 = vrot.slane %v3760, 5
      %v3763 = vsel %vm247, %v3758, %v3762
      %v3765 = vshrl.u32 %v3672, 16
      %v3767 = vrot.slane %v3765, 4
      %v3768 = vshll.u32 %v3672, 16
      %v3770 = vrot.slane %v3768, 5
      %v3771 = vor.u32 %v3767, %v3770
      %v3772 = vrot.slane %v3771, 4
      %v3774 = vshll.u32 %v3673, 16
      %v3776 = vrot.slane %v3774, 5
      %v3777 = vsel %vm247, %v3772, %v3776
      %v3778 = vshrl.u32 %v3673, 16
      %v3780 = vrot.slane %v3778, 4
      %v3781 = vor.u32 %v3780, %v3776
      %v3782 = vrot.slane %v3781, 4
      %v3784 = vshll.u32 %v3702, 16
      %v3786 = vrot.slane %v3784, 5
      %v3787 = vsel %vm247, %v3782, %v3786
      %v3789 = vshrl.u32 %v3674, 16
      %v3791 = vrot.slane %v3789, 4
      %v3792 = vshll.u32 %v3674, 16
      %v3794 = vrot.slane %v3792, 5
      %v3795 = vor.u32 %v3791, %v3794
      %v3796 = vrot.slane %v3795, 4
      %v3798 = vshll.u32 %v3675, 16
      %v3800 = vrot.slane %v3798, 5
      %v3801 = vsel %vm247, %v3796, %v3800
      %v3802 = vshrl.u32 %v3675, 16
      %v3804 = vrot.slane %v3802, 4
      %v3805 = vor.u32 %v3804, %v3800
      %v3806 = vrot.slane %v3805, 4
      %v3808 = vshll.u32 %v3703, 16
      %v3810 = vrot.slane %v3808, 5
      %v3811 = vsel %vm247, %v3806, %v3810
      %v3813 = vshrl.u32 %v3676, 16
      %v3815 = vrot.slane %v3813, 4
      %v3816 = vshll.u32 %v3676, 16
      %v3818 = vrot.slane %v3816, 5
      %v3819 = vor.u32 %v3815, %v3818
      %v3820 = vrot.slane %v3819, 4
      %v3822 = vshll.u32 %v3677, 16
      %v3824 = vrot.slane %v3822, 5
      %v3825 = vsel %vm247, %v3820, %v3824
      %v3826 = vshrl.u32 %v3677, 16
      %v3828 = vrot.slane %v3826, 4
      %v3829 = vor.u32 %v3828, %v3824
      %v3830 = vrot.slane %v3829, 4
      %v3832 = vshll.u32 %v3704, 16
      %v3834 = vrot.slane %v3832, 5
      %v3835 = vsel %vm247, %v3830, %v3834
      %v3837 = vshrl.u32 %v3678, 16
      %v3839 = vrot.slane %v3837, 4
      %v3840 = vshll.u32 %v3678, 16
      %v3842 = vrot.slane %v3840, 5
      %v3843 = vor.u32 %v3839, %v3842
      %v3844 = vrot.slane %v3843, 4
      %v3846 = vshll.u32 %v3679, 16
      %v3848 = vrot.slane %v3846, 5
      %v3849 = vsel %vm247, %v3844, %v3848
      %v3850 = vshrl.u32 %v3679, 16
      %v3852 = vrot.slane %v3850, 4
      %v3853 = vor.u32 %v3852, %v3848
      %v3854 = vrot.slane %v3853, 4
      %v3856 = vshll.u32 %v3705, 16
      %v3858 = vrot.slane %v3856, 5
      %v3859 = vsel %vm247, %v3854, %v3858
      %v3861 = vshrl.u32 %v3680, 16
      %v3863 = vrot.slane %v3861, 4
      %v3864 = vshll.u32 %v3680, 16
      %v3866 = vrot.slane %v3864, 5
      %v3867 = vor.u32 %v3863, %v3866
      %v3868 = vrot.slane %v3867, 4
      %v3870 = vshll.u32 %v3681, 16
      %v3872 = vrot.slane %v3870, 5
      %v3873 = vsel %vm247, %v3868, %v3872
      %v3874 = vshrl.u32 %v3681, 16
      %v3876 = vrot.slane %v3874, 4
      %v3877 = vor.u32 %v3876, %v3872
      %v3878 = vrot.slane %v3877, 4
      %v3880 = vshll.u32 %v3706, 16
      %v3882 = vrot.slane %v3880, 5
      %v3883 = vsel %vm247, %v3878, %v3882
      %v3885 = vshrl.u32 %v3682, 16
      %v3887 = vrot.slane %v3885, 4
      %v3888 = vshll.u32 %v3682, 16
      %v3890 = vrot.slane %v3888, 5
      %v3891 = vor.u32 %v3887, %v3890
      %v3892 = vrot.slane %v3891, 4
      %v3894 = vshll.u32 %v3683, 16
      %v3896 = vrot.slane %v3894, 5
      %v3897 = vsel %vm247, %v3892, %v3896
      %v3898 = vshrl.u32 %v3683, 16
      %v3900 = vrot.slane %v3898, 4
      %v3901 = vor.u32 %v3900, %v3896
      %v3902 = vrot.slane %v3901, 4
      %v3904 = vshll.u32 %v3707, 16
      %v3906 = vrot.slane %v3904, 5
      %v3907 = vsel %vm247, %v3902, %v3906
      %v3909 = vshrl.u32 %v3684, 16
      %v3911 = vrot.slane %v3909, 4
      %v3912 = vshll.u32 %v3684, 16
      %v3914 = vrot.slane %v3912, 5
      %v3915 = vor.u32 %v3911, %v3914
      %v3916 = vrot.slane %v3915, 4
      %v3918 = vshll.u32 %v3685, 16
      %v3920 = vrot.slane %v3918, 5
      %v3921 = vsel %vm247, %v3916, %v3920
      %v3922 = vshrl.u32 %v3685, 16
      %v3924 = vrot.slane %v3922, 4
      %v3925 = vor.u32 %v3924, %v3920
      %v3926 = vrot.slane %v3925, 4
      %v3928 = vshll.u32 %v3708, 16
      %v3930 = vrot.slane %v3928, 5
      %v3931 = vsel %vm247, %v3926, %v3930
      %v3933 = vshrl.u32 %v3686, 16
      %v3935 = vrot.slane %v3933, 4
      %v3936 = vshll.u32 %v3686, 16
      %v3938 = vrot.slane %v3936, 5
      %v3939 = vor.u32 %v3935, %v3938
      %v3940 = vrot.slane %v3939, 4
      %v3942 = vshll.u32 %v3687, 16
      %v3944 = vrot.slane %v3942, 5
      %v3945 = vsel %vm247, %v3940, %v3944
      %v3946 = vshrl.u32 %v3687, 16
      %v3948 = vrot.slane %v3946, 4
      %v3949 = vor.u32 %v3948, %v3944
      %v3950 = vrot.slane %v3949, 4
      %v3952 = vshll.u32 %v3709, 16
      %v3954 = vrot.slane %v3952, 5
      %v3955 = vsel %vm247, %v3950, %v3954
      %v3957 = vshrl.u32 %v3688, 16
      %v3959 = vrot.slane %v3957, 4
      %v3960 = vshll.u32 %v3688, 16
      %v3962 = vrot.slane %v3960, 5
      %v3963 = vor.u32 %v3959, %v3962
      %v3964 = vrot.slane %v3963, 4
      %v3966 = vshll.u32 %v3689, 16
      %v3968 = vrot.slane %v3966, 5
      %v3969 = vsel %vm247, %v3964, %v3968
      %v3970 = vshrl.u32 %v3689, 16
      %v3972 = vrot.slane %v3970, 4
      %v3973 = vor.u32 %v3972, %v3968
      %v3974 = vrot.slane %v3973, 4
      %v3976 = vshll.u32 %v3710, 16
      %v3978 = vrot.slane %v3976, 5
      %v3979 = vsel %vm247, %v3974, %v3978
      %v3981 = vshrl.u32 %v3690, 16
      %v3983 = vrot.slane %v3981, 4
      %v3984 = vshll.u32 %v3690, 16
      %v3986 = vrot.slane %v3984, 5
      %v3987 = vor.u32 %v3983, %v3986
      %v3988 = vrot.slane %v3987, 4
      %v3990 = vshll.u32 %v3691, 16
      %v3992 = vrot.slane %v3990, 5
      %v3993 = vsel %vm247, %v3988, %v3992
      %v3994 = vshrl.u32 %v3691, 16
      %v3996 = vrot.slane %v3994, 4
      %v3997 = vor.u32 %v3996, %v3992
      %v3998 = vrot.slane %v3997, 4
      %v4000 = vshll.u32 %v3711, 16
      %v4002 = vrot.slane %v4000, 5
      %v4003 = vsel %vm247, %v3998, %v4002
      %v4005 = vshrl.u32 %v3692, 16
      %v4007 = vrot.slane %v4005, 4
      %v4008 = vshll.u32 %v3692, 16
      %v4010 = vrot.slane %v4008, 5
      %v4011 = vor.u32 %v4007, %v4010
      %v4012 = vrot.slane %v4011, 4
      %v4014 = vshll.u32 %v3693, 16
      %v4016 = vrot.slane %v4014, 5
      %v4017 = vsel %vm247, %v4012, %v4016
      %v4018 = vshrl.u32 %v3693, 16
      %v4020 = vrot.slane %v4018, 4
      %v4021 = vor.u32 %v4020, %v4016
      %v4022 = vrot.slane %v4021, 4
      %v4024 = vshll.u32 %v3712, 16
      %v4026 = vrot.slane %v4024, 5
      %v4027 = vsel %vm247, %v4022, %v4026
      %v4029 = vshrl.u32 %v3694, 16
      %v4031 = vrot.slane %v4029, 4
      %v4032 = vshll.u32 %v3694, 16
      %v4034 = vrot.slane %v4032, 5
      %v4035 = vor.u32 %v4031, %v4034
      %v4036 = vrot.slane %v4035, 4
      %v4038 = vshll.u32 %v3695, 16
      %v4040 = vrot.slane %v4038, 5
      %v4041 = vsel %vm247, %v4036, %v4040
      %v4042 = vshrl.u32 %v3695, 16
      %v4044 = vrot.slane %v4042, 4
      %v4045 = vor.u32 %v4044, %v4040
      %v4046 = vrot.slane %v4045, 4
      %v4048 = vshll.u32 %v3713, 16
      %v4050 = vrot.slane %v4048, 5
      %v4051 = vsel %vm247, %v4046, %v4050
      %v4053 = vshrl.u32 %v3696, 16
      %v4055 = vrot.slane %v4053, 4
      %v4056 = vshll.u32 %v3696, 16
      %v4058 = vrot.slane %v4056, 5
      %v4059 = vor.u32 %v4055, %v4058
      %v4060 = vrot.slane %v4059, 4
      %v4062 = vshll.u32 %v3697, 16
      %v4064 = vrot.slane %v4062, 5
      %v4065 = vsel %vm247, %v4060, %v4064
      %v4066 = vshrl.u32 %v3697, 16
      %v4068 = vrot.slane %v4066, 4
      %v4069 = vor.u32 %v4068, %v4064
      %v4070 = vrot.slane %v4069, 4
      %v4072 = vshll.u32 %v3714, 16
      %v4074 = vrot.slane %v4072, 5
      %v4075 = vsel %vm247, %v4070, %v4074
      %v4077 = vshrl.u32 %v3698, 16
      %v4079 = vrot.slane %v4077, 4
      %v4080 = vshll.u32 %v3698, 16
      %v4082 = vrot.slane %v4080, 5
      %v4083 = vor.u32 %v4079, %v4082
      %v4084 = vrot.slane %v4083, 4
      %v4086 = vshll.u32 %v3699, 16
      %v4088 = vrot.slane %v4086, 5
      %v4089 = vsel %vm247, %v4084, %v4088
      %v4090 = vshrl.u32 %v3699, 16
      %v4092 = vrot.slane %v4090, 4
      %v4093 = vor.u32 %v4092, %v4088
      %v4094 = vrot.slane %v4093, 4
      %v4096 = vshll.u32 %v3715, 16
      %v4098 = vrot.slane %v4096, 5
      %v4099 = vsel %vm247, %v4094, %v4098
      %v4100 = vld [vmem:[%s3667] sm:$0xe]
      %v4101 = vld [vmem:[%s3667 + $0xc] sm:$0xe]
      %v4102 = vld [vmem:[%s3667 + $0x18] sm:$0xe]
      %v4103 = vld [vmem:[%s3667 + $0x24] sm:$0xe]
      %v4104 = vld [vmem:[%s3667 + $0x30] sm:$0xe]
      %v4105 = vld [vmem:[%s3667 + $0x3c] sm:$0xe]
      %v4106 = vld [vmem:[%s3667 + $0x48] sm:$0xe]
      %v4107 = vld [vmem:[%s3667 + $0x54] sm:$0xe]
      %v4108 = vld [vmem:[%s3667 + $0x60] sm:$0xe]
      %v4109 = vld [vmem:[%s3667 + $0x6c] sm:$0xe]
      %v4110 = vld [vmem:[%s3667 + $0x78] sm:$0xe]
      %v4111 = vld [vmem:[%s3667 + $0x84] sm:$0xe]
      %v4112 = vld [vmem:[%s3667 + $0x90] sm:$0xe]
      %v4113 = vld [vmem:[%s3667 + $0x9c] sm:$0xe]
      %v4114 = vld [vmem:[%s3667 + $0xa8] sm:$0xe]
      %v4115 = vld [vmem:[%s3667 + $0xb4] sm:$0xe]
      %v4164 = vrot.slane %v4100, 5
      %v4165 = vrot.slane %v4164, 4
      %v4166 = vrot.slane %v3669, 5
      %v4167 = vsel %vm698, %v4165, %v4166
      %v4168 = vrot.slane %v4166, 4
      %v4169 = vrot.slane %v3700, 5
      %v4170 = vsel %vm698, %v4168, %v4169
      %v4171 = vrot.slane %v4101, 5
      %v4172 = vrot.slane %v4171, 4
      %v4173 = vrot.slane %v3671, 5
      %v4174 = vsel %vm698, %v4172, %v4173
      %v4175 = vrot.slane %v4173, 4
      %v4176 = vrot.slane %v3701, 5
      %v4177 = vsel %vm698, %v4175, %v4176
      %v4178 = vrot.slane %v4102, 5
      %v4179 = vrot.slane %v4178, 4
      %v4180 = vrot.slane %v3673, 5
      %v4181 = vsel %vm698, %v4179, %v4180
      %v4182 = vrot.slane %v4180, 4
      %v4183 = vrot.slane %v3702, 5
      %v4184 = vsel %vm698, %v4182, %v4183
      %v4185 = vrot.slane %v4103, 5
      %v4186 = vrot.slane %v4185, 4
      %v4187 = vrot.slane %v3675, 5
      %v4188 = vsel %vm698, %v4186, %v4187
      %v4189 = vrot.slane %v4187, 4
      %v4190 = vrot.slane %v3703, 5
      %v4191 = vsel %vm698, %v4189, %v4190
      %v4192 = vrot.slane %v4104, 5
      %v4193 = vrot.slane %v4192, 4
      %v4194 = vrot.slane %v3677, 5
      %v4195 = vsel %vm698, %v4193, %v4194
      %v4196 = vrot.slane %v4194, 4
      %v4197 = vrot.slane %v3704, 5
      %v4198 = vsel %vm698, %v4196, %v4197
      %v4199 = vrot.slane %v4105, 5
      %v4200 = vrot.slane %v4199, 4
      %v4201 = vrot.slane %v3679, 5
      %v4202 = vsel %vm698, %v4200, %v4201
      %v4203 = vrot.slane %v4201, 4
      %v4204 = vrot.slane %v3705, 5
      %v4205 = vsel %vm698, %v4203, %v4204
      %v4206 = vrot.slane %v4106, 5
      %v4207 = vrot.slane %v4206, 4
      %v4208 = vrot.slane %v3681, 5
      %v4209 = vsel %vm698, %v4207, %v4208
      %v4210 = vrot.slane %v4208, 4
      %v4211 = vrot.slane %v3706, 5
      %v4212 = vsel %vm698, %v4210, %v4211
      %v4213 = vrot.slane %v4107, 5
      %v4214 = vrot.slane %v4213, 4
      %v4215 = vrot.slane %v3683, 5
      %v4216 = vsel %vm698, %v4214, %v4215
      %v4217 = vrot.slane %v4215, 4
      %v4218 = vrot.slane %v3707, 5
      %v4219 = vsel %vm698, %v4217, %v4218
      %v4220 = vrot.slane %v4108, 5
      %v4221 = vrot.slane %v4220, 4
      %v4222 = vrot.slane %v3685, 5
      %v4223 = vsel %vm698, %v4221, %v4222
      %v4224 = vrot.slane %v4222, 4
      %v4225 = vrot.slane %v3708, 5
      %v4226 = vsel %vm698, %v4224, %v4225
      %v4227 = vrot.slane %v4109, 5
      %v4228 = vrot.slane %v4227, 4
      %v4229 = vrot.slane %v3687, 5
      %v4230 = vsel %vm698, %v4228, %v4229
      %v4231 = vrot.slane %v4229, 4
      %v4232 = vrot.slane %v3709, 5
      %v4233 = vsel %vm698, %v4231, %v4232
      %v4234 = vrot.slane %v4110, 5
      %v4235 = vrot.slane %v4234, 4
      %v4236 = vrot.slane %v3689, 5
      %v4237 = vsel %vm698, %v4235, %v4236
      %v4238 = vrot.slane %v4236, 4
      %v4239 = vrot.slane %v3710, 5
      %v4240 = vsel %vm698, %v4238, %v4239
      %v4241 = vrot.slane %v4111, 5
      %v4242 = vrot.slane %v4241, 4
      %v4243 = vrot.slane %v3691, 5
      %v4244 = vsel %vm698, %v4242, %v4243
      %v4245 = vrot.slane %v4243, 4
      %v4246 = vrot.slane %v3711, 5
      %v4247 = vsel %vm698, %v4245, %v4246
      %v4248 = vrot.slane %v4112, 5
      %v4249 = vrot.slane %v4248, 4
      %v4250 = vrot.slane %v3693, 5
      %v4251 = vsel %vm698, %v4249, %v4250
      %v4252 = vrot.slane %v4250, 4
      %v4253 = vrot.slane %v3712, 5
      %v4254 = vsel %vm698, %v4252, %v4253
      %v4255 = vrot.slane %v4113, 5
      %v4256 = vrot.slane %v4255, 4
      %v4257 = vrot.slane %v3695, 5
      %v4258 = vsel %vm698, %v4256, %v4257
      %v4259 = vrot.slane %v4257, 4
      %v4260 = vrot.slane %v3713, 5
      %v4261 = vsel %vm698, %v4259, %v4260
      %v4262 = vrot.slane %v4114, 5
      %v4263 = vrot.slane %v4262, 4
      %v4264 = vrot.slane %v3697, 5
      %v4265 = vsel %vm698, %v4263, %v4264
      %v4266 = vrot.slane %v4264, 4
      %v4267 = vrot.slane %v3714, 5
      %v4268 = vsel %vm698, %v4266, %v4267
      %v4269 = vrot.slane %v4115, 5
      %v4270 = vrot.slane %v4269, 4
      %v4271 = vrot.slane %v3699, 5
      %v4272 = vsel %vm698, %v4270, %v4271
      %v4273 = vrot.slane %v4271, 4
      %v4274 = vrot.slane %v3715, 5
      %v4275 = vsel %vm698, %v4273, %v4274
      %v4276 = vld [vmem:[%s3667 + $0x8] sm:$0x3]
      %v4277 = vld [vmem:[%s3667 + $0x14] sm:$0x3]
      %v4278 = vld [vmem:[%s3667 + $0x20] sm:$0x3]
      %v4279 = vld [vmem:[%s3667 + $0x2c] sm:$0x3]
      %v4280 = vld [vmem:[%s3667 + $0x38] sm:$0x3]
      %v4281 = vld [vmem:[%s3667 + $0x44] sm:$0x3]
      %v4282 = vld [vmem:[%s3667 + $0x50] sm:$0x3]
      %v4283 = vld [vmem:[%s3667 + $0x5c] sm:$0x3]
      %v4284 = vld [vmem:[%s3667 + $0x68] sm:$0x3]
      %v4285 = vld [vmem:[%s3667 + $0x74] sm:$0x3]
      %v4286 = vld [vmem:[%s3667 + $0x80] sm:$0x3]
      %v4287 = vld [vmem:[%s3667 + $0x8c] sm:$0x3]
      %v4288 = vld [vmem:[%s3667 + $0x98] sm:$0x3]
      %v4289 = vld [vmem:[%s3667 + $0xa4] sm:$0x3]
      %v4290 = vld [vmem:[%s3667 + $0xb0] sm:$0x3]
      %v4291 = vld [vmem:[%s3667 + $0xbc] sm:$0x3]
      %v4293 = vshrl.u32 %v4100, 16
      %v4295 = vrot.slane %v4293, 5
      %v4296 = vshll.u32 %v4100, 16
      %v4298 = vrot.slane %v4296, 6
      %v4299 = vor.u32 %v4295, %v4298
      %v4300 = vrot.slane %v4299, 4
      %v4301 = vrot.slane %v3730, 5
      %v4302 = vrot.slane %v3726, 6
      %v4303 = vor.u32 %v4301, %v4302
      %v4304 = vsel %vm829, %v4300, %v4303
      %v4305 = vrot.slane %v4303, 4
      %v4307 = vshrl.u32 %v4276, 16
      %v4309 = vrot.slane %v4307, 5
      %v4310 = vshll.u32 %v4276, 16
      %v4312 = vrot.slane %v4310, 6
      %v4313 = vor.u32 %v4309, %v4312
      %v4314 = vsel %vm829, %v4305, %v4313
      %v4316 = vshrl.u32 %v4101, 16
      %v4318 = vrot.slane %v4316, 5
      %v4319 = vshll.u32 %v4101, 16
      %v4321 = vrot.slane %v4319, 6
      %v4322 = vor.u32 %v4318, %v4321
      %v4323 = vrot.slane %v4322, 4
      %v4324 = vrot.slane %v3754, 5
      %v4325 = vrot.slane %v3750, 6
      %v4326 = vor.u32 %v4324, %v4325
      %v4327 = vsel %vm829, %v4323, %v4326
      %v4328 = vrot.slane %v4326, 4
      %v4330 = vshrl.u32 %v4277, 16
      %v4332 = vrot.slane %v4330, 5
      %v4333 = vshll.u32 %v4277, 16
      %v4335 = vrot.slane %v4333, 6
      %v4336 = vor.u32 %v4332, %v4335
      %v4337 = vsel %vm829, %v4328, %v4336
      %v4339 = vshrl.u32 %v4102, 16
      %v4341 = vrot.slane %v4339, 5
      %v4342 = vshll.u32 %v4102, 16
      %v4344 = vrot.slane %v4342, 6
      %v4345 = vor.u32 %v4341, %v4344
      %v4346 = vrot.slane %v4345, 4
      %v4347 = vrot.slane %v3778, 5
      %v4348 = vrot.slane %v3774, 6
      %v4349 = vor.u32 %v4347, %v4348
      %v4350 = vsel %vm829, %v4346, %v4349
      %v4351 = vrot.slane %v4349, 4
      %v4353 = vshrl.u32 %v4278, 16
      %v4355 = vrot.slane %v4353, 5
      %v4356 = vshll.u32 %v4278, 16
      %v4358 = vrot.slane %v4356, 6
      %v4359 = vor.u32 %v4355, %v4358
      %v4360 = vsel %vm829, %v4351, %v4359
      %v4362 = vshrl.u32 %v4103, 16
      %v4364 = vrot.slane %v4362, 5
      %v4365 = vshll.u32 %v4103, 16
      %v4367 = vrot.slane %v4365, 6
      %v4368 = vor.u32 %v4364, %v4367
      %v4369 = vrot.slane %v4368, 4
      %v4370 = vrot.slane %v3802, 5
      %v4371 = vrot.slane %v3798, 6
      %v4372 = vor.u32 %v4370, %v4371
      %v4373 = vsel %vm829, %v4369, %v4372
      %v4374 = vrot.slane %v4372, 4
      %v4376 = vshrl.u32 %v4279, 16
      %v4378 = vrot.slane %v4376, 5
      %v4379 = vshll.u32 %v4279, 16
      %v4381 = vrot.slane %v4379, 6
      %v4382 = vor.u32 %v4378, %v4381
      %v4383 = vsel %vm829, %v4374, %v4382
      %v4385 = vshrl.u32 %v4104, 16
      %v4387 = vrot.slane %v4385, 5
      %v4388 = vshll.u32 %v4104, 16
      %v4390 = vrot.slane %v4388, 6
      %v4391 = vor.u32 %v4387, %v4390
      %v4392 = vrot.slane %v4391, 4
      %v4393 = vrot.slane %v3826, 5
      %v4394 = vrot.slane %v3822, 6
      %v4395 = vor.u32 %v4393, %v4394
      %v4396 = vsel %vm829, %v4392, %v4395
      %v4397 = vrot.slane %v4395, 4
      %v4399 = vshrl.u32 %v4280, 16
      %v4401 = vrot.slane %v4399, 5
      %v4402 = vshll.u32 %v4280, 16
      %v4404 = vrot.slane %v4402, 6
      %v4405 = vor.u32 %v4401, %v4404
      %v4406 = vsel %vm829, %v4397, %v4405
      %v4408 = vshrl.u32 %v4105, 16
      %v4410 = vrot.slane %v4408, 5
      %v4411 = vshll.u32 %v4105, 16
      %v4413 = vrot.slane %v4411, 6
      %v4414 = vor.u32 %v4410, %v4413
      %v4415 = vrot.slane %v4414, 4
      %v4416 = vrot.slane %v3850, 5
      %v4417 = vrot.slane %v3846, 6
      %v4418 = vor.u32 %v4416, %v4417
      %v4419 = vsel %vm829, %v4415, %v4418
      %v4420 = vrot.slane %v4418, 4
      %v4422 = vshrl.u32 %v4281, 16
      %v4424 = vrot.slane %v4422, 5
      %v4425 = vshll.u32 %v4281, 16
      %v4427 = vrot.slane %v4425, 6
      %v4428 = vor.u32 %v4424, %v4427
      %v4429 = vsel %vm829, %v4420, %v4428
      %v4431 = vshrl.u32 %v4106, 16
      %v4433 = vrot.slane %v4431, 5
      %v4434 = vshll.u32 %v4106, 16
      %v4436 = vrot.slane %v4434, 6
      %v4437 = vor.u32 %v4433, %v4436
      %v4438 = vrot.slane %v4437, 4
      %v4439 = vrot.slane %v3874, 5
      %v4440 = vrot.slane %v3870, 6
      %v4441 = vor.u32 %v4439, %v4440
      %v4442 = vsel %vm829, %v4438, %v4441
      %v4443 = vrot.slane %v4441, 4
      %v4445 = vshrl.u32 %v4282, 16
      %v4447 = vrot.slane %v4445, 5
      %v4448 = vshll.u32 %v4282, 16
      %v4450 = vrot.slane %v4448, 6
      %v4451 = vor.u32 %v4447, %v4450
      %v4452 = vsel %vm829, %v4443, %v4451
      %v4454 = vshrl.u32 %v4107, 16
      %v4456 = vrot.slane %v4454, 5
      %v4457 = vshll.u32 %v4107, 16
      %v4459 = vrot.slane %v4457, 6
      %v4460 = vor.u32 %v4456, %v4459
      %v4461 = vrot.slane %v4460, 4
      %v4462 = vrot.slane %v3898, 5
      %v4463 = vrot.slane %v3894, 6
      %v4464 = vor.u32 %v4462, %v4463
      %v4465 = vsel %vm829, %v4461, %v4464
      %v4466 = vrot.slane %v4464, 4
      %v4468 = vshrl.u32 %v4283, 16
      %v4470 = vrot.slane %v4468, 5
      %v4471 = vshll.u32 %v4283, 16
      %v4473 = vrot.slane %v4471, 6
      %v4474 = vor.u32 %v4470, %v4473
      %v4475 = vsel %vm829, %v4466, %v4474
      %v4477 = vshrl.u32 %v4108, 16
      %v4479 = vrot.slane %v4477, 5
      %v4480 = vshll.u32 %v4108, 16
      %v4482 = vrot.slane %v4480, 6
      %v4483 = vor.u32 %v4479, %v4482
      %v4484 = vrot.slane %v4483, 4
      %v4485 = vrot.slane %v3922, 5
      %v4486 = vrot.slane %v3918, 6
      %v4487 = vor.u32 %v4485, %v4486
      %v4488 = vsel %vm829, %v4484, %v4487
      %v4489 = vrot.slane %v4487, 4
      %v4491 = vshrl.u32 %v4284, 16
      %v4493 = vrot.slane %v4491, 5
      %v4494 = vshll.u32 %v4284, 16
      %v4496 = vrot.slane %v4494, 6
      %v4497 = vor.u32 %v4493, %v4496
      %v4498 = vsel %vm829, %v4489, %v4497
      %v4500 = vshrl.u32 %v4109, 16
      %v4502 = vrot.slane %v4500, 5
      %v4503 = vshll.u32 %v4109, 16
      %v4505 = vrot.slane %v4503, 6
      %v4506 = vor.u32 %v4502, %v4505
      %v4507 = vrot.slane %v4506, 4
      %v4508 = vrot.slane %v3946, 5
      %v4509 = vrot.slane %v3942, 6
      %v4510 = vor.u32 %v4508, %v4509
      %v4511 = vsel %vm829, %v4507, %v4510
      %v4512 = vrot.slane %v4510, 4
      %v4514 = vshrl.u32 %v4285, 16
      %v4516 = vrot.slane %v4514, 5
      %v4517 = vshll.u32 %v4285, 16
      %v4519 = vrot.slane %v4517, 6
      %v4520 = vor.u32 %v4516, %v4519
      %v4521 = vsel %vm829, %v4512, %v4520
      %v4523 = vshrl.u32 %v4110, 16
      %v4525 = vrot.slane %v4523, 5
      %v4526 = vshll.u32 %v4110, 16
      %v4528 = vrot.slane %v4526, 6
      %v4529 = vor.u32 %v4525, %v4528
      %v4530 = vrot.slane %v4529, 4
      %v4531 = vrot.slane %v3970, 5
      %v4532 = vrot.slane %v3966, 6
      %v4533 = vor.u32 %v4531, %v4532
      %v4534 = vsel %vm829, %v4530, %v4533
      %v4535 = vrot.slane %v4533, 4
      %v4537 = vshrl.u32 %v4286, 16
      %v4539 = vrot.slane %v4537, 5
      %v4540 = vshll.u32 %v4286, 16
      %v4542 = vrot.slane %v4540, 6
      %v4543 = vor.u32 %v4539, %v4542
      %v4544 = vsel %vm829, %v4535, %v4543
      %v4546 = vshrl.u32 %v4111, 16
      %v4548 = vrot.slane %v4546, 5
      %v4549 = vshll.u32 %v4111, 16
      %v4551 = vrot.slane %v4549, 6
      %v4552 = vor.u32 %v4548, %v4551
      %v4553 = vrot.slane %v4552, 4
      %v4554 = vrot.slane %v3994, 5
      %v4555 = vrot.slane %v3990, 6
      %v4556 = vor.u32 %v4554, %v4555
      %v4557 = vsel %vm829, %v4553, %v4556
      %v4558 = vrot.slane %v4556, 4
      %v4560 = vshrl.u32 %v4287, 16
      %v4562 = vrot.slane %v4560, 5
      %v4563 = vshll.u32 %v4287, 16
      %v4565 = vrot.slane %v4563, 6
      %v4566 = vor.u32 %v4562, %v4565
      %v4567 = vsel %vm829, %v4558, %v4566
      %v4569 = vshrl.u32 %v4112, 16
      %v4571 = vrot.slane %v4569, 5
      %v4572 = vshll.u32 %v4112, 16
      %v4574 = vrot.slane %v4572, 6
      %v4575 = vor.u32 %v4571, %v4574
      %v4576 = vrot.slane %v4575, 4
      %v4577 = vrot.slane %v4018, 5
      %v4578 = vrot.slane %v4014, 6
      %v4579 = vor.u32 %v4577, %v4578
      %v4580 = vsel %vm829, %v4576, %v4579
      %v4581 = vrot.slane %v4579, 4
      %v4583 = vshrl.u32 %v4288, 16
      %v4585 = vrot.slane %v4583, 5
      %v4586 = vshll.u32 %v4288, 16
      %v4588 = vrot.slane %v4586, 6
      %v4589 = vor.u32 %v4585, %v4588
      %v4590 = vsel %vm829, %v4581, %v4589
      %v4592 = vshrl.u32 %v4113, 16
      %v4594 = vrot.slane %v4592, 5
      %v4595 = vshll.u32 %v4113, 16
      %v4597 = vrot.slane %v4595, 6
      %v4598 = vor.u32 %v4594, %v4597
      %v4599 = vrot.slane %v4598, 4
      %v4600 = vrot.slane %v4042, 5
      %v4601 = vrot.slane %v4038, 6
      %v4602 = vor.u32 %v4600, %v4601
      %v4603 = vsel %vm829, %v4599, %v4602
      %v4604 = vrot.slane %v4602, 4
      %v4606 = vshrl.u32 %v4289, 16
      %v4608 = vrot.slane %v4606, 5
      %v4609 = vshll.u32 %v4289, 16
      %v4611 = vrot.slane %v4609, 6
      %v4612 = vor.u32 %v4608, %v4611
      %v4613 = vsel %vm829, %v4604, %v4612
      %v4615 = vshrl.u32 %v4114, 16
      %v4617 = vrot.slane %v4615, 5
      %v4618 = vshll.u32 %v4114, 16
      %v4620 = vrot.slane %v4618, 6
      %v4621 = vor.u32 %v4617, %v4620
      %v4622 = vrot.slane %v4621, 4
      %v4623 = vrot.slane %v4066, 5
      %v4624 = vrot.slane %v4062, 6
      %v4625 = vor.u32 %v4623, %v4624
      %v4626 = vsel %vm829, %v4622, %v4625
      %v4627 = vrot.slane %v4625, 4
      %v4629 = vshrl.u32 %v4290, 16
      %v4631 = vrot.slane %v4629, 5
      %v4632 = vshll.u32 %v4290, 16
      %v4634 = vrot.slane %v4632, 6
      %v4635 = vor.u32 %v4631, %v4634
      %v4636 = vsel %vm829, %v4627, %v4635
      %v4638 = vshrl.u32 %v4115, 16
      %v4640 = vrot.slane %v4638, 5
      %v4641 = vshll.u32 %v4115, 16
      %v4643 = vrot.slane %v4641, 6
      %v4644 = vor.u32 %v4640, %v4643
      %v4645 = vrot.slane %v4644, 4
      %v4646 = vrot.slane %v4090, 5
      %v4647 = vrot.slane %v4086, 6
      %v4648 = vor.u32 %v4646, %v4647
      %v4649 = vsel %vm829, %v4645, %v4648
      %v4650 = vrot.slane %v4648, 4
      %v4652 = vshrl.u32 %v4291, 16
      %v4654 = vrot.slane %v4652, 5
      %v4655 = vshll.u32 %v4291, 16
      %v4657 = vrot.slane %v4655, 6
      %v4658 = vor.u32 %v4654, %v4657
      %v4659 = vsel %vm829, %v4650, %v4658
      %v4660 = vld [vmem:[%s3667] sm:$0xc]
      %v4661 = vld [vmem:[%s3667 + $0xc] sm:$0xc]
      %v4662 = vld [vmem:[%s3667 + $0x18] sm:$0xc]
      %v4663 = vld [vmem:[%s3667 + $0x24] sm:$0xc]
      %v4664 = vld [vmem:[%s3667 + $0x30] sm:$0xc]
      %v4665 = vld [vmem:[%s3667 + $0x3c] sm:$0xc]
      %v4666 = vld [vmem:[%s3667 + $0x48] sm:$0xc]
      %v4667 = vld [vmem:[%s3667 + $0x54] sm:$0xc]
      %v4668 = vld [vmem:[%s3667 + $0x60] sm:$0xc]
      %v4669 = vld [vmem:[%s3667 + $0x6c] sm:$0xc]
      %v4670 = vld [vmem:[%s3667 + $0x78] sm:$0xc]
      %v4671 = vld [vmem:[%s3667 + $0x84] sm:$0xc]
      %v4672 = vld [vmem:[%s3667 + $0x90] sm:$0xc]
      %v4673 = vld [vmem:[%s3667 + $0x9c] sm:$0xc]
      %v4674 = vld [vmem:[%s3667 + $0xa8] sm:$0xc]
      %v4675 = vld [vmem:[%s3667 + $0xb4] sm:$0xc]
      %v4708 = vrot.slane %v4660, 6
      %v4709 = vrot.slane %v4708, 4
      %v4710 = vrot.slane %v3669, 6
      %v4711 = vsel %vm1248, %v4709, %v4710
      %v4712 = vrot.slane %v4710, 4
      %v4713 = vrot.slane %v4276, 6
      %v4714 = vsel %vm1248, %v4712, %v4713
      %v4715 = vrot.slane %v4661, 6
      %v4716 = vrot.slane %v4715, 4
      %v4717 = vrot.slane %v3671, 6
      %v4718 = vsel %vm1248, %v4716, %v4717
      %v4719 = vrot.slane %v4717, 4
      %v4720 = vrot.slane %v4277, 6
      %v4721 = vsel %vm1248, %v4719, %v4720
      %v4722 = vrot.slane %v4662, 6
      %v4723 = vrot.slane %v4722, 4
      %v4724 = vrot.slane %v3673, 6
      %v4725 = vsel %vm1248, %v4723, %v4724
      %v4726 = vrot.slane %v4724, 4
      %v4727 = vrot.slane %v4278, 6
      %v4728 = vsel %vm1248, %v4726, %v4727
      %v4729 = vrot.slane %v4663, 6
      %v4730 = vrot.slane %v4729, 4
      %v4731 = vrot.slane %v3675, 6
      %v4732 = vsel %vm1248, %v4730, %v4731
      %v4733 = vrot.slane %v4731, 4
      %v4734 = vrot.slane %v4279, 6
      %v4735 = vsel %vm1248, %v4733, %v4734
      %v4736 = vrot.slane %v4664, 6
      %v4737 = vrot.slane %v4736, 4
      %v4738 = vrot.slane %v3677, 6
      %v4739 = vsel %vm1248, %v4737, %v4738
      %v4740 = vrot.slane %v4738, 4
      %v4741 = vrot.slane %v4280, 6
      %v4742 = vsel %vm1248, %v4740, %v4741
      %v4743 = vrot.slane %v4665, 6
      %v4744 = vrot.slane %v4743, 4
      %v4745 = vrot.slane %v3679, 6
      %v4746 = vsel %vm1248, %v4744, %v4745
      %v4747 = vrot.slane %v4745, 4
      %v4748 = vrot.slane %v4281, 6
      %v4749 = vsel %vm1248, %v4747, %v4748
      %v4750 = vrot.slane %v4666, 6
      %v4751 = vrot.slane %v4750, 4
      %v4752 = vrot.slane %v3681, 6
      %v4753 = vsel %vm1248, %v4751, %v4752
      %v4754 = vrot.slane %v4752, 4
      %v4755 = vrot.slane %v4282, 6
      %v4756 = vsel %vm1248, %v4754, %v4755
      %v4757 = vrot.slane %v4667, 6
      %v4758 = vrot.slane %v4757, 4
      %v4759 = vrot.slane %v3683, 6
      %v4760 = vsel %vm1248, %v4758, %v4759
      %v4761 = vrot.slane %v4759, 4
      %v4762 = vrot.slane %v4283, 6
      %v4763 = vsel %vm1248, %v4761, %v4762
      %v4764 = vrot.slane %v4668, 6
      %v4765 = vrot.slane %v4764, 4
      %v4766 = vrot.slane %v3685, 6
      %v4767 = vsel %vm1248, %v4765, %v4766
      %v4768 = vrot.slane %v4766, 4
      %v4769 = vrot.slane %v4284, 6
      %v4770 = vsel %vm1248, %v4768, %v4769
      %v4771 = vrot.slane %v4669, 6
      %v4772 = vrot.slane %v4771, 4
      %v4773 = vrot.slane %v3687, 6
      %v4774 = vsel %vm1248, %v4772, %v4773
      %v4775 = vrot.slane %v4773, 4
      %v4776 = vrot.slane %v4285, 6
      %v4777 = vsel %vm1248, %v4775, %v4776
      %v4778 = vrot.slane %v4670, 6
      %v4779 = vrot.slane %v4778, 4
      %v4780 = vrot.slane %v3689, 6
      %v4781 = vsel %vm1248, %v4779, %v4780
      %v4782 = vrot.slane %v4780, 4
      %v4783 = vrot.slane %v4286, 6
      %v4784 = vsel %vm1248, %v4782, %v4783
      %v4785 = vrot.slane %v4671, 6
      %v4786 = vrot.slane %v4785, 4
      %v4787 = vrot.slane %v3691, 6
      %v4788 = vsel %vm1248, %v4786, %v4787
      %v4789 = vrot.slane %v4787, 4
      %v4790 = vrot.slane %v4287, 6
      %v4791 = vsel %vm1248, %v4789, %v4790
      %v4792 = vrot.slane %v4672, 6
      %v4793 = vrot.slane %v4792, 4
      %v4794 = vrot.slane %v3693, 6
      %v4795 = vsel %vm1248, %v4793, %v4794
      %v4796 = vrot.slane %v4794, 4
      %v4797 = vrot.slane %v4288, 6
      %v4798 = vsel %vm1248, %v4796, %v4797
      %v4799 = vrot.slane %v4673, 6
      %v4800 = vrot.slane %v4799, 4
      %v4801 = vrot.slane %v3695, 6
      %v4802 = vsel %vm1248, %v4800, %v4801
      %v4803 = vrot.slane %v4801, 4
      %v4804 = vrot.slane %v4289, 6
      %v4805 = vsel %vm1248, %v4803, %v4804
      %v4806 = vrot.slane %v4674, 6
      %v4807 = vrot.slane %v4806, 4
      %v4808 = vrot.slane %v3697, 6
      %v4809 = vsel %vm1248, %v4807, %v4808
      %v4810 = vrot.slane %v4808, 4
      %v4811 = vrot.slane %v4290, 6
      %v4812 = vsel %vm1248, %v4810, %v4811
      %v4813 = vrot.slane %v4675, 6
      %v4814 = vrot.slane %v4813, 4
      %v4815 = vrot.slane %v3699, 6
      %v4816 = vsel %vm1248, %v4814, %v4815
      %v4817 = vrot.slane %v4815, 4
      %v4818 = vrot.slane %v4291, 6
      %v4819 = vsel %vm1248, %v4817, %v4818
      %s4820 = scalar_lea.vmem %s190, 48
      %v4821 = vld [vmem:[%s4820] sm:$0xf]
      %v4822 = vld [vmem:[%s4820 + $0x4] sm:$0xf]
      %v4823 = vld [vmem:[%s4820 + $0xc] sm:$0xf]
      %v4824 = vld [vmem:[%s4820 + $0x10] sm:$0xf]
      %v4825 = vld [vmem:[%s4820 + $0x18] sm:$0xf]
      %v4826 = vld [vmem:[%s4820 + $0x1c] sm:$0xf]
      %v4827 = vld [vmem:[%s4820 + $0x24] sm:$0xf]
      %v4828 = vld [vmem:[%s4820 + $0x28] sm:$0xf]
      %v4829 = vld [vmem:[%s4820 + $0x30] sm:$0xf]
      %v4830 = vld [vmem:[%s4820 + $0x34] sm:$0xf]
      %v4831 = vld [vmem:[%s4820 + $0x3c] sm:$0xf]
      %v4832 = vld [vmem:[%s4820 + $0x40] sm:$0xf]
      %v4833 = vld [vmem:[%s4820 + $0x48] sm:$0xf]
      %v4834 = vld [vmem:[%s4820 + $0x4c] sm:$0xf]
      %v4835 = vld [vmem:[%s4820 + $0x54] sm:$0xf]
      %v4836 = vld [vmem:[%s4820 + $0x58] sm:$0xf]
      %v4837 = vld [vmem:[%s4820 + $0x60] sm:$0xf]
      %v4838 = vld [vmem:[%s4820 + $0x64] sm:$0xf]
      %v4839 = vld [vmem:[%s4820 + $0x6c] sm:$0xf]
      %v4840 = vld [vmem:[%s4820 + $0x70] sm:$0xf]
      %v4841 = vld [vmem:[%s4820 + $0x78] sm:$0xf]
      %v4842 = vld [vmem:[%s4820 + $0x7c] sm:$0xf]
      %v4843 = vld [vmem:[%s4820 + $0x84] sm:$0xf]
      %v4844 = vld [vmem:[%s4820 + $0x88] sm:$0xf]
      %v4845 = vld [vmem:[%s4820 + $0x90] sm:$0xf]
      %v4846 = vld [vmem:[%s4820 + $0x94] sm:$0xf]
      %v4847 = vld [vmem:[%s4820 + $0x9c] sm:$0xf]
      %v4848 = vld [vmem:[%s4820 + $0xa0] sm:$0xf]
      %v4849 = vld [vmem:[%s4820 + $0xa8] sm:$0xf]
      %v4850 = vld [vmem:[%s4820 + $0xac] sm:$0xf]
      %v4851 = vld [vmem:[%s4820 + $0xb4] sm:$0xf]
      %v4852 = vld [vmem:[%s4820 + $0xb8] sm:$0xf]
      %v4853 = vld [vmem:[%s4820 + $0x8] sm:$0x1]
      %v4854 = vld [vmem:[%s4820 + $0x14] sm:$0x1]
      %v4855 = vld [vmem:[%s4820 + $0x20] sm:$0x1]
      %v4856 = vld [vmem:[%s4820 + $0x2c] sm:$0x1]
      %v4857 = vld [vmem:[%s4820 + $0x38] sm:$0x1]
      %v4858 = vld [vmem:[%s4820 + $0x44] sm:$0x1]
      %v4859 = vld [vmem:[%s4820 + $0x50] sm:$0x1]
      %v4860 = vld [vmem:[%s4820 + $0x5c] sm:$0x1]
      %v4861 = vld [vmem:[%s4820 + $0x68] sm:$0x1]
      %v4862 = vld [vmem:[%s4820 + $0x74] sm:$0x1]
      %v4863 = vld [vmem:[%s4820 + $0x80] sm:$0x1]
      %v4864 = vld [vmem:[%s4820 + $0x8c] sm:$0x1]
      %v4865 = vld [vmem:[%s4820 + $0x98] sm:$0x1]
      %v4866 = vld [vmem:[%s4820 + $0xa4] sm:$0x1]
      %v4867 = vld [vmem:[%s4820 + $0xb0] sm:$0x1]
      %v4868 = vld [vmem:[%s4820 + $0xbc] sm:$0x1]
      %v4870 = vshrl.u32 %v4821, 16
      %v4872 = vrot.slane %v4870, 4
      %v4873 = vshll.u32 %v4821, 16
      %v4875 = vrot.slane %v4873, 5
      %v4876 = vor.u32 %v4872, %v4875
      %v4877 = vrot.slane %v4876, 4
      %v4879 = vshll.u32 %v4822, 16
      %v4881 = vrot.slane %v4879, 5
      %v4882 = vsel %vm247, %v4877, %v4881
      %v4883 = vshrl.u32 %v4822, 16
      %v4885 = vrot.slane %v4883, 4
      %v4886 = vor.u32 %v4885, %v4881
      %v4887 = vrot.slane %v4886, 4
      %v4889 = vshll.u32 %v4853, 16
      %v4891 = vrot.slane %v4889, 5
      %v4892 = vsel %vm247, %v4887, %v4891
      %v4894 = vshrl.u32 %v4823, 16
      %v4896 = vrot.slane %v4894, 4
      %v4897 = vshll.u32 %v4823, 16
      %v4899 = vrot.slane %v4897, 5
      %v4900 = vor.u32 %v4896, %v4899
      %v4901 = vrot.slane %v4900, 4
      %v4903 = vshll.u32 %v4824, 16
      %v4905 = vrot.slane %v4903, 5
      %v4906 = vsel %vm247, %v4901, %v4905
      %v4907 = vshrl.u32 %v4824, 16
      %v4909 = vrot.slane %v4907, 4
      %v4910 = vor.u32 %v4909, %v4905
      %v4911 = vrot.slane %v4910, 4
      %v4913 = vshll.u32 %v4854, 16
      %v4915 = vrot.slane %v4913, 5
      %v4916 = vsel %vm247, %v4911, %v4915
      %v4918 = vshrl.u32 %v4825, 16
      %v4920 = vrot.slane %v4918, 4
      %v4921 = vshll.u32 %v4825, 16
      %v4923 = vrot.slane %v4921, 5
      %v4924 = vor.u32 %v4920, %v4923
      %v4925 = vrot.slane %v4924, 4
      %v4927 = vshll.u32 %v4826, 16
      %v4929 = vrot.slane %v4927, 5
      %v4930 = vsel %vm247, %v4925, %v4929
      %v4931 = vshrl.u32 %v4826, 16
      %v4933 = vrot.slane %v4931, 4
      %v4934 = vor.u32 %v4933, %v4929
      %v4935 = vrot.slane %v4934, 4
      %v4937 = vshll.u32 %v4855, 16
      %v4939 = vrot.slane %v4937, 5
      %v4940 = vsel %vm247, %v4935, %v4939
      %v4942 = vshrl.u32 %v4827, 16
      %v4944 = vrot.slane %v4942, 4
      %v4945 = vshll.u32 %v4827, 16
      %v4947 = vrot.slane %v4945, 5
      %v4948 = vor.u32 %v4944, %v4947
      %v4949 = vrot.slane %v4948, 4
      %v4951 = vshll.u32 %v4828, 16
      %v4953 = vrot.slane %v4951, 5
      %v4954 = vsel %vm247, %v4949, %v4953
      %v4955 = vshrl.u32 %v4828, 16
      %v4957 = vrot.slane %v4955, 4
      %v4958 = vor.u32 %v4957, %v4953
      %v4959 = vrot.slane %v4958, 4
      %v4961 = vshll.u32 %v4856, 16
      %v4963 = vrot.slane %v4961, 5
      %v4964 = vsel %vm247, %v4959, %v4963
      %v4966 = vshrl.u32 %v4829, 16
      %v4968 = vrot.slane %v4966, 4
      %v4969 = vshll.u32 %v4829, 16
      %v4971 = vrot.slane %v4969, 5
      %v4972 = vor.u32 %v4968, %v4971
      %v4973 = vrot.slane %v4972, 4
      %v4975 = vshll.u32 %v4830, 16
      %v4977 = vrot.slane %v4975, 5
      %v4978 = vsel %vm247, %v4973, %v4977
      %v4979 = vshrl.u32 %v4830, 16
      %v4981 = vrot.slane %v4979, 4
      %v4982 = vor.u32 %v4981, %v4977
      %v4983 = vrot.slane %v4982, 4
      %v4985 = vshll.u32 %v4857, 16
      %v4987 = vrot.slane %v4985, 5
      %v4988 = vsel %vm247, %v4983, %v4987
      %v4990 = vshrl.u32 %v4831, 16
      %v4992 = vrot.slane %v4990, 4
      %v4993 = vshll.u32 %v4831, 16
      %v4995 = vrot.slane %v4993, 5
      %v4996 = vor.u32 %v4992, %v4995
      %v4997 = vrot.slane %v4996, 4
      %v4999 = vshll.u32 %v4832, 16
      %v5001 = vrot.slane %v4999, 5
      %v5002 = vsel %vm247, %v4997, %v5001
      %v5003 = vshrl.u32 %v4832, 16
      %v5005 = vrot.slane %v5003, 4
      %v5006 = vor.u32 %v5005, %v5001
      %v5007 = vrot.slane %v5006, 4
      %v5009 = vshll.u32 %v4858, 16
      %v5011 = vrot.slane %v5009, 5
      %v5012 = vsel %vm247, %v5007, %v5011
      %v5014 = vshrl.u32 %v4833, 16
      %v5016 = vrot.slane %v5014, 4
      %v5017 = vshll.u32 %v4833, 16
      %v5019 = vrot.slane %v5017, 5
      %v5020 = vor.u32 %v5016, %v5019
      %v5021 = vrot.slane %v5020, 4
      %v5023 = vshll.u32 %v4834, 16
      %v5025 = vrot.slane %v5023, 5
      %v5026 = vsel %vm247, %v5021, %v5025
      %v5027 = vshrl.u32 %v4834, 16
      %v5029 = vrot.slane %v5027, 4
      %v5030 = vor.u32 %v5029, %v5025
      %v5031 = vrot.slane %v5030, 4
      %v5033 = vshll.u32 %v4859, 16
      %v5035 = vrot.slane %v5033, 5
      %v5036 = vsel %vm247, %v5031, %v5035
      %v5038 = vshrl.u32 %v4835, 16
      %v5040 = vrot.slane %v5038, 4
      %v5041 = vshll.u32 %v4835, 16
      %v5043 = vrot.slane %v5041, 5
      %v5044 = vor.u32 %v5040, %v5043
      %v5045 = vrot.slane %v5044, 4
      %v5047 = vshll.u32 %v4836, 16
      %v5049 = vrot.slane %v5047, 5
      %v5050 = vsel %vm247, %v5045, %v5049
      %v5051 = vshrl.u32 %v4836, 16
      %v5053 = vrot.slane %v5051, 4
      %v5054 = vor.u32 %v5053, %v5049
      %v5055 = vrot.slane %v5054, 4
      %v5057 = vshll.u32 %v4860, 16
      %v5059 = vrot.slane %v5057, 5
      %v5060 = vsel %vm247, %v5055, %v5059
      %v5062 = vshrl.u32 %v4837, 16
      %v5064 = vrot.slane %v5062, 4
      %v5065 = vshll.u32 %v4837, 16
      %v5067 = vrot.slane %v5065, 5
      %v5068 = vor.u32 %v5064, %v5067
      %v5069 = vrot.slane %v5068, 4
      %v5071 = vshll.u32 %v4838, 16
      %v5073 = vrot.slane %v5071, 5
      %v5074 = vsel %vm247, %v5069, %v5073
      %v5075 = vshrl.u32 %v4838, 16
      %v5077 = vrot.slane %v5075, 4
      %v5078 = vor.u32 %v5077, %v5073
      %v5079 = vrot.slane %v5078, 4
      %v5081 = vshll.u32 %v4861, 16
      %v5083 = vrot.slane %v5081, 5
      %v5084 = vsel %vm247, %v5079, %v5083
      %v5086 = vshrl.u32 %v4839, 16
      %v5088 = vrot.slane %v5086, 4
      %v5089 = vshll.u32 %v4839, 16
      %v5091 = vrot.slane %v5089, 5
      %v5092 = vor.u32 %v5088, %v5091
      %v5093 = vrot.slane %v5092, 4
      %v5095 = vshll.u32 %v4840, 16
      %v5097 = vrot.slane %v5095, 5
      %v5098 = vsel %vm247, %v5093, %v5097
      %v5099 = vshrl.u32 %v4840, 16
      %v5101 = vrot.slane %v5099, 4
      %v5102 = vor.u32 %v5101, %v5097
      %v5103 = vrot.slane %v5102, 4
      %v5105 = vshll.u32 %v4862, 16
      %v5107 = vrot.slane %v5105, 5
      %v5108 = vsel %vm247, %v5103, %v5107
      %v5110 = vshrl.u32 %v4841, 16
      %v5112 = vrot.slane %v5110, 4
      %v5113 = vshll.u32 %v4841, 16
      %v5115 = vrot.slane %v5113, 5
      %v5116 = vor.u32 %v5112, %v5115
      %v5117 = vrot.slane %v5116, 4
      %v5119 = vshll.u32 %v4842, 16
      %v5121 = vrot.slane %v5119, 5
      %v5122 = vsel %vm247, %v5117, %v5121
      %v5123 = vshrl.u32 %v4842, 16
      %v5125 = vrot.slane %v5123, 4
      %v5126 = vor.u32 %v5125, %v5121
      %v5127 = vrot.slane %v5126, 4
      %v5129 = vshll.u32 %v4863, 16
      %v5131 = vrot.slane %v5129, 5
      %v5132 = vsel %vm247, %v5127, %v5131
      %v5134 = vshrl.u32 %v4843, 16
      %v5136 = vrot.slane %v5134, 4
      %v5137 = vshll.u32 %v4843, 16
      %v5139 = vrot.slane %v5137, 5
      %v5140 = vor.u32 %v5136, %v5139
      %v5141 = vrot.slane %v5140, 4
      %v5143 = vshll.u32 %v4844, 16
      %v5145 = vrot.slane %v5143, 5
      %v5146 = vsel %vm247, %v5141, %v5145
      %v5147 = vshrl.u32 %v4844, 16
      %v5149 = vrot.slane %v5147, 4
      %v5150 = vor.u32 %v5149, %v5145
      %v5151 = vrot.slane %v5150, 4
      %v5153 = vshll.u32 %v4864, 16
      %v5155 = vrot.slane %v5153, 5
      %v5156 = vsel %vm247, %v5151, %v5155
      %v5158 = vshrl.u32 %v4845, 16
      %v5160 = vrot.slane %v5158, 4
      %v5161 = vshll.u32 %v4845, 16
      %v5163 = vrot.slane %v5161, 5
      %v5164 = vor.u32 %v5160, %v5163
      %v5165 = vrot.slane %v5164, 4
      %v5167 = vshll.u32 %v4846, 16
      %v5169 = vrot.slane %v5167, 5
      %v5170 = vsel %vm247, %v5165, %v5169
      %v5171 = vshrl.u32 %v4846, 16
      %v5173 = vrot.slane %v5171, 4
      %v5174 = vor.u32 %v5173, %v5169
      %v5175 = vrot.slane %v5174, 4
      %v5177 = vshll.u32 %v4865, 16
      %v5179 = vrot.slane %v5177, 5
      %v5180 = vsel %vm247, %v5175, %v5179
      %v5182 = vshrl.u32 %v4847, 16
      %v5184 = vrot.slane %v5182, 4
      %v5185 = vshll.u32 %v4847, 16
      %v5187 = vrot.slane %v5185, 5
      %v5188 = vor.u32 %v5184, %v5187
      %v5189 = vrot.slane %v5188, 4
      %v5191 = vshll.u32 %v4848, 16
      %v5193 = vrot.slane %v5191, 5
      %v5194 = vsel %vm247, %v5189, %v5193
      %v5195 = vshrl.u32 %v4848, 16
      %v5197 = vrot.slane %v5195, 4
      %v5198 = vor.u32 %v5197, %v5193
      %v5199 = vrot.slane %v5198, 4
      %v5201 = vshll.u32 %v4866, 16
      %v5203 = vrot.slane %v5201, 5
      %v5204 = vsel %vm247, %v5199, %v5203
      %v5206 = vshrl.u32 %v4849, 16
      %v5208 = vrot.slane %v5206, 4
      %v5209 = vshll.u32 %v4849, 16
      %v5211 = vrot.slane %v5209, 5
      %v5212 = vor.u32 %v5208, %v5211
      %v5213 = vrot.slane %v5212, 4
      %v5215 = vshll.u32 %v4850, 16
      %v5217 = vrot.slane %v5215, 5
      %v5218 = vsel %vm247, %v5213, %v5217
      %v5219 = vshrl.u32 %v4850, 16
      %v5221 = vrot.slane %v5219, 4
      %v5222 = vor.u32 %v5221, %v5217
      %v5223 = vrot.slane %v5222, 4
      %v5225 = vshll.u32 %v4867, 16
      %v5227 = vrot.slane %v5225, 5
      %v5228 = vsel %vm247, %v5223, %v5227
      %v5230 = vshrl.u32 %v4851, 16
      %v5232 = vrot.slane %v5230, 4
      %v5233 = vshll.u32 %v4851, 16
      %v5235 = vrot.slane %v5233, 5
      %v5236 = vor.u32 %v5232, %v5235
      %v5237 = vrot.slane %v5236, 4
      %v5239 = vshll.u32 %v4852, 16
      %v5241 = vrot.slane %v5239, 5
      %v5242 = vsel %vm247, %v5237, %v5241
      %v5243 = vshrl.u32 %v4852, 16
      %v5245 = vrot.slane %v5243, 4
      %v5246 = vor.u32 %v5245, %v5241
      %v5247 = vrot.slane %v5246, 4
      %v5249 = vshll.u32 %v4868, 16
      %v5251 = vrot.slane %v5249, 5
      %v5252 = vsel %vm247, %v5247, %v5251
      %v5253 = vld [vmem:[%s4820] sm:$0xe]
      %v5254 = vld [vmem:[%s4820 + $0xc] sm:$0xe]
      %v5255 = vld [vmem:[%s4820 + $0x18] sm:$0xe]
      %v5256 = vld [vmem:[%s4820 + $0x24] sm:$0xe]
      %v5257 = vld [vmem:[%s4820 + $0x30] sm:$0xe]
      %v5258 = vld [vmem:[%s4820 + $0x3c] sm:$0xe]
      %v5259 = vld [vmem:[%s4820 + $0x48] sm:$0xe]
      %v5260 = vld [vmem:[%s4820 + $0x54] sm:$0xe]
      %v5261 = vld [vmem:[%s4820 + $0x60] sm:$0xe]
      %v5262 = vld [vmem:[%s4820 + $0x6c] sm:$0xe]
      %v5263 = vld [vmem:[%s4820 + $0x78] sm:$0xe]
      %v5264 = vld [vmem:[%s4820 + $0x84] sm:$0xe]
      %v5265 = vld [vmem:[%s4820 + $0x90] sm:$0xe]
      %v5266 = vld [vmem:[%s4820 + $0x9c] sm:$0xe]
      %v5267 = vld [vmem:[%s4820 + $0xa8] sm:$0xe]
      %v5268 = vld [vmem:[%s4820 + $0xb4] sm:$0xe]
      %v5317 = vrot.slane %v5253, 5
      %v5318 = vrot.slane %v5317, 4
      %v5319 = vrot.slane %v4822, 5
      %v5320 = vsel %vm698, %v5318, %v5319
      %v5321 = vrot.slane %v5319, 4
      %v5322 = vrot.slane %v4853, 5
      %v5323 = vsel %vm698, %v5321, %v5322
      %v5324 = vrot.slane %v5254, 5
      %v5325 = vrot.slane %v5324, 4
      %v5326 = vrot.slane %v4824, 5
      %v5327 = vsel %vm698, %v5325, %v5326
      %v5328 = vrot.slane %v5326, 4
      %v5329 = vrot.slane %v4854, 5
      %v5330 = vsel %vm698, %v5328, %v5329
      %v5331 = vrot.slane %v5255, 5
      %v5332 = vrot.slane %v5331, 4
      %v5333 = vrot.slane %v4826, 5
      %v5334 = vsel %vm698, %v5332, %v5333
      %v5335 = vrot.slane %v5333, 4
      %v5336 = vrot.slane %v4855, 5
      %v5337 = vsel %vm698, %v5335, %v5336
      %v5338 = vrot.slane %v5256, 5
      %v5339 = vrot.slane %v5338, 4
      %v5340 = vrot.slane %v4828, 5
      %v5341 = vsel %vm698, %v5339, %v5340
      %v5342 = vrot.slane %v5340, 4
      %v5343 = vrot.slane %v4856, 5
      %v5344 = vsel %vm698, %v5342, %v5343
      %v5345 = vrot.slane %v5257, 5
      %v5346 = vrot.slane %v5345, 4
      %v5347 = vrot.slane %v4830, 5
      %v5348 = vsel %vm698, %v5346, %v5347
      %v5349 = vrot.slane %v5347, 4
      %v5350 = vrot.slane %v4857, 5
      %v5351 = vsel %vm698, %v5349, %v5350
      %v5352 = vrot.slane %v5258, 5
      %v5353 = vrot.slane %v5352, 4
      %v5354 = vrot.slane %v4832, 5
      %v5355 = vsel %vm698, %v5353, %v5354
      %v5356 = vrot.slane %v5354, 4
      %v5357 = vrot.slane %v4858, 5
      %v5358 = vsel %vm698, %v5356, %v5357
      %v5359 = vrot.slane %v5259, 5
      %v5360 = vrot.slane %v5359, 4
      %v5361 = vrot.slane %v4834, 5
      %v5362 = vsel %vm698, %v5360, %v5361
      %v5363 = vrot.slane %v5361, 4
      %v5364 = vrot.slane %v4859, 5
      %v5365 = vsel %vm698, %v5363, %v5364
      %v5366 = vrot.slane %v5260, 5
      %v5367 = vrot.slane %v5366, 4
      %v5368 = vrot.slane %v4836, 5
      %v5369 = vsel %vm698, %v5367, %v5368
      %v5370 = vrot.slane %v5368, 4
      %v5371 = vrot.slane %v4860, 5
      %v5372 = vsel %vm698, %v5370, %v5371
      %v5373 = vrot.slane %v5261, 5
      %v5374 = vrot.slane %v5373, 4
      %v5375 = vrot.slane %v4838, 5
      %v5376 = vsel %vm698, %v5374, %v5375
      %v5377 = vrot.slane %v5375, 4
      %v5378 = vrot.slane %v4861, 5
      %v5379 = vsel %vm698, %v5377, %v5378
      %v5380 = vrot.slane %v5262, 5
      %v5381 = vrot.slane %v5380, 4
      %v5382 = vrot.slane %v4840, 5
      %v5383 = vsel %vm698, %v5381, %v5382
      %v5384 = vrot.slane %v5382, 4
      %v5385 = vrot.slane %v4862, 5
      %v5386 = vsel %vm698, %v5384, %v5385
      %v5387 = vrot.slane %v5263, 5
      %v5388 = vrot.slane %v5387, 4
      %v5389 = vrot.slane %v4842, 5
      %v5390 = vsel %vm698, %v5388, %v5389
      %v5391 = vrot.slane %v5389, 4
      %v5392 = vrot.slane %v4863, 5
      %v5393 = vsel %vm698, %v5391, %v5392
      %v5394 = vrot.slane %v5264, 5
      %v5395 = vrot.slane %v5394, 4
      %v5396 = vrot.slane %v4844, 5
      %v5397 = vsel %vm698, %v5395, %v5396
      %v5398 = vrot.slane %v5396, 4
      %v5399 = vrot.slane %v4864, 5
      %v5400 = vsel %vm698, %v5398, %v5399
      %v5401 = vrot.slane %v5265, 5
      %v5402 = vrot.slane %v5401, 4
      %v5403 = vrot.slane %v4846, 5
      %v5404 = vsel %vm698, %v5402, %v5403
      %v5405 = vrot.slane %v5403, 4
      %v5406 = vrot.slane %v4865, 5
      %v5407 = vsel %vm698, %v5405, %v5406
      %v5408 = vrot.slane %v5266, 5
      %v5409 = vrot.slane %v5408, 4
      %v5410 = vrot.slane %v4848, 5
      %v5411 = vsel %vm698, %v5409, %v5410
      %v5412 = vrot.slane %v5410, 4
      %v5413 = vrot.slane %v4866, 5
      %v5414 = vsel %vm698, %v5412, %v5413
      %v5415 = vrot.slane %v5267, 5
      %v5416 = vrot.slane %v5415, 4
      %v5417 = vrot.slane %v4850, 5
      %v5418 = vsel %vm698, %v5416, %v5417
      %v5419 = vrot.slane %v5417, 4
      %v5420 = vrot.slane %v4867, 5
      %v5421 = vsel %vm698, %v5419, %v5420
      %v5422 = vrot.slane %v5268, 5
      %v5423 = vrot.slane %v5422, 4
      %v5424 = vrot.slane %v4852, 5
      %v5425 = vsel %vm698, %v5423, %v5424
      %v5426 = vrot.slane %v5424, 4
      %v5427 = vrot.slane %v4868, 5
      %v5428 = vsel %vm698, %v5426, %v5427
      %v5429 = vld [vmem:[%s4820 + $0x8] sm:$0x3]
      %v5430 = vld [vmem:[%s4820 + $0x14] sm:$0x3]
      %v5431 = vld [vmem:[%s4820 + $0x20] sm:$0x3]
      %v5432 = vld [vmem:[%s4820 + $0x2c] sm:$0x3]
      %v5433 = vld [vmem:[%s4820 + $0x38] sm:$0x3]
      %v5434 = vld [vmem:[%s4820 + $0x44] sm:$0x3]
      %v5435 = vld [vmem:[%s4820 + $0x50] sm:$0x3]
      %v5436 = vld [vmem:[%s4820 + $0x5c] sm:$0x3]
      %v5437 = vld [vmem:[%s4820 + $0x68] sm:$0x3]
      %v5438 = vld [vmem:[%s4820 + $0x74] sm:$0x3]
      %v5439 = vld [vmem:[%s4820 + $0x80] sm:$0x3]
      %v5440 = vld [vmem:[%s4820 + $0x8c] sm:$0x3]
      %v5441 = vld [vmem:[%s4820 + $0x98] sm:$0x3]
      %v5442 = vld [vmem:[%s4820 + $0xa4] sm:$0x3]
      %v5443 = vld [vmem:[%s4820 + $0xb0] sm:$0x3]
      %v5444 = vld [vmem:[%s4820 + $0xbc] sm:$0x3]
      %v5446 = vshrl.u32 %v5253, 16
      %v5448 = vrot.slane %v5446, 5
      %v5449 = vshll.u32 %v5253, 16
      %v5451 = vrot.slane %v5449, 6
      %v5452 = vor.u32 %v5448, %v5451
      %v5453 = vrot.slane %v5452, 4
      %v5454 = vrot.slane %v4883, 5
      %v5455 = vrot.slane %v4879, 6
      %v5456 = vor.u32 %v5454, %v5455
      %v5457 = vsel %vm829, %v5453, %v5456
      %v5458 = vrot.slane %v5456, 4
      %v5460 = vshrl.u32 %v5429, 16
      %v5462 = vrot.slane %v5460, 5
      %v5463 = vshll.u32 %v5429, 16
      %v5465 = vrot.slane %v5463, 6
      %v5466 = vor.u32 %v5462, %v5465
      %v5467 = vsel %vm829, %v5458, %v5466
      %v5469 = vshrl.u32 %v5254, 16
      %v5471 = vrot.slane %v5469, 5
      %v5472 = vshll.u32 %v5254, 16
      %v5474 = vrot.slane %v5472, 6
      %v5475 = vor.u32 %v5471, %v5474
      %v5476 = vrot.slane %v5475, 4
      %v5477 = vrot.slane %v4907, 5
      %v5478 = vrot.slane %v4903, 6
      %v5479 = vor.u32 %v5477, %v5478
      %v5480 = vsel %vm829, %v5476, %v5479
      %v5481 = vrot.slane %v5479, 4
      %v5483 = vshrl.u32 %v5430, 16
      %v5485 = vrot.slane %v5483, 5
      %v5486 = vshll.u32 %v5430, 16
      %v5488 = vrot.slane %v5486, 6
      %v5489 = vor.u32 %v5485, %v5488
      %v5490 = vsel %vm829, %v5481, %v5489
      %v5492 = vshrl.u32 %v5255, 16
      %v5494 = vrot.slane %v5492, 5
      %v5495 = vshll.u32 %v5255, 16
      %v5497 = vrot.slane %v5495, 6
      %v5498 = vor.u32 %v5494, %v5497
      %v5499 = vrot.slane %v5498, 4
      %v5500 = vrot.slane %v4931, 5
      %v5501 = vrot.slane %v4927, 6
      %v5502 = vor.u32 %v5500, %v5501
      %v5503 = vsel %vm829, %v5499, %v5502
      %v5504 = vrot.slane %v5502, 4
      %v5506 = vshrl.u32 %v5431, 16
      %v5508 = vrot.slane %v5506, 5
      %v5509 = vshll.u32 %v5431, 16
      %v5511 = vrot.slane %v5509, 6
      %v5512 = vor.u32 %v5508, %v5511
      %v5513 = vsel %vm829, %v5504, %v5512
      %v5515 = vshrl.u32 %v5256, 16
      %v5517 = vrot.slane %v5515, 5
      %v5518 = vshll.u32 %v5256, 16
      %v5520 = vrot.slane %v5518, 6
      %v5521 = vor.u32 %v5517, %v5520
      %v5522 = vrot.slane %v5521, 4
      %v5523 = vrot.slane %v4955, 5
      %v5524 = vrot.slane %v4951, 6
      %v5525 = vor.u32 %v5523, %v5524
      %v5526 = vsel %vm829, %v5522, %v5525
      %v5527 = vrot.slane %v5525, 4
      %v5529 = vshrl.u32 %v5432, 16
      %v5531 = vrot.slane %v5529, 5
      %v5532 = vshll.u32 %v5432, 16
      %v5534 = vrot.slane %v5532, 6
      %v5535 = vor.u32 %v5531, %v5534
      %v5536 = vsel %vm829, %v5527, %v5535
      %v5538 = vshrl.u32 %v5257, 16
      %v5540 = vrot.slane %v5538, 5
      %v5541 = vshll.u32 %v5257, 16
      %v5543 = vrot.slane %v5541, 6
      %v5544 = vor.u32 %v5540, %v5543
      %v5545 = vrot.slane %v5544, 4
      %v5546 = vrot.slane %v4979, 5
      %v5547 = vrot.slane %v4975, 6
      %v5548 = vor.u32 %v5546, %v5547
      %v5549 = vsel %vm829, %v5545, %v5548
      %v5550 = vrot.slane %v5548, 4
      %v5552 = vshrl.u32 %v5433, 16
      %v5554 = vrot.slane %v5552, 5
      %v5555 = vshll.u32 %v5433, 16
      %v5557 = vrot.slane %v5555, 6
      %v5558 = vor.u32 %v5554, %v5557
      %v5559 = vsel %vm829, %v5550, %v5558
      %v5561 = vshrl.u32 %v5258, 16
      %v5563 = vrot.slane %v5561, 5
      %v5564 = vshll.u32 %v5258, 16
      %v5566 = vrot.slane %v5564, 6
      %v5567 = vor.u32 %v5563, %v5566
      %v5568 = vrot.slane %v5567, 4
      %v5569 = vrot.slane %v5003, 5
      %v5570 = vrot.slane %v4999, 6
      %v5571 = vor.u32 %v5569, %v5570
      %v5572 = vsel %vm829, %v5568, %v5571
      %v5573 = vrot.slane %v5571, 4
      %v5575 = vshrl.u32 %v5434, 16
      %v5577 = vrot.slane %v5575, 5
      %v5578 = vshll.u32 %v5434, 16
      %v5580 = vrot.slane %v5578, 6
      %v5581 = vor.u32 %v5577, %v5580
      %v5582 = vsel %vm829, %v5573, %v5581
      %v5584 = vshrl.u32 %v5259, 16
      %v5586 = vrot.slane %v5584, 5
      %v5587 = vshll.u32 %v5259, 16
      %v5589 = vrot.slane %v5587, 6
      %v5590 = vor.u32 %v5586, %v5589
      %v5591 = vrot.slane %v5590, 4
      %v5592 = vrot.slane %v5027, 5
      %v5593 = vrot.slane %v5023, 6
      %v5594 = vor.u32 %v5592, %v5593
      %v5595 = vsel %vm829, %v5591, %v5594
      %v5596 = vrot.slane %v5594, 4
      %v5598 = vshrl.u32 %v5435, 16
      %v5600 = vrot.slane %v5598, 5
      %v5601 = vshll.u32 %v5435, 16
      %v5603 = vrot.slane %v5601, 6
      %v5604 = vor.u32 %v5600, %v5603
      %v5605 = vsel %vm829, %v5596, %v5604
      %v5607 = vshrl.u32 %v5260, 16
      %v5609 = vrot.slane %v5607, 5
      %v5610 = vshll.u32 %v5260, 16
      %v5612 = vrot.slane %v5610, 6
      %v5613 = vor.u32 %v5609, %v5612
      %v5614 = vrot.slane %v5613, 4
      %v5615 = vrot.slane %v5051, 5
      %v5616 = vrot.slane %v5047, 6
      %v5617 = vor.u32 %v5615, %v5616
      %v5618 = vsel %vm829, %v5614, %v5617
      %v5619 = vrot.slane %v5617, 4
      %v5621 = vshrl.u32 %v5436, 16
      %v5623 = vrot.slane %v5621, 5
      %v5624 = vshll.u32 %v5436, 16
      %v5626 = vrot.slane %v5624, 6
      %v5627 = vor.u32 %v5623, %v5626
      %v5628 = vsel %vm829, %v5619, %v5627
      %v5630 = vshrl.u32 %v5261, 16
      %v5632 = vrot.slane %v5630, 5
      %v5633 = vshll.u32 %v5261, 16
      %v5635 = vrot.slane %v5633, 6
      %v5636 = vor.u32 %v5632, %v5635
      %v5637 = vrot.slane %v5636, 4
      %v5638 = vrot.slane %v5075, 5
      %v5639 = vrot.slane %v5071, 6
      %v5640 = vor.u32 %v5638, %v5639
      %v5641 = vsel %vm829, %v5637, %v5640
      %v5642 = vrot.slane %v5640, 4
      %v5644 = vshrl.u32 %v5437, 16
      %v5646 = vrot.slane %v5644, 5
      %v5647 = vshll.u32 %v5437, 16
      %v5649 = vrot.slane %v5647, 6
      %v5650 = vor.u32 %v5646, %v5649
      %v5651 = vsel %vm829, %v5642, %v5650
      %v5653 = vshrl.u32 %v5262, 16
      %v5655 = vrot.slane %v5653, 5
      %v5656 = vshll.u32 %v5262, 16
      %v5658 = vrot.slane %v5656, 6
      %v5659 = vor.u32 %v5655, %v5658
      %v5660 = vrot.slane %v5659, 4
      %v5661 = vrot.slane %v5099, 5
      %v5662 = vrot.slane %v5095, 6
      %v5663 = vor.u32 %v5661, %v5662
      %v5664 = vsel %vm829, %v5660, %v5663
      %v5665 = vrot.slane %v5663, 4
      %v5667 = vshrl.u32 %v5438, 16
      %v5669 = vrot.slane %v5667, 5
      %v5670 = vshll.u32 %v5438, 16
      %v5672 = vrot.slane %v5670, 6
      %v5673 = vor.u32 %v5669, %v5672
      %v5674 = vsel %vm829, %v5665, %v5673
      %v5676 = vshrl.u32 %v5263, 16
      %v5678 = vrot.slane %v5676, 5
      %v5679 = vshll.u32 %v5263, 16
      %v5681 = vrot.slane %v5679, 6
      %v5682 = vor.u32 %v5678, %v5681
      %v5683 = vrot.slane %v5682, 4
      %v5684 = vrot.slane %v5123, 5
      %v5685 = vrot.slane %v5119, 6
      %v5686 = vor.u32 %v5684, %v5685
      %v5687 = vsel %vm829, %v5683, %v5686
      %v5688 = vrot.slane %v5686, 4
      %v5690 = vshrl.u32 %v5439, 16
      %v5692 = vrot.slane %v5690, 5
      %v5693 = vshll.u32 %v5439, 16
      %v5695 = vrot.slane %v5693, 6
      %v5696 = vor.u32 %v5692, %v5695
      %v5697 = vsel %vm829, %v5688, %v5696
      %v5699 = vshrl.u32 %v5264, 16
      %v5701 = vrot.slane %v5699, 5
      %v5702 = vshll.u32 %v5264, 16
      %v5704 = vrot.slane %v5702, 6
      %v5705 = vor.u32 %v5701, %v5704
      %v5706 = vrot.slane %v5705, 4
      %v5707 = vrot.slane %v5147, 5
      %v5708 = vrot.slane %v5143, 6
      %v5709 = vor.u32 %v5707, %v5708
      %v5710 = vsel %vm829, %v5706, %v5709
      %v5711 = vrot.slane %v5709, 4
      %v5713 = vshrl.u32 %v5440, 16
      %v5715 = vrot.slane %v5713, 5
      %v5716 = vshll.u32 %v5440, 16
      %v5718 = vrot.slane %v5716, 6
      %v5719 = vor.u32 %v5715, %v5718
      %v5720 = vsel %vm829, %v5711, %v5719
      %v5722 = vshrl.u32 %v5265, 16
      %v5724 = vrot.slane %v5722, 5
      %v5725 = vshll.u32 %v5265, 16
      %v5727 = vrot.slane %v5725, 6
      %v5728 = vor.u32 %v5724, %v5727
      %v5729 = vrot.slane %v5728, 4
      %v5730 = vrot.slane %v5171, 5
      %v5731 = vrot.slane %v5167, 6
      %v5732 = vor.u32 %v5730, %v5731
      %v5733 = vsel %vm829, %v5729, %v5732
      %v5734 = vrot.slane %v5732, 4
      %v5736 = vshrl.u32 %v5441, 16
      %v5738 = vrot.slane %v5736, 5
      %v5739 = vshll.u32 %v5441, 16
      %v5741 = vrot.slane %v5739, 6
      %v5742 = vor.u32 %v5738, %v5741
      %v5743 = vsel %vm829, %v5734, %v5742
      %v5745 = vshrl.u32 %v5266, 16
      %v5747 = vrot.slane %v5745, 5
      %v5748 = vshll.u32 %v5266, 16
      %v5750 = vrot.slane %v5748, 6
      %v5751 = vor.u32 %v5747, %v5750
      %v5752 = vrot.slane %v5751, 4
      %v5753 = vrot.slane %v5195, 5
      %v5754 = vrot.slane %v5191, 6
      %v5755 = vor.u32 %v5753, %v5754
      %v5756 = vsel %vm829, %v5752, %v5755
      %v5757 = vrot.slane %v5755, 4
      %v5759 = vshrl.u32 %v5442, 16
      %v5761 = vrot.slane %v5759, 5
      %v5762 = vshll.u32 %v5442, 16
      %v5764 = vrot.slane %v5762, 6
      %v5765 = vor.u32 %v5761, %v5764
      %v5766 = vsel %vm829, %v5757, %v5765
      %v5768 = vshrl.u32 %v5267, 16
      %v5770 = vrot.slane %v5768, 5
      %v5771 = vshll.u32 %v5267, 16
      %v5773 = vrot.slane %v5771, 6
      %v5774 = vor.u32 %v5770, %v5773
      %v5775 = vrot.slane %v5774, 4
      %v5776 = vrot.slane %v5219, 5
      %v5777 = vrot.slane %v5215, 6
      %v5778 = vor.u32 %v5776, %v5777
      %v5779 = vsel %vm829, %v5775, %v5778
      %v5780 = vrot.slane %v5778, 4
      %v5782 = vshrl.u32 %v5443, 16
      %v5784 = vrot.slane %v5782, 5
      %v5785 = vshll.u32 %v5443, 16
      %v5787 = vrot.slane %v5785, 6
      %v5788 = vor.u32 %v5784, %v5787
      %v5789 = vsel %vm829, %v5780, %v5788
      %v5791 = vshrl.u32 %v5268, 16
      %v5793 = vrot.slane %v5791, 5
      %v5794 = vshll.u32 %v5268, 16
      %v5796 = vrot.slane %v5794, 6
      %v5797 = vor.u32 %v5793, %v5796
      %v5798 = vrot.slane %v5797, 4
      %v5799 = vrot.slane %v5243, 5
      %v5800 = vrot.slane %v5239, 6
      %v5801 = vor.u32 %v5799, %v5800
      %v5802 = vsel %vm829, %v5798, %v5801
      %v5803 = vrot.slane %v5801, 4
      %v5805 = vshrl.u32 %v5444, 16
      %v5807 = vrot.slane %v5805, 5
      %v5808 = vshll.u32 %v5444, 16
      %v5810 = vrot.slane %v5808, 6
      %v5811 = vor.u32 %v5807, %v5810
      %v5812 = vsel %vm829, %v5803, %v5811
      %v5813 = vld [vmem:[%s4820] sm:$0xc]
      %v5814 = vld [vmem:[%s4820 + $0xc] sm:$0xc]
      %v5815 = vld [vmem:[%s4820 + $0x18] sm:$0xc]
      %v5816 = vld [vmem:[%s4820 + $0x24] sm:$0xc]
      %v5817 = vld [vmem:[%s4820 + $0x30] sm:$0xc]
      %v5818 = vld [vmem:[%s4820 + $0x3c] sm:$0xc]
      %v5819 = vld [vmem:[%s4820 + $0x48] sm:$0xc]
      %v5820 = vld [vmem:[%s4820 + $0x54] sm:$0xc]
      %v5821 = vld [vmem:[%s4820 + $0x60] sm:$0xc]
      %v5822 = vld [vmem:[%s4820 + $0x6c] sm:$0xc]
      %v5823 = vld [vmem:[%s4820 + $0x78] sm:$0xc]
      %v5824 = vld [vmem:[%s4820 + $0x84] sm:$0xc]
      %v5825 = vld [vmem:[%s4820 + $0x90] sm:$0xc]
      %v5826 = vld [vmem:[%s4820 + $0x9c] sm:$0xc]
      %v5827 = vld [vmem:[%s4820 + $0xa8] sm:$0xc]
      %v5828 = vld [vmem:[%s4820 + $0xb4] sm:$0xc]
      %v5861 = vrot.slane %v5813, 6
      %v5862 = vrot.slane %v5861, 4
      %v5863 = vrot.slane %v4822, 6
      %v5864 = vsel %vm1248, %v5862, %v5863
      %v5865 = vrot.slane %v5863, 4
      %v5866 = vrot.slane %v5429, 6
      %v5867 = vsel %vm1248, %v5865, %v5866
      %v5868 = vrot.slane %v5814, 6
      %v5869 = vrot.slane %v5868, 4
      %v5870 = vrot.slane %v4824, 6
      %v5871 = vsel %vm1248, %v5869, %v5870
      %v5872 = vrot.slane %v5870, 4
      %v5873 = vrot.slane %v5430, 6
      %v5874 = vsel %vm1248, %v5872, %v5873
      %v5875 = vrot.slane %v5815, 6
      %v5876 = vrot.slane %v5875, 4
      %v5877 = vrot.slane %v4826, 6
      %v5878 = vsel %vm1248, %v5876, %v5877
      %v5879 = vrot.slane %v5877, 4
      %v5880 = vrot.slane %v5431, 6
      %v5881 = vsel %vm1248, %v5879, %v5880
      %v5882 = vrot.slane %v5816, 6
      %v5883 = vrot.slane %v5882, 4
      %v5884 = vrot.slane %v4828, 6
      %v5885 = vsel %vm1248, %v5883, %v5884
      %v5886 = vrot.slane %v5884, 4
      %v5887 = vrot.slane %v5432, 6
      %v5888 = vsel %vm1248, %v5886, %v5887
      %v5889 = vrot.slane %v5817, 6
      %v5890 = vrot.slane %v5889, 4
      %v5891 = vrot.slane %v4830, 6
      %v5892 = vsel %vm1248, %v5890, %v5891
      %v5893 = vrot.slane %v5891, 4
      %v5894 = vrot.slane %v5433, 6
      %v5895 = vsel %vm1248, %v5893, %v5894
      %v5896 = vrot.slane %v5818, 6
      %v5897 = vrot.slane %v5896, 4
      %v5898 = vrot.slane %v4832, 6
      %v5899 = vsel %vm1248, %v5897, %v5898
      %v5900 = vrot.slane %v5898, 4
      %v5901 = vrot.slane %v5434, 6
      %v5902 = vsel %vm1248, %v5900, %v5901
      %v5903 = vrot.slane %v5819, 6
      %v5904 = vrot.slane %v5903, 4
      %v5905 = vrot.slane %v4834, 6
      %v5906 = vsel %vm1248, %v5904, %v5905
      %v5907 = vrot.slane %v5905, 4
      %v5908 = vrot.slane %v5435, 6
      %v5909 = vsel %vm1248, %v5907, %v5908
      %v5910 = vrot.slane %v5820, 6
      %v5911 = vrot.slane %v5910, 4
      %v5912 = vrot.slane %v4836, 6
      %v5913 = vsel %vm1248, %v5911, %v5912
      %v5914 = vrot.slane %v5912, 4
      %v5915 = vrot.slane %v5436, 6
      %v5916 = vsel %vm1248, %v5914, %v5915
      %v5917 = vrot.slane %v5821, 6
      %v5918 = vrot.slane %v5917, 4
      %v5919 = vrot.slane %v4838, 6
      %v5920 = vsel %vm1248, %v5918, %v5919
      %v5921 = vrot.slane %v5919, 4
      %v5922 = vrot.slane %v5437, 6
      %v5923 = vsel %vm1248, %v5921, %v5922
      %v5924 = vrot.slane %v5822, 6
      %v5925 = vrot.slane %v5924, 4
      %v5926 = vrot.slane %v4840, 6
      %v5927 = vsel %vm1248, %v5925, %v5926
      %v5928 = vrot.slane %v5926, 4
      %v5929 = vrot.slane %v5438, 6
      %v5930 = vsel %vm1248, %v5928, %v5929
      %v5931 = vrot.slane %v5823, 6
      %v5932 = vrot.slane %v5931, 4
      %v5933 = vrot.slane %v4842, 6
      %v5934 = vsel %vm1248, %v5932, %v5933
      %v5935 = vrot.slane %v5933, 4
      %v5936 = vrot.slane %v5439, 6
      %v5937 = vsel %vm1248, %v5935, %v5936
      %v5938 = vrot.slane %v5824, 6
      %v5939 = vrot.slane %v5938, 4
      %v5940 = vrot.slane %v4844, 6
      %v5941 = vsel %vm1248, %v5939, %v5940
      %v5942 = vrot.slane %v5940, 4
      %v5943 = vrot.slane %v5440, 6
      %v5944 = vsel %vm1248, %v5942, %v5943
      %v5945 = vrot.slane %v5825, 6
      %v5946 = vrot.slane %v5945, 4
      %v5947 = vrot.slane %v4846, 6
      %v5948 = vsel %vm1248, %v5946, %v5947
      %v5949 = vrot.slane %v5947, 4
      %v5950 = vrot.slane %v5441, 6
      %v5951 = vsel %vm1248, %v5949, %v5950
      %v5952 = vrot.slane %v5826, 6
      %v5953 = vrot.slane %v5952, 4
      %v5954 = vrot.slane %v4848, 6
      %v5955 = vsel %vm1248, %v5953, %v5954
      %v5956 = vrot.slane %v5954, 4
      %v5957 = vrot.slane %v5442, 6
      %v5958 = vsel %vm1248, %v5956, %v5957
      %v5959 = vrot.slane %v5827, 6
      %v5960 = vrot.slane %v5959, 4
      %v5961 = vrot.slane %v4850, 6
      %v5962 = vsel %vm1248, %v5960, %v5961
      %v5963 = vrot.slane %v5961, 4
      %v5964 = vrot.slane %v5443, 6
      %v5965 = vsel %vm1248, %v5963, %v5964
      %v5966 = vrot.slane %v5828, 6
      %v5967 = vrot.slane %v5966, 4
      %v5968 = vrot.slane %v4852, 6
      %v5969 = vsel %vm1248, %v5967, %v5968
      %v5970 = vrot.slane %v5968, 4
      %v5971 = vrot.slane %v5444, 6
      %v5972 = vsel %vm1248, %v5970, %v5971
      %v5989 = vunpack.c.l.b16 %v197
      %v5990 = vunpack.c.l.b16 %v198
      %v5991 = vunpack.c.l.b16 %v199
      %v5992 = vunpack.c.l.b16 %v200
      %v5993 = vunpack.c.l.b16 %v201
      %v5994 = vunpack.c.l.b16 %v202
      %v5995 = vunpack.c.l.b16 %v203
      %v5996 = vunpack.c.l.b16 %v204
      %v5997 = vunpack.c.l.b16 %v205
      %v5998 = vunpack.c.l.b16 %v206
      %v5999 = vunpack.c.l.b16 %v207
      %v6000 = vunpack.c.l.b16 %v208
      %v6001 = vunpack.c.l.b16 %v209
      %v6002 = vunpack.c.l.b16 %v210
      %v6003 = vunpack.c.l.b16 %v211
      %v6004 = vunpack.c.l.b16 %v212
      %v6005 = vunpack.c.l.b16 %v213
      %v6006 = vunpack.c.l.b16 %v214
      %v6007 = vunpack.c.l.b16 %v215
      %v6008 = vunpack.c.l.b16 %v216
      %v6009 = vunpack.c.l.b16 %v217
      %v6010 = vunpack.c.l.b16 %v218
      %v6011 = vunpack.c.l.b16 %v219
      %v6012 = vunpack.c.l.b16 %v220
      %v6013 = vunpack.c.l.b16 %v221
      %v6014 = vunpack.c.l.b16 %v222
      %v6015 = vunpack.c.l.b16 %v223
      %v6016 = vunpack.c.l.b16 %v224
      %v6017 = vunpack.c.l.b16 %v225
      %v6018 = vunpack.c.l.b16 %v226
      %v6019 = vunpack.c.l.b16 %v227
      %v6020 = vunpack.c.l.b16 %v228
      %v6021 = vpack.c.b16 %v5990, %v5989
      %v6022 = vpack.c.b16 %v5992, %v5991
      %v6023 = vpack.c.b16 %v5994, %v5993
      %v6024 = vpack.c.b16 %v5996, %v5995
      %v6025 = vpack.c.b16 %v5998, %v5997
      %v6026 = vpack.c.b16 %v6000, %v5999
      %v6027 = vpack.c.b16 %v6002, %v6001
      %v6028 = vpack.c.b16 %v6004, %v6003
      %v6029 = vpack.c.b16 %v6006, %v6005
      %v6030 = vpack.c.b16 %v6008, %v6007
      %v6031 = vpack.c.b16 %v6010, %v6009
      %v6032 = vpack.c.b16 %v6012, %v6011
      %v6033 = vpack.c.b16 %v6014, %v6013
      %v6034 = vpack.c.b16 %v6016, %v6015
      %v6035 = vpack.c.b16 %v6018, %v6017
      %v6036 = vpack.c.b16 %v6020, %v6019
      %v6037 = vunpack.c.l.b16 %v261
      %v6038 = vunpack.c.l.b16 %v271
      %v6039 = vunpack.c.l.b16 %v285
      %v6040 = vunpack.c.l.b16 %v295
      %v6041 = vunpack.c.l.b16 %v309
      %v6042 = vunpack.c.l.b16 %v319
      %v6043 = vunpack.c.l.b16 %v333
      %v6044 = vunpack.c.l.b16 %v343
      %v6045 = vunpack.c.l.b16 %v357
      %v6046 = vunpack.c.l.b16 %v367
      %v6047 = vunpack.c.l.b16 %v381
      %v6048 = vunpack.c.l.b16 %v391
      %v6049 = vunpack.c.l.b16 %v405
      %v6050 = vunpack.c.l.b16 %v415
      %v6051 = vunpack.c.l.b16 %v429
      %v6052 = vunpack.c.l.b16 %v439
      %v6053 = vunpack.c.l.b16 %v453
      %v6054 = vunpack.c.l.b16 %v463
      %v6055 = vunpack.c.l.b16 %v477
      %v6056 = vunpack.c.l.b16 %v487
      %v6057 = vunpack.c.l.b16 %v501
      %v6058 = vunpack.c.l.b16 %v511
      %v6059 = vunpack.c.l.b16 %v525
      %v6060 = vunpack.c.l.b16 %v535
      %v6061 = vunpack.c.l.b16 %v549
      %v6062 = vunpack.c.l.b16 %v559
      %v6063 = vunpack.c.l.b16 %v573
      %v6064 = vunpack.c.l.b16 %v583
      %v6065 = vunpack.c.l.b16 %v597
      %v6066 = vunpack.c.l.b16 %v607
      %v6067 = vunpack.c.l.b16 %v621
      %v6068 = vunpack.c.l.b16 %v631
      %v6069 = vpack.c.b16 %v6038, %v6037
      %v6070 = vpack.c.b16 %v6040, %v6039
      %v6071 = vpack.c.b16 %v6042, %v6041
      %v6072 = vpack.c.b16 %v6044, %v6043
      %v6073 = vpack.c.b16 %v6046, %v6045
      %v6074 = vpack.c.b16 %v6048, %v6047
      %v6075 = vpack.c.b16 %v6050, %v6049
      %v6076 = vpack.c.b16 %v6052, %v6051
      %v6077 = vpack.c.b16 %v6054, %v6053
      %v6078 = vpack.c.b16 %v6056, %v6055
      %v6079 = vpack.c.b16 %v6058, %v6057
      %v6080 = vpack.c.b16 %v6060, %v6059
      %v6081 = vpack.c.b16 %v6062, %v6061
      %v6082 = vpack.c.b16 %v6064, %v6063
      %v6083 = vpack.c.b16 %v6066, %v6065
      %v6084 = vpack.c.b16 %v6068, %v6067
      %6085 = vrot.lane.b32.xlu0 %v6069, 8
      %v6086 = vpop.permute.xlu0 %6085
      %6087 = vrot.lane.b32.xlu0 %v6070, 8
      %v6088 = vpop.permute.xlu0 %6087
      %6089 = vrot.lane.b32.xlu0 %v6071, 8
      %v6090 = vpop.permute.xlu0 %6089
      %6091 = vrot.lane.b32.xlu0 %v6072, 8
      %v6092 = vpop.permute.xlu0 %6091
      %6093 = vrot.lane.b32.xlu0 %v6073, 8
      %v6094 = vpop.permute.xlu0 %6093
      %6095 = vrot.lane.b32.xlu0 %v6074, 8
      %v6096 = vpop.permute.xlu0 %6095
      %6097 = vrot.lane.b32.xlu0 %v6075, 8
      %v6098 = vpop.permute.xlu0 %6097
      %6099 = vrot.lane.b32.xlu0 %v6076, 8
      %v6100 = vpop.permute.xlu0 %6099
      %6101 = vrot.lane.b32.xlu0 %v6077, 8
      %v6102 = vpop.permute.xlu0 %6101
      %6103 = vrot.lane.b32.xlu0 %v6078, 8
      %v6104 = vpop.permute.xlu0 %6103
      %6105 = vrot.lane.b32.xlu0 %v6079, 8
      %v6106 = vpop.permute.xlu0 %6105
      %6107 = vrot.lane.b32.xlu0 %v6080, 8
      %v6108 = vpop.permute.xlu0 %6107
      %6109 = vrot.lane.b32.xlu0 %v6081, 8
      %v6110 = vpop.permute.xlu0 %6109
      %6111 = vrot.lane.b32.xlu0 %v6082, 8
      %v6112 = vpop.permute.xlu0 %6111
      %6113 = vrot.lane.b32.xlu0 %v6083, 8
      %v6114 = vpop.permute.xlu0 %6113
      %6115 = vrot.lane.b32.xlu0 %v6084, 8
      %v6116 = vpop.permute.xlu0 %6115
      %v6117 = vunpack.c.l.b16 %v702
      %v6118 = vunpack.c.l.b16 %v705
      %v6119 = vunpack.c.l.b16 %v709
      %v6120 = vunpack.c.l.b16 %v712
      %v6121 = vunpack.c.l.b16 %v716
      %v6122 = vunpack.c.l.b16 %v719
      %v6123 = vunpack.c.l.b16 %v723
      %v6124 = vunpack.c.l.b16 %v726
      %v6125 = vunpack.c.l.b16 %v730
      %v6126 = vunpack.c.l.b16 %v733
      %v6127 = vunpack.c.l.b16 %v737
      %v6128 = vunpack.c.l.b16 %v740
      %v6129 = vunpack.c.l.b16 %v744
      %v6130 = vunpack.c.l.b16 %v747
      %v6131 = vunpack.c.l.b16 %v751
      %v6132 = vunpack.c.l.b16 %v754
      %v6133 = vunpack.c.l.b16 %v758
      %v6134 = vunpack.c.l.b16 %v761
      %v6135 = vunpack.c.l.b16 %v765
      %v6136 = vunpack.c.l.b16 %v768
      %v6137 = vunpack.c.l.b16 %v772
      %v6138 = vunpack.c.l.b16 %v775
      %v6139 = vunpack.c.l.b16 %v779
      %v6140 = vunpack.c.l.b16 %v782
      %v6141 = vunpack.c.l.b16 %v786
      %v6142 = vunpack.c.l.b16 %v789
      %v6143 = vunpack.c.l.b16 %v793
      %v6144 = vunpack.c.l.b16 %v796
      %v6145 = vunpack.c.l.b16 %v800
      %v6146 = vunpack.c.l.b16 %v803
      %v6147 = vunpack.c.l.b16 %v807
      %v6148 = vunpack.c.l.b16 %v810
      %v6149 = vpack.c.b16 %v6118, %v6117
      %v6150 = vpack.c.b16 %v6120, %v6119
      %v6151 = vpack.c.b16 %v6122, %v6121
      %v6152 = vpack.c.b16 %v6124, %v6123
      %v6153 = vpack.c.b16 %v6126, %v6125
      %v6154 = vpack.c.b16 %v6128, %v6127
      %v6155 = vpack.c.b16 %v6130, %v6129
      %v6156 = vpack.c.b16 %v6132, %v6131
      %v6157 = vpack.c.b16 %v6134, %v6133
      %v6158 = vpack.c.b16 %v6136, %v6135
      %v6159 = vpack.c.b16 %v6138, %v6137
      %v6160 = vpack.c.b16 %v6140, %v6139
      %v6161 = vpack.c.b16 %v6142, %v6141
      %v6162 = vpack.c.b16 %v6144, %v6143
      %v6163 = vpack.c.b16 %v6146, %v6145
      %v6164 = vpack.c.b16 %v6148, %v6147
      %6165 = vrot.lane.b32.xlu0 %v6149, 16
      %v6166 = vpop.permute.xlu0 %6165
      %6167 = vrot.lane.b32.xlu0 %v6150, 16
      %v6168 = vpop.permute.xlu0 %6167
      %6169 = vrot.lane.b32.xlu0 %v6151, 16
      %v6170 = vpop.permute.xlu0 %6169
      %6171 = vrot.lane.b32.xlu0 %v6152, 16
      %v6172 = vpop.permute.xlu0 %6171
      %6173 = vrot.lane.b32.xlu0 %v6153, 16
      %v6174 = vpop.permute.xlu0 %6173
      %6175 = vrot.lane.b32.xlu0 %v6154, 16
      %v6176 = vpop.permute.xlu0 %6175
      %6177 = vrot.lane.b32.xlu0 %v6155, 16
      %v6178 = vpop.permute.xlu0 %6177
      %6179 = vrot.lane.b32.xlu0 %v6156, 16
      %v6180 = vpop.permute.xlu0 %6179
      %6181 = vrot.lane.b32.xlu0 %v6157, 16
      %v6182 = vpop.permute.xlu0 %6181
      %6183 = vrot.lane.b32.xlu0 %v6158, 16
      %v6184 = vpop.permute.xlu0 %6183
      %6185 = vrot.lane.b32.xlu0 %v6159, 16
      %v6186 = vpop.permute.xlu0 %6185
      %6187 = vrot.lane.b32.xlu0 %v6160, 16
      %v6188 = vpop.permute.xlu0 %6187
      %6189 = vrot.lane.b32.xlu0 %v6161, 16
      %v6190 = vpop.permute.xlu0 %6189
      %6191 = vrot.lane.b32.xlu0 %v6162, 16
      %v6192 = vpop.permute.xlu0 %6191
      %6193 = vrot.lane.b32.xlu0 %v6163, 16
      %v6194 = vpop.permute.xlu0 %6193
      %6195 = vrot.lane.b32.xlu0 %v6164, 16
      %v6196 = vpop.permute.xlu0 %6195
      %v6197 = vunpack.c.l.b16 %v842
      %v6198 = vunpack.c.l.b16 %v852
      %v6199 = vunpack.c.l.b16 %v865
      %v6200 = vunpack.c.l.b16 %v875
      %v6201 = vunpack.c.l.b16 %v888
      %v6202 = vunpack.c.l.b16 %v898
      %v6203 = vunpack.c.l.b16 %v911
      %v6204 = vunpack.c.l.b16 %v921
      %v6205 = vunpack.c.l.b16 %v934
      %v6206 = vunpack.c.l.b16 %v944
      %v6207 = vunpack.c.l.b16 %v957
      %v6208 = vunpack.c.l.b16 %v967
      %v6209 = vunpack.c.l.b16 %v980
      %v6210 = vunpack.c.l.b16 %v990
      %v6211 = vunpack.c.l.b16 %v1003
      %v6212 = vunpack.c.l.b16 %v1013
      %v6213 = vunpack.c.l.b16 %v1026
      %v6214 = vunpack.c.l.b16 %v1036
      %v6215 = vunpack.c.l.b16 %v1049
      %v6216 = vunpack.c.l.b16 %v1059
      %v6217 = vunpack.c.l.b16 %v1072
      %v6218 = vunpack.c.l.b16 %v1082
      %v6219 = vunpack.c.l.b16 %v1095
      %v6220 = vunpack.c.l.b16 %v1105
      %v6221 = vunpack.c.l.b16 %v1118
      %v6222 = vunpack.c.l.b16 %v1128
      %v6223 = vunpack.c.l.b16 %v1141
      %v6224 = vunpack.c.l.b16 %v1151
      %v6225 = vunpack.c.l.b16 %v1164
      %v6226 = vunpack.c.l.b16 %v1174
      %v6227 = vunpack.c.l.b16 %v1187
      %v6228 = vunpack.c.l.b16 %v1197
      %v6229 = vpack.c.b16 %v6198, %v6197
      %v6230 = vpack.c.b16 %v6200, %v6199
      %v6231 = vpack.c.b16 %v6202, %v6201
      %v6232 = vpack.c.b16 %v6204, %v6203
      %v6233 = vpack.c.b16 %v6206, %v6205
      %v6234 = vpack.c.b16 %v6208, %v6207
      %v6235 = vpack.c.b16 %v6210, %v6209
      %v6236 = vpack.c.b16 %v6212, %v6211
      %v6237 = vpack.c.b16 %v6214, %v6213
      %v6238 = vpack.c.b16 %v6216, %v6215
      %v6239 = vpack.c.b16 %v6218, %v6217
      %v6240 = vpack.c.b16 %v6220, %v6219
      %v6241 = vpack.c.b16 %v6222, %v6221
      %v6242 = vpack.c.b16 %v6224, %v6223
      %v6243 = vpack.c.b16 %v6226, %v6225
      %v6244 = vpack.c.b16 %v6228, %v6227
      %6245 = vrot.lane.b32.xlu0 %v6229, 24
      %v6246 = vpop.permute.xlu0 %6245
      %6247 = vrot.lane.b32.xlu0 %v6230, 24
      %v6248 = vpop.permute.xlu0 %6247
      %6249 = vrot.lane.b32.xlu0 %v6231, 24
      %v6250 = vpop.permute.xlu0 %6249
      %6251 = vrot.lane.b32.xlu0 %v6232, 24
      %v6252 = vpop.permute.xlu0 %6251
      %6253 = vrot.lane.b32.xlu0 %v6233, 24
      %v6254 = vpop.permute.xlu0 %6253
      %6255 = vrot.lane.b32.xlu0 %v6234, 24
      %v6256 = vpop.permute.xlu0 %6255
      %6257 = vrot.lane.b32.xlu0 %v6235, 24
      %v6258 = vpop.permute.xlu0 %6257
      %6259 = vrot.lane.b32.xlu0 %v6236, 24
      %v6260 = vpop.permute.xlu0 %6259
      %6261 = vrot.lane.b32.xlu0 %v6237, 24
      %v6262 = vpop.permute.xlu0 %6261
      %6263 = vrot.lane.b32.xlu0 %v6238, 24
      %v6264 = vpop.permute.xlu0 %6263
      %6265 = vrot.lane.b32.xlu0 %v6239, 24
      %v6266 = vpop.permute.xlu0 %6265
      %6267 = vrot.lane.b32.xlu0 %v6240, 24
      %v6268 = vpop.permute.xlu0 %6267
      %6269 = vrot.lane.b32.xlu0 %v6241, 24
      %v6270 = vpop.permute.xlu0 %6269
      %6271 = vrot.lane.b32.xlu0 %v6242, 24
      %v6272 = vpop.permute.xlu0 %6271
      %6273 = vrot.lane.b32.xlu0 %v6243, 24
      %v6274 = vpop.permute.xlu0 %6273
      %6275 = vrot.lane.b32.xlu0 %v6244, 24
      %v6276 = vpop.permute.xlu0 %6275
      %v6277 = vunpack.c.l.b16 %v1252
      %v6278 = vunpack.c.l.b16 %v1255
      %v6279 = vunpack.c.l.b16 %v1259
      %v6280 = vunpack.c.l.b16 %v1262
      %v6281 = vunpack.c.l.b16 %v1266
      %v6282 = vunpack.c.l.b16 %v1269
      %v6283 = vunpack.c.l.b16 %v1273
      %v6284 = vunpack.c.l.b16 %v1276
      %v6285 = vunpack.c.l.b16 %v1280
      %v6286 = vunpack.c.l.b16 %v1283
      %v6287 = vunpack.c.l.b16 %v1287
      %v6288 = vunpack.c.l.b16 %v1290
      %v6289 = vunpack.c.l.b16 %v1294
      %v6290 = vunpack.c.l.b16 %v1297
      %v6291 = vunpack.c.l.b16 %v1301
      %v6292 = vunpack.c.l.b16 %v1304
      %v6293 = vunpack.c.l.b16 %v1308
      %v6294 = vunpack.c.l.b16 %v1311
      %v6295 = vunpack.c.l.b16 %v1315
      %v6296 = vunpack.c.l.b16 %v1318
      %v6297 = vunpack.c.l.b16 %v1322
      %v6298 = vunpack.c.l.b16 %v1325
      %v6299 = vunpack.c.l.b16 %v1329
      %v6300 = vunpack.c.l.b16 %v1332
      %v6301 = vunpack.c.l.b16 %v1336
      %v6302 = vunpack.c.l.b16 %v1339
      %v6303 = vunpack.c.l.b16 %v1343
      %v6304 = vunpack.c.l.b16 %v1346
      %v6305 = vunpack.c.l.b16 %v1350
      %v6306 = vunpack.c.l.b16 %v1353
      %v6307 = vunpack.c.l.b16 %v1357
      %v6308 = vunpack.c.l.b16 %v1360
      %v6309 = vpack.c.b16 %v6278, %v6277
      %v6310 = vpack.c.b16 %v6280, %v6279
      %v6311 = vpack.c.b16 %v6282, %v6281
      %v6312 = vpack.c.b16 %v6284, %v6283
      %v6313 = vpack.c.b16 %v6286, %v6285
      %v6314 = vpack.c.b16 %v6288, %v6287
      %v6315 = vpack.c.b16 %v6290, %v6289
      %v6316 = vpack.c.b16 %v6292, %v6291
      %v6317 = vpack.c.b16 %v6294, %v6293
      %v6318 = vpack.c.b16 %v6296, %v6295
      %v6319 = vpack.c.b16 %v6298, %v6297
      %v6320 = vpack.c.b16 %v6300, %v6299
      %v6321 = vpack.c.b16 %v6302, %v6301
      %v6322 = vpack.c.b16 %v6304, %v6303
      %v6323 = vpack.c.b16 %v6306, %v6305
      %v6324 = vpack.c.b16 %v6308, %v6307
      %6325 = vrot.lane.b32.xlu0 %v6309, 32
      %v6326 = vpop.permute.xlu0 %6325
      %6327 = vrot.lane.b32.xlu0 %v6310, 32
      %v6328 = vpop.permute.xlu0 %6327
      %6329 = vrot.lane.b32.xlu0 %v6311, 32
      %v6330 = vpop.permute.xlu0 %6329
      %6331 = vrot.lane.b32.xlu0 %v6312, 32
      %v6332 = vpop.permute.xlu0 %6331
      %6333 = vrot.lane.b32.xlu0 %v6313, 32
      %v6334 = vpop.permute.xlu0 %6333
      %6335 = vrot.lane.b32.xlu0 %v6314, 32
      %v6336 = vpop.permute.xlu0 %6335
      %6337 = vrot.lane.b32.xlu0 %v6315, 32
      %v6338 = vpop.permute.xlu0 %6337
      %6339 = vrot.lane.b32.xlu0 %v6316, 32
      %v6340 = vpop.permute.xlu0 %6339
      %6341 = vrot.lane.b32.xlu0 %v6317, 32
      %v6342 = vpop.permute.xlu0 %6341
      %6343 = vrot.lane.b32.xlu0 %v6318, 32
      %v6344 = vpop.permute.xlu0 %6343
      %6345 = vrot.lane.b32.xlu0 %v6319, 32
      %v6346 = vpop.permute.xlu0 %6345
      %6347 = vrot.lane.b32.xlu0 %v6320, 32
      %v6348 = vpop.permute.xlu0 %6347
      %6349 = vrot.lane.b32.xlu0 %v6321, 32
      %v6350 = vpop.permute.xlu0 %6349
      %6351 = vrot.lane.b32.xlu0 %v6322, 32
      %v6352 = vpop.permute.xlu0 %6351
      %6353 = vrot.lane.b32.xlu0 %v6323, 32
      %v6354 = vpop.permute.xlu0 %6353
      %6355 = vrot.lane.b32.xlu0 %v6324, 32
      %v6356 = vpop.permute.xlu0 %6355
      %v6373 = vunpack.c.l.b16 %v1362
      %v6374 = vunpack.c.l.b16 %v1363
      %v6375 = vunpack.c.l.b16 %v1364
      %v6376 = vunpack.c.l.b16 %v1365
      %v6377 = vunpack.c.l.b16 %v1366
      %v6378 = vunpack.c.l.b16 %v1367
      %v6379 = vunpack.c.l.b16 %v1368
      %v6380 = vunpack.c.l.b16 %v1369
      %v6381 = vunpack.c.l.b16 %v1370
      %v6382 = vunpack.c.l.b16 %v1371
      %v6383 = vunpack.c.l.b16 %v1372
      %v6384 = vunpack.c.l.b16 %v1373
      %v6385 = vunpack.c.l.b16 %v1374
      %v6386 = vunpack.c.l.b16 %v1375
      %v6387 = vunpack.c.l.b16 %v1376
      %v6388 = vunpack.c.l.b16 %v1377
      %v6389 = vunpack.c.l.b16 %v1378
      %v6390 = vunpack.c.l.b16 %v1379
      %v6391 = vunpack.c.l.b16 %v1380
      %v6392 = vunpack.c.l.b16 %v1381
      %v6393 = vunpack.c.l.b16 %v1382
      %v6394 = vunpack.c.l.b16 %v1383
      %v6395 = vunpack.c.l.b16 %v1384
      %v6396 = vunpack.c.l.b16 %v1385
      %v6397 = vunpack.c.l.b16 %v1386
      %v6398 = vunpack.c.l.b16 %v1387
      %v6399 = vunpack.c.l.b16 %v1388
      %v6400 = vunpack.c.l.b16 %v1389
      %v6401 = vunpack.c.l.b16 %v1390
      %v6402 = vunpack.c.l.b16 %v1391
      %v6403 = vunpack.c.l.b16 %v1392
      %v6404 = vunpack.c.l.b16 %v1393
      %v6405 = vpack.c.b16 %v6374, %v6373
      %v6406 = vpack.c.b16 %v6376, %v6375
      %v6407 = vpack.c.b16 %v6378, %v6377
      %v6408 = vpack.c.b16 %v6380, %v6379
      %v6409 = vpack.c.b16 %v6382, %v6381
      %v6410 = vpack.c.b16 %v6384, %v6383
      %v6411 = vpack.c.b16 %v6386, %v6385
      %v6412 = vpack.c.b16 %v6388, %v6387
      %v6413 = vpack.c.b16 %v6390, %v6389
      %v6414 = vpack.c.b16 %v6392, %v6391
      %v6415 = vpack.c.b16 %v6394, %v6393
      %v6416 = vpack.c.b16 %v6396, %v6395
      %v6417 = vpack.c.b16 %v6398, %v6397
      %v6418 = vpack.c.b16 %v6400, %v6399
      %v6419 = vpack.c.b16 %v6402, %v6401
      %v6420 = vpack.c.b16 %v6404, %v6403
      %6421 = vrot.lane.b32.xlu0 %v6405, 40
      %v6422 = vpop.permute.xlu0 %6421
      %6423 = vrot.lane.b32.xlu0 %v6406, 40
      %v6424 = vpop.permute.xlu0 %6423
      %6425 = vrot.lane.b32.xlu0 %v6407, 40
      %v6426 = vpop.permute.xlu0 %6425
      %6427 = vrot.lane.b32.xlu0 %v6408, 40
      %v6428 = vpop.permute.xlu0 %6427
      %6429 = vrot.lane.b32.xlu0 %v6409, 40
      %v6430 = vpop.permute.xlu0 %6429
      %6431 = vrot.lane.b32.xlu0 %v6410, 40
      %v6432 = vpop.permute.xlu0 %6431
      %6433 = vrot.lane.b32.xlu0 %v6411, 40
      %v6434 = vpop.permute.xlu0 %6433
      %6435 = vrot.lane.b32.xlu0 %v6412, 40
      %v6436 = vpop.permute.xlu0 %6435
      %6437 = vrot.lane.b32.xlu0 %v6413, 40
      %v6438 = vpop.permute.xlu0 %6437
      %6439 = vrot.lane.b32.xlu0 %v6414, 40
      %v6440 = vpop.permute.xlu0 %6439
      %6441 = vrot.lane.b32.xlu0 %v6415, 40
      %v6442 = vpop.permute.xlu0 %6441
      %6443 = vrot.lane.b32.xlu0 %v6416, 40
      %v6444 = vpop.permute.xlu0 %6443
      %6445 = vrot.lane.b32.xlu0 %v6417, 40
      %v6446 = vpop.permute.xlu0 %6445
      %6447 = vrot.lane.b32.xlu0 %v6418, 40
      %v6448 = vpop.permute.xlu0 %6447
      %6449 = vrot.lane.b32.xlu0 %v6419, 40
      %v6450 = vpop.permute.xlu0 %6449
      %6451 = vrot.lane.b32.xlu0 %v6420, 40
      %v6452 = vpop.permute.xlu0 %6451
      %v6453 = vunpack.c.l.b16 %v1423
      %v6454 = vunpack.c.l.b16 %v1433
      %v6455 = vunpack.c.l.b16 %v1447
      %v6456 = vunpack.c.l.b16 %v1457
      %v6457 = vunpack.c.l.b16 %v1471
      %v6458 = vunpack.c.l.b16 %v1481
      %v6459 = vunpack.c.l.b16 %v1495
      %v6460 = vunpack.c.l.b16 %v1505
      %v6461 = vunpack.c.l.b16 %v1519
      %v6462 = vunpack.c.l.b16 %v1529
      %v6463 = vunpack.c.l.b16 %v1543
      %v6464 = vunpack.c.l.b16 %v1553
      %v6465 = vunpack.c.l.b16 %v1567
      %v6466 = vunpack.c.l.b16 %v1577
      %v6467 = vunpack.c.l.b16 %v1591
      %v6468 = vunpack.c.l.b16 %v1601
      %v6469 = vunpack.c.l.b16 %v1615
      %v6470 = vunpack.c.l.b16 %v1625
      %v6471 = vunpack.c.l.b16 %v1639
      %v6472 = vunpack.c.l.b16 %v1649
      %v6473 = vunpack.c.l.b16 %v1663
      %v6474 = vunpack.c.l.b16 %v1673
      %v6475 = vunpack.c.l.b16 %v1687
      %v6476 = vunpack.c.l.b16 %v1697
      %v6477 = vunpack.c.l.b16 %v1711
      %v6478 = vunpack.c.l.b16 %v1721
      %v6479 = vunpack.c.l.b16 %v1735
      %v6480 = vunpack.c.l.b16 %v1745
      %v6481 = vunpack.c.l.b16 %v1759
      %v6482 = vunpack.c.l.b16 %v1769
      %v6483 = vunpack.c.l.b16 %v1783
      %v6484 = vunpack.c.l.b16 %v1793
      %v6485 = vpack.c.b16 %v6454, %v6453
      %v6486 = vpack.c.b16 %v6456, %v6455
      %v6487 = vpack.c.b16 %v6458, %v6457
      %v6488 = vpack.c.b16 %v6460, %v6459
      %v6489 = vpack.c.b16 %v6462, %v6461
      %v6490 = vpack.c.b16 %v6464, %v6463
      %v6491 = vpack.c.b16 %v6466, %v6465
      %v6492 = vpack.c.b16 %v6468, %v6467
      %v6493 = vpack.c.b16 %v6470, %v6469
      %v6494 = vpack.c.b16 %v6472, %v6471
      %v6495 = vpack.c.b16 %v6474, %v6473
      %v6496 = vpack.c.b16 %v6476, %v6475
      %v6497 = vpack.c.b16 %v6478, %v6477
      %v6498 = vpack.c.b16 %v6480, %v6479
      %v6499 = vpack.c.b16 %v6482, %v6481
      %v6500 = vpack.c.b16 %v6484, %v6483
      %6501 = vrot.lane.b32.xlu0 %v6485, 48
      %v6502 = vpop.permute.xlu0 %6501
      %6503 = vrot.lane.b32.xlu0 %v6486, 48
      %v6504 = vpop.permute.xlu0 %6503
      %6505 = vrot.lane.b32.xlu0 %v6487, 48
      %v6506 = vpop.permute.xlu0 %6505
      %6507 = vrot.lane.b32.xlu0 %v6488, 48
      %v6508 = vpop.permute.xlu0 %6507
      %6509 = vrot.lane.b32.xlu0 %v6489, 48
      %v6510 = vpop.permute.xlu0 %6509
      %6511 = vrot.lane.b32.xlu0 %v6490, 48
      %v6512 = vpop.permute.xlu0 %6511
      %6513 = vrot.lane.b32.xlu0 %v6491, 48
      %v6514 = vpop.permute.xlu0 %6513
      %6515 = vrot.lane.b32.xlu0 %v6492, 48
      %v6516 = vpop.permute.xlu0 %6515
      %6517 = vrot.lane.b32.xlu0 %v6493, 48
      %v6518 = vpop.permute.xlu0 %6517
      %6519 = vrot.lane.b32.xlu0 %v6494, 48
      %v6520 = vpop.permute.xlu0 %6519
      %6521 = vrot.lane.b32.xlu0 %v6495, 48
      %v6522 = vpop.permute.xlu0 %6521
      %6523 = vrot.lane.b32.xlu0 %v6496, 48
      %v6524 = vpop.permute.xlu0 %6523
      %6525 = vrot.lane.b32.xlu0 %v6497, 48
      %v6526 = vpop.permute.xlu0 %6525
      %6527 = vrot.lane.b32.xlu0 %v6498, 48
      %v6528 = vpop.permute.xlu0 %6527
      %6529 = vrot.lane.b32.xlu0 %v6499, 48
      %v6530 = vpop.permute.xlu0 %6529
      %6531 = vrot.lane.b32.xlu0 %v6500, 48
      %v6532 = vpop.permute.xlu0 %6531
      %v6533 = vunpack.c.l.b16 %v1861
      %v6534 = vunpack.c.l.b16 %v1864
      %v6535 = vunpack.c.l.b16 %v1868
      %v6536 = vunpack.c.l.b16 %v1871
      %v6537 = vunpack.c.l.b16 %v1875
      %v6538 = vunpack.c.l.b16 %v1878
      %v6539 = vunpack.c.l.b16 %v1882
      %v6540 = vunpack.c.l.b16 %v1885
      %v6541 = vunpack.c.l.b16 %v1889
      %v6542 = vunpack.c.l.b16 %v1892
      %v6543 = vunpack.c.l.b16 %v1896
      %v6544 = vunpack.c.l.b16 %v1899
      %v6545 = vunpack.c.l.b16 %v1903
      %v6546 = vunpack.c.l.b16 %v1906
      %v6547 = vunpack.c.l.b16 %v1910
      %v6548 = vunpack.c.l.b16 %v1913
      %v6549 = vunpack.c.l.b16 %v1917
      %v6550 = vunpack.c.l.b16 %v1920
      %v6551 = vunpack.c.l.b16 %v1924
      %v6552 = vunpack.c.l.b16 %v1927
      %v6553 = vunpack.c.l.b16 %v1931
      %v6554 = vunpack.c.l.b16 %v1934
      %v6555 = vunpack.c.l.b16 %v1938
      %v6556 = vunpack.c.l.b16 %v1941
      %v6557 = vunpack.c.l.b16 %v1945
      %v6558 = vunpack.c.l.b16 %v1948
      %v6559 = vunpack.c.l.b16 %v1952
      %v6560 = vunpack.c.l.b16 %v1955
      %v6561 = vunpack.c.l.b16 %v1959
      %v6562 = vunpack.c.l.b16 %v1962
      %v6563 = vunpack.c.l.b16 %v1966
      %v6564 = vunpack.c.l.b16 %v1969
      %v6565 = vpack.c.b16 %v6534, %v6533
      %v6566 = vpack.c.b16 %v6536, %v6535
      %v6567 = vpack.c.b16 %v6538, %v6537
      %v6568 = vpack.c.b16 %v6540, %v6539
      %v6569 = vpack.c.b16 %v6542, %v6541
      %v6570 = vpack.c.b16 %v6544, %v6543
      %v6571 = vpack.c.b16 %v6546, %v6545
      %v6572 = vpack.c.b16 %v6548, %v6547
      %v6573 = vpack.c.b16 %v6550, %v6549
      %v6574 = vpack.c.b16 %v6552, %v6551
      %v6575 = vpack.c.b16 %v6554, %v6553
      %v6576 = vpack.c.b16 %v6556, %v6555
      %v6577 = vpack.c.b16 %v6558, %v6557
      %v6578 = vpack.c.b16 %v6560, %v6559
      %v6579 = vpack.c.b16 %v6562, %v6561
      %v6580 = vpack.c.b16 %v6564, %v6563
      %6581 = vrot.lane.b32.xlu0 %v6565, 56
      %v6582 = vpop.permute.xlu0 %6581
      %6583 = vrot.lane.b32.xlu0 %v6566, 56
      %v6584 = vpop.permute.xlu0 %6583
      %6585 = vrot.lane.b32.xlu0 %v6567, 56
      %v6586 = vpop.permute.xlu0 %6585
      %6587 = vrot.lane.b32.xlu0 %v6568, 56
      %v6588 = vpop.permute.xlu0 %6587
      %6589 = vrot.lane.b32.xlu0 %v6569, 56
      %v6590 = vpop.permute.xlu0 %6589
      %6591 = vrot.lane.b32.xlu0 %v6570, 56
      %v6592 = vpop.permute.xlu0 %6591
      %6593 = vrot.lane.b32.xlu0 %v6571, 56
      %v6594 = vpop.permute.xlu0 %6593
      %6595 = vrot.lane.b32.xlu0 %v6572, 56
      %v6596 = vpop.permute.xlu0 %6595
      %6597 = vrot.lane.b32.xlu0 %v6573, 56
      %v6598 = vpop.permute.xlu0 %6597
      %6599 = vrot.lane.b32.xlu0 %v6574, 56
      %v6600 = vpop.permute.xlu0 %6599
      %6601 = vrot.lane.b32.xlu0 %v6575, 56
      %v6602 = vpop.permute.xlu0 %6601
      %6603 = vrot.lane.b32.xlu0 %v6576, 56
      %v6604 = vpop.permute.xlu0 %6603
      %6605 = vrot.lane.b32.xlu0 %v6577, 56
      %v6606 = vpop.permute.xlu0 %6605
      %6607 = vrot.lane.b32.xlu0 %v6578, 56
      %v6608 = vpop.permute.xlu0 %6607
      %6609 = vrot.lane.b32.xlu0 %v6579, 56
      %v6610 = vpop.permute.xlu0 %6609
      %6611 = vrot.lane.b32.xlu0 %v6580, 56
      %v6612 = vpop.permute.xlu0 %6611
      %v6613 = vunpack.c.l.b16 %v1998
      %v6614 = vunpack.c.l.b16 %v2008
      %v6615 = vunpack.c.l.b16 %v2021
      %v6616 = vunpack.c.l.b16 %v2031
      %v6617 = vunpack.c.l.b16 %v2044
      %v6618 = vunpack.c.l.b16 %v2054
      %v6619 = vunpack.c.l.b16 %v2067
      %v6620 = vunpack.c.l.b16 %v2077
      %v6621 = vunpack.c.l.b16 %v2090
      %v6622 = vunpack.c.l.b16 %v2100
      %v6623 = vunpack.c.l.b16 %v2113
      %v6624 = vunpack.c.l.b16 %v2123
      %v6625 = vunpack.c.l.b16 %v2136
      %v6626 = vunpack.c.l.b16 %v2146
      %v6627 = vunpack.c.l.b16 %v2159
      %v6628 = vunpack.c.l.b16 %v2169
      %v6629 = vunpack.c.l.b16 %v2182
      %v6630 = vunpack.c.l.b16 %v2192
      %v6631 = vunpack.c.l.b16 %v2205
      %v6632 = vunpack.c.l.b16 %v2215
      %v6633 = vunpack.c.l.b16 %v2228
      %v6634 = vunpack.c.l.b16 %v2238
      %v6635 = vunpack.c.l.b16 %v2251
      %v6636 = vunpack.c.l.b16 %v2261
      %v6637 = vunpack.c.l.b16 %v2274
      %v6638 = vunpack.c.l.b16 %v2284
      %v6639 = vunpack.c.l.b16 %v2297
      %v6640 = vunpack.c.l.b16 %v2307
      %v6641 = vunpack.c.l.b16 %v2320
      %v6642 = vunpack.c.l.b16 %v2330
      %v6643 = vunpack.c.l.b16 %v2343
      %v6644 = vunpack.c.l.b16 %v2353
      %v6645 = vpack.c.b16 %v6614, %v6613
      %v6646 = vpack.c.b16 %v6616, %v6615
      %v6647 = vpack.c.b16 %v6618, %v6617
      %v6648 = vpack.c.b16 %v6620, %v6619
      %v6649 = vpack.c.b16 %v6622, %v6621
      %v6650 = vpack.c.b16 %v6624, %v6623
      %v6651 = vpack.c.b16 %v6626, %v6625
      %v6652 = vpack.c.b16 %v6628, %v6627
      %v6653 = vpack.c.b16 %v6630, %v6629
      %v6654 = vpack.c.b16 %v6632, %v6631
      %v6655 = vpack.c.b16 %v6634, %v6633
      %v6656 = vpack.c.b16 %v6636, %v6635
      %v6657 = vpack.c.b16 %v6638, %v6637
      %v6658 = vpack.c.b16 %v6640, %v6639
      %v6659 = vpack.c.b16 %v6642, %v6641
      %v6660 = vpack.c.b16 %v6644, %v6643
      %6661 = vrot.lane.b32.xlu0 %v6645, 64
      %v6662 = vpop.permute.xlu0 %6661
      %6663 = vrot.lane.b32.xlu0 %v6646, 64
      %v6664 = vpop.permute.xlu0 %6663
      %6665 = vrot.lane.b32.xlu0 %v6647, 64
      %v6666 = vpop.permute.xlu0 %6665
      %6667 = vrot.lane.b32.xlu0 %v6648, 64
      %v6668 = vpop.permute.xlu0 %6667
      %6669 = vrot.lane.b32.xlu0 %v6649, 64
      %v6670 = vpop.permute.xlu0 %6669
      %6671 = vrot.lane.b32.xlu0 %v6650, 64
      %v6672 = vpop.permute.xlu0 %6671
      %6673 = vrot.lane.b32.xlu0 %v6651, 64
      %v6674 = vpop.permute.xlu0 %6673
      %6675 = vrot.lane.b32.xlu0 %v6652, 64
      %v6676 = vpop.permute.xlu0 %6675
      %6677 = vrot.lane.b32.xlu0 %v6653, 64
      %v6678 = vpop.permute.xlu0 %6677
      %6679 = vrot.lane.b32.xlu0 %v6654, 64
      %v6680 = vpop.permute.xlu0 %6679
      %6681 = vrot.lane.b32.xlu0 %v6655, 64
      %v6682 = vpop.permute.xlu0 %6681
      %6683 = vrot.lane.b32.xlu0 %v6656, 64
      %v6684 = vpop.permute.xlu0 %6683
      %6685 = vrot.lane.b32.xlu0 %v6657, 64
      %v6686 = vpop.permute.xlu0 %6685
      %6687 = vrot.lane.b32.xlu0 %v6658, 64
      %v6688 = vpop.permute.xlu0 %6687
      %6689 = vrot.lane.b32.xlu0 %v6659, 64
      %v6690 = vpop.permute.xlu0 %6689
      %6691 = vrot.lane.b32.xlu0 %v6660, 64
      %v6692 = vpop.permute.xlu0 %6691
      %v6693 = vunpack.c.l.b16 %v2405
      %v6694 = vunpack.c.l.b16 %v2408
      %v6695 = vunpack.c.l.b16 %v2412
      %v6696 = vunpack.c.l.b16 %v2415
      %v6697 = vunpack.c.l.b16 %v2419
      %v6698 = vunpack.c.l.b16 %v2422
      %v6699 = vunpack.c.l.b16 %v2426
      %v6700 = vunpack.c.l.b16 %v2429
      %v6701 = vunpack.c.l.b16 %v2433
      %v6702 = vunpack.c.l.b16 %v2436
      %v6703 = vunpack.c.l.b16 %v2440
      %v6704 = vunpack.c.l.b16 %v2443
      %v6705 = vunpack.c.l.b16 %v2447
      %v6706 = vunpack.c.l.b16 %v2450
      %v6707 = vunpack.c.l.b16 %v2454
      %v6708 = vunpack.c.l.b16 %v2457
      %v6709 = vunpack.c.l.b16 %v2461
      %v6710 = vunpack.c.l.b16 %v2464
      %v6711 = vunpack.c.l.b16 %v2468
      %v6712 = vunpack.c.l.b16 %v2471
      %v6713 = vunpack.c.l.b16 %v2475
      %v6714 = vunpack.c.l.b16 %v2478
      %v6715 = vunpack.c.l.b16 %v2482
      %v6716 = vunpack.c.l.b16 %v2485
      %v6717 = vunpack.c.l.b16 %v2489
      %v6718 = vunpack.c.l.b16 %v2492
      %v6719 = vunpack.c.l.b16 %v2496
      %v6720 = vunpack.c.l.b16 %v2499
      %v6721 = vunpack.c.l.b16 %v2503
      %v6722 = vunpack.c.l.b16 %v2506
      %v6723 = vunpack.c.l.b16 %v2510
      %v6724 = vunpack.c.l.b16 %v2513
      %v6725 = vpack.c.b16 %v6694, %v6693
      %v6726 = vpack.c.b16 %v6696, %v6695
      %v6727 = vpack.c.b16 %v6698, %v6697
      %v6728 = vpack.c.b16 %v6700, %v6699
      %v6729 = vpack.c.b16 %v6702, %v6701
      %v6730 = vpack.c.b16 %v6704, %v6703
      %v6731 = vpack.c.b16 %v6706, %v6705
      %v6732 = vpack.c.b16 %v6708, %v6707
      %v6733 = vpack.c.b16 %v6710, %v6709
      %v6734 = vpack.c.b16 %v6712, %v6711
      %v6735 = vpack.c.b16 %v6714, %v6713
      %v6736 = vpack.c.b16 %v6716, %v6715
      %v6737 = vpack.c.b16 %v6718, %v6717
      %v6738 = vpack.c.b16 %v6720, %v6719
      %v6739 = vpack.c.b16 %v6722, %v6721
      %v6740 = vpack.c.b16 %v6724, %v6723
      %6741 = vrot.lane.b32.xlu0 %v6725, 72
      %v6742 = vpop.permute.xlu0 %6741
      %6743 = vrot.lane.b32.xlu0 %v6726, 72
      %v6744 = vpop.permute.xlu0 %6743
      %6745 = vrot.lane.b32.xlu0 %v6727, 72
      %v6746 = vpop.permute.xlu0 %6745
      %6747 = vrot.lane.b32.xlu0 %v6728, 72
      %v6748 = vpop.permute.xlu0 %6747
      %6749 = vrot.lane.b32.xlu0 %v6729, 72
      %v6750 = vpop.permute.xlu0 %6749
      %6751 = vrot.lane.b32.xlu0 %v6730, 72
      %v6752 = vpop.permute.xlu0 %6751
      %6753 = vrot.lane.b32.xlu0 %v6731, 72
      %v6754 = vpop.permute.xlu0 %6753
      %6755 = vrot.lane.b32.xlu0 %v6732, 72
      %v6756 = vpop.permute.xlu0 %6755
      %6757 = vrot.lane.b32.xlu0 %v6733, 72
      %v6758 = vpop.permute.xlu0 %6757
      %6759 = vrot.lane.b32.xlu0 %v6734, 72
      %v6760 = vpop.permute.xlu0 %6759
      %6761 = vrot.lane.b32.xlu0 %v6735, 72
      %v6762 = vpop.permute.xlu0 %6761
      %6763 = vrot.lane.b32.xlu0 %v6736, 72
      %v6764 = vpop.permute.xlu0 %6763
      %6765 = vrot.lane.b32.xlu0 %v6737, 72
      %v6766 = vpop.permute.xlu0 %6765
      %6767 = vrot.lane.b32.xlu0 %v6738, 72
      %v6768 = vpop.permute.xlu0 %6767
      %6769 = vrot.lane.b32.xlu0 %v6739, 72
      %v6770 = vpop.permute.xlu0 %6769
      %6771 = vrot.lane.b32.xlu0 %v6740, 72
      %v6772 = vpop.permute.xlu0 %6771
      %v6789 = vunpack.c.l.b16 %v2515
      %v6790 = vunpack.c.l.b16 %v2516
      %v6791 = vunpack.c.l.b16 %v2517
      %v6792 = vunpack.c.l.b16 %v2518
      %v6793 = vunpack.c.l.b16 %v2519
      %v6794 = vunpack.c.l.b16 %v2520
      %v6795 = vunpack.c.l.b16 %v2521
      %v6796 = vunpack.c.l.b16 %v2522
      %v6797 = vunpack.c.l.b16 %v2523
      %v6798 = vunpack.c.l.b16 %v2524
      %v6799 = vunpack.c.l.b16 %v2525
      %v6800 = vunpack.c.l.b16 %v2526
      %v6801 = vunpack.c.l.b16 %v2527
      %v6802 = vunpack.c.l.b16 %v2528
      %v6803 = vunpack.c.l.b16 %v2529
      %v6804 = vunpack.c.l.b16 %v2530
      %v6805 = vunpack.c.l.b16 %v2531
      %v6806 = vunpack.c.l.b16 %v2532
      %v6807 = vunpack.c.l.b16 %v2533
      %v6808 = vunpack.c.l.b16 %v2534
      %v6809 = vunpack.c.l.b16 %v2535
      %v6810 = vunpack.c.l.b16 %v2536
      %v6811 = vunpack.c.l.b16 %v2537
      %v6812 = vunpack.c.l.b16 %v2538
      %v6813 = vunpack.c.l.b16 %v2539
      %v6814 = vunpack.c.l.b16 %v2540
      %v6815 = vunpack.c.l.b16 %v2541
      %v6816 = vunpack.c.l.b16 %v2542
      %v6817 = vunpack.c.l.b16 %v2543
      %v6818 = vunpack.c.l.b16 %v2544
      %v6819 = vunpack.c.l.b16 %v2545
      %v6820 = vunpack.c.l.b16 %v2546
      %v6821 = vpack.c.b16 %v6790, %v6789
      %v6822 = vpack.c.b16 %v6792, %v6791
      %v6823 = vpack.c.b16 %v6794, %v6793
      %v6824 = vpack.c.b16 %v6796, %v6795
      %v6825 = vpack.c.b16 %v6798, %v6797
      %v6826 = vpack.c.b16 %v6800, %v6799
      %v6827 = vpack.c.b16 %v6802, %v6801
      %v6828 = vpack.c.b16 %v6804, %v6803
      %v6829 = vpack.c.b16 %v6806, %v6805
      %v6830 = vpack.c.b16 %v6808, %v6807
      %v6831 = vpack.c.b16 %v6810, %v6809
      %v6832 = vpack.c.b16 %v6812, %v6811
      %v6833 = vpack.c.b16 %v6814, %v6813
      %v6834 = vpack.c.b16 %v6816, %v6815
      %v6835 = vpack.c.b16 %v6818, %v6817
      %v6836 = vpack.c.b16 %v6820, %v6819
      %6837 = vrot.lane.b32.xlu0 %v6821, 80
      %v6838 = vpop.permute.xlu0 %6837
      %6839 = vrot.lane.b32.xlu0 %v6822, 80
      %v6840 = vpop.permute.xlu0 %6839
      %6841 = vrot.lane.b32.xlu0 %v6823, 80
      %v6842 = vpop.permute.xlu0 %6841
      %6843 = vrot.lane.b32.xlu0 %v6824, 80
      %v6844 = vpop.permute.xlu0 %6843
      %6845 = vrot.lane.b32.xlu0 %v6825, 80
      %v6846 = vpop.permute.xlu0 %6845
      %6847 = vrot.lane.b32.xlu0 %v6826, 80
      %v6848 = vpop.permute.xlu0 %6847
      %6849 = vrot.lane.b32.xlu0 %v6827, 80
      %v6850 = vpop.permute.xlu0 %6849
      %6851 = vrot.lane.b32.xlu0 %v6828, 80
      %v6852 = vpop.permute.xlu0 %6851
      %6853 = vrot.lane.b32.xlu0 %v6829, 80
      %v6854 = vpop.permute.xlu0 %6853
      %6855 = vrot.lane.b32.xlu0 %v6830, 80
      %v6856 = vpop.permute.xlu0 %6855
      %6857 = vrot.lane.b32.xlu0 %v6831, 80
      %v6858 = vpop.permute.xlu0 %6857
      %6859 = vrot.lane.b32.xlu0 %v6832, 80
      %v6860 = vpop.permute.xlu0 %6859
      %6861 = vrot.lane.b32.xlu0 %v6833, 80
      %v6862 = vpop.permute.xlu0 %6861
      %6863 = vrot.lane.b32.xlu0 %v6834, 80
      %v6864 = vpop.permute.xlu0 %6863
      %6865 = vrot.lane.b32.xlu0 %v6835, 80
      %v6866 = vpop.permute.xlu0 %6865
      %6867 = vrot.lane.b32.xlu0 %v6836, 80
      %v6868 = vpop.permute.xlu0 %6867
      %v6869 = vunpack.c.l.b16 %v2576
      %v6870 = vunpack.c.l.b16 %v2586
      %v6871 = vunpack.c.l.b16 %v2600
      %v6872 = vunpack.c.l.b16 %v2610
      %v6873 = vunpack.c.l.b16 %v2624
      %v6874 = vunpack.c.l.b16 %v2634
      %v6875 = vunpack.c.l.b16 %v2648
      %v6876 = vunpack.c.l.b16 %v2658
      %v6877 = vunpack.c.l.b16 %v2672
      %v6878 = vunpack.c.l.b16 %v2682
      %v6879 = vunpack.c.l.b16 %v2696
      %v6880 = vunpack.c.l.b16 %v2706
      %v6881 = vunpack.c.l.b16 %v2720
      %v6882 = vunpack.c.l.b16 %v2730
      %v6883 = vunpack.c.l.b16 %v2744
      %v6884 = vunpack.c.l.b16 %v2754
      %v6885 = vunpack.c.l.b16 %v2768
      %v6886 = vunpack.c.l.b16 %v2778
      %v6887 = vunpack.c.l.b16 %v2792
      %v6888 = vunpack.c.l.b16 %v2802
      %v6889 = vunpack.c.l.b16 %v2816
      %v6890 = vunpack.c.l.b16 %v2826
      %v6891 = vunpack.c.l.b16 %v2840
      %v6892 = vunpack.c.l.b16 %v2850
      %v6893 = vunpack.c.l.b16 %v2864
      %v6894 = vunpack.c.l.b16 %v2874
      %v6895 = vunpack.c.l.b16 %v2888
      %v6896 = vunpack.c.l.b16 %v2898
      %v6897 = vunpack.c.l.b16 %v2912
      %v6898 = vunpack.c.l.b16 %v2922
      %v6899 = vunpack.c.l.b16 %v2936
      %v6900 = vunpack.c.l.b16 %v2946
      %v6901 = vpack.c.b16 %v6870, %v6869
      %v6902 = vpack.c.b16 %v6872, %v6871
      %v6903 = vpack.c.b16 %v6874, %v6873
      %v6904 = vpack.c.b16 %v6876, %v6875
      %v6905 = vpack.c.b16 %v6878, %v6877
      %v6906 = vpack.c.b16 %v6880, %v6879
      %v6907 = vpack.c.b16 %v6882, %v6881
      %v6908 = vpack.c.b16 %v6884, %v6883
      %v6909 = vpack.c.b16 %v6886, %v6885
      %v6910 = vpack.c.b16 %v6888, %v6887
      %v6911 = vpack.c.b16 %v6890, %v6889
      %v6912 = vpack.c.b16 %v6892, %v6891
      %v6913 = vpack.c.b16 %v6894, %v6893
      %v6914 = vpack.c.b16 %v6896, %v6895
      %v6915 = vpack.c.b16 %v6898, %v6897
      %v6916 = vpack.c.b16 %v6900, %v6899
      %6917 = vrot.lane.b32.xlu0 %v6901, 88
      %v6918 = vpop.permute.xlu0 %6917
      %6919 = vrot.lane.b32.xlu0 %v6902, 88
      %v6920 = vpop.permute.xlu0 %6919
      %6921 = vrot.lane.b32.xlu0 %v6903, 88
      %v6922 = vpop.permute.xlu0 %6921
      %6923 = vrot.lane.b32.xlu0 %v6904, 88
      %v6924 = vpop.permute.xlu0 %6923
      %6925 = vrot.lane.b32.xlu0 %v6905, 88
      %v6926 = vpop.permute.xlu0 %6925
      %6927 = vrot.lane.b32.xlu0 %v6906, 88
      %v6928 = vpop.permute.xlu0 %6927
      %6929 = vrot.lane.b32.xlu0 %v6907, 88
      %v6930 = vpop.permute.xlu0 %6929
      %6931 = vrot.lane.b32.xlu0 %v6908, 88
      %v6932 = vpop.permute.xlu0 %6931
      %6933 = vrot.lane.b32.xlu0 %v6909, 88
      %v6934 = vpop.permute.xlu0 %6933
      %6935 = vrot.lane.b32.xlu0 %v6910, 88
      %v6936 = vpop.permute.xlu0 %6935
      %6937 = vrot.lane.b32.xlu0 %v6911, 88
      %v6938 = vpop.permute.xlu0 %6937
      %6939 = vrot.lane.b32.xlu0 %v6912, 88
      %v6940 = vpop.permute.xlu0 %6939
      %6941 = vrot.lane.b32.xlu0 %v6913, 88
      %v6942 = vpop.permute.xlu0 %6941
      %6943 = vrot.lane.b32.xlu0 %v6914, 88
      %v6944 = vpop.permute.xlu0 %6943
      %6945 = vrot.lane.b32.xlu0 %v6915, 88
      %v6946 = vpop.permute.xlu0 %6945
      %6947 = vrot.lane.b32.xlu0 %v6916, 88
      %v6948 = vpop.permute.xlu0 %6947
      %v6949 = vunpack.c.l.b16 %v3014
      %v6950 = vunpack.c.l.b16 %v3017
      %v6951 = vunpack.c.l.b16 %v3021
      %v6952 = vunpack.c.l.b16 %v3024
      %v6953 = vunpack.c.l.b16 %v3028
      %v6954 = vunpack.c.l.b16 %v3031
      %v6955 = vunpack.c.l.b16 %v3035
      %v6956 = vunpack.c.l.b16 %v3038
      %v6957 = vunpack.c.l.b16 %v3042
      %v6958 = vunpack.c.l.b16 %v3045
      %v6959 = vunpack.c.l.b16 %v3049
      %v6960 = vunpack.c.l.b16 %v3052
      %v6961 = vunpack.c.l.b16 %v3056
      %v6962 = vunpack.c.l.b16 %v3059
      %v6963 = vunpack.c.l.b16 %v3063
      %v6964 = vunpack.c.l.b16 %v3066
      %v6965 = vunpack.c.l.b16 %v3070
      %v6966 = vunpack.c.l.b16 %v3073
      %v6967 = vunpack.c.l.b16 %v3077
      %v6968 = vunpack.c.l.b16 %v3080
      %v6969 = vunpack.c.l.b16 %v3084
      %v6970 = vunpack.c.l.b16 %v3087
      %v6971 = vunpack.c.l.b16 %v3091
      %v6972 = vunpack.c.l.b16 %v3094
      %v6973 = vunpack.c.l.b16 %v3098
      %v6974 = vunpack.c.l.b16 %v3101
      %v6975 = vunpack.c.l.b16 %v3105
      %v6976 = vunpack.c.l.b16 %v3108
      %v6977 = vunpack.c.l.b16 %v3112
      %v6978 = vunpack.c.l.b16 %v3115
      %v6979 = vunpack.c.l.b16 %v3119
      %v6980 = vunpack.c.l.b16 %v3122
      %v6981 = vpack.c.b16 %v6950, %v6949
      %v6982 = vpack.c.b16 %v6952, %v6951
      %v6983 = vpack.c.b16 %v6954, %v6953
      %v6984 = vpack.c.b16 %v6956, %v6955
      %v6985 = vpack.c.b16 %v6958, %v6957
      %v6986 = vpack.c.b16 %v6960, %v6959
      %v6987 = vpack.c.b16 %v6962, %v6961
      %v6988 = vpack.c.b16 %v6964, %v6963
      %v6989 = vpack.c.b16 %v6966, %v6965
      %v6990 = vpack.c.b16 %v6968, %v6967
      %v6991 = vpack.c.b16 %v6970, %v6969
      %v6992 = vpack.c.b16 %v6972, %v6971
      %v6993 = vpack.c.b16 %v6974, %v6973
      %v6994 = vpack.c.b16 %v6976, %v6975
      %v6995 = vpack.c.b16 %v6978, %v6977
      %v6996 = vpack.c.b16 %v6980, %v6979
      %6997 = vrot.lane.b32.xlu0 %v6981, 96
      %v6998 = vpop.permute.xlu0 %6997
      %6999 = vrot.lane.b32.xlu0 %v6982, 96
      %v7000 = vpop.permute.xlu0 %6999
      %7001 = vrot.lane.b32.xlu0 %v6983, 96
      %v7002 = vpop.permute.xlu0 %7001
      %7003 = vrot.lane.b32.xlu0 %v6984, 96
      %v7004 = vpop.permute.xlu0 %7003
      %7005 = vrot.lane.b32.xlu0 %v6985, 96
      %v7006 = vpop.permute.xlu0 %7005
      %7007 = vrot.lane.b32.xlu0 %v6986, 96
      %v7008 = vpop.permute.xlu0 %7007
      %7009 = vrot.lane.b32.xlu0 %v6987, 96
      %v7010 = vpop.permute.xlu0 %7009
      %7011 = vrot.lane.b32.xlu0 %v6988, 96
      %v7012 = vpop.permute.xlu0 %7011
      %7013 = vrot.lane.b32.xlu0 %v6989, 96
      %v7014 = vpop.permute.xlu0 %7013
      %7015 = vrot.lane.b32.xlu0 %v6990, 96
      %v7016 = vpop.permute.xlu0 %7015
      %7017 = vrot.lane.b32.xlu0 %v6991, 96
      %v7018 = vpop.permute.xlu0 %7017
      %7019 = vrot.lane.b32.xlu0 %v6992, 96
      %v7020 = vpop.permute.xlu0 %7019
      %7021 = vrot.lane.b32.xlu0 %v6993, 96
      %v7022 = vpop.permute.xlu0 %7021
      %7023 = vrot.lane.b32.xlu0 %v6994, 96
      %v7024 = vpop.permute.xlu0 %7023
      %7025 = vrot.lane.b32.xlu0 %v6995, 96
      %v7026 = vpop.permute.xlu0 %7025
      %7027 = vrot.lane.b32.xlu0 %v6996, 96
      %v7028 = vpop.permute.xlu0 %7027
      %v7029 = vunpack.c.l.b16 %v3151
      %v7030 = vunpack.c.l.b16 %v3161
      %v7031 = vunpack.c.l.b16 %v3174
      %v7032 = vunpack.c.l.b16 %v3184
      %v7033 = vunpack.c.l.b16 %v3197
      %v7034 = vunpack.c.l.b16 %v3207
      %v7035 = vunpack.c.l.b16 %v3220
      %v7036 = vunpack.c.l.b16 %v3230
      %v7037 = vunpack.c.l.b16 %v3243
      %v7038 = vunpack.c.l.b16 %v3253
      %v7039 = vunpack.c.l.b16 %v3266
      %v7040 = vunpack.c.l.b16 %v3276
      %v7041 = vunpack.c.l.b16 %v3289
      %v7042 = vunpack.c.l.b16 %v3299
      %v7043 = vunpack.c.l.b16 %v3312
      %v7044 = vunpack.c.l.b16 %v3322
      %v7045 = vunpack.c.l.b16 %v3335
      %v7046 = vunpack.c.l.b16 %v3345
      %v7047 = vunpack.c.l.b16 %v3358
      %v7048 = vunpack.c.l.b16 %v3368
      %v7049 = vunpack.c.l.b16 %v3381
      %v7050 = vunpack.c.l.b16 %v3391
      %v7051 = vunpack.c.l.b16 %v3404
      %v7052 = vunpack.c.l.b16 %v3414
      %v7053 = vunpack.c.l.b16 %v3427
      %v7054 = vunpack.c.l.b16 %v3437
      %v7055 = vunpack.c.l.b16 %v3450
      %v7056 = vunpack.c.l.b16 %v3460
      %v7057 = vunpack.c.l.b16 %v3473
      %v7058 = vunpack.c.l.b16 %v3483
      %v7059 = vunpack.c.l.b16 %v3496
      %v7060 = vunpack.c.l.b16 %v3506
      %v7061 = vpack.c.b16 %v7030, %v7029
      %v7062 = vpack.c.b16 %v7032, %v7031
      %v7063 = vpack.c.b16 %v7034, %v7033
      %v7064 = vpack.c.b16 %v7036, %v7035
      %v7065 = vpack.c.b16 %v7038, %v7037
      %v7066 = vpack.c.b16 %v7040, %v7039
      %v7067 = vpack.c.b16 %v7042, %v7041
      %v7068 = vpack.c.b16 %v7044, %v7043
      %v7069 = vpack.c.b16 %v7046, %v7045
      %v7070 = vpack.c.b16 %v7048, %v7047
      %v7071 = vpack.c.b16 %v7050, %v7049
      %v7072 = vpack.c.b16 %v7052, %v7051
      %v7073 = vpack.c.b16 %v7054, %v7053
      %v7074 = vpack.c.b16 %v7056, %v7055
      %v7075 = vpack.c.b16 %v7058, %v7057
      %v7076 = vpack.c.b16 %v7060, %v7059
      %7077 = vrot.lane.b32.xlu0 %v7061, 104
      %v7078 = vpop.permute.xlu0 %7077
      %7079 = vrot.lane.b32.xlu0 %v7062, 104
      %v7080 = vpop.permute.xlu0 %7079
      %7081 = vrot.lane.b32.xlu0 %v7063, 104
      %v7082 = vpop.permute.xlu0 %7081
      %7083 = vrot.lane.b32.xlu0 %v7064, 104
      %v7084 = vpop.permute.xlu0 %7083
      %7085 = vrot.lane.b32.xlu0 %v7065, 104
      %v7086 = vpop.permute.xlu0 %7085
      %7087 = vrot.lane.b32.xlu0 %v7066, 104
      %v7088 = vpop.permute.xlu0 %7087
      %7089 = vrot.lane.b32.xlu0 %v7067, 104
      %v7090 = vpop.permute.xlu0 %7089
      %7091 = vrot.lane.b32.xlu0 %v7068, 104
      %v7092 = vpop.permute.xlu0 %7091
      %7093 = vrot.lane.b32.xlu0 %v7069, 104
      %v7094 = vpop.permute.xlu0 %7093
      %7095 = vrot.lane.b32.xlu0 %v7070, 104
      %v7096 = vpop.permute.xlu0 %7095
      %7097 = vrot.lane.b32.xlu0 %v7071, 104
      %v7098 = vpop.permute.xlu0 %7097
      %7099 = vrot.lane.b32.xlu0 %v7072, 104
      %v7100 = vpop.permute.xlu0 %7099
      %7101 = vrot.lane.b32.xlu0 %v7073, 104
      %v7102 = vpop.permute.xlu0 %7101
      %7103 = vrot.lane.b32.xlu0 %v7074, 104
      %v7104 = vpop.permute.xlu0 %7103
      %7105 = vrot.lane.b32.xlu0 %v7075, 104
      %v7106 = vpop.permute.xlu0 %7105
      %7107 = vrot.lane.b32.xlu0 %v7076, 104
      %v7108 = vpop.permute.xlu0 %7107
      %v7109 = vunpack.c.l.b16 %v3558
      %v7110 = vunpack.c.l.b16 %v3561
      %v7111 = vunpack.c.l.b16 %v3565
      %v7112 = vunpack.c.l.b16 %v3568
      %v7113 = vunpack.c.l.b16 %v3572
      %v7114 = vunpack.c.l.b16 %v3575
      %v7115 = vunpack.c.l.b16 %v3579
      %v7116 = vunpack.c.l.b16 %v3582
      %v7117 = vunpack.c.l.b16 %v3586
      %v7118 = vunpack.c.l.b16 %v3589
      %v7119 = vunpack.c.l.b16 %v3593
      %v7120 = vunpack.c.l.b16 %v3596
      %v7121 = vunpack.c.l.b16 %v3600
      %v7122 = vunpack.c.l.b16 %v3603
      %v7123 = vunpack.c.l.b16 %v3607
      %v7124 = vunpack.c.l.b16 %v3610
      %v7125 = vunpack.c.l.b16 %v3614
      %v7126 = vunpack.c.l.b16 %v3617
      %v7127 = vunpack.c.l.b16 %v3621
      %v7128 = vunpack.c.l.b16 %v3624
      %v7129 = vunpack.c.l.b16 %v3628
      %v7130 = vunpack.c.l.b16 %v3631
      %v7131 = vunpack.c.l.b16 %v3635
      %v7132 = vunpack.c.l.b16 %v3638
      %v7133 = vunpack.c.l.b16 %v3642
      %v7134 = vunpack.c.l.b16 %v3645
      %v7135 = vunpack.c.l.b16 %v3649
      %v7136 = vunpack.c.l.b16 %v3652
      %v7137 = vunpack.c.l.b16 %v3656
      %v7138 = vunpack.c.l.b16 %v3659
      %v7139 = vunpack.c.l.b16 %v3663
      %v7140 = vunpack.c.l.b16 %v3666
      %v7141 = vpack.c.b16 %v7110, %v7109
      %v7142 = vpack.c.b16 %v7112, %v7111
      %v7143 = vpack.c.b16 %v7114, %v7113
      %v7144 = vpack.c.b16 %v7116, %v7115
      %v7145 = vpack.c.b16 %v7118, %v7117
      %v7146 = vpack.c.b16 %v7120, %v7119
      %v7147 = vpack.c.b16 %v7122, %v7121
      %v7148 = vpack.c.b16 %v7124, %v7123
      %v7149 = vpack.c.b16 %v7126, %v7125
      %v7150 = vpack.c.b16 %v7128, %v7127
      %v7151 = vpack.c.b16 %v7130, %v7129
      %v7152 = vpack.c.b16 %v7132, %v7131
      %v7153 = vpack.c.b16 %v7134, %v7133
      %v7154 = vpack.c.b16 %v7136, %v7135
      %v7155 = vpack.c.b16 %v7138, %v7137
      %v7156 = vpack.c.b16 %v7140, %v7139
      %7157 = vrot.lane.b32.xlu0 %v7141, 112
      %v7158 = vpop.permute.xlu0 %7157
      %7159 = vrot.lane.b32.xlu0 %v7142, 112
      %v7160 = vpop.permute.xlu0 %7159
      %7161 = vrot.lane.b32.xlu0 %v7143, 112
      %v7162 = vpop.permute.xlu0 %7161
      %7163 = vrot.lane.b32.xlu0 %v7144, 112
      %v7164 = vpop.permute.xlu0 %7163
      %7165 = vrot.lane.b32.xlu0 %v7145, 112
      %v7166 = vpop.permute.xlu0 %7165
      %7167 = vrot.lane.b32.xlu0 %v7146, 112
      %v7168 = vpop.permute.xlu0 %7167
      %7169 = vrot.lane.b32.xlu0 %v7147, 112
      %v7170 = vpop.permute.xlu0 %7169
      %7171 = vrot.lane.b32.xlu0 %v7148, 112
      %v7172 = vpop.permute.xlu0 %7171
      %7173 = vrot.lane.b32.xlu0 %v7149, 112
      %v7174 = vpop.permute.xlu0 %7173
      %7175 = vrot.lane.b32.xlu0 %v7150, 112
      %v7176 = vpop.permute.xlu0 %7175
      %7177 = vrot.lane.b32.xlu0 %v7151, 112
      %v7178 = vpop.permute.xlu0 %7177
      %7179 = vrot.lane.b32.xlu0 %v7152, 112
      %v7180 = vpop.permute.xlu0 %7179
      %7181 = vrot.lane.b32.xlu0 %v7153, 112
      %v7182 = vpop.permute.xlu0 %7181
      %7183 = vrot.lane.b32.xlu0 %v7154, 112
      %v7184 = vpop.permute.xlu0 %7183
      %7185 = vrot.lane.b32.xlu0 %v7155, 112
      %v7186 = vpop.permute.xlu0 %7185
      %7187 = vrot.lane.b32.xlu0 %v7156, 112
      %v7188 = vpop.permute.xlu0 %7187
      %v7205 = vunpack.c.l.b16 %v3668
      %v7206 = vunpack.c.l.b16 %v3669
      %v7207 = vunpack.c.l.b16 %v3670
      %v7208 = vunpack.c.l.b16 %v3671
      %v7209 = vunpack.c.l.b16 %v3672
      %v7210 = vunpack.c.l.b16 %v3673
      %v7211 = vunpack.c.l.b16 %v3674
      %v7212 = vunpack.c.l.b16 %v3675
      %v7213 = vunpack.c.l.b16 %v3676
      %v7214 = vunpack.c.l.b16 %v3677
      %v7215 = vunpack.c.l.b16 %v3678
      %v7216 = vunpack.c.l.b16 %v3679
      %v7217 = vunpack.c.l.b16 %v3680
      %v7218 = vunpack.c.l.b16 %v3681
      %v7219 = vunpack.c.l.b16 %v3682
      %v7220 = vunpack.c.l.b16 %v3683
      %v7221 = vunpack.c.l.b16 %v3684
      %v7222 = vunpack.c.l.b16 %v3685
      %v7223 = vunpack.c.l.b16 %v3686
      %v7224 = vunpack.c.l.b16 %v3687
      %v7225 = vunpack.c.l.b16 %v3688
      %v7226 = vunpack.c.l.b16 %v3689
      %v7227 = vunpack.c.l.b16 %v3690
      %v7228 = vunpack.c.l.b16 %v3691
      %v7229 = vunpack.c.l.b16 %v3692
      %v7230 = vunpack.c.l.b16 %v3693
      %v7231 = vunpack.c.l.b16 %v3694
      %v7232 = vunpack.c.l.b16 %v3695
      %v7233 = vunpack.c.l.b16 %v3696
      %v7234 = vunpack.c.l.b16 %v3697
      %v7235 = vunpack.c.l.b16 %v3698
      %v7236 = vunpack.c.l.b16 %v3699
      %v7237 = vpack.c.b16 %v7206, %v7205
      %v7238 = vpack.c.b16 %v7208, %v7207
      %v7239 = vpack.c.b16 %v7210, %v7209
      %v7240 = vpack.c.b16 %v7212, %v7211
      %v7241 = vpack.c.b16 %v7214, %v7213
      %v7242 = vpack.c.b16 %v7216, %v7215
      %v7243 = vpack.c.b16 %v7218, %v7217
      %v7244 = vpack.c.b16 %v7220, %v7219
      %v7245 = vpack.c.b16 %v7222, %v7221
      %v7246 = vpack.c.b16 %v7224, %v7223
      %v7247 = vpack.c.b16 %v7226, %v7225
      %v7248 = vpack.c.b16 %v7228, %v7227
      %v7249 = vpack.c.b16 %v7230, %v7229
      %v7250 = vpack.c.b16 %v7232, %v7231
      %v7251 = vpack.c.b16 %v7234, %v7233
      %v7252 = vpack.c.b16 %v7236, %v7235
      %7253 = vrot.lane.b32.xlu0 %v7237, 120
      %v7254 = vpop.permute.xlu0 %7253
      %7255 = vrot.lane.b32.xlu0 %v7238, 120
      %v7256 = vpop.permute.xlu0 %7255
      %7257 = vrot.lane.b32.xlu0 %v7239, 120
      %v7258 = vpop.permute.xlu0 %7257
      %7259 = vrot.lane.b32.xlu0 %v7240, 120
      %v7260 = vpop.permute.xlu0 %7259
      %7261 = vrot.lane.b32.xlu0 %v7241, 120
      %v7262 = vpop.permute.xlu0 %7261
      %7263 = vrot.lane.b32.xlu0 %v7242, 120
      %v7264 = vpop.permute.xlu0 %7263
      %7265 = vrot.lane.b32.xlu0 %v7243, 120
      %v7266 = vpop.permute.xlu0 %7265
      %7267 = vrot.lane.b32.xlu0 %v7244, 120
      %v7268 = vpop.permute.xlu0 %7267
      %7269 = vrot.lane.b32.xlu0 %v7245, 120
      %v7270 = vpop.permute.xlu0 %7269
      %7271 = vrot.lane.b32.xlu0 %v7246, 120
      %v7272 = vpop.permute.xlu0 %7271
      %7273 = vrot.lane.b32.xlu0 %v7247, 120
      %v7274 = vpop.permute.xlu0 %7273
      %7275 = vrot.lane.b32.xlu0 %v7248, 120
      %v7276 = vpop.permute.xlu0 %7275
      %7277 = vrot.lane.b32.xlu0 %v7249, 120
      %v7278 = vpop.permute.xlu0 %7277
      %7279 = vrot.lane.b32.xlu0 %v7250, 120
      %v7280 = vpop.permute.xlu0 %7279
      %7281 = vrot.lane.b32.xlu0 %v7251, 120
      %v7282 = vpop.permute.xlu0 %7281
      %7283 = vrot.lane.b32.xlu0 %v7252, 120
      %v7284 = vpop.permute.xlu0 %7283
      %vm7285 = vcmask 64512
      %v7288 = vsel %vm7285, %v6021, %v6086
      %v7291 = vsel %vm7285, %v6022, %v6088
      %v7294 = vsel %vm7285, %v6023, %v6090
      %v7297 = vsel %vm7285, %v6024, %v6092
      %v7300 = vsel %vm7285, %v6025, %v6094
      %v7303 = vsel %vm7285, %v6026, %v6096
      %v7306 = vsel %vm7285, %v6027, %v6098
      %v7309 = vsel %vm7285, %v6028, %v6100
      %v7312 = vsel %vm7285, %v6029, %v6102
      %v7315 = vsel %vm7285, %v6030, %v6104
      %v7318 = vsel %vm7285, %v6031, %v6106
      %v7321 = vsel %vm7285, %v6032, %v6108
      %v7324 = vsel %vm7285, %v6033, %v6110
      %v7327 = vsel %vm7285, %v6034, %v6112
      %v7330 = vsel %vm7285, %v6035, %v6114
      %v7333 = vsel %vm7285, %v6036, %v6116
      %vm7334 = vcmask 130048
      %v7336 = vsel %vm7334, %v7288, %v6166
      %v7338 = vsel %vm7334, %v7291, %v6168
      %v7340 = vsel %vm7334, %v7294, %v6170
      %v7342 = vsel %vm7334, %v7297, %v6172
      %v7344 = vsel %vm7334, %v7300, %v6174
      %v7346 = vsel %vm7334, %v7303, %v6176
      %v7348 = vsel %vm7334, %v7306, %v6178
      %v7350 = vsel %vm7334, %v7309, %v6180
      %v7352 = vsel %vm7334, %v7312, %v6182
      %v7354 = vsel %vm7334, %v7315, %v6184
      %v7356 = vsel %vm7334, %v7318, %v6186
      %v7358 = vsel %vm7334, %v7321, %v6188
      %v7360 = vsel %vm7334, %v7324, %v6190
      %v7362 = vsel %vm7334, %v7327, %v6192
      %v7364 = vsel %vm7334, %v7330, %v6194
      %v7366 = vsel %vm7334, %v7333, %v6196
      %vm7367 = vcmask 195584
      %v7369 = vsel %vm7367, %v7336, %v6246
      %v7371 = vsel %vm7367, %v7338, %v6248
      %v7373 = vsel %vm7367, %v7340, %v6250
      %v7375 = vsel %vm7367, %v7342, %v6252
      %v7377 = vsel %vm7367, %v7344, %v6254
      %v7379 = vsel %vm7367, %v7346, %v6256
      %v7381 = vsel %vm7367, %v7348, %v6258
      %v7383 = vsel %vm7367, %v7350, %v6260
      %v7385 = vsel %vm7367, %v7352, %v6262
      %v7387 = vsel %vm7367, %v7354, %v6264
      %v7389 = vsel %vm7367, %v7356, %v6266
      %v7391 = vsel %vm7367, %v7358, %v6268
      %v7393 = vsel %vm7367, %v7360, %v6270
      %v7395 = vsel %vm7367, %v7362, %v6272
      %v7397 = vsel %vm7367, %v7364, %v6274
      %v7399 = vsel %vm7367, %v7366, %v6276
      %vm7400 = vcmask 261120
      %v7402 = vsel %vm7400, %v7369, %v6326
      %v7404 = vsel %vm7400, %v7371, %v6328
      %v7406 = vsel %vm7400, %v7373, %v6330
      %v7408 = vsel %vm7400, %v7375, %v6332
      %v7410 = vsel %vm7400, %v7377, %v6334
      %v7412 = vsel %vm7400, %v7379, %v6336
      %v7414 = vsel %vm7400, %v7381, %v6338
      %v7416 = vsel %vm7400, %v7383, %v6340
      %v7418 = vsel %vm7400, %v7385, %v6342
      %v7420 = vsel %vm7400, %v7387, %v6344
      %v7422 = vsel %vm7400, %v7389, %v6346
      %v7424 = vsel %vm7400, %v7391, %v6348
      %v7426 = vsel %vm7400, %v7393, %v6350
      %v7428 = vsel %vm7400, %v7395, %v6352
      %v7430 = vsel %vm7400, %v7397, %v6354
      %v7432 = vsel %vm7400, %v7399, %v6356
      %vm7433 = vcmask 326656
      %v7435 = vsel %vm7433, %v7402, %v6422
      %v7437 = vsel %vm7433, %v7404, %v6424
      %v7439 = vsel %vm7433, %v7406, %v6426
      %v7441 = vsel %vm7433, %v7408, %v6428
      %v7443 = vsel %vm7433, %v7410, %v6430
      %v7445 = vsel %vm7433, %v7412, %v6432
      %v7447 = vsel %vm7433, %v7414, %v6434
      %v7449 = vsel %vm7433, %v7416, %v6436
      %v7451 = vsel %vm7433, %v7418, %v6438
      %v7453 = vsel %vm7433, %v7420, %v6440
      %v7455 = vsel %vm7433, %v7422, %v6442
      %v7457 = vsel %vm7433, %v7424, %v6444
      %v7459 = vsel %vm7433, %v7426, %v6446
      %v7461 = vsel %vm7433, %v7428, %v6448
      %v7463 = vsel %vm7433, %v7430, %v6450
      %v7465 = vsel %vm7433, %v7432, %v6452
      %vm7466 = vcmask 392192
      %v7468 = vsel %vm7466, %v7435, %v6502
      %v7470 = vsel %vm7466, %v7437, %v6504
      %v7472 = vsel %vm7466, %v7439, %v6506
      %v7474 = vsel %vm7466, %v7441, %v6508
      %v7476 = vsel %vm7466, %v7443, %v6510
      %v7478 = vsel %vm7466, %v7445, %v6512
      %v7480 = vsel %vm7466, %v7447, %v6514
      %v7482 = vsel %vm7466, %v7449, %v6516
      %v7484 = vsel %vm7466, %v7451, %v6518
      %v7486 = vsel %vm7466, %v7453, %v6520
      %v7488 = vsel %vm7466, %v7455, %v6522
      %v7490 = vsel %vm7466, %v7457, %v6524
      %v7492 = vsel %vm7466, %v7459, %v6526
      %v7494 = vsel %vm7466, %v7461, %v6528
      %v7496 = vsel %vm7466, %v7463, %v6530
      %v7498 = vsel %vm7466, %v7465, %v6532
      %vm7499 = vcmask 457728
      %v7501 = vsel %vm7499, %v7468, %v6582
      %v7503 = vsel %vm7499, %v7470, %v6584
      %v7505 = vsel %vm7499, %v7472, %v6586
      %v7507 = vsel %vm7499, %v7474, %v6588
      %v7509 = vsel %vm7499, %v7476, %v6590
      %v7511 = vsel %vm7499, %v7478, %v6592
      %v7513 = vsel %vm7499, %v7480, %v6594
      %v7515 = vsel %vm7499, %v7482, %v6596
      %v7517 = vsel %vm7499, %v7484, %v6598
      %v7519 = vsel %vm7499, %v7486, %v6600
      %v7521 = vsel %vm7499, %v7488, %v6602
      %v7523 = vsel %vm7499, %v7490, %v6604
      %v7525 = vsel %vm7499, %v7492, %v6606
      %v7527 = vsel %vm7499, %v7494, %v6608
      %v7529 = vsel %vm7499, %v7496, %v6610
      %v7531 = vsel %vm7499, %v7498, %v6612
      %vm7532 = vcmask 523264
      %v7534 = vsel %vm7532, %v7501, %v6662
      %v7536 = vsel %vm7532, %v7503, %v6664
      %v7538 = vsel %vm7532, %v7505, %v6666
      %v7540 = vsel %vm7532, %v7507, %v6668
      %v7542 = vsel %vm7532, %v7509, %v6670
      %v7544 = vsel %vm7532, %v7511, %v6672
      %v7546 = vsel %vm7532, %v7513, %v6674
      %v7548 = vsel %vm7532, %v7515, %v6676
      %v7550 = vsel %vm7532, %v7517, %v6678
      %v7552 = vsel %vm7532, %v7519, %v6680
      %v7554 = vsel %vm7532, %v7521, %v6682
      %v7556 = vsel %vm7532, %v7523, %v6684
      %v7558 = vsel %vm7532, %v7525, %v6686
      %v7560 = vsel %vm7532, %v7527, %v6688
      %v7562 = vsel %vm7532, %v7529, %v6690
      %v7564 = vsel %vm7532, %v7531, %v6692
      %vm7565 = vcmask 588800
      %v7567 = vsel %vm7565, %v7534, %v6742
      %v7569 = vsel %vm7565, %v7536, %v6744
      %v7571 = vsel %vm7565, %v7538, %v6746
      %v7573 = vsel %vm7565, %v7540, %v6748
      %v7575 = vsel %vm7565, %v7542, %v6750
      %v7577 = vsel %vm7565, %v7544, %v6752
      %v7579 = vsel %vm7565, %v7546, %v6754
      %v7581 = vsel %vm7565, %v7548, %v6756
      %v7583 = vsel %vm7565, %v7550, %v6758
      %v7585 = vsel %vm7565, %v7552, %v6760
      %v7587 = vsel %vm7565, %v7554, %v6762
      %v7589 = vsel %vm7565, %v7556, %v6764
      %v7591 = vsel %vm7565, %v7558, %v6766
      %v7593 = vsel %vm7565, %v7560, %v6768
      %v7595 = vsel %vm7565, %v7562, %v6770
      %v7597 = vsel %vm7565, %v7564, %v6772
      %vm7598 = vcmask 654336
      %v7600 = vsel %vm7598, %v7567, %v6838
      %v7602 = vsel %vm7598, %v7569, %v6840
      %v7604 = vsel %vm7598, %v7571, %v6842
      %v7606 = vsel %vm7598, %v7573, %v6844
      %v7608 = vsel %vm7598, %v7575, %v6846
      %v7610 = vsel %vm7598, %v7577, %v6848
      %v7612 = vsel %vm7598, %v7579, %v6850
      %v7614 = vsel %vm7598, %v7581, %v6852
      %v7616 = vsel %vm7598, %v7583, %v6854
      %v7618 = vsel %vm7598, %v7585, %v6856
      %v7620 = vsel %vm7598, %v7587, %v6858
      %v7622 = vsel %vm7598, %v7589, %v6860
      %v7624 = vsel %vm7598, %v7591, %v6862
      %v7626 = vsel %vm7598, %v7593, %v6864
      %v7628 = vsel %vm7598, %v7595, %v6866
      %v7630 = vsel %vm7598, %v7597, %v6868
      %vm7631 = vcmask 719872
      %v7633 = vsel %vm7631, %v7600, %v6918
      %v7635 = vsel %vm7631, %v7602, %v6920
      %v7637 = vsel %vm7631, %v7604, %v6922
      %v7639 = vsel %vm7631, %v7606, %v6924
      %v7641 = vsel %vm7631, %v7608, %v6926
      %v7643 = vsel %vm7631, %v7610, %v6928
      %v7645 = vsel %vm7631, %v7612, %v6930
      %v7647 = vsel %vm7631, %v7614, %v6932
      %v7649 = vsel %vm7631, %v7616, %v6934
      %v7651 = vsel %vm7631, %v7618, %v6936
      %v7653 = vsel %vm7631, %v7620, %v6938
      %v7655 = vsel %vm7631, %v7622, %v6940
      %v7657 = vsel %vm7631, %v7624, %v6942
      %v7659 = vsel %vm7631, %v7626, %v6944
      %v7661 = vsel %vm7631, %v7628, %v6946
      %v7663 = vsel %vm7631, %v7630, %v6948
      %vm7664 = vcmask 785408
      %v7666 = vsel %vm7664, %v7633, %v6998
      %v7668 = vsel %vm7664, %v7635, %v7000
      %v7670 = vsel %vm7664, %v7637, %v7002
      %v7672 = vsel %vm7664, %v7639, %v7004
      %v7674 = vsel %vm7664, %v7641, %v7006
      %v7676 = vsel %vm7664, %v7643, %v7008
      %v7678 = vsel %vm7664, %v7645, %v7010
      %v7680 = vsel %vm7664, %v7647, %v7012
      %v7682 = vsel %vm7664, %v7649, %v7014
      %v7684 = vsel %vm7664, %v7651, %v7016
      %v7686 = vsel %vm7664, %v7653, %v7018
      %v7688 = vsel %vm7664, %v7655, %v7020
      %v7690 = vsel %vm7664, %v7657, %v7022
      %v7692 = vsel %vm7664, %v7659, %v7024
      %v7694 = vsel %vm7664, %v7661, %v7026
      %v7696 = vsel %vm7664, %v7663, %v7028
      %vm7697 = vcmask 850944
      %v7699 = vsel %vm7697, %v7666, %v7078
      %v7701 = vsel %vm7697, %v7668, %v7080
      %v7703 = vsel %vm7697, %v7670, %v7082
      %v7705 = vsel %vm7697, %v7672, %v7084
      %v7707 = vsel %vm7697, %v7674, %v7086
      %v7709 = vsel %vm7697, %v7676, %v7088
      %v7711 = vsel %vm7697, %v7678, %v7090
      %v7713 = vsel %vm7697, %v7680, %v7092
      %v7715 = vsel %vm7697, %v7682, %v7094
      %v7717 = vsel %vm7697, %v7684, %v7096
      %v7719 = vsel %vm7697, %v7686, %v7098
      %v7721 = vsel %vm7697, %v7688, %v7100
      %v7723 = vsel %vm7697, %v7690, %v7102
      %v7725 = vsel %vm7697, %v7692, %v7104
      %v7727 = vsel %vm7697, %v7694, %v7106
      %v7729 = vsel %vm7697, %v7696, %v7108
      %vm7730 = vcmask 916480
      %v7732 = vsel %vm7730, %v7699, %v7158
      %v7734 = vsel %vm7730, %v7701, %v7160
      %v7736 = vsel %vm7730, %v7703, %v7162
      %v7738 = vsel %vm7730, %v7705, %v7164
      %v7740 = vsel %vm7730, %v7707, %v7166
      %v7742 = vsel %vm7730, %v7709, %v7168
      %v7744 = vsel %vm7730, %v7711, %v7170
      %v7746 = vsel %vm7730, %v7713, %v7172
      %v7748 = vsel %vm7730, %v7715, %v7174
      %v7750 = vsel %vm7730, %v7717, %v7176
      %v7752 = vsel %vm7730, %v7719, %v7178
      %v7754 = vsel %vm7730, %v7721, %v7180
      %v7756 = vsel %vm7730, %v7723, %v7182
      %v7758 = vsel %vm7730, %v7725, %v7184
      %v7760 = vsel %vm7730, %v7727, %v7186
      %v7762 = vsel %vm7730, %v7729, %v7188
      %vm7763 = vcmask 982016
      %v7765 = vsel %vm7763, %v7732, %v7254
      %v7768 = vsel %vm7763, %v7734, %v7256
      %v7771 = vsel %vm7763, %v7736, %v7258
      %v7774 = vsel %vm7763, %v7738, %v7260
      %v7777 = vsel %vm7763, %v7740, %v7262
      %v7780 = vsel %vm7763, %v7742, %v7264
      %v7783 = vsel %vm7763, %v7744, %v7266
      %v7786 = vsel %vm7763, %v7746, %v7268
      %v7789 = vsel %vm7763, %v7748, %v7270
      %v7792 = vsel %vm7763, %v7750, %v7272
      %v7795 = vsel %vm7763, %v7752, %v7274
      %v7798 = vsel %vm7763, %v7754, %v7276
      %v7801 = vsel %vm7763, %v7756, %v7278
      %v7804 = vsel %vm7763, %v7758, %v7280
      %v7807 = vsel %vm7763, %v7760, %v7282
      %v7810 = vsel %vm7763, %v7762, %v7284
      %v7812 = vunpack.c.l.b16 %v3729
      %v7813 = vunpack.c.l.b16 %v3739
      %v7814 = vunpack.c.l.b16 %v3753
      %v7815 = vunpack.c.l.b16 %v3763
      %v7816 = vunpack.c.l.b16 %v3777
      %v7817 = vunpack.c.l.b16 %v3787
      %v7818 = vunpack.c.l.b16 %v3801
      %v7819 = vunpack.c.l.b16 %v3811
      %v7820 = vunpack.c.l.b16 %v3825
      %v7821 = vunpack.c.l.b16 %v3835
      %v7822 = vunpack.c.l.b16 %v3849
      %v7823 = vunpack.c.l.b16 %v3859
      %v7824 = vunpack.c.l.b16 %v3873
      %v7825 = vunpack.c.l.b16 %v3883
      %v7826 = vunpack.c.l.b16 %v3897
      %v7827 = vunpack.c.l.b16 %v3907
      %v7828 = vunpack.c.l.b16 %v3921
      %v7829 = vunpack.c.l.b16 %v3931
      %v7830 = vunpack.c.l.b16 %v3945
      %v7831 = vunpack.c.l.b16 %v3955
      %v7832 = vunpack.c.l.b16 %v3969
      %v7833 = vunpack.c.l.b16 %v3979
      %v7834 = vunpack.c.l.b16 %v3993
      %v7835 = vunpack.c.l.b16 %v4003
      %v7836 = vunpack.c.l.b16 %v4017
      %v7837 = vunpack.c.l.b16 %v4027
      %v7838 = vunpack.c.l.b16 %v4041
      %v7839 = vunpack.c.l.b16 %v4051
      %v7840 = vunpack.c.l.b16 %v4065
      %v7841 = vunpack.c.l.b16 %v4075
      %v7842 = vunpack.c.l.b16 %v4089
      %v7843 = vunpack.c.l.b16 %v4099
      %v7844 = vpack.c.b16 %v7813, %v7812
      %v7845 = vpack.c.b16 %v7815, %v7814
      %v7846 = vpack.c.b16 %v7817, %v7816
      %v7847 = vpack.c.b16 %v7819, %v7818
      %v7848 = vpack.c.b16 %v7821, %v7820
      %v7849 = vpack.c.b16 %v7823, %v7822
      %v7850 = vpack.c.b16 %v7825, %v7824
      %v7851 = vpack.c.b16 %v7827, %v7826
      %v7852 = vpack.c.b16 %v7829, %v7828
      %v7853 = vpack.c.b16 %v7831, %v7830
      %v7854 = vpack.c.b16 %v7833, %v7832
      %v7855 = vpack.c.b16 %v7835, %v7834
      %v7856 = vpack.c.b16 %v7837, %v7836
      %v7857 = vpack.c.b16 %v7839, %v7838
      %v7858 = vpack.c.b16 %v7841, %v7840
      %v7859 = vpack.c.b16 %v7843, %v7842
      %v7860 = vunpack.c.l.b16 %v4167
      %v7861 = vunpack.c.l.b16 %v4170
      %v7862 = vunpack.c.l.b16 %v4174
      %v7863 = vunpack.c.l.b16 %v4177
      %v7864 = vunpack.c.l.b16 %v4181
      %v7865 = vunpack.c.l.b16 %v4184
      %v7866 = vunpack.c.l.b16 %v4188
      %v7867 = vunpack.c.l.b16 %v4191
      %v7868 = vunpack.c.l.b16 %v4195
      %v7869 = vunpack.c.l.b16 %v4198
      %v7870 = vunpack.c.l.b16 %v4202
      %v7871 = vunpack.c.l.b16 %v4205
      %v7872 = vunpack.c.l.b16 %v4209
      %v7873 = vunpack.c.l.b16 %v4212
      %v7874 = vunpack.c.l.b16 %v4216
      %v7875 = vunpack.c.l.b16 %v4219
      %v7876 = vunpack.c.l.b16 %v4223
      %v7877 = vunpack.c.l.b16 %v4226
      %v7878 = vunpack.c.l.b16 %v4230
      %v7879 = vunpack.c.l.b16 %v4233
      %v7880 = vunpack.c.l.b16 %v4237
      %v7881 = vunpack.c.l.b16 %v4240
      %v7882 = vunpack.c.l.b16 %v4244
      %v7883 = vunpack.c.l.b16 %v4247
      %v7884 = vunpack.c.l.b16 %v4251
      %v7885 = vunpack.c.l.b16 %v4254
      %v7886 = vunpack.c.l.b16 %v4258
      %v7887 = vunpack.c.l.b16 %v4261
      %v7888 = vunpack.c.l.b16 %v4265
      %v7889 = vunpack.c.l.b16 %v4268
      %v7890 = vunpack.c.l.b16 %v4272
      %v7891 = vunpack.c.l.b16 %v4275
      %v7892 = vpack.c.b16 %v7861, %v7860
      %v7893 = vpack.c.b16 %v7863, %v7862
      %v7894 = vpack.c.b16 %v7865, %v7864
      %v7895 = vpack.c.b16 %v7867, %v7866
      %v7896 = vpack.c.b16 %v7869, %v7868
      %v7897 = vpack.c.b16 %v7871, %v7870
      %v7898 = vpack.c.b16 %v7873, %v7872
      %v7899 = vpack.c.b16 %v7875, %v7874
      %v7900 = vpack.c.b16 %v7877, %v7876
      %v7901 = vpack.c.b16 %v7879, %v7878
      %v7902 = vpack.c.b16 %v7881, %v7880
      %v7903 = vpack.c.b16 %v7883, %v7882
      %v7904 = vpack.c.b16 %v7885, %v7884
      %v7905 = vpack.c.b16 %v7887, %v7886
      %v7906 = vpack.c.b16 %v7889, %v7888
      %v7907 = vpack.c.b16 %v7891, %v7890
      %7908 = vrot.lane.b32.xlu0 %v7892, 8
      %v7909 = vpop.permute.xlu0 %7908
      %7910 = vrot.lane.b32.xlu0 %v7893, 8
      %v7911 = vpop.permute.xlu0 %7910
      %7912 = vrot.lane.b32.xlu0 %v7894, 8
      %v7913 = vpop.permute.xlu0 %7912
      %7914 = vrot.lane.b32.xlu0 %v7895, 8
      %v7915 = vpop.permute.xlu0 %7914
      %7916 = vrot.lane.b32.xlu0 %v7896, 8
      %v7917 = vpop.permute.xlu0 %7916
      %7918 = vrot.lane.b32.xlu0 %v7897, 8
      %v7919 = vpop.permute.xlu0 %7918
      %7920 = vrot.lane.b32.xlu0 %v7898, 8
      %v7921 = vpop.permute.xlu0 %7920
      %7922 = vrot.lane.b32.xlu0 %v7899, 8
      %v7923 = vpop.permute.xlu0 %7922
      %7924 = vrot.lane.b32.xlu0 %v7900, 8
      %v7925 = vpop.permute.xlu0 %7924
      %7926 = vrot.lane.b32.xlu0 %v7901, 8
      %v7927 = vpop.permute.xlu0 %7926
      %7928 = vrot.lane.b32.xlu0 %v7902, 8
      %v7929 = vpop.permute.xlu0 %7928
      %7930 = vrot.lane.b32.xlu0 %v7903, 8
      %v7931 = vpop.permute.xlu0 %7930
      %7932 = vrot.lane.b32.xlu0 %v7904, 8
      %v7933 = vpop.permute.xlu0 %7932
      %7934 = vrot.lane.b32.xlu0 %v7905, 8
      %v7935 = vpop.permute.xlu0 %7934
      %7936 = vrot.lane.b32.xlu0 %v7906, 8
      %v7937 = vpop.permute.xlu0 %7936
      %7938 = vrot.lane.b32.xlu0 %v7907, 8
      %v7939 = vpop.permute.xlu0 %7938
      %v7940 = vunpack.c.l.b16 %v4304
      %v7941 = vunpack.c.l.b16 %v4314
      %v7942 = vunpack.c.l.b16 %v4327
      %v7943 = vunpack.c.l.b16 %v4337
      %v7944 = vunpack.c.l.b16 %v4350
      %v7945 = vunpack.c.l.b16 %v4360
      %v7946 = vunpack.c.l.b16 %v4373
      %v7947 = vunpack.c.l.b16 %v4383
      %v7948 = vunpack.c.l.b16 %v4396
      %v7949 = vunpack.c.l.b16 %v4406
      %v7950 = vunpack.c.l.b16 %v4419
      %v7951 = vunpack.c.l.b16 %v4429
      %v7952 = vunpack.c.l.b16 %v4442
      %v7953 = vunpack.c.l.b16 %v4452
      %v7954 = vunpack.c.l.b16 %v4465
      %v7955 = vunpack.c.l.b16 %v4475
      %v7956 = vunpack.c.l.b16 %v4488
      %v7957 = vunpack.c.l.b16 %v4498
      %v7958 = vunpack.c.l.b16 %v4511
      %v7959 = vunpack.c.l.b16 %v4521
      %v7960 = vunpack.c.l.b16 %v4534
      %v7961 = vunpack.c.l.b16 %v4544
      %v7962 = vunpack.c.l.b16 %v4557
      %v7963 = vunpack.c.l.b16 %v4567
      %v7964 = vunpack.c.l.b16 %v4580
      %v7965 = vunpack.c.l.b16 %v4590
      %v7966 = vunpack.c.l.b16 %v4603
      %v7967 = vunpack.c.l.b16 %v4613
      %v7968 = vunpack.c.l.b16 %v4626
      %v7969 = vunpack.c.l.b16 %v4636
      %v7970 = vunpack.c.l.b16 %v4649
      %v7971 = vunpack.c.l.b16 %v4659
      %v7972 = vpack.c.b16 %v7941, %v7940
      %v7973 = vpack.c.b16 %v7943, %v7942
      %v7974 = vpack.c.b16 %v7945, %v7944
      %v7975 = vpack.c.b16 %v7947, %v7946
      %v7976 = vpack.c.b16 %v7949, %v7948
      %v7977 = vpack.c.b16 %v7951, %v7950
      %v7978 = vpack.c.b16 %v7953, %v7952
      %v7979 = vpack.c.b16 %v7955, %v7954
      %v7980 = vpack.c.b16 %v7957, %v7956
      %v7981 = vpack.c.b16 %v7959, %v7958
      %v7982 = vpack.c.b16 %v7961, %v7960
      %v7983 = vpack.c.b16 %v7963, %v7962
      %v7984 = vpack.c.b16 %v7965, %v7964
      %v7985 = vpack.c.b16 %v7967, %v7966
      %v7986 = vpack.c.b16 %v7969, %v7968
      %v7987 = vpack.c.b16 %v7971, %v7970
      %7988 = vrot.lane.b32.xlu0 %v7972, 16
      %v7989 = vpop.permute.xlu0 %7988
      %7990 = vrot.lane.b32.xlu0 %v7973, 16
      %v7991 = vpop.permute.xlu0 %7990
      %7992 = vrot.lane.b32.xlu0 %v7974, 16
      %v7993 = vpop.permute.xlu0 %7992
      %7994 = vrot.lane.b32.xlu0 %v7975, 16
      %v7995 = vpop.permute.xlu0 %7994
      %7996 = vrot.lane.b32.xlu0 %v7976, 16
      %v7997 = vpop.permute.xlu0 %7996
      %7998 = vrot.lane.b32.xlu0 %v7977, 16
      %v7999 = vpop.permute.xlu0 %7998
      %8000 = vrot.lane.b32.xlu0 %v7978, 16
      %v8001 = vpop.permute.xlu0 %8000
      %8002 = vrot.lane.b32.xlu0 %v7979, 16
      %v8003 = vpop.permute.xlu0 %8002
      %8004 = vrot.lane.b32.xlu0 %v7980, 16
      %v8005 = vpop.permute.xlu0 %8004
      %8006 = vrot.lane.b32.xlu0 %v7981, 16
      %v8007 = vpop.permute.xlu0 %8006
      %8008 = vrot.lane.b32.xlu0 %v7982, 16
      %v8009 = vpop.permute.xlu0 %8008
      %8010 = vrot.lane.b32.xlu0 %v7983, 16
      %v8011 = vpop.permute.xlu0 %8010
      %8012 = vrot.lane.b32.xlu0 %v7984, 16
      %v8013 = vpop.permute.xlu0 %8012
      %8014 = vrot.lane.b32.xlu0 %v7985, 16
      %v8015 = vpop.permute.xlu0 %8014
      %8016 = vrot.lane.b32.xlu0 %v7986, 16
      %v8017 = vpop.permute.xlu0 %8016
      %8018 = vrot.lane.b32.xlu0 %v7987, 16
      %v8019 = vpop.permute.xlu0 %8018
      %v8020 = vunpack.c.l.b16 %v4711
      %v8021 = vunpack.c.l.b16 %v4714
      %v8022 = vunpack.c.l.b16 %v4718
      %v8023 = vunpack.c.l.b16 %v4721
      %v8024 = vunpack.c.l.b16 %v4725
      %v8025 = vunpack.c.l.b16 %v4728
      %v8026 = vunpack.c.l.b16 %v4732
      %v8027 = vunpack.c.l.b16 %v4735
      %v8028 = vunpack.c.l.b16 %v4739
      %v8029 = vunpack.c.l.b16 %v4742
      %v8030 = vunpack.c.l.b16 %v4746
      %v8031 = vunpack.c.l.b16 %v4749
      %v8032 = vunpack.c.l.b16 %v4753
      %v8033 = vunpack.c.l.b16 %v4756
      %v8034 = vunpack.c.l.b16 %v4760
      %v8035 = vunpack.c.l.b16 %v4763
      %v8036 = vunpack.c.l.b16 %v4767
      %v8037 = vunpack.c.l.b16 %v4770
      %v8038 = vunpack.c.l.b16 %v4774
      %v8039 = vunpack.c.l.b16 %v4777
      %v8040 = vunpack.c.l.b16 %v4781
      %v8041 = vunpack.c.l.b16 %v4784
      %v8042 = vunpack.c.l.b16 %v4788
      %v8043 = vunpack.c.l.b16 %v4791
      %v8044 = vunpack.c.l.b16 %v4795
      %v8045 = vunpack.c.l.b16 %v4798
      %v8046 = vunpack.c.l.b16 %v4802
      %v8047 = vunpack.c.l.b16 %v4805
      %v8048 = vunpack.c.l.b16 %v4809
      %v8049 = vunpack.c.l.b16 %v4812
      %v8050 = vunpack.c.l.b16 %v4816
      %v8051 = vunpack.c.l.b16 %v4819
      %v8052 = vpack.c.b16 %v8021, %v8020
      %v8053 = vpack.c.b16 %v8023, %v8022
      %v8054 = vpack.c.b16 %v8025, %v8024
      %v8055 = vpack.c.b16 %v8027, %v8026
      %v8056 = vpack.c.b16 %v8029, %v8028
      %v8057 = vpack.c.b16 %v8031, %v8030
      %v8058 = vpack.c.b16 %v8033, %v8032
      %v8059 = vpack.c.b16 %v8035, %v8034
      %v8060 = vpack.c.b16 %v8037, %v8036
      %v8061 = vpack.c.b16 %v8039, %v8038
      %v8062 = vpack.c.b16 %v8041, %v8040
      %v8063 = vpack.c.b16 %v8043, %v8042
      %v8064 = vpack.c.b16 %v8045, %v8044
      %v8065 = vpack.c.b16 %v8047, %v8046
      %v8066 = vpack.c.b16 %v8049, %v8048
      %v8067 = vpack.c.b16 %v8051, %v8050
      %8068 = vrot.lane.b32.xlu0 %v8052, 24
      %v8069 = vpop.permute.xlu0 %8068
      %8070 = vrot.lane.b32.xlu0 %v8053, 24
      %v8071 = vpop.permute.xlu0 %8070
      %8072 = vrot.lane.b32.xlu0 %v8054, 24
      %v8073 = vpop.permute.xlu0 %8072
      %8074 = vrot.lane.b32.xlu0 %v8055, 24
      %v8075 = vpop.permute.xlu0 %8074
      %8076 = vrot.lane.b32.xlu0 %v8056, 24
      %v8077 = vpop.permute.xlu0 %8076
      %8078 = vrot.lane.b32.xlu0 %v8057, 24
      %v8079 = vpop.permute.xlu0 %8078
      %8080 = vrot.lane.b32.xlu0 %v8058, 24
      %v8081 = vpop.permute.xlu0 %8080
      %8082 = vrot.lane.b32.xlu0 %v8059, 24
      %v8083 = vpop.permute.xlu0 %8082
      %8084 = vrot.lane.b32.xlu0 %v8060, 24
      %v8085 = vpop.permute.xlu0 %8084
      %8086 = vrot.lane.b32.xlu0 %v8061, 24
      %v8087 = vpop.permute.xlu0 %8086
      %8088 = vrot.lane.b32.xlu0 %v8062, 24
      %v8089 = vpop.permute.xlu0 %8088
      %8090 = vrot.lane.b32.xlu0 %v8063, 24
      %v8091 = vpop.permute.xlu0 %8090
      %8092 = vrot.lane.b32.xlu0 %v8064, 24
      %v8093 = vpop.permute.xlu0 %8092
      %8094 = vrot.lane.b32.xlu0 %v8065, 24
      %v8095 = vpop.permute.xlu0 %8094
      %8096 = vrot.lane.b32.xlu0 %v8066, 24
      %v8097 = vpop.permute.xlu0 %8096
      %8098 = vrot.lane.b32.xlu0 %v8067, 24
      %v8099 = vpop.permute.xlu0 %8098
      %v8116 = vunpack.c.l.b16 %v4821
      %v8117 = vunpack.c.l.b16 %v4822
      %v8118 = vunpack.c.l.b16 %v4823
      %v8119 = vunpack.c.l.b16 %v4824
      %v8120 = vunpack.c.l.b16 %v4825
      %v8121 = vunpack.c.l.b16 %v4826
      %v8122 = vunpack.c.l.b16 %v4827
      %v8123 = vunpack.c.l.b16 %v4828
      %v8124 = vunpack.c.l.b16 %v4829
      %v8125 = vunpack.c.l.b16 %v4830
      %v8126 = vunpack.c.l.b16 %v4831
      %v8127 = vunpack.c.l.b16 %v4832
      %v8128 = vunpack.c.l.b16 %v4833
      %v8129 = vunpack.c.l.b16 %v4834
      %v8130 = vunpack.c.l.b16 %v4835
      %v8131 = vunpack.c.l.b16 %v4836
      %v8132 = vunpack.c.l.b16 %v4837
      %v8133 = vunpack.c.l.b16 %v4838
      %v8134 = vunpack.c.l.b16 %v4839
      %v8135 = vunpack.c.l.b16 %v4840
      %v8136 = vunpack.c.l.b16 %v4841
      %v8137 = vunpack.c.l.b16 %v4842
      %v8138 = vunpack.c.l.b16 %v4843
      %v8139 = vunpack.c.l.b16 %v4844
      %v8140 = vunpack.c.l.b16 %v4845
      %v8141 = vunpack.c.l.b16 %v4846
      %v8142 = vunpack.c.l.b16 %v4847
      %v8143 = vunpack.c.l.b16 %v4848
      %v8144 = vunpack.c.l.b16 %v4849
      %v8145 = vunpack.c.l.b16 %v4850
      %v8146 = vunpack.c.l.b16 %v4851
      %v8147 = vunpack.c.l.b16 %v4852
      %v8148 = vpack.c.b16 %v8117, %v8116
      %v8149 = vpack.c.b16 %v8119, %v8118
      %v8150 = vpack.c.b16 %v8121, %v8120
      %v8151 = vpack.c.b16 %v8123, %v8122
      %v8152 = vpack.c.b16 %v8125, %v8124
      %v8153 = vpack.c.b16 %v8127, %v8126
      %v8154 = vpack.c.b16 %v8129, %v8128
      %v8155 = vpack.c.b16 %v8131, %v8130
      %v8156 = vpack.c.b16 %v8133, %v8132
      %v8157 = vpack.c.b16 %v8135, %v8134
      %v8158 = vpack.c.b16 %v8137, %v8136
      %v8159 = vpack.c.b16 %v8139, %v8138
      %v8160 = vpack.c.b16 %v8141, %v8140
      %v8161 = vpack.c.b16 %v8143, %v8142
      %v8162 = vpack.c.b16 %v8145, %v8144
      %v8163 = vpack.c.b16 %v8147, %v8146
      %8164 = vrot.lane.b32.xlu0 %v8148, 32
      %v8165 = vpop.permute.xlu0 %8164
      %8166 = vrot.lane.b32.xlu0 %v8149, 32
      %v8167 = vpop.permute.xlu0 %8166
      %8168 = vrot.lane.b32.xlu0 %v8150, 32
      %v8169 = vpop.permute.xlu0 %8168
      %8170 = vrot.lane.b32.xlu0 %v8151, 32
      %v8171 = vpop.permute.xlu0 %8170
      %8172 = vrot.lane.b32.xlu0 %v8152, 32
      %v8173 = vpop.permute.xlu0 %8172
      %8174 = vrot.lane.b32.xlu0 %v8153, 32
      %v8175 = vpop.permute.xlu0 %8174
      %8176 = vrot.lane.b32.xlu0 %v8154, 32
      %v8177 = vpop.permute.xlu0 %8176
      %8178 = vrot.lane.b32.xlu0 %v8155, 32
      %v8179 = vpop.permute.xlu0 %8178
      %8180 = vrot.lane.b32.xlu0 %v8156, 32
      %v8181 = vpop.permute.xlu0 %8180
      %8182 = vrot.lane.b32.xlu0 %v8157, 32
      %v8183 = vpop.permute.xlu0 %8182
      %8184 = vrot.lane.b32.xlu0 %v8158, 32
      %v8185 = vpop.permute.xlu0 %8184
      %8186 = vrot.lane.b32.xlu0 %v8159, 32
      %v8187 = vpop.permute.xlu0 %8186
      %8188 = vrot.lane.b32.xlu0 %v8160, 32
      %v8189 = vpop.permute.xlu0 %8188
      %8190 = vrot.lane.b32.xlu0 %v8161, 32
      %v8191 = vpop.permute.xlu0 %8190
      %8192 = vrot.lane.b32.xlu0 %v8162, 32
      %v8193 = vpop.permute.xlu0 %8192
      %8194 = vrot.lane.b32.xlu0 %v8163, 32
      %v8195 = vpop.permute.xlu0 %8194
      %v8196 = vunpack.c.l.b16 %v4882
      %v8197 = vunpack.c.l.b16 %v4892
      %v8198 = vunpack.c.l.b16 %v4906
      %v8199 = vunpack.c.l.b16 %v4916
      %v8200 = vunpack.c.l.b16 %v4930
      %v8201 = vunpack.c.l.b16 %v4940
      %v8202 = vunpack.c.l.b16 %v4954
      %v8203 = vunpack.c.l.b16 %v4964
      %v8204 = vunpack.c.l.b16 %v4978
      %v8205 = vunpack.c.l.b16 %v4988
      %v8206 = vunpack.c.l.b16 %v5002
      %v8207 = vunpack.c.l.b16 %v5012
      %v8208 = vunpack.c.l.b16 %v5026
      %v8209 = vunpack.c.l.b16 %v5036
      %v8210 = vunpack.c.l.b16 %v5050
      %v8211 = vunpack.c.l.b16 %v5060
      %v8212 = vunpack.c.l.b16 %v5074
      %v8213 = vunpack.c.l.b16 %v5084
      %v8214 = vunpack.c.l.b16 %v5098
      %v8215 = vunpack.c.l.b16 %v5108
      %v8216 = vunpack.c.l.b16 %v5122
      %v8217 = vunpack.c.l.b16 %v5132
      %v8218 = vunpack.c.l.b16 %v5146
      %v8219 = vunpack.c.l.b16 %v5156
      %v8220 = vunpack.c.l.b16 %v5170
      %v8221 = vunpack.c.l.b16 %v5180
      %v8222 = vunpack.c.l.b16 %v5194
      %v8223 = vunpack.c.l.b16 %v5204
      %v8224 = vunpack.c.l.b16 %v5218
      %v8225 = vunpack.c.l.b16 %v5228
      %v8226 = vunpack.c.l.b16 %v5242
      %v8227 = vunpack.c.l.b16 %v5252
      %v8228 = vpack.c.b16 %v8197, %v8196
      %v8229 = vpack.c.b16 %v8199, %v8198
      %v8230 = vpack.c.b16 %v8201, %v8200
      %v8231 = vpack.c.b16 %v8203, %v8202
      %v8232 = vpack.c.b16 %v8205, %v8204
      %v8233 = vpack.c.b16 %v8207, %v8206
      %v8234 = vpack.c.b16 %v8209, %v8208
      %v8235 = vpack.c.b16 %v8211, %v8210
      %v8236 = vpack.c.b16 %v8213, %v8212
      %v8237 = vpack.c.b16 %v8215, %v8214
      %v8238 = vpack.c.b16 %v8217, %v8216
      %v8239 = vpack.c.b16 %v8219, %v8218
      %v8240 = vpack.c.b16 %v8221, %v8220
      %v8241 = vpack.c.b16 %v8223, %v8222
      %v8242 = vpack.c.b16 %v8225, %v8224
      %v8243 = vpack.c.b16 %v8227, %v8226
      %8244 = vrot.lane.b32.xlu0 %v8228, 40
      %v8245 = vpop.permute.xlu0 %8244
      %8246 = vrot.lane.b32.xlu0 %v8229, 40
      %v8247 = vpop.permute.xlu0 %8246
      %8248 = vrot.lane.b32.xlu0 %v8230, 40
      %v8249 = vpop.permute.xlu0 %8248
      %8250 = vrot.lane.b32.xlu0 %v8231, 40
      %v8251 = vpop.permute.xlu0 %8250
      %8252 = vrot.lane.b32.xlu0 %v8232, 40
      %v8253 = vpop.permute.xlu0 %8252
      %8254 = vrot.lane.b32.xlu0 %v8233, 40
      %v8255 = vpop.permute.xlu0 %8254
      %8256 = vrot.lane.b32.xlu0 %v8234, 40
      %v8257 = vpop.permute.xlu0 %8256
      %8258 = vrot.lane.b32.xlu0 %v8235, 40
      %v8259 = vpop.permute.xlu0 %8258
      %8260 = vrot.lane.b32.xlu0 %v8236, 40
      %v8261 = vpop.permute.xlu0 %8260
      %8262 = vrot.lane.b32.xlu0 %v8237, 40
      %v8263 = vpop.permute.xlu0 %8262
      %8264 = vrot.lane.b32.xlu0 %v8238, 40
      %v8265 = vpop.permute.xlu0 %8264
      %8266 = vrot.lane.b32.xlu0 %v8239, 40
      %v8267 = vpop.permute.xlu0 %8266
      %8268 = vrot.lane.b32.xlu0 %v8240, 40
      %v8269 = vpop.permute.xlu0 %8268
      %8270 = vrot.lane.b32.xlu0 %v8241, 40
      %v8271 = vpop.permute.xlu0 %8270
      %8272 = vrot.lane.b32.xlu0 %v8242, 40
      %v8273 = vpop.permute.xlu0 %8272
      %8274 = vrot.lane.b32.xlu0 %v8243, 40
      %v8275 = vpop.permute.xlu0 %8274
      %v8276 = vunpack.c.l.b16 %v5320
      %v8277 = vunpack.c.l.b16 %v5323
      %v8278 = vunpack.c.l.b16 %v5327
      %v8279 = vunpack.c.l.b16 %v5330
      %v8280 = vunpack.c.l.b16 %v5334
      %v8281 = vunpack.c.l.b16 %v5337
      %v8282 = vunpack.c.l.b16 %v5341
      %v8283 = vunpack.c.l.b16 %v5344
      %v8284 = vunpack.c.l.b16 %v5348
      %v8285 = vunpack.c.l.b16 %v5351
      %v8286 = vunpack.c.l.b16 %v5355
      %v8287 = vunpack.c.l.b16 %v5358
      %v8288 = vunpack.c.l.b16 %v5362
      %v8289 = vunpack.c.l.b16 %v5365
      %v8290 = vunpack.c.l.b16 %v5369
      %v8291 = vunpack.c.l.b16 %v5372
      %v8292 = vunpack.c.l.b16 %v5376
      %v8293 = vunpack.c.l.b16 %v5379
      %v8294 = vunpack.c.l.b16 %v5383
      %v8295 = vunpack.c.l.b16 %v5386
      %v8296 = vunpack.c.l.b16 %v5390
      %v8297 = vunpack.c.l.b16 %v5393
      %v8298 = vunpack.c.l.b16 %v5397
      %v8299 = vunpack.c.l.b16 %v5400
      %v8300 = vunpack.c.l.b16 %v5404
      %v8301 = vunpack.c.l.b16 %v5407
      %v8302 = vunpack.c.l.b16 %v5411
      %v8303 = vunpack.c.l.b16 %v5414
      %v8304 = vunpack.c.l.b16 %v5418
      %v8305 = vunpack.c.l.b16 %v5421
      %v8306 = vunpack.c.l.b16 %v5425
      %v8307 = vunpack.c.l.b16 %v5428
      %v8308 = vpack.c.b16 %v8277, %v8276
      %v8309 = vpack.c.b16 %v8279, %v8278
      %v8310 = vpack.c.b16 %v8281, %v8280
      %v8311 = vpack.c.b16 %v8283, %v8282
      %v8312 = vpack.c.b16 %v8285, %v8284
      %v8313 = vpack.c.b16 %v8287, %v8286
      %v8314 = vpack.c.b16 %v8289, %v8288
      %v8315 = vpack.c.b16 %v8291, %v8290
      %v8316 = vpack.c.b16 %v8293, %v8292
      %v8317 = vpack.c.b16 %v8295, %v8294
      %v8318 = vpack.c.b16 %v8297, %v8296
      %v8319 = vpack.c.b16 %v8299, %v8298
      %v8320 = vpack.c.b16 %v8301, %v8300
      %v8321 = vpack.c.b16 %v8303, %v8302
      %v8322 = vpack.c.b16 %v8305, %v8304
      %v8323 = vpack.c.b16 %v8307, %v8306
      %8324 = vrot.lane.b32.xlu0 %v8308, 48
      %v8325 = vpop.permute.xlu0 %8324
      %8326 = vrot.lane.b32.xlu0 %v8309, 48
      %v8327 = vpop.permute.xlu0 %8326
      %8328 = vrot.lane.b32.xlu0 %v8310, 48
      %v8329 = vpop.permute.xlu0 %8328
      %8330 = vrot.lane.b32.xlu0 %v8311, 48
      %v8331 = vpop.permute.xlu0 %8330
      %8332 = vrot.lane.b32.xlu0 %v8312, 48
      %v8333 = vpop.permute.xlu0 %8332
      %8334 = vrot.lane.b32.xlu0 %v8313, 48
      %v8335 = vpop.permute.xlu0 %8334
      %8336 = vrot.lane.b32.xlu0 %v8314, 48
      %v8337 = vpop.permute.xlu0 %8336
      %8338 = vrot.lane.b32.xlu0 %v8315, 48
      %v8339 = vpop.permute.xlu0 %8338
      %8340 = vrot.lane.b32.xlu0 %v8316, 48
      %v8341 = vpop.permute.xlu0 %8340
      %8342 = vrot.lane.b32.xlu0 %v8317, 48
      %v8343 = vpop.permute.xlu0 %8342
      %8344 = vrot.lane.b32.xlu0 %v8318, 48
      %v8345 = vpop.permute.xlu0 %8344
      %8346 = vrot.lane.b32.xlu0 %v8319, 48
      %v8347 = vpop.permute.xlu0 %8346
      %8348 = vrot.lane.b32.xlu0 %v8320, 48
      %v8349 = vpop.permute.xlu0 %8348
      %8350 = vrot.lane.b32.xlu0 %v8321, 48
      %v8351 = vpop.permute.xlu0 %8350
      %8352 = vrot.lane.b32.xlu0 %v8322, 48
      %v8353 = vpop.permute.xlu0 %8352
      %8354 = vrot.lane.b32.xlu0 %v8323, 48
      %v8355 = vpop.permute.xlu0 %8354
      %v8356 = vunpack.c.l.b16 %v5457
      %v8357 = vunpack.c.l.b16 %v5467
      %v8358 = vunpack.c.l.b16 %v5480
      %v8359 = vunpack.c.l.b16 %v5490
      %v8360 = vunpack.c.l.b16 %v5503
      %v8361 = vunpack.c.l.b16 %v5513
      %v8362 = vunpack.c.l.b16 %v5526
      %v8363 = vunpack.c.l.b16 %v5536
      %v8364 = vunpack.c.l.b16 %v5549
      %v8365 = vunpack.c.l.b16 %v5559
      %v8366 = vunpack.c.l.b16 %v5572
      %v8367 = vunpack.c.l.b16 %v5582
      %v8368 = vunpack.c.l.b16 %v5595
      %v8369 = vunpack.c.l.b16 %v5605
      %v8370 = vunpack.c.l.b16 %v5618
      %v8371 = vunpack.c.l.b16 %v5628
      %v8372 = vunpack.c.l.b16 %v5641
      %v8373 = vunpack.c.l.b16 %v5651
      %v8374 = vunpack.c.l.b16 %v5664
      %v8375 = vunpack.c.l.b16 %v5674
      %v8376 = vunpack.c.l.b16 %v5687
      %v8377 = vunpack.c.l.b16 %v5697
      %v8378 = vunpack.c.l.b16 %v5710
      %v8379 = vunpack.c.l.b16 %v5720
      %v8380 = vunpack.c.l.b16 %v5733
      %v8381 = vunpack.c.l.b16 %v5743
      %v8382 = vunpack.c.l.b16 %v5756
      %v8383 = vunpack.c.l.b16 %v5766
      %v8384 = vunpack.c.l.b16 %v5779
      %v8385 = vunpack.c.l.b16 %v5789
      %v8386 = vunpack.c.l.b16 %v5802
      %v8387 = vunpack.c.l.b16 %v5812
      %v8388 = vpack.c.b16 %v8357, %v8356
      %v8389 = vpack.c.b16 %v8359, %v8358
      %v8390 = vpack.c.b16 %v8361, %v8360
      %v8391 = vpack.c.b16 %v8363, %v8362
      %v8392 = vpack.c.b16 %v8365, %v8364
      %v8393 = vpack.c.b16 %v8367, %v8366
      %v8394 = vpack.c.b16 %v8369, %v8368
      %v8395 = vpack.c.b16 %v8371, %v8370
      %v8396 = vpack.c.b16 %v8373, %v8372
      %v8397 = vpack.c.b16 %v8375, %v8374
      %v8398 = vpack.c.b16 %v8377, %v8376
      %v8399 = vpack.c.b16 %v8379, %v8378
      %v8400 = vpack.c.b16 %v8381, %v8380
      %v8401 = vpack.c.b16 %v8383, %v8382
      %v8402 = vpack.c.b16 %v8385, %v8384
      %v8403 = vpack.c.b16 %v8387, %v8386
      %8404 = vrot.lane.b32.xlu0 %v8388, 56
      %v8405 = vpop.permute.xlu0 %8404
      %8406 = vrot.lane.b32.xlu0 %v8389, 56
      %v8407 = vpop.permute.xlu0 %8406
      %8408 = vrot.lane.b32.xlu0 %v8390, 56
      %v8409 = vpop.permute.xlu0 %8408
      %8410 = vrot.lane.b32.xlu0 %v8391, 56
      %v8411 = vpop.permute.xlu0 %8410
      %8412 = vrot.lane.b32.xlu0 %v8392, 56
      %v8413 = vpop.permute.xlu0 %8412
      %8414 = vrot.lane.b32.xlu0 %v8393, 56
      %v8415 = vpop.permute.xlu0 %8414
      %8416 = vrot.lane.b32.xlu0 %v8394, 56
      %v8417 = vpop.permute.xlu0 %8416
      %8418 = vrot.lane.b32.xlu0 %v8395, 56
      %v8419 = vpop.permute.xlu0 %8418
      %8420 = vrot.lane.b32.xlu0 %v8396, 56
      %v8421 = vpop.permute.xlu0 %8420
      %8422 = vrot.lane.b32.xlu0 %v8397, 56
      %v8423 = vpop.permute.xlu0 %8422
      %8424 = vrot.lane.b32.xlu0 %v8398, 56
      %v8425 = vpop.permute.xlu0 %8424
      %8426 = vrot.lane.b32.xlu0 %v8399, 56
      %v8427 = vpop.permute.xlu0 %8426
      %8428 = vrot.lane.b32.xlu0 %v8400, 56
      %v8429 = vpop.permute.xlu0 %8428
      %8430 = vrot.lane.b32.xlu0 %v8401, 56
      %v8431 = vpop.permute.xlu0 %8430
      %8432 = vrot.lane.b32.xlu0 %v8402, 56
      %v8433 = vpop.permute.xlu0 %8432
      %8434 = vrot.lane.b32.xlu0 %v8403, 56
      %v8435 = vpop.permute.xlu0 %8434
      %v8436 = vunpack.c.l.b16 %v5864
      %v8437 = vunpack.c.l.b16 %v5867
      %v8438 = vunpack.c.l.b16 %v5871
      %v8439 = vunpack.c.l.b16 %v5874
      %v8440 = vunpack.c.l.b16 %v5878
      %v8441 = vunpack.c.l.b16 %v5881
      %v8442 = vunpack.c.l.b16 %v5885
      %v8443 = vunpack.c.l.b16 %v5888
      %v8444 = vunpack.c.l.b16 %v5892
      %v8445 = vunpack.c.l.b16 %v5895
      %v8446 = vunpack.c.l.b16 %v5899
      %v8447 = vunpack.c.l.b16 %v5902
      %v8448 = vunpack.c.l.b16 %v5906
      %v8449 = vunpack.c.l.b16 %v5909
      %v8450 = vunpack.c.l.b16 %v5913
      %v8451 = vunpack.c.l.b16 %v5916
      %v8452 = vunpack.c.l.b16 %v5920
      %v8453 = vunpack.c.l.b16 %v5923
      %v8454 = vunpack.c.l.b16 %v5927
      %v8455 = vunpack.c.l.b16 %v5930
      %v8456 = vunpack.c.l.b16 %v5934
      %v8457 = vunpack.c.l.b16 %v5937
      %v8458 = vunpack.c.l.b16 %v5941
      %v8459 = vunpack.c.l.b16 %v5944
      %v8460 = vunpack.c.l.b16 %v5948
      %v8461 = vunpack.c.l.b16 %v5951
      %v8462 = vunpack.c.l.b16 %v5955
      %v8463 = vunpack.c.l.b16 %v5958
      %v8464 = vunpack.c.l.b16 %v5962
      %v8465 = vunpack.c.l.b16 %v5965
      %v8466 = vunpack.c.l.b16 %v5969
      %v8467 = vunpack.c.l.b16 %v5972
      %v8468 = vpack.c.b16 %v8437, %v8436
      %v8469 = vpack.c.b16 %v8439, %v8438
      %v8470 = vpack.c.b16 %v8441, %v8440
      %v8471 = vpack.c.b16 %v8443, %v8442
      %v8472 = vpack.c.b16 %v8445, %v8444
      %v8473 = vpack.c.b16 %v8447, %v8446
      %v8474 = vpack.c.b16 %v8449, %v8448
      %v8475 = vpack.c.b16 %v8451, %v8450
      %v8476 = vpack.c.b16 %v8453, %v8452
      %v8477 = vpack.c.b16 %v8455, %v8454
      %v8478 = vpack.c.b16 %v8457, %v8456
      %v8479 = vpack.c.b16 %v8459, %v8458
      %v8480 = vpack.c.b16 %v8461, %v8460
      %v8481 = vpack.c.b16 %v8463, %v8462
      %v8482 = vpack.c.b16 %v8465, %v8464
      %v8483 = vpack.c.b16 %v8467, %v8466
      %8484 = vrot.lane.b32.xlu0 %v8468, 64
      %v8485 = vpop.permute.xlu0 %8484
      %8486 = vrot.lane.b32.xlu0 %v8469, 64
      %v8487 = vpop.permute.xlu0 %8486
      %8488 = vrot.lane.b32.xlu0 %v8470, 64
      %v8489 = vpop.permute.xlu0 %8488
      %8490 = vrot.lane.b32.xlu0 %v8471, 64
      %v8491 = vpop.permute.xlu0 %8490
      %8492 = vrot.lane.b32.xlu0 %v8472, 64
      %v8493 = vpop.permute.xlu0 %8492
      %8494 = vrot.lane.b32.xlu0 %v8473, 64
      %v8495 = vpop.permute.xlu0 %8494
      %8496 = vrot.lane.b32.xlu0 %v8474, 64
      %v8497 = vpop.permute.xlu0 %8496
      %8498 = vrot.lane.b32.xlu0 %v8475, 64
      %v8499 = vpop.permute.xlu0 %8498
      %8500 = vrot.lane.b32.xlu0 %v8476, 64
      %v8501 = vpop.permute.xlu0 %8500
      %8502 = vrot.lane.b32.xlu0 %v8477, 64
      %v8503 = vpop.permute.xlu0 %8502
      %8504 = vrot.lane.b32.xlu0 %v8478, 64
      %v8505 = vpop.permute.xlu0 %8504
      %8506 = vrot.lane.b32.xlu0 %v8479, 64
      %v8507 = vpop.permute.xlu0 %8506
      %8508 = vrot.lane.b32.xlu0 %v8480, 64
      %v8509 = vpop.permute.xlu0 %8508
      %8510 = vrot.lane.b32.xlu0 %v8481, 64
      %v8511 = vpop.permute.xlu0 %8510
      %8512 = vrot.lane.b32.xlu0 %v8482, 64
      %v8513 = vpop.permute.xlu0 %8512
      %8514 = vrot.lane.b32.xlu0 %v8483, 64
      %v8515 = vpop.permute.xlu0 %8514
      %v8518 = vsel %vm7285, %v7844, %v7909
      %v8521 = vsel %vm7285, %v7845, %v7911
      %v8524 = vsel %vm7285, %v7846, %v7913
      %v8527 = vsel %vm7285, %v7847, %v7915
      %v8530 = vsel %vm7285, %v7848, %v7917
      %v8533 = vsel %vm7285, %v7849, %v7919
      %v8536 = vsel %vm7285, %v7850, %v7921
      %v8539 = vsel %vm7285, %v7851, %v7923
      %v8542 = vsel %vm7285, %v7852, %v7925
      %v8545 = vsel %vm7285, %v7853, %v7927
      %v8548 = vsel %vm7285, %v7854, %v7929
      %v8551 = vsel %vm7285, %v7855, %v7931
      %v8554 = vsel %vm7285, %v7856, %v7933
      %v8557 = vsel %vm7285, %v7857, %v7935
      %v8560 = vsel %vm7285, %v7858, %v7937
      %v8563 = vsel %vm7285, %v7859, %v7939
      %v8565 = vsel %vm7334, %v8518, %v7989
      %v8567 = vsel %vm7334, %v8521, %v7991
      %v8569 = vsel %vm7334, %v8524, %v7993
      %v8571 = vsel %vm7334, %v8527, %v7995
      %v8573 = vsel %vm7334, %v8530, %v7997
      %v8575 = vsel %vm7334, %v8533, %v7999
      %v8577 = vsel %vm7334, %v8536, %v8001
      %v8579 = vsel %vm7334, %v8539, %v8003
      %v8581 = vsel %vm7334, %v8542, %v8005
      %v8583 = vsel %vm7334, %v8545, %v8007
      %v8585 = vsel %vm7334, %v8548, %v8009
      %v8587 = vsel %vm7334, %v8551, %v8011
      %v8589 = vsel %vm7334, %v8554, %v8013
      %v8591 = vsel %vm7334, %v8557, %v8015
      %v8593 = vsel %vm7334, %v8560, %v8017
      %v8595 = vsel %vm7334, %v8563, %v8019
      %v8597 = vsel %vm7367, %v8565, %v8069
      %v8599 = vsel %vm7367, %v8567, %v8071
      %v8601 = vsel %vm7367, %v8569, %v8073
      %v8603 = vsel %vm7367, %v8571, %v8075
      %v8605 = vsel %vm7367, %v8573, %v8077
      %v8607 = vsel %vm7367, %v8575, %v8079
      %v8609 = vsel %vm7367, %v8577, %v8081
      %v8611 = vsel %vm7367, %v8579, %v8083
      %v8613 = vsel %vm7367, %v8581, %v8085
      %v8615 = vsel %vm7367, %v8583, %v8087
      %v8617 = vsel %vm7367, %v8585, %v8089
      %v8619 = vsel %vm7367, %v8587, %v8091
      %v8621 = vsel %vm7367, %v8589, %v8093
      %v8623 = vsel %vm7367, %v8591, %v8095
      %v8625 = vsel %vm7367, %v8593, %v8097
      %v8627 = vsel %vm7367, %v8595, %v8099
      %v8629 = vsel %vm7400, %v8597, %v8165
      %v8631 = vsel %vm7400, %v8599, %v8167
      %v8633 = vsel %vm7400, %v8601, %v8169
      %v8635 = vsel %vm7400, %v8603, %v8171
      %v8637 = vsel %vm7400, %v8605, %v8173
      %v8639 = vsel %vm7400, %v8607, %v8175
      %v8641 = vsel %vm7400, %v8609, %v8177
      %v8643 = vsel %vm7400, %v8611, %v8179
      %v8645 = vsel %vm7400, %v8613, %v8181
      %v8647 = vsel %vm7400, %v8615, %v8183
      %v8649 = vsel %vm7400, %v8617, %v8185
      %v8651 = vsel %vm7400, %v8619, %v8187
      %v8653 = vsel %vm7400, %v8621, %v8189
      %v8655 = vsel %vm7400, %v8623, %v8191
      %v8657 = vsel %vm7400, %v8625, %v8193
      %v8659 = vsel %vm7400, %v8627, %v8195
      %v8661 = vsel %vm7433, %v8629, %v8245
      %v8663 = vsel %vm7433, %v8631, %v8247
      %v8665 = vsel %vm7433, %v8633, %v8249
      %v8667 = vsel %vm7433, %v8635, %v8251
      %v8669 = vsel %vm7433, %v8637, %v8253
      %v8671 = vsel %vm7433, %v8639, %v8255
      %v8673 = vsel %vm7433, %v8641, %v8257
      %v8675 = vsel %vm7433, %v8643, %v8259
      %v8677 = vsel %vm7433, %v8645, %v8261
      %v8679 = vsel %vm7433, %v8647, %v8263
      %v8681 = vsel %vm7433, %v8649, %v8265
      %v8683 = vsel %vm7433, %v8651, %v8267
      %v8685 = vsel %vm7433, %v8653, %v8269
      %v8687 = vsel %vm7433, %v8655, %v8271
      %v8689 = vsel %vm7433, %v8657, %v8273
      %v8691 = vsel %vm7433, %v8659, %v8275
      %v8693 = vsel %vm7466, %v8661, %v8325
      %v8695 = vsel %vm7466, %v8663, %v8327
      %v8697 = vsel %vm7466, %v8665, %v8329
      %v8699 = vsel %vm7466, %v8667, %v8331
      %v8701 = vsel %vm7466, %v8669, %v8333
      %v8703 = vsel %vm7466, %v8671, %v8335
      %v8705 = vsel %vm7466, %v8673, %v8337
      %v8707 = vsel %vm7466, %v8675, %v8339
      %v8709 = vsel %vm7466, %v8677, %v8341
      %v8711 = vsel %vm7466, %v8679, %v8343
      %v8713 = vsel %vm7466, %v8681, %v8345
      %v8715 = vsel %vm7466, %v8683, %v8347
      %v8717 = vsel %vm7466, %v8685, %v8349
      %v8719 = vsel %vm7466, %v8687, %v8351
      %v8721 = vsel %vm7466, %v8689, %v8353
      %v8723 = vsel %vm7466, %v8691, %v8355
      %v8725 = vsel %vm7499, %v8693, %v8405
      %v8727 = vsel %vm7499, %v8695, %v8407
      %v8729 = vsel %vm7499, %v8697, %v8409
      %v8731 = vsel %vm7499, %v8699, %v8411
      %v8733 = vsel %vm7499, %v8701, %v8413
      %v8735 = vsel %vm7499, %v8703, %v8415
      %v8737 = vsel %vm7499, %v8705, %v8417
      %v8739 = vsel %vm7499, %v8707, %v8419
      %v8741 = vsel %vm7499, %v8709, %v8421
      %v8743 = vsel %vm7499, %v8711, %v8423
      %v8745 = vsel %vm7499, %v8713, %v8425
      %v8747 = vsel %vm7499, %v8715, %v8427
      %v8749 = vsel %vm7499, %v8717, %v8429
      %v8751 = vsel %vm7499, %v8719, %v8431
      %v8753 = vsel %vm7499, %v8721, %v8433
      %v8755 = vsel %vm7499, %v8723, %v8435
      %v8757 = vsel %vm7532, %v8725, %v8485
      %v8759 = vsel %vm7532, %v8727, %v8487
      %v8761 = vsel %vm7532, %v8729, %v8489
      %v8763 = vsel %vm7532, %v8731, %v8491
      %v8765 = vsel %vm7532, %v8733, %v8493
      %v8767 = vsel %vm7532, %v8735, %v8495
      %v8769 = vsel %vm7532, %v8737, %v8497
      %v8771 = vsel %vm7532, %v8739, %v8499
      %v8773 = vsel %vm7532, %v8741, %v8501
      %v8775 = vsel %vm7532, %v8743, %v8503
      %v8777 = vsel %vm7532, %v8745, %v8505
      %v8779 = vsel %vm7532, %v8747, %v8507
      %v8781 = vsel %vm7532, %v8749, %v8509
      %v8783 = vsel %vm7532, %v8751, %v8511
      %v8785 = vsel %vm7532, %v8753, %v8513
      %v8787 = vsel %vm7532, %v8755, %v8515
      %v8788 = vld [vmem:[%s1] sm:$0xf]
      %v8789 = vld [vmem:[%s1 + $0x4] sm:$0xf]
      %v8790 = vld [vmem:[%s1 + $0x8] sm:$0xf]
      %v8791 = vld [vmem:[%s1 + $0xc] sm:$0xf]
      %v8792 = vld [vmem:[%s1 + $0x10] sm:$0xf]
      %v8793 = vld [vmem:[%s1 + $0x14] sm:$0xf]
      %v8794 = vld [vmem:[%s1 + $0x18] sm:$0xf]
      %v8795 = vld [vmem:[%s1 + $0x1c] sm:$0xf]
      %v8796 = vld [vmem:[%s1 + $0x20] sm:$0xf]
      %v8797 = vld [vmem:[%s1 + $0x24] sm:$0xf]
      %v8798 = vld [vmem:[%s1 + $0x28] sm:$0xf]
      %v8799 = vld [vmem:[%s1 + $0x2c] sm:$0xf]
      %v8800 = vld [vmem:[%s1 + $0x30] sm:$0xf]
      %v8801 = vld [vmem:[%s1 + $0x34] sm:$0xf]
      %v8802 = vld [vmem:[%s1 + $0x38] sm:$0xf]
      %v8803 = vld [vmem:[%s1 + $0x3c] sm:$0xf]
      %v8804 = vld [vmem:[%s1 + $0x40] sm:$0xf]
      %v8805 = vld [vmem:[%s1 + $0x44] sm:$0xf]
      %v8806 = vld [vmem:[%s1 + $0x48] sm:$0xf]
      %v8807 = vld [vmem:[%s1 + $0x4c] sm:$0xf]
      %v8808 = vld [vmem:[%s1 + $0x50] sm:$0xf]
      %v8809 = vld [vmem:[%s1 + $0x54] sm:$0xf]
      %v8810 = vld [vmem:[%s1 + $0x58] sm:$0xf]
      %v8811 = vld [vmem:[%s1 + $0x5c] sm:$0xf]
      %v8812 = vld [vmem:[%s1 + $0x60] sm:$0xf]
      %v8813 = vld [vmem:[%s2] sm:$0x1]
      %v8815 = vperm.slane %v8813, 0
      %v8842 = vunpack.c.l.b16 %v8788
      %v8843 = vunpack.c.l.b16 %v8789
      %v8844 = vunpack.c.l.b16 %v8790
      %v8845 = vunpack.c.l.b16 %v8791
      %v8846 = vunpack.c.l.b16 %v8792
      %v8847 = vunpack.c.l.b16 %v8793
      %v8848 = vunpack.c.l.b16 %v8794
      %v8849 = vunpack.c.l.b16 %v8795
      %v8850 = vunpack.c.l.b16 %v8796
      %v8851 = vunpack.c.l.b16 %v8797
      %v8852 = vunpack.c.l.b16 %v8798
      %v8853 = vunpack.c.l.b16 %v8799
      %v8854 = vunpack.c.l.b16 %v8800
      %v8855 = vunpack.c.l.b16 %v8801
      %v8856 = vunpack.c.l.b16 %v8802
      %v8857 = vunpack.c.l.b16 %v8803
      %v8858 = vunpack.c.l.b16 %v8804
      %v8859 = vunpack.c.l.b16 %v8805
      %v8860 = vunpack.c.l.b16 %v8806
      %v8861 = vunpack.c.l.b16 %v8807
      %v8862 = vunpack.c.l.b16 %v8808
      %v8863 = vunpack.c.l.b16 %v8809
      %v8864 = vunpack.c.l.b16 %v8810
      %v8865 = vunpack.c.l.b16 %v8811
      %v8866 = vunpack.c.l.b16 %v8812
      %v8867 = vpack.c.b16 %v8843, %v8842
      %v8868 = vpack.c.b16 %v8845, %v8844
      %v8869 = vpack.c.b16 %v8847, %v8846
      %v8870 = vpack.c.b16 %v8849, %v8848
      %v8871 = vpack.c.b16 %v8851, %v8850
      %v8872 = vpack.c.b16 %v8853, %v8852
      %v8873 = vpack.c.b16 %v8855, %v8854
      %v8874 = vpack.c.b16 %v8857, %v8856
      %v8875 = vpack.c.b16 %v8859, %v8858
      %v8876 = vpack.c.b16 %v8861, %v8860
      %v8877 = vpack.c.b16 %v8863, %v8862
      %v8878 = vpack.c.b16 %v8865, %v8864
      %v8879 = vpack.c.b16 %v8866, %v8866
      %v8892 = vsel %vm7565, %v8757, 0
      %v8894 = vsel %vm7565, %v8759, 0
      %v8896 = vsel %vm7565, %v8761, 0
      %v8898 = vsel %vm7565, %v8763, 0
      %v8900 = vsel %vm7565, %v8765, 0
      %v8902 = vsel %vm7565, %v8767, 0
      %v8904 = vsel %vm7565, %v8769, 0
      %v8906 = vsel %vm7565, %v8771, 0
      %v8908 = vsel %vm7565, %v8773, 0
      %v8910 = vsel %vm7565, %v8775, 0
      %v8912 = vsel %vm7565, %v8777, 0
      %v8914 = vsel %vm7565, %v8779, 0
      %v8916 = vsel %vm7565, %v8781, 0
      %v8918 = vsel %vm7565, %v8783, 0
      %v8920 = vsel %vm7565, %v8785, 0
      %v8922 = vsel %vm7565, %v8787, 0
      %vm8924 = vcmask 1043456
      %v8926 = vsel %vm8924, %v8879, 0
      %8928 = vmatpush.bf16.msra.mxu0 %v8874
      %8929 = vmatpush.bf16.msra.mxu0 %v8873
      %8930 = vmatpush.bf16.msra.mxu0 %v8872
      %8931 = vmatpush.bf16.msra.mxu0 %v8871
      %8932 = vmatpush.bf16.msra.mxu0 %v8870
      %8933 = vmatpush.bf16.msra.mxu0 %v8869
      %8934 = vmatpush.bf16.msra.mxu0 %v8868
      %8935 = vmatpush.bf16.msra.mxu0 %v8867
      %8936 = vmatmul.bf16.gmra.mxu0 %v7765
      %v8937 = vpop.f32.mrf.mxu0
      %v8938 = vadd.f32 %v8815, %v8937
      %v8939 = vpop.f32.mrf.mxu0
      %v8940 = vadd.f32 %v8815, %v8939
      %8941 = vmatmul.bf16.gmra.mxu0 %v7768
      %v8942 = vpop.f32.mrf.mxu0
      %v8943 = vadd.f32 %v8815, %v8942
      %v8944 = vpop.f32.mrf.mxu0
      %v8945 = vadd.f32 %v8815, %v8944
      %8946 = vmatmul.bf16.gmra.mxu0 %v7771
      %v8947 = vpop.f32.mrf.mxu0
      %v8948 = vadd.f32 %v8815, %v8947
      %v8949 = vpop.f32.mrf.mxu0
      %v8950 = vadd.f32 %v8815, %v8949
      %8951 = vmatmul.bf16.gmra.mxu0 %v7774
      %v8952 = vpop.f32.mrf.mxu0
      %v8953 = vadd.f32 %v8815, %v8952
      %v8954 = vpop.f32.mrf.mxu0
      %v8955 = vadd.f32 %v8815, %v8954
      %8956 = vmatmul.bf16.gmra.mxu0 %v7777
      %v8957 = vpop.f32.mrf.mxu0
      %v8958 = vadd.f32 %v8815, %v8957
      %v8959 = vpop.f32.mrf.mxu0
      %v8960 = vadd.f32 %v8815, %v8959
      %8961 = vmatmul.bf16.gmra.mxu0 %v7780
      %v8962 = vpop.f32.mrf.mxu0
      %v8963 = vadd.f32 %v8815, %v8962
      %v8964 = vpop.f32.mrf.mxu0
      %v8965 = vadd.f32 %v8815, %v8964
      %8966 = vmatmul.bf16.gmra.mxu0 %v7783
      %v8967 = vpop.f32.mrf.mxu0
      %v8968 = vadd.f32 %v8815, %v8967
      %v8969 = vpop.f32.mrf.mxu0
      %v8970 = vadd.f32 %v8815, %v8969
      %8971 = vmatmul.bf16.gmra.mxu0 %v7786
      %v8972 = vpop.f32.mrf.mxu0
      %v8973 = vadd.f32 %v8815, %v8972
      %v8974 = vpop.f32.mrf.mxu0
      %v8975 = vadd.f32 %v8815, %v8974
      %8976 = vmatmul.bf16.gmra.mxu0 %v7789
      %v8977 = vpop.f32.mrf.mxu0
      %v8978 = vadd.f32 %v8815, %v8977
      %v8979 = vpop.f32.mrf.mxu0
      %v8980 = vadd.f32 %v8815, %v8979
      %8981 = vmatmul.bf16.gmra.mxu0 %v7792
      %v8982 = vpop.f32.mrf.mxu0
      %v8983 = vadd.f32 %v8815, %v8982
      %v8984 = vpop.f32.mrf.mxu0
      %v8985 = vadd.f32 %v8815, %v8984
      %8986 = vmatmul.bf16.gmra.mxu0 %v7795
      %v8987 = vpop.f32.mrf.mxu0
      %v8988 = vadd.f32 %v8815, %v8987
      %v8989 = vpop.f32.mrf.mxu0
      %v8990 = vadd.f32 %v8815, %v8989
      %8991 = vmatmul.bf16.gmra.mxu0 %v7798
      %v8992 = vpop.f32.mrf.mxu0
      %v8993 = vadd.f32 %v8815, %v8992
      %v8994 = vpop.f32.mrf.mxu0
      %v8995 = vadd.f32 %v8815, %v8994
      %8996 = vmatmul.bf16.gmra.mxu0 %v7801
      %v8997 = vpop.f32.mrf.mxu0
      %v8998 = vadd.f32 %v8815, %v8997
      %v8999 = vpop.f32.mrf.mxu0
      %v9000 = vadd.f32 %v8815, %v8999
      %9001 = vmatmul.bf16.gmra.mxu0 %v7804
      %v9002 = vpop.f32.mrf.mxu0
      %v9003 = vadd.f32 %v8815, %v9002
      %v9004 = vpop.f32.mrf.mxu0
      %v9005 = vadd.f32 %v8815, %v9004
      %9006 = vmatmul.bf16.gmra.mxu0 %v7807
      %v9007 = vpop.f32.mrf.mxu0
      %v9008 = vadd.f32 %v8815, %v9007
      %v9009 = vpop.f32.mrf.mxu0
      %v9010 = vadd.f32 %v8815, %v9009
      %9011 = vmatmul.bf16.gmra.mxu0 %v7810
      %v9012 = vpop.f32.mrf.mxu0
      %v9013 = vadd.f32 %v8815, %v9012
      %v9014 = vpop.f32.mrf.mxu0
      %v9015 = vadd.f32 %v8815, %v9014
      %9016 = vdwg.mxu0
      %9017 = vmatpush.bf16.msra.mxu0 0
      %9018 = vmatpush.bf16.msra.mxu0 0
      %9019 = vmatpush.bf16.msra.mxu0 0
      %9020 = vmatpush.bf16.msra.mxu0 %v8926
      %9021 = vmatpush.bf16.msra.mxu0 %v8878
      %9022 = vmatpush.bf16.msra.mxu0 %v8877
      %9023 = vmatpush.bf16.msra.mxu0 %v8876
      %9024 = vmatpush.bf16.msra.mxu0 %v8875
      %9025 = vmatmul.bf16.gmra.mxu0 %v8892
      %v9026 = vpop.f32.mrf.mxu0
      %v9027 = vadd.f32 %v8938, %v9026
      %v9028 = vpop.f32.mrf.mxu0
      %v9029 = vadd.f32 %v8940, %v9028
      %9030 = vmatmul.bf16.gmra.mxu0 %v8894
      %v9031 = vpop.f32.mrf.mxu0
      %v9032 = vadd.f32 %v8943, %v9031
      %v9033 = vpop.f32.mrf.mxu0
      %v9034 = vadd.f32 %v8945, %v9033
      %9035 = vmatmul.bf16.gmra.mxu0 %v8896
      %v9036 = vpop.f32.mrf.mxu0
      %v9037 = vadd.f32 %v8948, %v9036
      %v9038 = vpop.f32.mrf.mxu0
      %v9039 = vadd.f32 %v8950, %v9038
      %9040 = vmatmul.bf16.gmra.mxu0 %v8898
      %v9041 = vpop.f32.mrf.mxu0
      %v9042 = vadd.f32 %v8953, %v9041
      %v9043 = vpop.f32.mrf.mxu0
      %v9044 = vadd.f32 %v8955, %v9043
      %9045 = vmatmul.bf16.gmra.mxu0 %v8900
      %v9046 = vpop.f32.mrf.mxu0
      %v9047 = vadd.f32 %v8958, %v9046
      %v9048 = vpop.f32.mrf.mxu0
      %v9049 = vadd.f32 %v8960, %v9048
      %9050 = vmatmul.bf16.gmra.mxu0 %v8902
      %v9051 = vpop.f32.mrf.mxu0
      %v9052 = vadd.f32 %v8963, %v9051
      %v9053 = vpop.f32.mrf.mxu0
      %v9054 = vadd.f32 %v8965, %v9053
      %9055 = vmatmul.bf16.gmra.mxu0 %v8904
      %v9056 = vpop.f32.mrf.mxu0
      %v9057 = vadd.f32 %v8968, %v9056
      %v9058 = vpop.f32.mrf.mxu0
      %v9059 = vadd.f32 %v8970, %v9058
      %9060 = vmatmul.bf16.gmra.mxu0 %v8906
      %v9061 = vpop.f32.mrf.mxu0
      %v9062 = vadd.f32 %v8973, %v9061
      %v9063 = vpop.f32.mrf.mxu0
      %v9064 = vadd.f32 %v8975, %v9063
      %9065 = vmatmul.bf16.gmra.mxu0 %v8908
      %v9066 = vpop.f32.mrf.mxu0
      %v9067 = vadd.f32 %v8978, %v9066
      %v9068 = vpop.f32.mrf.mxu0
      %v9069 = vadd.f32 %v8980, %v9068
      %9070 = vmatmul.bf16.gmra.mxu0 %v8910
      %v9071 = vpop.f32.mrf.mxu0
      %v9072 = vadd.f32 %v8983, %v9071
      %v9073 = vpop.f32.mrf.mxu0
      %v9074 = vadd.f32 %v8985, %v9073
      %9075 = vmatmul.bf16.gmra.mxu0 %v8912
      %v9076 = vpop.f32.mrf.mxu0
      %v9077 = vadd.f32 %v8988, %v9076
      %v9078 = vpop.f32.mrf.mxu0
      %v9079 = vadd.f32 %v8990, %v9078
      %9080 = vmatmul.bf16.gmra.mxu0 %v8914
      %v9081 = vpop.f32.mrf.mxu0
      %v9082 = vadd.f32 %v8993, %v9081
      %v9083 = vpop.f32.mrf.mxu0
      %v9084 = vadd.f32 %v8995, %v9083
      %9085 = vmatmul.bf16.gmra.mxu0 %v8916
      %v9086 = vpop.f32.mrf.mxu0
      %v9087 = vadd.f32 %v8998, %v9086
      %v9088 = vpop.f32.mrf.mxu0
      %v9089 = vadd.f32 %v9000, %v9088
      %9090 = vmatmul.bf16.gmra.mxu0 %v8918
      %v9091 = vpop.f32.mrf.mxu0
      %v9092 = vadd.f32 %v9003, %v9091
      %v9093 = vpop.f32.mrf.mxu0
      %v9094 = vadd.f32 %v9005, %v9093
      %9095 = vmatmul.bf16.gmra.mxu0 %v8920
      %v9096 = vpop.f32.mrf.mxu0
      %v9097 = vadd.f32 %v9008, %v9096
      %v9098 = vpop.f32.mrf.mxu0
      %v9099 = vadd.f32 %v9010, %v9098
      %9100 = vmatmul.bf16.gmra.mxu0 %v8922
      %v9101 = vpop.f32.mrf.mxu0
      %v9102 = vadd.f32 %v9013, %v9101
      %v9103 = vpop.f32.mrf.mxu0
      %v9104 = vadd.f32 %v9015, %v9103
      %9105 = vdwg.mxu0
      %v9122 = vrot.slane %v9032, 7
      %vm9123 = vcmask 1041409
      %v9124 = vsel %vm9123, %v9122, %v9027
      %v9125 = vrot.slane %v9037, 6
      %vm9126 = vcmask 1042434
      %v9127 = vsel %vm9126, %v9125, %v9124
      %v9128 = vrot.slane %v9042, 5
      %vm9129 = vcmask 1043459
      %v9130 = vsel %vm9129, %v9128, %v9127
      %v9131 = vrot.slane %v9047, 4
      %vm9132 = vcmask 1044484
      %v9133 = vsel %vm9132, %v9131, %v9130
      %v9134 = vrot.slane %v9052, 3
      %vm9135 = vcmask 1045509
      %v9136 = vsel %vm9135, %v9134, %v9133
      %v9137 = vrot.slane %v9057, 2
      %vm9138 = vcmask 1046534
      %v9139 = vsel %vm9138, %v9137, %v9136
      %v9140 = vrot.slane %v9062, 1
      %vm9141 = vcmask 1047559
      %v9142 = vsel %vm9141, %v9140, %v9139
      %v9143 = vrot.slane %v9072, 7
      %v9144 = vsel %vm9123, %v9143, %v9067
      %v9145 = vrot.slane %v9077, 6
      %v9146 = vsel %vm9126, %v9145, %v9144
      %v9147 = vrot.slane %v9082, 5
      %v9148 = vsel %vm9129, %v9147, %v9146
      %v9149 = vrot.slane %v9087, 4
      %v9150 = vsel %vm9132, %v9149, %v9148
      %v9151 = vrot.slane %v9092, 3
      %v9152 = vsel %vm9135, %v9151, %v9150
      %v9153 = vrot.slane %v9097, 2
      %v9154 = vsel %vm9138, %v9153, %v9152
      %v9155 = vrot.slane %v9102, 1
      %v9156 = vsel %vm9141, %v9155, %v9154
      %v9159 = vrot.slane %v9027, 1
      %v9160 = vsel %vm9123, %v9032, %v9159
      %v9161 = vrot.slane %v9037, 7
      %v9162 = vsel %vm9126, %v9161, %v9160
      %v9163 = vrot.slane %v9042, 6
      %v9164 = vsel %vm9129, %v9163, %v9162
      %v9165 = vrot.slane %v9047, 5
      %v9166 = vsel %vm9132, %v9165, %v9164
      %v9167 = vrot.slane %v9052, 4
      %v9168 = vsel %vm9135, %v9167, %v9166
      %v9169 = vrot.slane %v9057, 3
      %v9170 = vsel %vm9138, %v9169, %v9168
      %v9171 = vrot.slane %v9062, 2
      %v9172 = vsel %vm9141, %v9171, %v9170
      %v9173 = vrot.slane %v9067, 1
      %v9174 = vsel %vm9123, %v9072, %v9173
      %v9175 = vrot.slane %v9077, 7
      %v9176 = vsel %vm9126, %v9175, %v9174
      %v9177 = vrot.slane %v9082, 6
      %v9178 = vsel %vm9129, %v9177, %v9176
      %v9179 = vrot.slane %v9087, 5
      %v9180 = vsel %vm9132, %v9179, %v9178
      %v9181 = vrot.slane %v9092, 4
      %v9182 = vsel %vm9135, %v9181, %v9180
      %v9183 = vrot.slane %v9097, 3
      %v9184 = vsel %vm9138, %v9183, %v9182
      %v9185 = vrot.slane %v9102, 2
      %v9186 = vsel %vm9141, %v9185, %v9184
      %9187 = vrot.lane.b32.xlu0 %v9172, 16
      %v9188 = vpop.permute.xlu0 %9187
      %9189 = vrot.lane.b32.xlu0 %v9186, 16
      %v9190 = vpop.permute.xlu0 %9189
      %v9193 = vrot.slane %v9027, 2
      %v9194 = vrot.slane %v9032, 1
      %v9195 = vsel %vm9123, %v9194, %v9193
      %v9196 = vsel %vm9126, %v9037, %v9195
      %v9197 = vrot.slane %v9042, 7
      %v9198 = vsel %vm9129, %v9197, %v9196
      %v9199 = vrot.slane %v9047, 6
      %v9200 = vsel %vm9132, %v9199, %v9198
      %v9201 = vrot.slane %v9052, 5
      %v9202 = vsel %vm9135, %v9201, %v9200
      %v9203 = vrot.slane %v9057, 4
      %v9204 = vsel %vm9138, %v9203, %v9202
      %v9205 = vrot.slane %v9062, 3
      %v9206 = vsel %vm9141, %v9205, %v9204
      %v9207 = vrot.slane %v9067, 2
      %v9208 = vrot.slane %v9072, 1
      %v9209 = vsel %vm9123, %v9208, %v9207
      %v9210 = vsel %vm9126, %v9077, %v9209
      %v9211 = vrot.slane %v9082, 7
      %v9212 = vsel %vm9129, %v9211, %v9210
      %v9213 = vrot.slane %v9087, 6
      %v9214 = vsel %vm9132, %v9213, %v9212
      %v9215 = vrot.slane %v9092, 5
      %v9216 = vsel %vm9135, %v9215, %v9214
      %v9217 = vrot.slane %v9097, 4
      %v9218 = vsel %vm9138, %v9217, %v9216
      %v9219 = vrot.slane %v9102, 3
      %v9220 = vsel %vm9141, %v9219, %v9218
      %9221 = vrot.lane.b32.xlu0 %v9206, 32
      %v9222 = vpop.permute.xlu0 %9221
      %9223 = vrot.lane.b32.xlu0 %v9220, 32
      %v9224 = vpop.permute.xlu0 %9223
      %v9227 = vrot.slane %v9027, 3
      %v9228 = vrot.slane %v9032, 2
      %v9229 = vsel %vm9123, %v9228, %v9227
      %v9230 = vrot.slane %v9037, 1
      %v9231 = vsel %vm9126, %v9230, %v9229
      %v9232 = vsel %vm9129, %v9042, %v9231
      %v9233 = vrot.slane %v9047, 7
      %v9234 = vsel %vm9132, %v9233, %v9232
      %v9235 = vrot.slane %v9052, 6
      %v9236 = vsel %vm9135, %v9235, %v9234
      %v9237 = vrot.slane %v9057, 5
      %v9238 = vsel %vm9138, %v9237, %v9236
      %v9239 = vrot.slane %v9062, 4
      %v9240 = vsel %vm9141, %v9239, %v9238
      %v9241 = vrot.slane %v9067, 3
      %v9242 = vrot.slane %v9072, 2
      %v9243 = vsel %vm9123, %v9242, %v9241
      %v9244 = vrot.slane %v9077, 1
      %v9245 = vsel %vm9126, %v9244, %v9243
      %v9246 = vsel %vm9129, %v9082, %v9245
      %v9247 = vrot.slane %v9087, 7
      %v9248 = vsel %vm9132, %v9247, %v9246
      %v9249 = vrot.slane %v9092, 6
      %v9250 = vsel %vm9135, %v9249, %v9248
      %v9251 = vrot.slane %v9097, 5
      %v9252 = vsel %vm9138, %v9251, %v9250
      %v9253 = vrot.slane %v9102, 4
      %v9254 = vsel %vm9141, %v9253, %v9252
      %9255 = vrot.lane.b32.xlu0 %v9240, 48
      %v9256 = vpop.permute.xlu0 %9255
      %9257 = vrot.lane.b32.xlu0 %v9254, 48
      %v9258 = vpop.permute.xlu0 %9257
      %v9261 = vrot.slane %v9027, 4
      %v9262 = vrot.slane %v9032, 3
      %v9263 = vsel %vm9123, %v9262, %v9261
      %v9264 = vrot.slane %v9037, 2
      %v9265 = vsel %vm9126, %v9264, %v9263
      %v9266 = vrot.slane %v9042, 1
      %v9267 = vsel %vm9129, %v9266, %v9265
      %v9268 = vsel %vm9132, %v9047, %v9267
      %v9269 = vrot.slane %v9052, 7
      %v9270 = vsel %vm9135, %v9269, %v9268
      %v9271 = vrot.slane %v9057, 6
      %v9272 = vsel %vm9138, %v9271, %v9270
      %v9273 = vrot.slane %v9062, 5
      %v9274 = vsel %vm9141, %v9273, %v9272
      %v9275 = vrot.slane %v9067, 4
      %v9276 = vrot.slane %v9072, 3
      %v9277 = vsel %vm9123, %v9276, %v9275
      %v9278 = vrot.slane %v9077, 2
      %v9279 = vsel %vm9126, %v9278, %v9277
      %v9280 = vrot.slane %v9082, 1
      %v9281 = vsel %vm9129, %v9280, %v9279
      %v9282 = vsel %vm9132, %v9087, %v9281
      %v9283 = vrot.slane %v9092, 7
      %v9284 = vsel %vm9135, %v9283, %v9282
      %v9285 = vrot.slane %v9097, 6
      %v9286 = vsel %vm9138, %v9285, %v9284
      %v9287 = vrot.slane %v9102, 5
      %v9288 = vsel %vm9141, %v9287, %v9286
      %9289 = vrot.lane.b32.xlu0 %v9274, 64
      %v9290 = vpop.permute.xlu0 %9289
      %9291 = vrot.lane.b32.xlu0 %v9288, 64
      %v9292 = vpop.permute.xlu0 %9291
      %v9295 = vrot.slane %v9027, 5
      %v9296 = vrot.slane %v9032, 4
      %v9297 = vsel %vm9123, %v9296, %v9295
      %v9298 = vrot.slane %v9037, 3
      %v9299 = vsel %vm9126, %v9298, %v9297
      %v9300 = vrot.slane %v9042, 2
      %v9301 = vsel %vm9129, %v9300, %v9299
      %v9302 = vrot.slane %v9047, 1
      %v9303 = vsel %vm9132, %v9302, %v9301
      %v9304 = vsel %vm9135, %v9052, %v9303
      %v9305 = vrot.slane %v9057, 7
      %v9306 = vsel %vm9138, %v9305, %v9304
      %v9307 = vrot.slane %v9062, 6
      %v9308 = vsel %vm9141, %v9307, %v9306
      %v9309 = vrot.slane %v9067, 5
      %v9310 = vrot.slane %v9072, 4
      %v9311 = vsel %vm9123, %v9310, %v9309
      %v9312 = vrot.slane %v9077, 3
      %v9313 = vsel %vm9126, %v9312, %v9311
      %v9314 = vrot.slane %v9082, 2
      %v9315 = vsel %vm9129, %v9314, %v9313
      %v9316 = vrot.slane %v9087, 1
      %v9317 = vsel %vm9132, %v9316, %v9315
      %v9318 = vsel %vm9135, %v9092, %v9317
      %v9319 = vrot.slane %v9097, 7
      %v9320 = vsel %vm9138, %v9319, %v9318
      %v9321 = vrot.slane %v9102, 6
      %v9322 = vsel %vm9141, %v9321, %v9320
      %9323 = vrot.lane.b32.xlu0 %v9308, 80
      %v9324 = vpop.permute.xlu0 %9323
      %9325 = vrot.lane.b32.xlu0 %v9322, 80
      %v9326 = vpop.permute.xlu0 %9325
      %v9329 = vrot.slane %v9027, 6
      %v9330 = vrot.slane %v9032, 5
      %v9331 = vsel %vm9123, %v9330, %v9329
      %v9332 = vrot.slane %v9037, 4
      %v9333 = vsel %vm9126, %v9332, %v9331
      %v9334 = vrot.slane %v9042, 3
      %v9335 = vsel %vm9129, %v9334, %v9333
      %v9336 = vrot.slane %v9047, 2
      %v9337 = vsel %vm9132, %v9336, %v9335
      %v9338 = vrot.slane %v9052, 1
      %v9339 = vsel %vm9135, %v9338, %v9337
      %v9340 = vsel %vm9138, %v9057, %v9339
      %v9341 = vrot.slane %v9062, 7
      %v9342 = vsel %vm9141, %v9341, %v9340
      %v9343 = vrot.slane %v9067, 6
      %v9344 = vrot.slane %v9072, 5
      %v9345 = vsel %vm9123, %v9344, %v9343
      %v9346 = vrot.slane %v9077, 4
      %v9347 = vsel %vm9126, %v9346, %v9345
      %v9348 = vrot.slane %v9082, 3
      %v9349 = vsel %vm9129, %v9348, %v9347
      %v9350 = vrot.slane %v9087, 2
      %v9351 = vsel %vm9132, %v9350, %v9349
      %v9352 = vrot.slane %v9092, 1
      %v9353 = vsel %vm9135, %v9352, %v9351
      %v9354 = vsel %vm9138, %v9097, %v9353
      %v9355 = vrot.slane %v9102, 7
      %v9356 = vsel %vm9141, %v9355, %v9354
      %9357 = vrot.lane.b32.xlu0 %v9342, 96
      %v9358 = vpop.permute.xlu0 %9357
      %9359 = vrot.lane.b32.xlu0 %v9356, 96
      %v9360 = vpop.permute.xlu0 %9359
      %v9363 = vrot.slane %v9027, 7
      %v9364 = vrot.slane %v9032, 6
      %v9365 = vsel %vm9123, %v9364, %v9363
      %v9366 = vrot.slane %v9037, 5
      %v9367 = vsel %vm9126, %v9366, %v9365
      %v9368 = vrot.slane %v9042, 4
      %v9369 = vsel %vm9129, %v9368, %v9367
      %v9370 = vrot.slane %v9047, 3
      %v9371 = vsel %vm9132, %v9370, %v9369
      %v9372 = vrot.slane %v9052, 2
      %v9373 = vsel %vm9135, %v9372, %v9371
      %v9374 = vrot.slane %v9057, 1
      %v9375 = vsel %vm9138, %v9374, %v9373
      %v9376 = vsel %vm9141, %v9062, %v9375
      %v9377 = vrot.slane %v9067, 7
      %v9378 = vrot.slane %v9072, 6
      %v9379 = vsel %vm9123, %v9378, %v9377
      %v9380 = vrot.slane %v9077, 5
      %v9381 = vsel %vm9126, %v9380, %v9379
      %v9382 = vrot.slane %v9082, 4
      %v9383 = vsel %vm9129, %v9382, %v9381
      %v9384 = vrot.slane %v9087, 3
      %v9385 = vsel %vm9132, %v9384, %v9383
      %v9386 = vrot.slane %v9092, 2
      %v9387 = vsel %vm9135, %v9386, %v9385
      %v9388 = vrot.slane %v9097, 1
      %v9389 = vsel %vm9138, %v9388, %v9387
      %v9390 = vsel %vm9141, %v9102, %v9389
      %9391 = vrot.lane.b32.xlu0 %v9376, 112
      %v9392 = vpop.permute.xlu0 %9391
      %9393 = vrot.lane.b32.xlu0 %v9390, 112
      %v9394 = vpop.permute.xlu0 %9393
      %v9413 = vrot.slane %v9034, 7
      %v9414 = vsel %vm9123, %v9413, %v9029
      %v9415 = vrot.slane %v9039, 6
      %v9416 = vsel %vm9126, %v9415, %v9414
      %v9417 = vrot.slane %v9044, 5
      %v9418 = vsel %vm9129, %v9417, %v9416
      %v9419 = vrot.slane %v9049, 4
      %v9420 = vsel %vm9132, %v9419, %v9418
      %v9421 = vrot.slane %v9054, 3
      %v9422 = vsel %vm9135, %v9421, %v9420
      %v9423 = vrot.slane %v9059, 2
      %v9424 = vsel %vm9138, %v9423, %v9422
      %v9425 = vrot.slane %v9064, 1
      %v9426 = vsel %vm9141, %v9425, %v9424
      %v9427 = vrot.slane %v9074, 7
      %v9428 = vsel %vm9123, %v9427, %v9069
      %v9429 = vrot.slane %v9079, 6
      %v9430 = vsel %vm9126, %v9429, %v9428
      %v9431 = vrot.slane %v9084, 5
      %v9432 = vsel %vm9129, %v9431, %v9430
      %v9433 = vrot.slane %v9089, 4
      %v9434 = vsel %vm9132, %v9433, %v9432
      %v9435 = vrot.slane %v9094, 3
      %v9436 = vsel %vm9135, %v9435, %v9434
      %v9437 = vrot.slane %v9099, 2
      %v9438 = vsel %vm9138, %v9437, %v9436
      %v9439 = vrot.slane %v9104, 1
      %v9440 = vsel %vm9141, %v9439, %v9438
      %v9443 = vrot.slane %v9029, 1
      %v9444 = vsel %vm9123, %v9034, %v9443
      %v9445 = vrot.slane %v9039, 7
      %v9446 = vsel %vm9126, %v9445, %v9444
      %v9447 = vrot.slane %v9044, 6
      %v9448 = vsel %vm9129, %v9447, %v9446
      %v9449 = vrot.slane %v9049, 5
      %v9450 = vsel %vm9132, %v9449, %v9448
      %v9451 = vrot.slane %v9054, 4
      %v9452 = vsel %vm9135, %v9451, %v9450
      %v9453 = vrot.slane %v9059, 3
      %v9454 = vsel %vm9138, %v9453, %v9452
      %v9455 = vrot.slane %v9064, 2
      %v9456 = vsel %vm9141, %v9455, %v9454
      %v9457 = vrot.slane %v9069, 1
      %v9458 = vsel %vm9123, %v9074, %v9457
      %v9459 = vrot.slane %v9079, 7
      %v9460 = vsel %vm9126, %v9459, %v9458
      %v9461 = vrot.slane %v9084, 6
      %v9462 = vsel %vm9129, %v9461, %v9460
      %v9463 = vrot.slane %v9089, 5
      %v9464 = vsel %vm9132, %v9463, %v9462
      %v9465 = vrot.slane %v9094, 4
      %v9466 = vsel %vm9135, %v9465, %v9464
      %v9467 = vrot.slane %v9099, 3
      %v9468 = vsel %vm9138, %v9467, %v9466
      %v9469 = vrot.slane %v9104, 2
      %v9470 = vsel %vm9141, %v9469, %v9468
      %9471 = vrot.lane.b32.xlu0 %v9456, 16
      %v9472 = vpop.permute.xlu0 %9471
      %9473 = vrot.lane.b32.xlu0 %v9470, 16
      %v9474 = vpop.permute.xlu0 %9473
      %v9477 = vrot.slane %v9029, 2
      %v9478 = vrot.slane %v9034, 1
      %v9479 = vsel %vm9123, %v9478, %v9477
      %v9480 = vsel %vm9126, %v9039, %v9479
      %v9481 = vrot.slane %v9044, 7
      %v9482 = vsel %vm9129, %v9481, %v9480
      %v9483 = vrot.slane %v9049, 6
      %v9484 = vsel %vm9132, %v9483, %v9482
      %v9485 = vrot.slane %v9054, 5
      %v9486 = vsel %vm9135, %v9485, %v9484
      %v9487 = vrot.slane %v9059, 4
      %v9488 = vsel %vm9138, %v9487, %v9486
      %v9489 = vrot.slane %v9064, 3
      %v9490 = vsel %vm9141, %v9489, %v9488
      %v9491 = vrot.slane %v9069, 2
      %v9492 = vrot.slane %v9074, 1
      %v9493 = vsel %vm9123, %v9492, %v9491
      %v9494 = vsel %vm9126, %v9079, %v9493
      %v9495 = vrot.slane %v9084, 7
      %v9496 = vsel %vm9129, %v9495, %v9494
      %v9497 = vrot.slane %v9089, 6
      %v9498 = vsel %vm9132, %v9497, %v9496
      %v9499 = vrot.slane %v9094, 5
      %v9500 = vsel %vm9135, %v9499, %v9498
      %v9501 = vrot.slane %v9099, 4
      %v9502 = vsel %vm9138, %v9501, %v9500
      %v9503 = vrot.slane %v9104, 3
      %v9504 = vsel %vm9141, %v9503, %v9502
      %9505 = vrot.lane.b32.xlu0 %v9490, 32
      %v9506 = vpop.permute.xlu0 %9505
      %9507 = vrot.lane.b32.xlu0 %v9504, 32
      %v9508 = vpop.permute.xlu0 %9507
      %v9511 = vrot.slane %v9029, 3
      %v9512 = vrot.slane %v9034, 2
      %v9513 = vsel %vm9123, %v9512, %v9511
      %v9514 = vrot.slane %v9039, 1
      %v9515 = vsel %vm9126, %v9514, %v9513
      %v9516 = vsel %vm9129, %v9044, %v9515
      %v9517 = vrot.slane %v9049, 7
      %v9518 = vsel %vm9132, %v9517, %v9516
      %v9519 = vrot.slane %v9054, 6
      %v9520 = vsel %vm9135, %v9519, %v9518
      %v9521 = vrot.slane %v9059, 5
      %v9522 = vsel %vm9138, %v9521, %v9520
      %v9523 = vrot.slane %v9064, 4
      %v9524 = vsel %vm9141, %v9523, %v9522
      %v9525 = vrot.slane %v9069, 3
      %v9526 = vrot.slane %v9074, 2
      %v9527 = vsel %vm9123, %v9526, %v9525
      %v9528 = vrot.slane %v9079, 1
      %v9529 = vsel %vm9126, %v9528, %v9527
      %v9530 = vsel %vm9129, %v9084, %v9529
      %v9531 = vrot.slane %v9089, 7
      %v9532 = vsel %vm9132, %v9531, %v9530
      %v9533 = vrot.slane %v9094, 6
      %v9534 = vsel %vm9135, %v9533, %v9532
      %v9535 = vrot.slane %v9099, 5
      %v9536 = vsel %vm9138, %v9535, %v9534
      %v9537 = vrot.slane %v9104, 4
      %v9538 = vsel %vm9141, %v9537, %v9536
      %9539 = vrot.lane.b32.xlu0 %v9524, 48
      %v9540 = vpop.permute.xlu0 %9539
      %9541 = vrot.lane.b32.xlu0 %v9538, 48
      %v9542 = vpop.permute.xlu0 %9541
      %v9545 = vrot.slane %v9029, 4
      %v9546 = vrot.slane %v9034, 3
      %v9547 = vsel %vm9123, %v9546, %v9545
      %v9548 = vrot.slane %v9039, 2
      %v9549 = vsel %vm9126, %v9548, %v9547
      %v9550 = vrot.slane %v9044, 1
      %v9551 = vsel %vm9129, %v9550, %v9549
      %v9552 = vsel %vm9132, %v9049, %v9551
      %v9553 = vrot.slane %v9054, 7
      %v9554 = vsel %vm9135, %v9553, %v9552
      %v9555 = vrot.slane %v9059, 6
      %v9556 = vsel %vm9138, %v9555, %v9554
      %v9557 = vrot.slane %v9064, 5
      %v9558 = vsel %vm9141, %v9557, %v9556
      %v9559 = vrot.slane %v9069, 4
      %v9560 = vrot.slane %v9074, 3
      %v9561 = vsel %vm9123, %v9560, %v9559
      %v9562 = vrot.slane %v9079, 2
      %v9563 = vsel %vm9126, %v9562, %v9561
      %v9564 = vrot.slane %v9084, 1
      %v9565 = vsel %vm9129, %v9564, %v9563
      %v9566 = vsel %vm9132, %v9089, %v9565
      %v9567 = vrot.slane %v9094, 7
      %v9568 = vsel %vm9135, %v9567, %v9566
      %v9569 = vrot.slane %v9099, 6
      %v9570 = vsel %vm9138, %v9569, %v9568
      %v9571 = vrot.slane %v9104, 5
      %v9572 = vsel %vm9141, %v9571, %v9570
      %9573 = vrot.lane.b32.xlu0 %v9558, 64
      %v9574 = vpop.permute.xlu0 %9573
      %9575 = vrot.lane.b32.xlu0 %v9572, 64
      %v9576 = vpop.permute.xlu0 %9575
      %v9579 = vrot.slane %v9029, 5
      %v9580 = vrot.slane %v9034, 4
      %v9581 = vsel %vm9123, %v9580, %v9579
      %v9582 = vrot.slane %v9039, 3
      %v9583 = vsel %vm9126, %v9582, %v9581
      %v9584 = vrot.slane %v9044, 2
      %v9585 = vsel %vm9129, %v9584, %v9583
      %v9586 = vrot.slane %v9049, 1
      %v9587 = vsel %vm9132, %v9586, %v9585
      %v9588 = vsel %vm9135, %v9054, %v9587
      %v9589 = vrot.slane %v9059, 7
      %v9590 = vsel %vm9138, %v9589, %v9588
      %v9591 = vrot.slane %v9064, 6
      %v9592 = vsel %vm9141, %v9591, %v9590
      %v9593 = vrot.slane %v9069, 5
      %v9594 = vrot.slane %v9074, 4
      %v9595 = vsel %vm9123, %v9594, %v9593
      %v9596 = vrot.slane %v9079, 3
      %v9597 = vsel %vm9126, %v9596, %v9595
      %v9598 = vrot.slane %v9084, 2
      %v9599 = vsel %vm9129, %v9598, %v9597
      %v9600 = vrot.slane %v9089, 1
      %v9601 = vsel %vm9132, %v9600, %v9599
      %v9602 = vsel %vm9135, %v9094, %v9601
      %v9603 = vrot.slane %v9099, 7
      %v9604 = vsel %vm9138, %v9603, %v9602
      %v9605 = vrot.slane %v9104, 6
      %v9606 = vsel %vm9141, %v9605, %v9604
      %9607 = vrot.lane.b32.xlu0 %v9592, 80
      %v9608 = vpop.permute.xlu0 %9607
      %9609 = vrot.lane.b32.xlu0 %v9606, 80
      %v9610 = vpop.permute.xlu0 %9609
      %v9613 = vrot.slane %v9029, 6
      %v9614 = vrot.slane %v9034, 5
      %v9615 = vsel %vm9123, %v9614, %v9613
      %v9616 = vrot.slane %v9039, 4
      %v9617 = vsel %vm9126, %v9616, %v9615
      %v9618 = vrot.slane %v9044, 3
      %v9619 = vsel %vm9129, %v9618, %v9617
      %v9620 = vrot.slane %v9049, 2
      %v9621 = vsel %vm9132, %v9620, %v9619
      %v9622 = vrot.slane %v9054, 1
      %v9623 = vsel %vm9135, %v9622, %v9621
      %v9624 = vsel %vm9138, %v9059, %v9623
      %v9625 = vrot.slane %v9064, 7
      %v9626 = vsel %vm9141, %v9625, %v9624
      %v9627 = vrot.slane %v9069, 6
      %v9628 = vrot.slane %v9074, 5
      %v9629 = vsel %vm9123, %v9628, %v9627
      %v9630 = vrot.slane %v9079, 4
      %v9631 = vsel %vm9126, %v9630, %v9629
      %v9632 = vrot.slane %v9084, 3
      %v9633 = vsel %vm9129, %v9632, %v9631
      %v9634 = vrot.slane %v9089, 2
      %v9635 = vsel %vm9132, %v9634, %v9633
      %v9636 = vrot.slane %v9094, 1
      %v9637 = vsel %vm9135, %v9636, %v9635
      %v9638 = vsel %vm9138, %v9099, %v9637
      %v9639 = vrot.slane %v9104, 7
      %v9640 = vsel %vm9141, %v9639, %v9638
      %9641 = vrot.lane.b32.xlu0 %v9626, 96
      %v9642 = vpop.permute.xlu0 %9641
      %9643 = vrot.lane.b32.xlu0 %v9640, 96
      %v9644 = vpop.permute.xlu0 %9643
      %v9647 = vrot.slane %v9029, 7
      %v9648 = vrot.slane %v9034, 6
      %v9649 = vsel %vm9123, %v9648, %v9647
      %v9650 = vrot.slane %v9039, 5
      %v9651 = vsel %vm9126, %v9650, %v9649
      %v9652 = vrot.slane %v9044, 4
      %v9653 = vsel %vm9129, %v9652, %v9651
      %v9654 = vrot.slane %v9049, 3
      %v9655 = vsel %vm9132, %v9654, %v9653
      %v9656 = vrot.slane %v9054, 2
      %v9657 = vsel %vm9135, %v9656, %v9655
      %v9658 = vrot.slane %v9059, 1
      %v9659 = vsel %vm9138, %v9658, %v9657
      %v9660 = vsel %vm9141, %v9064, %v9659
      %v9661 = vrot.slane %v9069, 7
      %v9662 = vrot.slane %v9074, 6
      %v9663 = vsel %vm9123, %v9662, %v9661
      %v9664 = vrot.slane %v9079, 5
      %v9665 = vsel %vm9126, %v9664, %v9663
      %v9666 = vrot.slane %v9084, 4
      %v9667 = vsel %vm9129, %v9666, %v9665
      %v9668 = vrot.slane %v9089, 3
      %v9669 = vsel %vm9132, %v9668, %v9667
      %v9670 = vrot.slane %v9094, 2
      %v9671 = vsel %vm9135, %v9670, %v9669
      %v9672 = vrot.slane %v9099, 1
      %v9673 = vsel %vm9138, %v9672, %v9671
      %v9674 = vsel %vm9141, %v9104, %v9673
      %9675 = vrot.lane.b32.xlu0 %v9660, 112
      %v9676 = vpop.permute.xlu0 %9675
      %9677 = vrot.lane.b32.xlu0 %v9674, 112
      %v9678 = vpop.permute.xlu0 %9677
      %v9681 = vsel %vm7334, %v9142, %v9188
      %v9682 = vsel %vm7334, %v9156, %v9190
      %v9683 = vsel %vm7400, %v9681, %v9222
      %v9684 = vsel %vm7400, %v9682, %v9224
      %v9685 = vsel %vm7466, %v9683, %v9256
      %v9686 = vsel %vm7466, %v9684, %v9258
      %v9687 = vsel %vm7532, %v9685, %v9290
      %v9688 = vsel %vm7532, %v9686, %v9292
      %v9689 = vsel %vm7598, %v9687, %v9324
      %v9690 = vsel %vm7598, %v9688, %v9326
      %v9691 = vsel %vm7664, %v9689, %v9358
      %v9692 = vsel %vm7664, %v9690, %v9360
      %v9693 = vsel %vm7730, %v9691, %v9392
      %v9694 = vsel %vm7730, %v9692, %v9394
      %v9695 = vsel %vm7334, %v9426, %v9472
      %v9696 = vsel %vm7334, %v9440, %v9474
      %v9697 = vsel %vm7400, %v9695, %v9506
      %v9698 = vsel %vm7400, %v9696, %v9508
      %v9699 = vsel %vm7466, %v9697, %v9540
      %v9700 = vsel %vm7466, %v9698, %v9542
      %v9701 = vsel %vm7532, %v9699, %v9574
      %v9702 = vsel %vm7532, %v9700, %v9576
      %v9703 = vsel %vm7598, %v9701, %v9608
      %v9704 = vsel %vm7598, %v9702, %v9610
      %v9705 = vsel %vm7664, %v9703, %v9642
      %v9706 = vsel %vm7664, %v9704, %v9644
      %v9707 = vsel %vm7730, %v9705, %v9676
      %v9708 = vsel %vm7730, %v9706, %v9678
      %v9709 = vpack.c.bf16 %v9707, %v9693
      %v9710 = vpack.c.bf16 %v9708, %v9694
      %9711 = vst [vmem:[%s195] sm:$0xff] %v9709
      %9712 = vst [vmem:[%s195 + $0x8] sm:$0xff] %v9710
      %v9713 = vsel %vm7334, %v9027, 0.0
      %v9714 = vsel %vm7334, %v9029, 0.0
      %v9715 = vadd.f32 %v9713, %v9714
      %v9716 = vsel %vm7334, %v9032, 0.0
      %v9717 = vadd.f32 %v9715, %v9716
      %v9718 = vsel %vm7334, %v9034, 0.0
      %v9719 = vadd.f32 %v9717, %v9718
      %v9720 = vsel %vm7334, %v9037, 0.0
      %v9721 = vadd.f32 %v9719, %v9720
      %v9722 = vsel %vm7334, %v9039, 0.0
      %v9723 = vadd.f32 %v9721, %v9722
      %v9724 = vsel %vm7334, %v9042, 0.0
      %v9725 = vadd.f32 %v9723, %v9724
      %v9726 = vsel %vm7334, %v9044, 0.0
      %v9727 = vadd.f32 %v9725, %v9726
      %v9728 = vsel %vm7334, %v9047, 0.0
      %v9729 = vadd.f32 %v9727, %v9728
      %v9730 = vsel %vm7334, %v9049, 0.0
      %v9731 = vadd.f32 %v9729, %v9730
      %v9732 = vsel %vm7334, %v9052, 0.0
      %v9733 = vadd.f32 %v9731, %v9732
      %v9734 = vsel %vm7334, %v9054, 0.0
      %v9735 = vadd.f32 %v9733, %v9734
      %v9736 = vsel %vm7334, %v9057, 0.0
      %v9737 = vadd.f32 %v9735, %v9736
      %v9738 = vsel %vm7334, %v9059, 0.0
      %v9739 = vadd.f32 %v9737, %v9738
      %v9740 = vsel %vm7334, %v9062, 0.0
      %v9741 = vadd.f32 %v9739, %v9740
      %v9742 = vsel %vm7334, %v9064, 0.0
      %v9743 = vadd.f32 %v9741, %v9742
      %v9744 = vsel %vm7334, %v9067, 0.0
      %v9745 = vadd.f32 %v9743, %v9744
      %v9746 = vsel %vm7334, %v9069, 0.0
      %v9747 = vadd.f32 %v9745, %v9746
      %v9748 = vsel %vm7334, %v9072, 0.0
      %v9749 = vadd.f32 %v9747, %v9748
      %v9750 = vsel %vm7334, %v9074, 0.0
      %v9751 = vadd.f32 %v9749, %v9750
      %v9752 = vsel %vm7334, %v9077, 0.0
      %v9753 = vadd.f32 %v9751, %v9752
      %v9754 = vsel %vm7334, %v9079, 0.0
      %v9755 = vadd.f32 %v9753, %v9754
      %v9756 = vsel %vm7334, %v9082, 0.0
      %v9757 = vadd.f32 %v9755, %v9756
      %v9758 = vsel %vm7334, %v9084, 0.0
      %v9759 = vadd.f32 %v9757, %v9758
      %v9760 = vsel %vm7334, %v9087, 0.0
      %v9761 = vadd.f32 %v9759, %v9760
      %v9762 = vsel %vm7334, %v9089, 0.0
      %v9763 = vadd.f32 %v9761, %v9762
      %v9764 = vsel %vm7334, %v9092, 0.0
      %v9765 = vadd.f32 %v9763, %v9764
      %v9766 = vsel %vm7334, %v9094, 0.0
      %v9767 = vadd.f32 %v9765, %v9766
      %v9768 = vsel %vm7334, %v9097, 0.0
      %v9769 = vadd.f32 %v9767, %v9768
      %v9770 = vsel %vm7334, %v9099, 0.0
      %v9771 = vadd.f32 %v9769, %v9770
      %v9772 = vsel %vm7334, %v9102, 0.0
      %v9773 = vadd.f32 %v9771, %v9772
      %v9774 = vsel %vm7334, %v9104, 0.0
      %v9775 = vadd.f32 %v9773, %v9774
      %v9776 = vrot.slane %v9775, 4
      %v9777 = vadd.f32 %v9775, %v9776
      %v9778 = vrot.slane %v9777, 2
      %v9779 = vadd.f32 %v9777, %v9778
      %v9780 = vrot.slane %v9779, 1
      %v9781 = vadd.f32 %v9779, %v9780
      %v9782 = vmul.f32 %v9027, %v9027
      %v9783 = vmul.f32 %v9029, %v9029
      %v9784 = vmul.f32 %v9032, %v9032
      %v9785 = vmul.f32 %v9034, %v9034
      %v9786 = vmul.f32 %v9037, %v9037
      %v9787 = vmul.f32 %v9039, %v9039
      %v9788 = vmul.f32 %v9042, %v9042
      %v9789 = vmul.f32 %v9044, %v9044
      %v9790 = vmul.f32 %v9047, %v9047
      %v9791 = vmul.f32 %v9049, %v9049
      %v9792 = vmul.f32 %v9052, %v9052
      %v9793 = vmul.f32 %v9054, %v9054
      %v9794 = vmul.f32 %v9057, %v9057
      %v9795 = vmul.f32 %v9059, %v9059
      %v9796 = vmul.f32 %v9062, %v9062
      %v9797 = vmul.f32 %v9064, %v9064
      %v9798 = vmul.f32 %v9067, %v9067
      %v9799 = vmul.f32 %v9069, %v9069
      %v9800 = vmul.f32 %v9072, %v9072
      %v9801 = vmul.f32 %v9074, %v9074
      %v9802 = vmul.f32 %v9077, %v9077
      %v9803 = vmul.f32 %v9079, %v9079
      %v9804 = vmul.f32 %v9082, %v9082
      %v9805 = vmul.f32 %v9084, %v9084
      %v9806 = vmul.f32 %v9087, %v9087
      %v9807 = vmul.f32 %v9089, %v9089
      %v9808 = vmul.f32 %v9092, %v9092
      %v9809 = vmul.f32 %v9094, %v9094
      %v9810 = vmul.f32 %v9097, %v9097
      %v9811 = vmul.f32 %v9099, %v9099
      %v9812 = vmul.f32 %v9102, %v9102
      %v9813 = vmul.f32 %v9104, %v9104
      %v9814 = vsel %vm7334, %v9782, 0.0
      %v9815 = vsel %vm7334, %v9783, 0.0
      %v9816 = vadd.f32 %v9814, %v9815
      %v9817 = vsel %vm7334, %v9784, 0.0
      %v9818 = vadd.f32 %v9816, %v9817
      %v9819 = vsel %vm7334, %v9785, 0.0
      %v9820 = vadd.f32 %v9818, %v9819
      %v9821 = vsel %vm7334, %v9786, 0.0
      %v9822 = vadd.f32 %v9820, %v9821
      %v9823 = vsel %vm7334, %v9787, 0.0
      %v9824 = vadd.f32 %v9822, %v9823
      %v9825 = vsel %vm7334, %v9788, 0.0
      %v9826 = vadd.f32 %v9824, %v9825
      %v9827 = vsel %vm7334, %v9789, 0.0
      %v9828 = vadd.f32 %v9826, %v9827
      %v9829 = vsel %vm7334, %v9790, 0.0
      %v9830 = vadd.f32 %v9828, %v9829
      %v9831 = vsel %vm7334, %v9791, 0.0
      %v9832 = vadd.f32 %v9830, %v9831
      %v9833 = vsel %vm7334, %v9792, 0.0
      %v9834 = vadd.f32 %v9832, %v9833
      %v9835 = vsel %vm7334, %v9793, 0.0
      %v9836 = vadd.f32 %v9834, %v9835
      %v9837 = vsel %vm7334, %v9794, 0.0
      %v9838 = vadd.f32 %v9836, %v9837
      %v9839 = vsel %vm7334, %v9795, 0.0
      %v9840 = vadd.f32 %v9838, %v9839
      %v9841 = vsel %vm7334, %v9796, 0.0
      %v9842 = vadd.f32 %v9840, %v9841
      %v9843 = vsel %vm7334, %v9797, 0.0
      %v9844 = vadd.f32 %v9842, %v9843
      %v9845 = vsel %vm7334, %v9798, 0.0
      %v9846 = vadd.f32 %v9844, %v9845
      %v9847 = vsel %vm7334, %v9799, 0.0
      %v9848 = vadd.f32 %v9846, %v9847
      %v9849 = vsel %vm7334, %v9800, 0.0
      %v9850 = vadd.f32 %v9848, %v9849
      %v9851 = vsel %vm7334, %v9801, 0.0
      %v9852 = vadd.f32 %v9850, %v9851
      %v9853 = vsel %vm7334, %v9802, 0.0
      %v9854 = vadd.f32 %v9852, %v9853
      %v9855 = vsel %vm7334, %v9803, 0.0
      %v9856 = vadd.f32 %v9854, %v9855
      %v9857 = vsel %vm7334, %v9804, 0.0
      %v9858 = vadd.f32 %v9856, %v9857
      %v9859 = vsel %vm7334, %v9805, 0.0
      %v9860 = vadd.f32 %v9858, %v9859
      %v9861 = vsel %vm7334, %v9806, 0.0
      %v9862 = vadd.f32 %v9860, %v9861
      %v9863 = vsel %vm7334, %v9807, 0.0
      %v9864 = vadd.f32 %v9862, %v9863
      %v9865 = vsel %vm7334, %v9808, 0.0
      %v9866 = vadd.f32 %v9864, %v9865
      %v9867 = vsel %vm7334, %v9809, 0.0
      %v9868 = vadd.f32 %v9866, %v9867
      %v9869 = vsel %vm7334, %v9810, 0.0
      %v9870 = vadd.f32 %v9868, %v9869
      %v9871 = vsel %vm7334, %v9811, 0.0
      %v9872 = vadd.f32 %v9870, %v9871
      %v9873 = vsel %vm7334, %v9812, 0.0
      %v9874 = vadd.f32 %v9872, %v9873
      %v9875 = vsel %vm7334, %v9813, 0.0
      %v9876 = vadd.f32 %v9874, %v9875
      %v9877 = vrot.slane %v9876, 4
      %v9878 = vadd.f32 %v9876, %v9877
      %v9879 = vrot.slane %v9878, 2
      %v9880 = vadd.f32 %v9878, %v9879
      %v9881 = vrot.slane %v9880, 1
      %v9882 = vadd.f32 %v9880, %v9881
      %vm9883 = vcmask 1040384
      %v9884 = vsel %vm9883, %v9781, %v9882
      %p9885 = scmp.eq.s32.totalorder %s16, 0
      // Predicated region
      $region33: #{_lambda_.8} parent=31 // pred_check
        %p9886 = pneg %p9885
      $region34: #{_lambda_.8} parent=31 // pred_check_branch
        %9888 = sbr.rel (%p9886) target = $region36
      $region35: #{_lambda_.8} parent=31 // pred_region
        %vm9889 = vcmask 123904
        %9890 = vst.msk [vmem:[%s4] sm:$0x3] %vm9889, 0.0
      $region36: #{_lambda_.8} parent=31 // pred_fallthru
        _
      %v9891 = vld [vmem:[%s4] sm:$0x3]
      %v9892 = vadd.f32 %v9891, %v9884
      %vm9893 = vcmask 123904
      %9894 = vst.msk [vmem:[%s4] sm:$0x3] %vm9893, %v9892
      %p9895 = scmp.lt.s32.totalorder %s16, 1
      %s9896 = scalar_select %p9895, %s16, 1
      %s9897 = smul.addr %s9896, 4
      %s9898 = smul.addr %s9897, 4
      %s9899 = scalar_lea.vmem %s3, %s9898
      // Predicated region
      $region37: #{_lambda_.8} parent=31 // pred_check
        %p9900 = pneg %p102
      $region38: #{_lambda_.8} parent=31 // pred_check_branch
        %9902 = sbr.rel (%p9900) target = $region40
      $region39: #{_lambda_.8} parent=31 // pred_region
        _
      $region40: #{_lambda_.8} parent=31 // pred_fallthru
        _
      // Predicated region
      $region41: #{_lambda_.8} parent=31 // pred_check
        %p9903 = pneg %p123
      $region42: #{_lambda_.8} parent=31 // pred_check_branch
        %9905 = sbr.rel (%p9903) target = $region44
      $region43: #{_lambda_.8} parent=31 // pred_region
        _
      $region44: #{_lambda_.8} parent=31 // pred_fallthru
        _
      // Predicated region
      $region45: #{_lambda_.8} parent=31 // pred_check
        %p9906 = pneg %p123
      $region46: #{_lambda_.8} parent=31 // pred_check_branch
        %9908 = sbr.rel (%p9906) target = $region48
      $region47: #{_lambda_.8} parent=31 // pred_region
        _
      $region48: #{_lambda_.8} parent=31 // pred_fallthru
        _
    $region32: #{_lambda_.8} parent=5 // pred_fallthru
      _
    %p9909 = scmp.le.s32.totalorder 2, %s11
    // Predicated region
    $region49: #{_lambda_.8} parent=5 // pred_check
      %p9910 = pneg %p9909
    $region50: #{_lambda_.8} parent=5 // pred_check_branch
      %9912 = sbr.rel (%p9910) target = $region52
    $region51: #{_lambda_.8} parent=5 // pred_region
      %s9913 = ssub.s32 %s11, 2
      // Predicated region
      $region53: #{_lambda_.8} parent=51 // pred_check
        %p9914 = pneg %p108
      $region54: #{_lambda_.8} parent=51 // pred_check_branch
        %9916 = sbr.rel (%p9914) target = $region56
      $region55: #{_lambda_.8} parent=51 // pred_region
        %p9917 = scmp.lt.s32.totalorder %s17, 1
        %s9918 = scalar_select %p9917, %s17, 1
        %s9919 = smul.addr %s9918, 4
        %s9920 = smul.addr %s9919, 4
        %s9921 = scalar_lea.vmem %s3, %s9920
      $region56: #{_lambda_.8} parent=51 // pred_fallthru
        _
    $region52: #{_lambda_.8} parent=5 // pred_fallthru
      _
  $region6: #{_lambda_.8} parent=0 // loop_footer
    %s15 = sadd.s32 1, %s11
  $region7: #{_lambda_.8} parent=0 // loop_footer_branch
    %10 = sbr.rel target = $region3
  $region8: #{_lambda_.8} parent=0 // loop_exit
    _

</llo_original>
